<compile_context>
chip_gen: v7x
topology: tpu7x:2x2x1
jax: 0.10.0
libtpu: 0.0.40
codegen_flags: <defaults>
</compile_context>

<pallas_src>
import functools

import jax
import jax.numpy as jnp
from jax.experimental import pallas as pl
from jax.experimental.pallas import tpu as pltpu


def _round_up(x, m):
    return (x + m - 1) // m * m


# Activation blocks here are tiny (tens of KB); keep a comfortable, explicit
# cap that also fits v7x's 64 MiB physical VMEM with headroom.
_COMPILER = pltpu.CompilerParams(
    dimension_semantics=("parallel",),
    vmem_limit_bytes=32 * 1024 * 1024,
)


# ----------------------------------------------------------------------------
# Kernels.  Layout inside a grid step (one batch image):
#   activations: (C, L) with channels on sublanes and the flattened padded
#   spatial axis L on lanes; weights: (CR, taps*Cin) tap-major; taps are
#   formed in-kernel by static lane-slices of the resident block (in-kernel
#   "im2col"), then accumulated with small MXU dots.
# ----------------------------------------------------------------------------
def _upsample_kernel(x_ref, w_ref, b_ref, o_ref, *, cin, wx, l_out):
    # Sub-pixel ConvTranspose2d(k=3,s=2,p=1,op=1): 2x2-tap GEMM over the small
    # HxW input produces all 4 output parities at once (rows = (2a+b)*Cout+c).
    # x_ref: (1, Cin, LPx) zero-padded flattened (Hx=H+1, Wx=W+1) input
    # w_ref: (CR_UP, 4*Cin) packed weights ; b_ref: (CR_UP, 1)
    # o_ref: (1, CR_UP, l_out) with l_out = H*Wx (garbage at col j==W, sliced
    #        away by the wrapper's pixel shuffle)
    x = x_ref[0]
    acc = None
    for dh in range(2):
        for dw in range(2):
            t = 2 * dh + dw
            off = dh * wx + dw
            xs = x[:, off:off + l_out]
            p = jnp.dot(w_ref[:, t * cin:(t + 1) * cin], xs,
                        preferred_element_type=jnp.float32)
            acc = p if acc is None else acc + p
    o_ref[0] = acc + b_ref[...]


def _conv1_kernel(y_ref, s_ref, wy_ref, ws_ref, b_ref, vmask_ref,
                  z_ref, mean_ref, m2_ref, *, c_in, wp, l_out, count, pad_off):
    # Conv2d(2*Cout -> Cout, 3x3, pad=1) with the channel concat folded away:
    # the up-path (y) and skip-path (s) arrive as two refs with split weights.
    # y_ref/s_ref: (1, c_in, LP) PF-layout inputs; wy/ws: (CR, 9*c_in)
    # b_ref: (CR, 1); vmask_ref: (1, l_out) 1.0 at valid output columns
    # z_ref: (1, CR, LP) pre-BN output written directly in PF layout (zero
    #        border) so conv2 can read it with no wrapper pad pass.
    # mean_ref/m2_ref: (1, CR, 1) per-image BatchNorm partial statistics.
    y = y_ref[0]
    s = s_ref[0]
    acc = None
    for di in range(3):
        for dj in range(3):
            t = 3 * di + dj
            off = di * wp + dj
            p = jnp.dot(wy_ref[:, t * c_in:(t + 1) * c_in], y[:, off:off + l_out],
                        preferred_element_type=jnp.float32)
            p = p + jnp.dot(ws_ref[:, t * c_in:(t + 1) * c_in], s[:, off:off + l_out],
                            preferred_element_type=jnp.float32)
            acc = p if acc is None else acc + p
    acc = acc + b_ref[...]
    vmask = vmask_ref[...]
    masked = acc * vmask                       # zero the 2 pad columns per row

    # PF-embed the result (zero border + lane-pad tail, interior at pad_off).
    z_ref[...] = jnp.zeros_like(z_ref)
    z_ref[0, :, pad_off:pad_off + l_out] = masked

    # Per-image (mean, centered M2) over the H2*W2 valid elements -> combined
    # with Chan's formula in the wrapper (avoids E[z^2]-E[z]^2 cancellation).
    m_t = jnp.sum(masked, axis=1, keepdims=True) * (1.0 / count)
    d = (acc - m_t) * vmask
    mean_ref[0] = m_t
    m2_ref[0] = jnp.sum(d * d, axis=1, keepdims=True)


def _conv2_kernel(z1_ref, sc_ref, sh_ref, imask_ref, vmask_ref, w_ref, b_ref,
                  z_ref, mean_ref, m2_ref, *, c_in, wp, l_out, count):
    # Conv2d(Cout -> Cout, 3x3, pad=1) with BN1 scale/shift + ReLU fused into
    # the input path (no standalone BN pass / extra HBM round trip for z1).
    # z1_ref: (1, CR, LP) pre-BN conv1 output (PF layout); sc/sh: (CR, 1)
    # imask_ref: (1, LP) 1.0 at interior positions (re-zeroes the padding after
    #            the affine+ReLU so the conv's zero padding stays exact).
    z1 = z1_ref[0]
    x = jnp.maximum(z1 * sc_ref[...] + sh_ref[...], 0.0) * imask_ref[...]
    acc = None
    for di in range(3):
        for dj in range(3):
            t = 3 * di + dj
            off = di * wp + dj
            p = jnp.dot(w_ref[:, t * c_in:(t + 1) * c_in], x[:, off:off + l_out],
                        preferred_element_type=jnp.float32)
            acc = p if acc is None else acc + p
    acc = acc + b_ref[...]
    vmask = vmask_ref[...]
    masked = acc * vmask
    z_ref[0] = masked
    m_t = jnp.sum(masked, axis=1, keepdims=True) * (1.0 / count)
    d = (acc - m_t) * vmask
    mean_ref[0] = m_t
    m2_ref[0] = jnp.sum(d * d, axis=1, keepdims=True)


def _bn_relu_nchw_kernel(z_ref, sc_ref, sh_ref, o_ref, *, cout, w_out):
    # Final BN2 + ReLU, written directly as NCHW (no wrapper transpose).
    # z_ref: (1, CR, H2, Wp2) conv2 output viewed 4-D; sc/sh: (cout, 1, 1)
    # o_ref: (1, cout, H2, W2)
    v = z_ref[0]
    v = v[:cout, :, :w_out]
    o_ref[0] = jnp.maximum(v * sc_ref[...] + sh_ref[...], 0.0)


# ----------------------------------------------------------------------------
# Weight packing (done once at __init__)
# ----------------------------------------------------------------------------
def _pack_conv_w(w_oihw, rows, cols_per_tap):
    """OIHW conv weight -> (rows, 9*cols_per_tap), tap-major, channel-minor."""
    co, ci, kh, kw = w_oihw.shape
    out = jnp.zeros((rows, kh * kw * cols_per_tap), jnp.float32)
    for di in range(kh):
        for dj in range(kw):
            t = di * kw + dj
            out = out.at[:co, t * cols_per_tap:t * cols_per_tap + ci].set(
                w_oihw[:, :, di, dj])
    return out


def _pack_up_w(up_w, rows):
    """ConvTranspose2d(k=3,s=2,p=1,op=1) weight (Cin,Cout,3,3) -> sub-pixel
    GEMM matrix (rows, 4*Cin): row = (2a+b)*Cout + co (output parity a,b),
    col block = (2dh+dw)*Cin (2x2 input tap)."""
    ci, co, _, _ = up_w.shape
    out = jnp.zeros((rows, 4 * ci), jnp.float32)
    for a in (0, 1):
        for b in (0, 1):
            for dh in (0, 1):
                for dw in (0, 1):
                    kh, kw = a + 1 - 2 * dh, b + 1 - 2 * dw
                    if 0 <= kh < 3 and 0 <= kw < 3:
                        blk = jnp.transpose(up_w[:, :, kh, kw])  # (Cout, Cin)
                        r0 = (2 * a + b) * co
                        c0 = (2 * dh + dw) * ci
                        out = out.at[r0:r0 + co, c0:c0 + ci].set(blk)
    return out


def _col(v, rows):
    return jnp.pad(v, (0, rows - v.shape[0])).reshape(rows, 1).astype(jnp.float32)


# ----------------------------------------------------------------------------
# Up module
# ----------------------------------------------------------------------------
class UpPallas:
    def __init__(self, in_channels, out_channels, kernel_size=3, stride=2,
                 dilation=1, *, key, eps=1e-5):
        assert kernel_size == 3 and stride == 2 and dilation == 1, \
            "This kernel supports k=3, stride=2, dilation=1 (UNet Up)."
        self.cin, self.cout, self.eps = in_channels, out_channels, eps

        def uni(k_, shape, fan_in):
            bound = 1.0 / (fan_in ** 0.5)
            return jax.random.uniform(k_, shape, jnp.float32, -bound, bound)

        ks = jax.random.split(key, 10)
        kk = kernel_size * kernel_size
        # PyTorch-layout parameters (also used by the pure-JAX reference).
        self.up_w = uni(ks[0], (in_channels, out_channels, 3, 3), in_channels * kk)
        self.up_b = uni(ks[1], (out_channels,), in_channels * kk)
        self.c1_w = uni(ks[2], (out_channels, 2 * out_channels, 3, 3), 2 * out_channels * kk)
        self.c1_b = uni(ks[3], (out_channels,), 2 * out_channels * kk)
        self.c2_w = uni(ks[4], (out_channels, out_channels, 3, 3), out_channels * kk)
        self.c2_b = uni(ks[5], (out_channels,), out_channels * kk)
        self.bn1_g = 1.0 + 0.1 * jax.random.normal(ks[6], (out_channels,), jnp.float32)
        self.bn1_b = 0.1 * jax.random.normal(ks[7], (out_channels,), jnp.float32)
        self.bn2_g = 1.0 + 0.1 * jax.random.normal(ks[8], (out_channels,), jnp.float32)
        self.bn2_b = 0.1 * jax.random.normal(ks[9], (out_channels,), jnp.float32)

        co = out_channels
        self.cr = _round_up(co, 8)           # conv output rows, padded to 8
        self.cr_up = _round_up(4 * co, 8)    # 4 parities x Cout

        # Packed (GEMM-ready) parameters.
        self.up_w_p = _pack_up_w(self.up_w, self.cr_up)              # (CR_UP, 4*Cin)
        self.up_b_p = _col(jnp.tile(self.up_b, 4), self.cr_up)
        self.w1y_p = _pack_conv_w(self.c1_w[:, :co], self.cr, co)    # up-path half
        self.w1s_p = _pack_conv_w(self.c1_w[:, co:], self.cr, co)    # skip-path half
        self.b1_p = _col(self.c1_b, self.cr)
        self.w2_p = _pack_conv_w(self.c2_w, self.cr, self.cr)        # cols padded to CR
        self.b2_p = _col(self.c2_b, self.cr)
        self.bn1_g_p = _col(self.bn1_g, self.cr)
        self.bn1_b_p = _col(self.bn1_b, self.cr)
        self.bn2_g_p = _col(self.bn2_g, self.cr)
        self.bn2_b_p = _col(self.bn2_b, self.cr)

    # Chan parallel-variance combine of per-image (mean, M2) partials.
    def _bn_fold(self, mean_t, m2_t, per_count, gamma, beta):
        n = mean_t.shape[0]
        mean = jnp.mean(mean_t, axis=0)                                  # (CR, 1)
        ss = jnp.sum(m2_t, axis=0) + per_count * jnp.sum((mean_t - mean) ** 2, axis=0)
        var = ss / (per_count * n)                                       # biased
        scale = gamma * jax.lax.rsqrt(var + self.eps)
        shift = beta - mean * scale
        return scale, shift

    def __call__(self, x_nchw, skip_nchw):
        f32 = jnp.float32
        x = x_nchw.astype(f32)
        skip = skip_nchw.astype(f32)
        n, cin, h, w = x.shape
        co, cr, cr_up = self.cout, self.cr, self.cr_up

        h2, w2 = 2 * h, 2 * w
        hx, wx = h + 1, w + 1                       # (0,1)-padded input for convT
        hp2, wp2 = h2 + 2, w2 + 2                   # (1,1)-padded conv maps
        l_up = h * wx                               # sub-pixel GEMM output length
        l2 = h2 * wp2                               # width-padded conv output length
        # PF buffer lengths: lane-padded to 128 with room for the largest tap offset.
        lpx = _round_up(hx * wx + wx + 2, 128)
        lp2 = _round_up(hp2 * wp2 + wp2 + 2, 128)
        count = float(h2 * w2)

        # ---- ConvTranspose2d (sub-pixel; no zero-stuffed tensor) -------------
        xpf = jnp.pad(x, ((0, 0), (0, 0), (0, 1), (0, 1))).reshape(n, cin, hx * wx)
        xpf = jnp.pad(xpf, ((0, 0), (0, 0), (0, lpx - hx * wx)))
        up = pl.pallas_call(
            functools.partial(_upsample_kernel, cin=cin, wx=wx, l_out=l_up),
            grid=(n,),
            in_specs=[pl.BlockSpec((1, cin, lpx), lambda i: (i, 0, 0)),
                      pl.BlockSpec((cr_up, 4 * cin), lambda i: (0, 0)),
                      pl.BlockSpec((cr_up, 1), lambda i: (0, 0))],
            out_specs=pl.BlockSpec((1, cr_up, l_up), lambda i: (i, 0, 0)),
            out_shape=jax.ShapeDtypeStruct((n, cr_up, l_up), f32),
            compiler_params=_COMPILER,
        )(xpf, self.up_w_p, self.up_b_p)

        # Parity interleave (pixel shuffle) + PF padding of the up output and the
        # skip tensor.  These are the only wrapper-side data-movement passes left.
        # TODO(synk): fold the parity interleave + pad into the upsample kernel's
        # store (strided lane/sublane stores / pltpu.einshape) to save this pass.
        y = up[:, :4 * co, :].reshape(n, 2, 2, co, h, wx)[..., :w]
        y = jnp.transpose(y, (0, 3, 4, 1, 5, 2)).reshape(n, co, h2, w2)
        ypf = jnp.pad(y, ((0, 0), (0, 0), (1, 1), (1, 1))).reshape(n, co, hp2 * wp2)
        ypf = jnp.pad(ypf, ((0, 0), (0, 0), (0, lp2 - hp2 * wp2)))
        spf = jnp.pad(skip, ((0, 0), (0, 0), (1, 1), (1, 1))).reshape(n, co, hp2 * wp2)
        spf = jnp.pad(spf, ((0, 0), (0, 0), (0, lp2 - hp2 * wp2)))

        # Precomputed masks (tiny, resident in VMEM).
        vmask = (jnp.arange(l2) % wp2 < w2).astype(f32).reshape(1, l2)
        im2d = jnp.zeros((hp2, wp2), f32).at[1:1 + h2, 1:1 + w2].set(1.0)
        imask = jnp.pad(im2d.reshape(1, hp2 * wp2), ((0, 0), (0, lp2 - hp2 * wp2)))

        # ---- conv1 (concat folded into two input refs) + BN1 partial stats ---
        z1pf, mean1_t, m2_1_t = pl.pallas_call(
            functools.partial(_conv1_kernel, c_in=co, wp=wp2, l_out=l2,
                              count=count, pad_off=wp2 + 1),
            grid=(n,),
            in_specs=[pl.BlockSpec((1, co, lp2), lambda i: (i, 0, 0)),
                      pl.BlockSpec((1, co, lp2), lambda i: (i, 0, 0)),
                      pl.BlockSpec((cr, 9 * co), lambda i: (0, 0)),
                      pl.BlockSpec((cr, 9 * co), lambda i: (0, 0)),
                      pl.BlockSpec((cr, 1), lambda i: (0, 0)),
                      pl.BlockSpec((1, l2), lambda i: (0, 0))],
            out_specs=(pl.BlockSpec((1, cr, lp2), lambda i: (i, 0, 0)),
                       pl.BlockSpec((1, cr, 1), lambda i: (i, 0, 0)),
                       pl.BlockSpec((1, cr, 1), lambda i: (i, 0, 0))),
            out_shape=(jax.ShapeDtypeStruct((n, cr, lp2), f32),
                       jax.ShapeDtypeStruct((n, cr, 1), f32),
                       jax.ShapeDtypeStruct((n, cr, 1), f32)),
            compiler_params=_COMPILER,
        )(ypf, spf, self.w1y_p, self.w1s_p, self.b1_p, vmask)

        scale1, shift1 = self._bn_fold(mean1_t, m2_1_t, count,
                                       self.bn1_g_p, self.bn1_b_p)

        # ---- conv2 with BN1+ReLU fused on the input path + BN2 partial stats -
        z2, mean2_t, m2_2_t = pl.pallas_call(
            functools.partial(_conv2_kernel, c_in=cr, wp=wp2, l_out=l2, count=count),
            grid=(n,),
            in_specs=[pl.BlockSpec((1, cr, lp2), lambda i: (i, 0, 0)),
                      pl.BlockSpec((cr, 1), lambda i: (0, 0)),
                      pl.BlockSpec((cr, 1), lambda i: (0, 0)),
                      pl.BlockSpec((1, lp2), lambda i: (0, 0)),
                      pl.BlockSpec((1, l2), lambda i: (0, 0)),
                      pl.BlockSpec((cr, 9 * cr), lambda i: (0, 0)),
                      pl.BlockSpec((cr, 1), lambda i: (0, 0))],
            out_specs=(pl.BlockSpec((1, cr, l2), lambda i: (i, 0, 0)),
                       pl.BlockSpec((1, cr, 1), lambda i: (i, 0, 0)),
                       pl.BlockSpec((1, cr, 1), lambda i: (i, 0, 0))),
            out_shape=(jax.ShapeDtypeStruct((n, cr, l2), f32),
                       jax.ShapeDtypeStruct((n, cr, 1), f32),
                       jax.ShapeDtypeStruct((n, cr, 1), f32)),
            compiler_params=_COMPILER,
        )(z1pf, scale1, shift1, imask, vmask, self.w2_p, self.b2_p)

        scale2, shift2 = self._bn_fold(mean2_t, m2_2_t, count,
                                       self.bn2_g_p, self.bn2_b_p)

        # ---- final BN2 + ReLU, written directly in NCHW ----------------------
        z2_4d = z2.reshape(n, cr, h2, wp2)
        out = pl.pallas_call(
            functools.partial(_bn_relu_nchw_kernel, cout=co, w_out=w2),
            grid=(n,),
            in_specs=[pl.BlockSpec((1, cr, h2, wp2), lambda i: (i, 0, 0, 0)),
                      pl.BlockSpec((co, 1, 1), lambda i: (0, 0, 0)),
                      pl.BlockSpec((co, 1, 1), lambda i: (0, 0, 0))],
            out_specs=pl.BlockSpec((1, co, h2, w2), lambda i: (i, 0, 0, 0)),
            out_shape=jax.ShapeDtypeStruct((n, co, h2, w2), f32),
            compiler_params=_COMPILER,
        )(z2_4d, scale2[:co].reshape(co, 1, 1), shift2[:co].reshape(co, 1, 1))
        return out

    # ---------------- pure-JAX reference (for validation) ----------------
    def reference(self, x_nchw, skip_nchw, eps=1e-5):
        k, s = 3, 2
        w_conv = jnp.transpose(self.up_w[:, :, ::-1, ::-1], (1, 0, 2, 3))  # OIHW
        y = jax.lax.conv_general_dilated(
            x_nchw, w_conv, window_strides=(1, 1),
            padding=[(k - 2, k - 1), (k - 2, k - 1)],
            lhs_dilation=(s, s),
            dimension_numbers=("NCHW", "OIHW", "NCHW"))
        y = y + self.up_b.reshape(1, -1, 1, 1)

        cat = jnp.concatenate([y, skip_nchw], axis=1)

        def conv_bn_relu(z, w, b, g, be):
            z = jax.lax.conv_general_dilated(
                z, w, window_strides=(1, 1), padding=[(1, 1), (1, 1)],
                dimension_numbers=("NCHW", "OIHW", "NCHW"))
            z = z + b.reshape(1, -1, 1, 1)
            mean = z.mean(axis=(0, 2, 3), keepdims=True)
            var = ((z - mean) ** 2).mean(axis=(0, 2, 3), keepdims=True)
            z = (z - mean) * jax.lax.rsqrt(var + eps)
            z = z * g.reshape(1, -1, 1, 1) + be.reshape(1, -1, 1, 1)
            return jnp.maximum(z, 0.0)

        h1 = conv_bn_relu(cat, self.c1_w, self.c1_b, self.bn1_g, self.bn1_b)
        h2 = conv_bn_relu(h1, self.c2_w, self.c2_b, self.bn2_g, self.bn2_b)
        return h2


# ----------------------------------------------------------------------------
if __name__ == "__main__":
    key = jax.random.PRNGKey(0)
    in_channels, out_channels = 8, 4
    up = UpPallas(in_channels, out_channels, kernel_size=3, stride=2,
                  dilation=1, key=key)

    kx, ksk = jax.random.split(jax.random.fold_in(key, 123))
    x = jax.random.normal(kx, (2, in_channels, 8, 8), jnp.float32)         # NCHW
    skip = jax.random.normal(ksk, (2, out_channels, 16, 16), jnp.float32)  # NCHW

    fwd = jax.jit(up.__call__)
    out = jax.block_until_ready(fwd(x, skip))

    assert out.shape == (2, out_channels, 16, 16), out.shape
    ref = up.reference(x, skip)
    err = float(jnp.max(jnp.abs(out - ref)))
    assert jnp.allclose(out, ref, atol=1e-3, rtol=1e-3), f"max abs err {err}"

    print("KERNEL_OK")
</pallas_src>

<mosaic_0001>
module attributes {stable_mosaic.version = 11 : i64} {
  func.func @_upsample_kernel(%arg0: i32, %arg1: memref<1x8x128xf32, #tpu.memory_space<vmem>>, %arg2: memref<16x32xf32, #tpu.memory_space<vmem>>, %arg3: memref<16x1xf32, #tpu.memory_space<vmem>>, %arg4: memref<1x16x72xf32, #tpu.memory_space<vmem>>) attributes {dimension_semantics = [#tpu.dimension_semantics<parallel>], iteration_bounds = array<i64: 2>, scalar_prefetch = 0 : i64, scratch_operands = 0 : i64, tpu.core_type = #tpu.core_type<tc>, window_params = [{transform_indices = @transform_0, window_bounds = array<i64: 1, 8, 128>}, {pipeline_mode = #tpu.pipeline_mode<synchronous>, transform_indices = @transform_1, window_bounds = array<i64: 16, 32>}, {pipeline_mode = #tpu.pipeline_mode<synchronous>, transform_indices = @transform_2, window_bounds = array<i64: 16, 1>}, {transform_indices = @transform_3, window_bounds = array<i64: 1, 16, 72>}]} {
    %c0 = arith.constant 0 : index
    %c0_0 = arith.constant 0 : index
    %c0_1 = arith.constant 0 : index
    %0 = vector.load %arg1[%c0, %c0_0, %c0_1] : memref<1x8x128xf32, #tpu.memory_space<vmem>>, vector<1x8x128xf32>
    %1 = vector.shape_cast %0 : vector<1x8x128xf32> to vector<8x128xf32>
    %2 = vector.extract_strided_slice %1 {offsets = [0, 0], sizes = [8, 72], strides = [1, 1]} : vector<8x128xf32> to vector<8x72xf32>
    %c0_2 = arith.constant 0 : index
    %c0_3 = arith.constant 0 : index
    %3 = vector.load %arg2[%c0_2, %c0_3] : memref<16x32xf32, #tpu.memory_space<vmem>>, vector<16x8xf32>
    %cst = arith.constant dense<0.000000e+00> : vector<16x72xf32>
    %4 = tpu.matmul %3, %2, %cst {dimension_numbers = #tpu.dot_dimension_numbers<[1], [0], [0], [1], [0, 0, 1, 1], [], []>} : vector<16x8xf32>, vector<8x72xf32>, vector<16x72xf32> -> vector<16x72xf32>
    %5 = vector.extract_strided_slice %1 {offsets = [0, 1], sizes = [8, 72], strides = [1, 1]} : vector<8x128xf32> to vector<8x72xf32>
    %c0_4 = arith.constant 0 : index
    %c8 = arith.constant 8 : index
    %6 = vector.load %arg2[%c0_4, %c8] : memref<16x32xf32, #tpu.memory_space<vmem>>, vector<16x8xf32>
    %cst_5 = arith.constant dense<0.000000e+00> : vector<16x72xf32>
    %7 = tpu.matmul %6, %5, %cst_5 {dimension_numbers = #tpu.dot_dimension_numbers<[1], [0], [0], [1], [0, 0, 1, 1], [], []>} : vector<16x8xf32>, vector<8x72xf32>, vector<16x72xf32> -> vector<16x72xf32>
    %8 = arith.addf %4, %7 : vector<16x72xf32>
    %9 = vector.extract_strided_slice %1 {offsets = [0, 9], sizes = [8, 72], strides = [1, 1]} : vector<8x128xf32> to vector<8x72xf32>
    %c0_6 = arith.constant 0 : index
    %c16 = arith.constant 16 : index
    %10 = vector.load %arg2[%c0_6, %c16] : memref<16x32xf32, #tpu.memory_space<vmem>>, vector<16x8xf32>
    %cst_7 = arith.constant dense<0.000000e+00> : vector<16x72xf32>
    %11 = tpu.matmul %10, %9, %cst_7 {dimension_numbers = #tpu.dot_dimension_numbers<[1], [0], [0], [1], [0, 0, 1, 1], [], []>} : vector<16x8xf32>, vector<8x72xf32>, vector<16x72xf32> -> vector<16x72xf32>
    %12 = arith.addf %8, %11 : vector<16x72xf32>
    %13 = vector.extract_strided_slice %1 {offsets = [0, 10], sizes = [8, 72], strides = [1, 1]} : vector<8x128xf32> to vector<8x72xf32>
    %c0_8 = arith.constant 0 : index
    %c24 = arith.constant 24 : index
    %14 = vector.load %arg2[%c0_8, %c24] : memref<16x32xf32, #tpu.memory_space<vmem>>, vector<16x8xf32>
    %cst_9 = arith.constant dense<0.000000e+00> : vector<16x72xf32>
    %15 = tpu.matmul %14, %13, %cst_9 {dimension_numbers = #tpu.dot_dimension_numbers<[1], [0], [0], [1], [0, 0, 1, 1], [], []>} : vector<16x8xf32>, vector<8x72xf32>, vector<16x72xf32> -> vector<16x72xf32>
    %16 = arith.addf %12, %15 : vector<16x72xf32>
    %c0_10 = arith.constant 0 : index
    %c0_11 = arith.constant 0 : index
    %17 = vector.load %arg3[%c0_10, %c0_11] : memref<16x1xf32, #tpu.memory_space<vmem>>, vector<16x1xf32>
    %18 = vector.broadcast %17 : vector<16x1xf32> to vector<16x72xf32>
    %19 = arith.addf %16, %18 : vector<16x72xf32>
    %c0_12 = arith.constant 0 : index
    %c0_13 = arith.constant 0 : index
    %c0_14 = arith.constant 0 : index
    %20 = vector.load %arg4[%c0_12, %c0_13, %c0_14] : memref<1x16x72xf32, #tpu.memory_space<vmem>>, vector<1x16x72xf32>
    %21 = vector.shape_cast %20 : vector<1x16x72xf32> to vector<16x72xf32>
    %22 = vector.shape_cast %19 : vector<16x72xf32> to vector<1x16x72xf32>
    tpu.vector_store %arg4[%c0_12, %c0_13, %c0_14], %22 {strides = array<i32>} : memref<1x16x72xf32, #tpu.memory_space<vmem>>, vector<1x16x72xf32>,
    return
  }
  func.func @transform_0(%arg0: i32) -> (i32, i32, i32) {
    %c0_i32 = arith.constant 0 : i32
    %c0_i32_0 = arith.constant 0 : i32
    %c0_i32_1 = arith.constant 0 : i32
    return %arg0, %c0_i32, %c0_i32_0 : i32, i32, i32
  }
  func.func @transform_1(%arg0: i32) -> (i32, i32) {
    %c0_i32 = arith.constant 0 : i32
    %c0_i32_0 = arith.constant 0 : i32
    %c0_i32_1 = arith.constant 0 : i32
    return %c0_i32, %c0_i32_0 : i32, i32
  }
  func.func @transform_2(%arg0: i32) -> (i32, i32) {
    %c0_i32 = arith.constant 0 : i32
    %c0_i32_0 = arith.constant 0 : i32
    %c0_i32_1 = arith.constant 0 : i32
    return %c0_i32, %c0_i32_0 : i32, i32
  }
  func.func @transform_3(%arg0: i32) -> (i32, i32, i32) {
    %c0_i32 = arith.constant 0 : i32
    %c0_i32_0 = arith.constant 0 : i32
    %c0_i32_1 = arith.constant 0 : i32
    return %arg0, %c0_i32, %c0_i32_0 : i32, i32, i32
  }
}

module attributes {stable_mosaic.version = 11 : i64} {
  func.func @_conv1_kernel(%arg0: i32, %arg1: memref<1x4x384xf32, #tpu.memory_space<vmem>>, %arg2: memref<1x4x384xf32, #tpu.memory_space<vmem>>, %arg3: memref<8x36xf32, #tpu.memory_space<vmem>>, %arg4: memref<8x36xf32, #tpu.memory_space<vmem>>, %arg5: memref<8x1xf32, #tpu.memory_space<vmem>>, %arg6: memref<1x288xf32, #tpu.memory_space<vmem>>, %arg7: memref<1x8x384xf32, #tpu.memory_space<vmem>>, %arg8: memref<1x8x1xf32, #tpu.memory_space<vmem>>, %arg9: memref<1x8x1xf32, #tpu.memory_space<vmem>>) attributes {dimension_semantics = [#tpu.dimension_semantics<parallel>], iteration_bounds = array<i64: 2>, scalar_prefetch = 0 : i64, scratch_operands = 0 : i64, tpu.core_type = #tpu.core_type<tc>, window_params = [{transform_indices = @transform_0, window_bounds = array<i64: 1, 4, 384>}, {transform_indices = @transform_1, window_bounds = array<i64: 1, 4, 384>}, {pipeline_mode = #tpu.pipeline_mode<synchronous>, transform_indices = @transform_2, window_bounds = array<i64: 8, 36>}, {pipeline_mode = #tpu.pipeline_mode<synchronous>, transform_indices = @transform_3, window_bounds = array<i64: 8, 36>}, {pipeline_mode = #tpu.pipeline_mode<synchronous>, transform_indices = @transform_4, window_bounds = array<i64: 8, 1>}, {pipeline_mode = #tpu.pipeline_mode<synchronous>, transform_indices = @transform_5, window_bounds = array<i64: 1, 288>}, {transform_indices = @transform_6, window_bounds = array<i64: 1, 8, 384>}, {transform_indices = @transform_7, window_bounds = array<i64: 1, 8, 1>}, {transform_indices = @transform_8, window_bounds = array<i64: 1, 8, 1>}]} {
    %c0 = arith.constant 0 : index
    %c0_0 = arith.constant 0 : index
    %c0_1 = arith.constant 0 : index
    %0 = vector.load %arg1[%c0, %c0_0, %c0_1] : memref<1x4x384xf32, #tpu.memory_space<vmem>>, vector<1x4x384xf32>
    %1 = vector.shape_cast %0 : vector<1x4x384xf32> to vector<4x384xf32>
    %c0_2 = arith.constant 0 : index
    %c0_3 = arith.constant 0 : index
    %c0_4 = arith.constant 0 : index
    %2 = vector.load %arg2[%c0_2, %c0_3, %c0_4] : memref<1x4x384xf32, #tpu.memory_space<vmem>>, vector<1x4x384xf32>
    %3 = vector.shape_cast %2 : vector<1x4x384xf32> to vector<4x384xf32>
    %c0_5 = arith.constant 0 : index
    %c0_6 = arith.constant 0 : index
    %4 = vector.load %arg3[%c0_5, %c0_6] : memref<8x36xf32, #tpu.memory_space<vmem>>, vector<8x4xf32>
    %5 = vector.extract_strided_slice %1 {offsets = [0, 0], sizes = [4, 288], strides = [1, 1]} : vector<4x384xf32> to vector<4x288xf32>
    %cst = arith.constant dense<0.000000e+00> : vector<8x288xf32>
    %6 = tpu.matmul %4, %5, %cst {dimension_numbers = #tpu.dot_dimension_numbers<[1], [0], [0], [1], [0, 0, 1, 1], [], []>} : vector<8x4xf32>, vector<4x288xf32>, vector<8x288xf32> -> vector<8x288xf32>
    %c0_7 = arith.constant 0 : index
    %c0_8 = arith.constant 0 : index
    %7 = vector.load %arg4[%c0_7, %c0_8] : memref<8x36xf32, #tpu.memory_space<vmem>>, vector<8x4xf32>
    %8 = vector.extract_strided_slice %3 {offsets = [0, 0], sizes = [4, 288], strides = [1, 1]} : vector<4x384xf32> to vector<4x288xf32>
    %cst_9 = arith.constant dense<0.000000e+00> : vector<8x288xf32>
    %9 = tpu.matmul %7, %8, %cst_9 {dimension_numbers = #tpu.dot_dimension_numbers<[1], [0], [0], [1], [0, 0, 1, 1], [], []>} : vector<8x4xf32>, vector<4x288xf32>, vector<8x288xf32> -> vector<8x288xf32>
    %10 = arith.addf %6, %9 : vector<8x288xf32>
    %c0_10 = arith.constant 0 : index
    %c4 = arith.constant 4 : index
    %11 = vector.load %arg3[%c0_10, %c4] : memref<8x36xf32, #tpu.memory_space<vmem>>, vector<8x4xf32>
    %12 = vector.extract_strided_slice %1 {offsets = [0, 1], sizes = [4, 288], strides = [1, 1]} : vector<4x384xf32> to vector<4x288xf32>
    %cst_11 = arith.constant dense<0.000000e+00> : vector<8x288xf32>
    %13 = tpu.matmul %11, %12, %cst_11 {dimension_numbers = #tpu.dot_dimension_numbers<[1], [0], [0], [1], [0, 0, 1, 1], [], []>} : vector<8x4xf32>, vector<4x288xf32>, vector<8x288xf32> -> vector<8x288xf32>
    %c0_12 = arith.constant 0 : index
    %c4_13 = arith.constant 4 : index
    %14 = vector.load %arg4[%c0_12, %c4_13] : memref<8x36xf32, #tpu.memory_space<vmem>>, vector<8x4xf32>
    %15 = vector.extract_strided_slice %3 {offsets = [0, 1], sizes = [4, 288], strides = [1, 1]} : vector<4x384xf32> to vector<4x288xf32>
    %cst_14 = arith.constant dense<0.000000e+00> : vector<8x288xf32>
    %16 = tpu.matmul %14, %15, %cst_14 {dimension_numbers = #tpu.dot_dimension_numbers<[1], [0], [0], [1], [0, 0, 1, 1], [], []>} : vector<8x4xf32>, vector<4x288xf32>, vector<8x288xf32> -> vector<8x288xf32>
    %17 = arith.addf %13, %16 : vector<8x288xf32>
    %18 = arith.addf %10, %17 : vector<8x288xf32>
    %c0_15 = arith.constant 0 : index
    %c8 = arith.constant 8 : index
    %19 = vector.load %arg3[%c0_15, %c8] : memref<8x36xf32, #tpu.memory_space<vmem>>, vector<8x4xf32>
    %20 = vector.extract_strided_slice %1 {offsets = [0, 2], sizes = [4, 288], strides = [1, 1]} : vector<4x384xf32> to vector<4x288xf32>
    %cst_16 = arith.constant dense<0.000000e+00> : vector<8x288xf32>
    %21 = tpu.matmul %19, %20, %cst_16 {dimension_numbers = #tpu.dot_dimension_numbers<[1], [0], [0], [1], [0, 0, 1, 1], [], []>} : vector<8x4xf32>, vector<4x288xf32>, vector<8x288xf32> -> vector<8x288xf32>
    %c0_17 = arith.constant 0 : index
    %c8_18 = arith.constant 8 : index
    %22 = vector.load %arg4[%c0_17, %c8_18] : memref<8x36xf32, #tpu.memory_space<vmem>>, vector<8x4xf32>
    %23 = vector.extract_strided_slice %3 {offsets = [0, 2], sizes = [4, 288], strides = [1, 1]} : vector<4x384xf32> to vector<4x288xf32>
    %cst_19 = arith.constant dense<0.000000e+00> : vector<8x288xf32>
    %24 = tpu.matmul %22, %23, %cst_19 {dimension_numbers = #tpu.dot_dimension_numbers<[1], [0], [0], [1], [0, 0, 1, 1], [], []>} : vector<8x4xf32>, vector<4x288xf32>, vector<8x288xf32> -> vector<8x288xf32>
    %25 = arith.addf %21, %24 : vector<8x288xf32>
    %26 = arith.addf %18, %25 : vector<8x288xf32>
    %c0_20 = arith.constant 0 : index
    %c12 = arith.constant 12 : index
    %27 = vector.load %arg3[%c0_20, %c12] : memref<8x36xf32, #tpu.memory_space<vmem>>, vector<8x4xf32>
    %28 = vector.extract_strided_slice %1 {offsets = [0, 18], sizes = [4, 288], strides = [1, 1]} : vector<4x384xf32> to vector<4x288xf32>
    %cst_21 = arith.constant dense<0.000000e+00> : vector<8x288xf32>
    %29 = tpu.matmul %27, %28, %cst_21 {dimension_numbers = #tpu.dot_dimension_numbers<[1], [0], [0], [1], [0, 0, 1, 1], [], []>} : vector<8x4xf32>, vector<4x288xf32>, vector<8x288xf32> -> vector<8x288xf32>
    %c0_22 = arith.constant 0 : index
    %c12_23 = arith.constant 12 : index
    %30 = vector.load %arg4[%c0_22, %c12_23] : memref<8x36xf32, #tpu.memory_space<vmem>>, vector<8x4xf32>
    %31 = vector.extract_strided_slice %3 {offsets = [0, 18], sizes = [4, 288], strides = [1, 1]} : vector<4x384xf32> to vector<4x288xf32>
    %cst_24 = arith.constant dense<0.000000e+00> : vector<8x288xf32>
    %32 = tpu.matmul %30, %31, %cst_24 {dimension_numbers = #tpu.dot_dimension_numbers<[1], [0], [0], [1], [0, 0, 1, 1], [], []>} : vector<8x4xf32>, vector<4x288xf32>, vector<8x288xf32> -> vector<8x288xf32>
    %33 = arith.addf %29, %32 : vector<8x288xf32>
    %34 = arith.addf %26, %33 : vector<8x288xf32>
    %c0_25 = arith.constant 0 : index
    %c16 = arith.constant 16 : index
    %35 = vector.load %arg3[%c0_25, %c16] : memref<8x36xf32, #tpu.memory_space<vmem>>, vector<8x4xf32>
    %36 = vector.extract_strided_slice %1 {offsets = [0, 19], sizes = [4, 288], strides = [1, 1]} : vector<4x384xf32> to vector<4x288xf32>
    %cst_26 = arith.constant dense<0.000000e+00> : vector<8x288xf32>
    %37 = tpu.matmul %35, %36, %cst_26 {dimension_numbers = #tpu.dot_dimension_numbers<[1], [0], [0], [1], [0, 0, 1, 1], [], []>} : vector<8x4xf32>, vector<4x288xf32>, vector<8x288xf32> -> vector<8x288xf32>
    %c0_27 = arith.constant 0 : index
    %c16_28 = arith.constant 16 : index
    %38 = vector.load %arg4[%c0_27, %c16_28] : memref<8x36xf32, #tpu.memory_space<vmem>>, vector<8x4xf32>
    %39 = vector.extract_strided_slice %3 {offsets = [0, 19], sizes = [4, 288], strides = [1, 1]} : vector<4x384xf32> to vector<4x288xf32>
    %cst_29 = arith.constant dense<0.000000e+00> : vector<8x288xf32>
    %40 = tpu.matmul %38, %39, %cst_29 {dimension_numbers = #tpu.dot_dimension_numbers<[1], [0], [0], [1], [0, 0, 1, 1], [], []>} : vector<8x4xf32>, vector<4x288xf32>, vector<8x288xf32> -> vector<8x288xf32>
    %41 = arith.addf %37, %40 : vector<8x288xf32>
    %42 = arith.addf %34, %41 : vector<8x288xf32>
    %c0_30 = arith.constant 0 : index
    %c20 = arith.constant 20 : index
    %43 = vector.load %arg3[%c0_30, %c20] : memref<8x36xf32, #tpu.memory_space<vmem>>, vector<8x4xf32>
    %44 = vector.extract_strided_slice %1 {offsets = [0, 20], sizes = [4, 288], strides = [1, 1]} : vector<4x384xf32> to vector<4x288xf32>
    %cst_31 = arith.constant dense<0.000000e+00> : vector<8x288xf32>
    %45 = tpu.matmul %43, %44, %cst_31 {dimension_numbers = #tpu.dot_dimension_numbers<[1], [0], [0], [1], [0, 0, 1, 1], [], []>} : vector<8x4xf32>, vector<4x288xf32>, vector<8x288xf32> -> vector<8x288xf32>
    %c0_32 = arith.constant 0 : index
    %c20_33 = arith.constant 20 : index
    %46 = vector.load %arg4[%c0_32, %c20_33] : memref<8x36xf32, #tpu.memory_space<vmem>>, vector<8x4xf32>
    %47 = vector.extract_strided_slice %3 {offsets = [0, 20], sizes = [4, 288], strides = [1, 1]} : vector<4x384xf32> to vector<4x288xf32>
    %cst_34 = arith.constant dense<0.000000e+00> : vector<8x288xf32>
    %48 = tpu.matmul %46, %47, %cst_34 {dimension_numbers = #tpu.dot_dimension_numbers<[1], [0], [0], [1], [0, 0, 1, 1], [], []>} : vector<8x4xf32>, vector<4x288xf32>, vector<8x288xf32> -> vector<8x288xf32>
    %49 = arith.addf %45, %48 : vector<8x288xf32>
    %50 = arith.addf %42, %49 : vector<8x288xf32>
    %c0_35 = arith.constant 0 : index
    %c24 = arith.constant 24 : index
    %51 = vector.load %arg3[%c0_35, %c24] : memref<8x36xf32, #tpu.memory_space<vmem>>, vector<8x4xf32>
    %52 = vector.extract_strided_slice %1 {offsets = [0, 36], sizes = [4, 288], strides = [1, 1]} : vector<4x384xf32> to vector<4x288xf32>
    %cst_36 = arith.constant dense<0.000000e+00> : vector<8x288xf32>
    %53 = tpu.matmul %51, %52, %cst_36 {dimension_numbers = #tpu.dot_dimension_numbers<[1], [0], [0], [1], [0, 0, 1, 1], [], []>} : vector<8x4xf32>, vector<4x288xf32>, vector<8x288xf32> -> vector<8x288xf32>
    %c0_37 = arith.constant 0 : index
    %c24_38 = arith.constant 24 : index
    %54 = vector.load %arg4[%c0_37, %c24_38] : memref<8x36xf32, #tpu.memory_space<vmem>>, vector<8x4xf32>
    %55 = vector.extract_strided_slice %3 {offsets = [0, 36], sizes = [4, 288], strides = [1, 1]} : vector<4x384xf32> to vector<4x288xf32>
    %cst_39 = arith.constant dense<0.000000e+00> : vector<8x288xf32>
    %56 = tpu.matmul %54, %55, %cst_39 {dimension_numbers = #tpu.dot_dimension_numbers<[1], [0], [0], [1], [0, 0, 1, 1], [], []>} : vector<8x4xf32>, vector<4x288xf32>, vector<8x288xf32> -> vector<8x288xf32>
    %57 = arith.addf %53, %56 : vector<8x288xf32>
    %58 = arith.addf %50, %57 : vector<8x288xf32>
    %c0_40 = arith.constant 0 : index
    %c28 = arith.constant 28 : index
    %59 = vector.load %arg3[%c0_40, %c28] : memref<8x36xf32, #tpu.memory_space<vmem>>, vector<8x4xf32>
    %60 = vector.extract_strided_slice %1 {offsets = [0, 37], sizes = [4, 288], strides = [1, 1]} : vector<4x384xf32> to vector<4x288xf32>
    %cst_41 = arith.constant dense<0.000000e+00> : vector<8x288xf32>
    %61 = tpu.matmul %59, %60, %cst_41 {dimension_numbers = #tpu.dot_dimension_numbers<[1], [0], [0], [1], [0, 0, 1, 1], [], []>} : vector<8x4xf32>, vector<4x288xf32>, vector<8x288xf32> -> vector<8x288xf32>
    %c0_42 = arith.constant 0 : index
    %c28_43 = arith.constant 28 : index
    %62 = vector.load %arg4[%c0_42, %c28_43] : memref<8x36xf32, #tpu.memory_space<vmem>>, vector<8x4xf32>
    %63 = vector.extract_strided_slice %3 {offsets = [0, 37], sizes = [4, 288], strides = [1, 1]} : vector<4x384xf32> to vector<4x288xf32>
    %cst_44 = arith.constant dense<0.000000e+00> : vector<8x288xf32>
    %64 = tpu.matmul %62, %63, %cst_44 {dimension_numbers = #tpu.dot_dimension_numbers<[1], [0], [0], [1], [0, 0, 1, 1], [], []>} : vector<8x4xf32>, vector<4x288xf32>, vector<8x288xf32> -> vector<8x288xf32>
    %65 = arith.addf %61, %64 : vector<8x288xf32>
    %66 = arith.addf %58, %65 : vector<8x288xf32>
    %c0_45 = arith.constant 0 : index
    %c32 = arith.constant 32 : index
    %67 = vector.load %arg3[%c0_45, %c32] : memref<8x36xf32, #tpu.memory_space<vmem>>, vector<8x4xf32>
    %68 = vector.extract_strided_slice %1 {offsets = [0, 38], sizes = [4, 288], strides = [1, 1]} : vector<4x384xf32> to vector<4x288xf32>
    %cst_46 = arith.constant dense<0.000000e+00> : vector<8x288xf32>
    %69 = tpu.matmul %67, %68, %cst_46 {dimension_numbers = #tpu.dot_dimension_numbers<[1], [0], [0], [1], [0, 0, 1, 1], [], []>} : vector<8x4xf32>, vector<4x288xf32>, vector<8x288xf32> -> vector<8x288xf32>
    %c0_47 = arith.constant 0 : index
    %c32_48 = arith.constant 32 : index
    %70 = vector.load %arg4[%c0_47, %c32_48] : memref<8x36xf32, #tpu.memory_space<vmem>>, vector<8x4xf32>
    %71 = vector.extract_strided_slice %3 {offsets = [0, 38], sizes = [4, 288], strides = [1, 1]} : vector<4x384xf32> to vector<4x288xf32>
    %cst_49 = arith.constant dense<0.000000e+00> : vector<8x288xf32>
    %72 = tpu.matmul %70, %71, %cst_49 {dimension_numbers = #tpu.dot_dimension_numbers<[1], [0], [0], [1], [0, 0, 1, 1], [], []>} : vector<8x4xf32>, vector<4x288xf32>, vector<8x288xf32> -> vector<8x288xf32>
    %73 = arith.addf %69, %72 : vector<8x288xf32>
    %74 = arith.addf %66, %73 : vector<8x288xf32>
    %c0_50 = arith.constant 0 : index
    %c0_51 = arith.constant 0 : index
    %75 = vector.load %arg5[%c0_50, %c0_51] : memref<8x1xf32, #tpu.memory_space<vmem>>, vector<8x1xf32>
    %76 = vector.broadcast %75 : vector<8x1xf32> to vector<8x288xf32>
    %77 = arith.addf %74, %76 : vector<8x288xf32>
    %c0_52 = arith.constant 0 : index
    %c0_53 = arith.constant 0 : index
    %78 = vector.load %arg6[%c0_52, %c0_53] : memref<1x288xf32, #tpu.memory_space<vmem>>, vector<1x288xf32>
    %79 = vector.broadcast %78 : vector<1x288xf32> to vector<8x288xf32>
    %80 = arith.mulf %77, %79 : vector<8x288xf32>
    %cst_54 = arith.constant 0.000000e+00 : f32
    %81 = vector.broadcast %cst_54 : f32 to vector<1x8x384xf32>
    %c0_55 = arith.constant 0 : index
    %c0_56 = arith.constant 0 : index
    %c0_57 = arith.constant 0 : index
    %82 = vector.load %arg7[%c0_55, %c0_56, %c0_57] : memref<1x8x384xf32, #tpu.memory_space<vmem>>, vector<1x8x384xf32>
    tpu.vector_store %arg7[%c0_55, %c0_56, %c0_57], %81 {strides = array<i32>} : memref<1x8x384xf32, #tpu.memory_space<vmem>>, vector<1x8x384xf32>,
    %c0_58 = arith.constant 0 : index
    %c0_59 = arith.constant 0 : index
    %c19 = arith.constant 19 : index
    %83 = vector.load %arg7[%c0_58, %c0_59, %c19] : memref<1x8x384xf32, #tpu.memory_space<vmem>>, vector<1x8x288xf32>
    %84 = vector.shape_cast %83 : vector<1x8x288xf32> to vector<8x288xf32>
    %85 = vector.shape_cast %80 : vector<8x288xf32> to vector<1x8x288xf32>
    tpu.vector_store %arg7[%c0_58, %c0_59, %c19], %85 {strides = array<i32>} : memref<1x8x384xf32, #tpu.memory_space<vmem>>, vector<1x8x288xf32>,
    %cst_60 = arith.constant dense<0.000000e+00> : vector<8xf32>
    %86 = vector.multi_reduction <add>, %80, %cst_60 [1] : vector<8x288xf32> to vector<8xf32>
    %87 = vector.shape_cast %86 : vector<8xf32> to vector<8x1xf32>
    %cst_61 = arith.constant 3.906250e-03 : f32
    %88 = vector.broadcast %cst_61 : f32 to vector<8x1xf32>
    %89 = arith.mulf %87, %88 : vector<8x1xf32>
    %90 = vector.broadcast %89 : vector<8x1xf32> to vector<8x288xf32>
    %91 = arith.subf %77, %90 : vector<8x288xf32>
    %92 = vector.broadcast %78 : vector<1x288xf32> to vector<8x288xf32>
    %93 = arith.mulf %91, %92 : vector<8x288xf32>
    %c0_62 = arith.constant 0 : index
    %c0_63 = arith.constant 0 : index
    %c0_64 = arith.constant 0 : index
    %94 = vector.load %arg8[%c0_62, %c0_63, %c0_64] : memref<1x8x1xf32, #tpu.memory_space<vmem>>, vector<1x8x1xf32>
    %95 = vector.shape_cast %94 : vector<1x8x1xf32> to vector<8x1xf32>
    %96 = vector.shape_cast %89 : vector<8x1xf32> to vector<1x8x1xf32>
    tpu.vector_store %arg8[%c0_62, %c0_63, %c0_64], %96 {strides = array<i32>} : memref<1x8x1xf32, #tpu.memory_space<vmem>>, vector<1x8x1xf32>,
    %97 = arith.mulf %93, %93 : vector<8x288xf32>
    %cst_65 = arith.constant dense<0.000000e+00> : vector<8xf32>
    %98 = vector.multi_reduction <add>, %97, %cst_65 [1] : vector<8x288xf32> to vector<8xf32>
    %99 = vector.shape_cast %98 : vector<8xf32> to vector<8x1xf32>
    %c0_66 = arith.constant 0 : index
    %c0_67 = arith.constant 0 : index
    %c0_68 = arith.constant 0 : index
    %100 = vector.load %arg9[%c0_66, %c0_67, %c0_68] : memref<1x8x1xf32, #tpu.memory_space<vmem>>, vector<1x8x1xf32>
    %101 = vector.shape_cast %100 : vector<1x8x1xf32> to vector<8x1xf32>
    %102 = vector.shape_cast %99 : vector<8x1xf32> to vector<1x8x1xf32>
    tpu.vector_store %arg9[%c0_66, %c0_67, %c0_68], %102 {strides = array<i32>} : memref<1x8x1xf32, #tpu.memory_space<vmem>>, vector<1x8x1xf32>,
    return
  }
  func.func @transform_0(%arg0: i32) -> (i32, i32, i32) {
    %c0_i32 = arith.constant 0 : i32
    %c0_i32_0 = arith.constant 0 : i32
    %c0_i32_1 = arith.constant 0 : i32
    return %arg0, %c0_i32, %c0_i32_0 : i32, i32, i32
  }
  func.func @transform_1(%arg0: i32) -> (i32, i32, i32) {
    %c0_i32 = arith.constant 0 : i32
    %c0_i32_0 = arith.constant 0 : i32
    %c0_i32_1 = arith.constant 0 : i32
    return %arg0, %c0_i32, %c0_i32_0 : i32, i32, i32
  }
  func.func @transform_2(%arg0: i32) -> (i32, i32) {
    %c0_i32 = arith.constant 0 : i32
    %c0_i32_0 = arith.constant 0 : i32
    %c0_i32_1 = arith.constant 0 : i32
    return %c0_i32, %c0_i32_0 : i32, i32
  }
  func.func @transform_3(%arg0: i32) -> (i32, i32) {
    %c0_i32 = arith.constant 0 : i32
    %c0_i32_0 = arith.constant 0 : i32
    %c0_i32_1 = arith.constant 0 : i32
    return %c0_i32, %c0_i32_0 : i32, i32
  }
  func.func @transform_4(%arg0: i32) -> (i32, i32) {
    %c0_i32 = arith.constant 0 : i32
    %c0_i32_0 = arith.constant 0 : i32
    %c0_i32_1 = arith.constant 0 : i32
    return %c0_i32, %c0_i32_0 : i32, i32
  }
  func.func @transform_5(%arg0: i32) -> (i32, i32) {
    %c0_i32 = arith.constant 0 : i32
    %c0_i32_0 = arith.constant 0 : i32
    %c0_i32_1 = arith.constant 0 : i32
    return %c0_i32, %c0_i32_0 : i32, i32
  }
  func.func @transform_6(%arg0: i32) -> (i32, i32, i32) {
    %c0_i32 = arith.constant 0 : i32
    %c0_i32_0 = arith.constant 0 : i32
    %c0_i32_1 = arith.constant 0 : i32
    return %arg0, %c0_i32, %c0_i32_0 : i32, i32, i32
  }
  func.func @transform_7(%arg0: i32) -> (i32, i32, i32) {
    %c0_i32 = arith.constant 0 : i32
    %c0_i32_0 = arith.constant 0 : i32
    %c0_i32_1 = arith.constant 0 : i32
    return %arg0, %c0_i32, %c0_i32_0 : i32, i32, i32
  }
  func.func @transform_8(%arg0: i32) -> (i32, i32, i32) {
    %c0_i32 = arith.constant 0 : i32
    %c0_i32_0 = arith.constant 0 : i32
    %c0_i32_1 = arith.constant 0 : i32
    return %arg0, %c0_i32, %c0_i32_0 : i32, i32, i32
  }
}

module attributes {stable_mosaic.version = 11 : i64} {
  func.func @_bn_relu_nchw_kernel(%arg0: i32, %arg1: memref<1x8x16x18xf32, #tpu.memory_space<vmem>>, %arg2: memref<4x1x1xf32, #tpu.memory_space<vmem>>, %arg3: memref<4x1x1xf32, #tpu.memory_space<vmem>>, %arg4: memref<1x4x16x16xf32, #tpu.memory_space<vmem>>) attributes {dimension_semantics = [#tpu.dimension_semantics<parallel>], iteration_bounds = array<i64: 2>, scalar_prefetch = 0 : i64, scratch_operands = 0 : i64, tpu.core_type = #tpu.core_type<tc>, window_params = [{transform_indices = @transform_0, window_bounds = array<i64: 1, 8, 16, 18>}, {pipeline_mode = #tpu.pipeline_mode<synchronous>, transform_indices = @transform_1, window_bounds = array<i64: 4, 1, 1>}, {pipeline_mode = #tpu.pipeline_mode<synchronous>, transform_indices = @transform_2, window_bounds = array<i64: 4, 1, 1>}, {transform_indices = @transform_3, window_bounds = array<i64: 1, 4, 16, 16>}]} {
    %c0 = arith.constant 0 : index
    %c0_0 = arith.constant 0 : index
    %c0_1 = arith.constant 0 : index
    %c0_2 = arith.constant 0 : index
    %0 = vector.load %arg1[%c0, %c0_0, %c0_1, %c0_2] : memref<1x8x16x18xf32, #tpu.memory_space<vmem>>, vector<1x8x16x18xf32>
    %1 = vector.shape_cast %0 : vector<1x8x16x18xf32> to vector<8x16x18xf32>
    %2 = vector.extract_strided_slice %1 {offsets = [0, 0, 0], sizes = [4, 16, 16], strides = [1, 1, 1]} : vector<8x16x18xf32> to vector<4x16x16xf32>
    %c0_3 = arith.constant 0 : index
    %c0_4 = arith.constant 0 : index
    %c0_5 = arith.constant 0 : index
    %3 = vector.load %arg2[%c0_3, %c0_4, %c0_5] : memref<4x1x1xf32, #tpu.memory_space<vmem>>, vector<4x1x1xf32>
    %4 = vector.broadcast %3 : vector<4x1x1xf32> to vector<4x16x16xf32>
    %5 = arith.mulf %2, %4 : vector<4x16x16xf32>
    %c0_6 = arith.constant 0 : index
    %c0_7 = arith.constant 0 : index
    %c0_8 = arith.constant 0 : index
    %6 = vector.load %arg3[%c0_6, %c0_7, %c0_8] : memref<4x1x1xf32, #tpu.memory_space<vmem>>, vector<4x1x1xf32>
    %7 = vector.broadcast %6 : vector<4x1x1xf32> to vector<4x16x16xf32>
    %8 = arith.addf %5, %7 : vector<4x16x16xf32>
    %cst = arith.constant 0.000000e+00 : f32
    %9 = vector.broadcast %cst : f32 to vector<4x16x16xf32>
    %10 = arith.maximumf %8, %9 : vector<4x16x16xf32>
    %c0_9 = arith.constant 0 : index
    %c0_10 = arith.constant 0 : index
    %c0_11 = arith.constant 0 : index
    %c0_12 = arith.constant 0 : index
    %11 = vector.load %arg4[%c0_9, %c0_10, %c0_11, %c0_12] : memref<1x4x16x16xf32, #tpu.memory_space<vmem>>, vector<1x4x16x16xf32>
    %12 = vector.shape_cast %11 : vector<1x4x16x16xf32> to vector<4x16x16xf32>
    %13 = vector.shape_cast %10 : vector<4x16x16xf32> to vector<1x4x16x16xf32>
    tpu.vector_store %arg4[%c0_9, %c0_10, %c0_11, %c0_12], %13 {strides = array<i32>} : memref<1x4x16x16xf32, #tpu.memory_space<vmem>>, vector<1x4x16x16xf32>,
    return
  }
  func.func @transform_0(%arg0: i32) -> (i32, i32, i32, i32) {
    %c0_i32 = arith.constant 0 : i32
    %c0_i32_0 = arith.constant 0 : i32
    %c0_i32_1 = arith.constant 0 : i32
    %c0_i32_2 = arith.constant 0 : i32
    return %arg0, %c0_i32, %c0_i32_0, %c0_i32_1 : i32, i32, i32, i32
  }
  func.func @transform_1(%arg0: i32) -> (i32, i32, i32) {
    %c0_i32 = arith.constant 0 : i32
    %c0_i32_0 = arith.constant 0 : i32
    %c0_i32_1 = arith.constant 0 : i32
    %c0_i32_2 = arith.constant 0 : i32
    return %c0_i32, %c0_i32_0, %c0_i32_1 : i32, i32, i32
  }
  func.func @transform_2(%arg0: i32) -> (i32, i32, i32) {
    %c0_i32 = arith.constant 0 : i32
    %c0_i32_0 = arith.constant 0 : i32
    %c0_i32_1 = arith.constant 0 : i32
    %c0_i32_2 = arith.constant 0 : i32
    return %c0_i32, %c0_i32_0, %c0_i32_1 : i32, i32, i32
  }
  func.func @transform_3(%arg0: i32) -> (i32, i32, i32, i32) {
    %c0_i32 = arith.constant 0 : i32
    %c0_i32_0 = arith.constant 0 : i32
    %c0_i32_1 = arith.constant 0 : i32
    %c0_i32_2 = arith.constant 0 : i32
    return %arg0, %c0_i32, %c0_i32_0, %c0_i32_1 : i32, i32, i32, i32
  }
}

module attributes {stable_mosaic.version = 11 : i64} {
  func.func @_conv2_kernel(%arg0: i32, %arg1: memref<1x8x384xf32, #tpu.memory_space<vmem>>, %arg2: memref<8x1xf32, #tpu.memory_space<vmem>>, %arg3: memref<8x1xf32, #tpu.memory_space<vmem>>, %arg4: memref<1x384xf32, #tpu.memory_space<vmem>>, %arg5: memref<1x288xf32, #tpu.memory_space<vmem>>, %arg6: memref<8x72xf32, #tpu.memory_space<vmem>>, %arg7: memref<8x1xf32, #tpu.memory_space<vmem>>, %arg8: memref<1x8x288xf32, #tpu.memory_space<vmem>>, %arg9: memref<1x8x1xf32, #tpu.memory_space<vmem>>, %arg10: memref<1x8x1xf32, #tpu.memory_space<vmem>>) attributes {dimension_semantics = [#tpu.dimension_semantics<parallel>], iteration_bounds = array<i64: 2>, scalar_prefetch = 0 : i64, scratch_operands = 0 : i64, tpu.core_type = #tpu.core_type<tc>, window_params = [{transform_indices = @transform_0, window_bounds = array<i64: 1, 8, 384>}, {pipeline_mode = #tpu.pipeline_mode<synchronous>, transform_indices = @transform_1, window_bounds = array<i64: 8, 1>}, {pipeline_mode = #tpu.pipeline_mode<synchronous>, transform_indices = @transform_2, window_bounds = array<i64: 8, 1>}, {pipeline_mode = #tpu.pipeline_mode<synchronous>, transform_indices = @transform_3, window_bounds = array<i64: 1, 384>}, {pipeline_mode = #tpu.pipeline_mode<synchronous>, transform_indices = @transform_4, window_bounds = array<i64: 1, 288>}, {pipeline_mode = #tpu.pipeline_mode<synchronous>, transform_indices = @transform_5, window_bounds = array<i64: 8, 72>}, {pipeline_mode = #tpu.pipeline_mode<synchronous>, transform_indices = @transform_6, window_bounds = array<i64: 8, 1>}, {transform_indices = @transform_7, window_bounds = array<i64: 1, 8, 288>}, {transform_indices = @transform_8, window_bounds = array<i64: 1, 8, 1>}, {transform_indices = @transform_9, window_bounds = array<i64: 1, 8, 1>}]} {
    %c0 = arith.constant 0 : index
    %c0_0 = arith.constant 0 : index
    %c0_1 = arith.constant 0 : index
    %0 = vector.load %arg1[%c0, %c0_0, %c0_1] : memref<1x8x384xf32, #tpu.memory_space<vmem>>, vector<1x8x384xf32>
    %1 = vector.shape_cast %0 : vector<1x8x384xf32> to vector<8x384xf32>
    %c0_2 = arith.constant 0 : index
    %c0_3 = arith.constant 0 : index
    %2 = vector.load %arg2[%c0_2, %c0_3] : memref<8x1xf32, #tpu.memory_space<vmem>>, vector<8x1xf32>
    %3 = vector.broadcast %2 : vector<8x1xf32> to vector<8x384xf32>
    %4 = arith.mulf %1, %3 : vector<8x384xf32>
    %c0_4 = arith.constant 0 : index
    %c0_5 = arith.constant 0 : index
    %5 = vector.load %arg3[%c0_4, %c0_5] : memref<8x1xf32, #tpu.memory_space<vmem>>, vector<8x1xf32>
    %6 = vector.broadcast %5 : vector<8x1xf32> to vector<8x384xf32>
    %7 = arith.addf %4, %6 : vector<8x384xf32>
    %cst = arith.constant 0.000000e+00 : f32
    %8 = vector.broadcast %cst : f32 to vector<8x384xf32>
    %9 = arith.maximumf %7, %8 : vector<8x384xf32>
    %c0_6 = arith.constant 0 : index
    %c0_7 = arith.constant 0 : index
    %10 = vector.load %arg4[%c0_6, %c0_7] : memref<1x384xf32, #tpu.memory_space<vmem>>, vector<1x384xf32>
    %11 = vector.broadcast %10 : vector<1x384xf32> to vector<8x384xf32>
    %12 = arith.mulf %9, %11 : vector<8x384xf32>
    %c0_8 = arith.constant 0 : index
    %c0_9 = arith.constant 0 : index
    %13 = vector.load %arg6[%c0_8, %c0_9] : memref<8x72xf32, #tpu.memory_space<vmem>>, vector<8x8xf32>
    %14 = vector.extract_strided_slice %12 {offsets = [0, 0], sizes = [8, 288], strides = [1, 1]} : vector<8x384xf32> to vector<8x288xf32>
    %cst_10 = arith.constant dense<0.000000e+00> : vector<8x288xf32>
    %15 = tpu.matmul %13, %14, %cst_10 {dimension_numbers = #tpu.dot_dimension_numbers<[1], [0], [0], [1], [0, 0, 1, 1], [], []>} : vector<8x8xf32>, vector<8x288xf32>, vector<8x288xf32> -> vector<8x288xf32>
    %c0_11 = arith.constant 0 : index
    %c8 = arith.constant 8 : index
    %16 = vector.load %arg6[%c0_11, %c8] : memref<8x72xf32, #tpu.memory_space<vmem>>, vector<8x8xf32>
    %17 = vector.extract_strided_slice %12 {offsets = [0, 1], sizes = [8, 288], strides = [1, 1]} : vector<8x384xf32> to vector<8x288xf32>
    %cst_12 = arith.constant dense<0.000000e+00> : vector<8x288xf32>
    %18 = tpu.matmul %16, %17, %cst_12 {dimension_numbers = #tpu.dot_dimension_numbers<[1], [0], [0], [1], [0, 0, 1, 1], [], []>} : vector<8x8xf32>, vector<8x288xf32>, vector<8x288xf32> -> vector<8x288xf32>
    %19 = arith.addf %15, %18 : vector<8x288xf32>
    %c0_13 = arith.constant 0 : index
    %c16 = arith.constant 16 : index
    %20 = vector.load %arg6[%c0_13, %c16] : memref<8x72xf32, #tpu.memory_space<vmem>>, vector<8x8xf32>
    %21 = vector.extract_strided_slice %12 {offsets = [0, 2], sizes = [8, 288], strides = [1, 1]} : vector<8x384xf32> to vector<8x288xf32>
    %cst_14 = arith.constant dense<0.000000e+00> : vector<8x288xf32>
    %22 = tpu.matmul %20, %21, %cst_14 {dimension_numbers = #tpu.dot_dimension_numbers<[1], [0], [0], [1], [0, 0, 1, 1], [], []>} : vector<8x8xf32>, vector<8x288xf32>, vector<8x288xf32> -> vector<8x288xf32>
    %23 = arith.addf %19, %22 : vector<8x288xf32>
    %c0_15 = arith.constant 0 : index
    %c24 = arith.constant 24 : index
    %24 = vector.load %arg6[%c0_15, %c24] : memref<8x72xf32, #tpu.memory_space<vmem>>, vector<8x8xf32>
    %25 = vector.extract_strided_slice %12 {offsets = [0, 18], sizes = [8, 288], strides = [1, 1]} : vector<8x384xf32> to vector<8x288xf32>
    %cst_16 = arith.constant dense<0.000000e+00> : vector<8x288xf32>
    %26 = tpu.matmul %24, %25, %cst_16 {dimension_numbers = #tpu.dot_dimension_numbers<[1], [0], [0], [1], [0, 0, 1, 1], [], []>} : vector<8x8xf32>, vector<8x288xf32>, vector<8x288xf32> -> vector<8x288xf32>
    %27 = arith.addf %23, %26 : vector<8x288xf32>
    %c0_17 = arith.constant 0 : index
    %c32 = arith.constant 32 : index
    %28 = vector.load %arg6[%c0_17, %c32] : memref<8x72xf32, #tpu.memory_space<vmem>>, vector<8x8xf32>
    %29 = vector.extract_strided_slice %12 {offsets = [0, 19], sizes = [8, 288], strides = [1, 1]} : vector<8x384xf32> to vector<8x288xf32>
    %cst_18 = arith.constant dense<0.000000e+00> : vector<8x288xf32>
    %30 = tpu.matmul %28, %29, %cst_18 {dimension_numbers = #tpu.dot_dimension_numbers<[1], [0], [0], [1], [0, 0, 1, 1], [], []>} : vector<8x8xf32>, vector<8x288xf32>, vector<8x288xf32> -> vector<8x288xf32>
    %31 = arith.addf %27, %30 : vector<8x288xf32>
    %c0_19 = arith.constant 0 : index
    %c40 = arith.constant 40 : index
    %32 = vector.load %arg6[%c0_19, %c40] : memref<8x72xf32, #tpu.memory_space<vmem>>, vector<8x8xf32>
    %33 = vector.extract_strided_slice %12 {offsets = [0, 20], sizes = [8, 288], strides = [1, 1]} : vector<8x384xf32> to vector<8x288xf32>
    %cst_20 = arith.constant dense<0.000000e+00> : vector<8x288xf32>
    %34 = tpu.matmul %32, %33, %cst_20 {dimension_numbers = #tpu.dot_dimension_numbers<[1], [0], [0], [1], [0, 0, 1, 1], [], []>} : vector<8x8xf32>, vector<8x288xf32>, vector<8x288xf32> -> vector<8x288xf32>
    %35 = arith.addf %31, %34 : vector<8x288xf32>
    %c0_21 = arith.constant 0 : index
    %c48 = arith.constant 48 : index
    %36 = vector.load %arg6[%c0_21, %c48] : memref<8x72xf32, #tpu.memory_space<vmem>>, vector<8x8xf32>
    %37 = vector.extract_strided_slice %12 {offsets = [0, 36], sizes = [8, 288], strides = [1, 1]} : vector<8x384xf32> to vector<8x288xf32>
    %cst_22 = arith.constant dense<0.000000e+00> : vector<8x288xf32>
    %38 = tpu.matmul %36, %37, %cst_22 {dimension_numbers = #tpu.dot_dimension_numbers<[1], [0], [0], [1], [0, 0, 1, 1], [], []>} : vector<8x8xf32>, vector<8x288xf32>, vector<8x288xf32> -> vector<8x288xf32>
    %39 = arith.addf %35, %38 : vector<8x288xf32>
    %c0_23 = arith.constant 0 : index
    %c56 = arith.constant 56 : index
    %40 = vector.load %arg6[%c0_23, %c56] : memref<8x72xf32, #tpu.memory_space<vmem>>, vector<8x8xf32>
    %41 = vector.extract_strided_slice %12 {offsets = [0, 37], sizes = [8, 288], strides = [1, 1]} : vector<8x384xf32> to vector<8x288xf32>
    %cst_24 = arith.constant dense<0.000000e+00> : vector<8x288xf32>
    %42 = tpu.matmul %40, %41, %cst_24 {dimension_numbers = #tpu.dot_dimension_numbers<[1], [0], [0], [1], [0, 0, 1, 1], [], []>} : vector<8x8xf32>, vector<8x288xf32>, vector<8x288xf32> -> vector<8x288xf32>
    %43 = arith.addf %39, %42 : vector<8x288xf32>
    %c0_25 = arith.constant 0 : index
    %c64 = arith.constant 64 : index
    %44 = vector.load %arg6[%c0_25, %c64] : memref<8x72xf32, #tpu.memory_space<vmem>>, vector<8x8xf32>
    %45 = vector.extract_strided_slice %12 {offsets = [0, 38], sizes = [8, 288], strides = [1, 1]} : vector<8x384xf32> to vector<8x288xf32>
    %cst_26 = arith.constant dense<0.000000e+00> : vector<8x288xf32>
    %46 = tpu.matmul %44, %45, %cst_26 {dimension_numbers = #tpu.dot_dimension_numbers<[1], [0], [0], [1], [0, 0, 1, 1], [], []>} : vector<8x8xf32>, vector<8x288xf32>, vector<8x288xf32> -> vector<8x288xf32>
    %47 = arith.addf %43, %46 : vector<8x288xf32>
    %c0_27 = arith.constant 0 : index
    %c0_28 = arith.constant 0 : index
    %48 = vector.load %arg7[%c0_27, %c0_28] : memref<8x1xf32, #tpu.memory_space<vmem>>, vector<8x1xf32>
    %49 = vector.broadcast %48 : vector<8x1xf32> to vector<8x288xf32>
    %50 = arith.addf %47, %49 : vector<8x288xf32>
    %c0_29 = arith.constant 0 : index
    %c0_30 = arith.constant 0 : index
    %51 = vector.load %arg5[%c0_29, %c0_30] : memref<1x288xf32, #tpu.memory_space<vmem>>, vector<1x288xf32>
    %52 = vector.broadcast %51 : vector<1x288xf32> to vector<8x288xf32>
    %53 = arith.mulf %50, %52 : vector<8x288xf32>
    %c0_31 = arith.constant 0 : index
    %c0_32 = arith.constant 0 : index
    %c0_33 = arith.constant 0 : index
    %54 = vector.load %arg8[%c0_31, %c0_32, %c0_33] : memref<1x8x288xf32, #tpu.memory_space<vmem>>, vector<1x8x288xf32>
    %55 = vector.shape_cast %54 : vector<1x8x288xf32> to vector<8x288xf32>
    %56 = vector.shape_cast %53 : vector<8x288xf32> to vector<1x8x288xf32>
    tpu.vector_store %arg8[%c0_31, %c0_32, %c0_33], %56 {strides = array<i32>} : memref<1x8x288xf32, #tpu.memory_space<vmem>>, vector<1x8x288xf32>,
    %cst_34 = arith.constant dense<0.000000e+00> : vector<8xf32>
    %57 = vector.multi_reduction <add>, %53, %cst_34 [1] : vector<8x288xf32> to vector<8xf32>
    %58 = vector.shape_cast %57 : vector<8xf32> to vector<8x1xf32>
    %cst_35 = arith.constant 3.906250e-03 : f32
    %59 = vector.broadcast %cst_35 : f32 to vector<8x1xf32>
    %60 = arith.mulf %58, %59 : vector<8x1xf32>
    %61 = vector.broadcast %60 : vector<8x1xf32> to vector<8x288xf32>
    %62 = arith.subf %50, %61 : vector<8x288xf32>
    %63 = vector.broadcast %51 : vector<1x288xf32> to vector<8x288xf32>
    %64 = arith.mulf %62, %63 : vector<8x288xf32>
    %c0_36 = arith.constant 0 : index
    %c0_37 = arith.constant 0 : index
    %c0_38 = arith.constant 0 : index
    %65 = vector.load %arg9[%c0_36, %c0_37, %c0_38] : memref<1x8x1xf32, #tpu.memory_space<vmem>>, vector<1x8x1xf32>
    %66 = vector.shape_cast %65 : vector<1x8x1xf32> to vector<8x1xf32>
    %67 = vector.shape_cast %60 : vector<8x1xf32> to vector<1x8x1xf32>
    tpu.vector_store %arg9[%c0_36, %c0_37, %c0_38], %67 {strides = array<i32>} : memref<1x8x1xf32, #tpu.memory_space<vmem>>, vector<1x8x1xf32>,
    %68 = arith.mulf %64, %64 : vector<8x288xf32>
    %cst_39 = arith.constant dense<0.000000e+00> : vector<8xf32>
    %69 = vector.multi_reduction <add>, %68, %cst_39 [1] : vector<8x288xf32> to vector<8xf32>
    %70 = vector.shape_cast %69 : vector<8xf32> to vector<8x1xf32>
    %c0_40 = arith.constant 0 : index
    %c0_41 = arith.constant 0 : index
    %c0_42 = arith.constant 0 : index
    %71 = vector.load %arg10[%c0_40, %c0_41, %c0_42] : memref<1x8x1xf32, #tpu.memory_space<vmem>>, vector<1x8x1xf32>
    %72 = vector.shape_cast %71 : vector<1x8x1xf32> to vector<8x1xf32>
    %73 = vector.shape_cast %70 : vector<8x1xf32> to vector<1x8x1xf32>
    tpu.vector_store %arg10[%c0_40, %c0_41, %c0_42], %73 {strides = array<i32>} : memref<1x8x1xf32, #tpu.memory_space<vmem>>, vector<1x8x1xf32>,
    return
  }
  func.func @transform_0(%arg0: i32) -> (i32, i32, i32) {
    %c0_i32 = arith.constant 0 : i32
    %c0_i32_0 = arith.constant 0 : i32
    %c0_i32_1 = arith.constant 0 : i32
    return %arg0, %c0_i32, %c0_i32_0 : i32, i32, i32
  }
  func.func @transform_1(%arg0: i32) -> (i32, i32) {
    %c0_i32 = arith.constant 0 : i32
    %c0_i32_0 = arith.constant 0 : i32
    %c0_i32_1 = arith.constant 0 : i32
    return %c0_i32, %c0_i32_0 : i32, i32
  }
  func.func @transform_2(%arg0: i32) -> (i32, i32) {
    %c0_i32 = arith.constant 0 : i32
    %c0_i32_0 = arith.constant 0 : i32
    %c0_i32_1 = arith.constant 0 : i32
    return %c0_i32, %c0_i32_0 : i32, i32
  }
  func.func @transform_3(%arg0: i32) -> (i32, i32) {
    %c0_i32 = arith.constant 0 : i32
    %c0_i32_0 = arith.constant 0 : i32
    %c0_i32_1 = arith.constant 0 : i32
    return %c0_i32, %c0_i32_0 : i32, i32
  }
  func.func @transform_4(%arg0: i32) -> (i32, i32) {
    %c0_i32 = arith.constant 0 : i32
    %c0_i32_0 = arith.constant 0 : i32
    %c0_i32_1 = arith.constant 0 : i32
    return %c0_i32, %c0_i32_0 : i32, i32
  }
  func.func @transform_5(%arg0: i32) -> (i32, i32) {
    %c0_i32 = arith.constant 0 : i32
    %c0_i32_0 = arith.constant 0 : i32
    %c0_i32_1 = arith.constant 0 : i32
    return %c0_i32, %c0_i32_0 : i32, i32
  }
  func.func @transform_6(%arg0: i32) -> (i32, i32) {
    %c0_i32 = arith.constant 0 : i32
    %c0_i32_0 = arith.constant 0 : i32
    %c0_i32_1 = arith.constant 0 : i32
    return %c0_i32, %c0_i32_0 : i32, i32
  }
  func.func @transform_7(%arg0: i32) -> (i32, i32, i32) {
    %c0_i32 = arith.constant 0 : i32
    %c0_i32_0 = arith.constant 0 : i32
    %c0_i32_1 = arith.constant 0 : i32
    return %arg0, %c0_i32, %c0_i32_0 : i32, i32, i32
  }
  func.func @transform_8(%arg0: i32) -> (i32, i32, i32) {
    %c0_i32 = arith.constant 0 : i32
    %c0_i32_0 = arith.constant 0 : i32
    %c0_i32_1 = arith.constant 0 : i32
    return %arg0, %c0_i32, %c0_i32_0 : i32, i32, i32
  }
  func.func @transform_9(%arg0: i32) -> (i32, i32, i32) {
    %c0_i32 = arith.constant 0 : i32
    %c0_i32_0 = arith.constant 0 : i32
    %c0_i32_1 = arith.constant 0 : i32
    return %arg0, %c0_i32, %c0_i32_0 : i32, i32, i32
  }
}

</mosaic_0001>

<llo_original>
// kernel: a_call__.4
$region0: #{a_call__.4}
  #allocation0 [shape = 'u32[]', space=smem, size = 0x4, offset = 0x4, fixed_abs, tag = 'smem constant byte address 0x4 - core index']
  #allocation1 [shape = 'u32[144,128]{1,0:T(1,128)}', space=vmem, size = 0x12000, scoped, tag = 'internal scratch']
  %s0 = inlined_call_operand.vmem [shape: f32[2,8,128], index: 0, kind: input, shape index: {}]
  %s1 = inlined_call_operand.vmem [shape: f32[16,32], index: 1, kind: input, shape index: {}]
  %s2 = inlined_call_operand.vmem [shape: f32[16,1], index: 2, kind: input, shape index: {}]
  %s3 = inlined_call_operand.vmem [shape: f32[2,16,72], index: 3, kind: output, shape index: {}]
  %s4 = sld [smem:[#allocation0]]
  $region45: #{a_call__.4} parent=0
    _
  %s6 = ssub.s32 1, %s4
  %s7 = scalar_select 0, %s6, %s4
  loop: start=0, step=1, limit=4
  $region2: #{a_call__.4} parent=0 // loop_pre_header
    _
  $region3: #{a_call__.4} parent=0 // loop_header
    %s9 = sphi 0, %s13
    %p10 = scmp.ge.s32.totalorder %s9, 4
    %s19 = sphi 0, %s21
    %s22 = sphi 0, %s19
    %s23 = sphi 0, %s22
    %s39 = sphi 0, %s23
    %s43 = sphi 0, %s43
    %s45 = sphi 0, %s43
    %s46 = sphi 0, %s45
    %s60 = sphi 0, %s46
    %s64 = sphi 0, %s64
    %s66 = sphi 0, %s64
    %s67 = sphi 0, %s66
    %s81 = sphi 0, %s67
    %s87 = sphi 0, %s89
    %s90 = sphi 0, %s87
    %s91 = sphi 0, %s90
    %s107 = sphi 0, %s91
  $region4: #{a_call__.4} parent=0 // loop_header_branch
    %12 = sbr.rel (%p10) target = $region8
  $region5: #{a_call__.4} parent=0 // loop_body
    %s14 = ssub.s32 %s9, 1
    %s15 = ssub.s32 %s9, 2
    %s16 = sadd.s32 %s9, 1
    %s17 = ssub.s32 %s9, %s16
    %p18 = scmp.eq.s32.totalorder %s17, 0
    %s20 = sadd.s32 %s19, 1
    %s21 = scalar_select %p18, %s19, %s20
    %p24 = pneg %p18
    %p25 = scmp.eq.s32.totalorder %s9, 1
    %p26 = por %p24, %p25
    %p27 = scmp.ne.s32.totalorder %s19, %s22
    %p28 = scmp.eq.s32.totalorder %s9, 0
    %p29 = por %p27, %p28
    %p30 = scmp.ne.s32.totalorder %s19, %s22
    %p31 = scmp.eq.s32.totalorder %s14, 1
    %p32 = por %p30, %p31
    %p33 = scmp.ne.s32.totalorder %s22, %s23
    %p34 = scmp.eq.s32.totalorder %s14, 0
    %p35 = por %p33, %p34
    %p36 = scmp.ne.s32.totalorder %s22, %s23
    %p37 = scmp.eq.s32.totalorder %s15, 1
    %p38 = por %p36, %p37
    %p40 = scmp.ne.s32.totalorder %s23, %s39
    %p41 = scmp.eq.s32.totalorder %s15, 0
    %p42 = por %p40, %p41
    %s44 = sadd.s32 %s43, 1
    %p47 = scmp.eq.s32.totalorder %s9, 1
    %p48 = scmp.ne.s32.totalorder %s43, %s45
    %p49 = scmp.eq.s32.totalorder %s9, 0
    %p50 = por %p48, %p49
    %p51 = scmp.ne.s32.totalorder %s43, %s45
    %p52 = scmp.eq.s32.totalorder %s14, 1
    %p53 = por %p51, %p52
    %p54 = scmp.ne.s32.totalorder %s45, %s46
    %p55 = scmp.eq.s32.totalorder %s14, 0
    %p56 = por %p54, %p55
    %p57 = scmp.ne.s32.totalorder %s45, %s46
    %p58 = scmp.eq.s32.totalorder %s15, 1
    %p59 = por %p57, %p58
    %p61 = scmp.ne.s32.totalorder %s46, %s60
    %p62 = scmp.eq.s32.totalorder %s15, 0
    %p63 = por %p61, %p62
    %s65 = sadd.s32 %s64, 1
    %p68 = scmp.eq.s32.totalorder %s9, 1
    %p69 = scmp.ne.s32.totalorder %s64, %s66
    %p70 = scmp.eq.s32.totalorder %s9, 0
    %p71 = por %p69, %p70
    %p72 = scmp.ne.s32.totalorder %s64, %s66
    %p73 = scmp.eq.s32.totalorder %s14, 1
    %p74 = por %p72, %p73
    %p75 = scmp.ne.s32.totalorder %s66, %s67
    %p76 = scmp.eq.s32.totalorder %s14, 0
    %p77 = por %p75, %p76
    %p78 = scmp.ne.s32.totalorder %s66, %s67
    %p79 = scmp.eq.s32.totalorder %s15, 1
    %p80 = por %p78, %p79
    %p82 = scmp.ne.s32.totalorder %s67, %s81
    %p83 = scmp.eq.s32.totalorder %s15, 0
    %p84 = por %p82, %p83
    %s85 = ssub.s32 %s9, %s16
    %p86 = scmp.eq.s32.totalorder %s85, 0
    %s88 = sadd.s32 %s87, 1
    %s89 = scalar_select %p86, %s87, %s88
    %p92 = pneg %p86
    %p93 = scmp.eq.s32.totalorder %s9, 1
    %p94 = por %p92, %p93
    %p95 = scmp.ne.s32.totalorder %s87, %s90
    %p96 = scmp.eq.s32.totalorder %s9, 0
    %p97 = por %p95, %p96
    %p98 = scmp.ne.s32.totalorder %s87, %s90
    %p99 = scmp.eq.s32.totalorder %s14, 1
    %p100 = por %p98, %p99
    %p101 = scmp.ne.s32.totalorder %s90, %s91
    %p102 = scmp.eq.s32.totalorder %s14, 0
    %p103 = por %p101, %p102
    %p104 = scmp.ne.s32.totalorder %s90, %s91
    %p105 = scmp.eq.s32.totalorder %s15, 1
    %p106 = por %p104, %p105
    %p108 = scmp.ne.s32.totalorder %s91, %s107
    %p109 = scmp.eq.s32.totalorder %s15, 0
    %p110 = por %p108, %p109
    %p111 = scmp.le.s32.totalorder 1, %s9
    %p112 = scmp.lt.s32.totalorder %s9, 3
    %p113 = pnand %p111, %p112
    %p114 = pneg %p113
    // Predicated region
    $region9: #{a_call__.4} parent=5 // pred_check
      _
    $region10: #{a_call__.4} parent=5 // pred_check_branch
      %116 = sbr.rel (%p113) target = $region12
    $region11: #{a_call__.4} parent=5 // pred_region
      %s117 = ssub.s32 %s9, 1
      // Predicated region
      $region13: #{a_call__.4} parent=11 // pred_check
        %p118 = pneg %p56
      $region14: #{a_call__.4} parent=11 // pred_check_branch
        %120 = sbr.rel (%p118) target = $region16
      $region15: #{a_call__.4} parent=11 // pred_region
        _
      $region16: #{a_call__.4} parent=11 // pred_fallthru
        _
      // Predicated region
      $region17: #{a_call__.4} parent=11 // pred_check
        %p121 = pneg %p77
      $region18: #{a_call__.4} parent=11 // pred_check_branch
        %123 = sbr.rel (%p121) target = $region20
      $region19: #{a_call__.4} parent=11 // pred_region
        _
      $region20: #{a_call__.4} parent=11 // pred_fallthru
        _
    $region12: #{a_call__.4} parent=5 // pred_fallthru
      _
    %p124 = scmp.lt.s32.totalorder %s9, 2
    // Predicated region
    $region21: #{a_call__.4} parent=5 // pred_check
      %p125 = pneg %p124
    $region22: #{a_call__.4} parent=5 // pred_check_branch
      %127 = sbr.rel (%p125) target = $region24
    $region23: #{a_call__.4} parent=5 // pred_region
      // Predicated region
      $region25: #{a_call__.4} parent=23 // pred_check
        %p128 = pneg %p29
      $region26: #{a_call__.4} parent=23 // pred_check_branch
        %130 = sbr.rel (%p128) target = $region28
      $region27: #{a_call__.4} parent=23 // pred_region
        %p131 = scmp.lt.s32.totalorder %s9, 1
        %s132 = scalar_select %p131, %s9, 1
        %s133 = smul.addr %s132, 8
        %s134 = scalar_lea.vmem %s0, %s133
      $region28: #{a_call__.4} parent=23 // pred_fallthru
        _
    $region24: #{a_call__.4} parent=5 // pred_fallthru
      _
    %p135 = scmp.le.s32.totalorder 1, %s9
    %p136 = scmp.lt.s32.totalorder %s9, 3
    %p137 = pnand %p135, %p136
    %p138 = pneg %p137
    // Predicated region
    $region29: #{a_call__.4} parent=5 // pred_check
      _
    $region30: #{a_call__.4} parent=5 // pred_check_branch
      %140 = sbr.rel (%p137) target = $region32
    $region31: #{a_call__.4} parent=5 // pred_region
      %s141 = ssub.s32 %s9, 1
      %p142 = scmp.lt.s32.totalorder %s14, 1
      %s143 = scalar_select %p142, %s14, 1
      %s144 = smul.addr %s143, 8
      %s145 = scalar_lea.vmem %s0, %s144
      %p146 = pneg %p35
      %p147 = pneg %p32
      %p148 = pneg %p56
      %p149 = pneg %p53
      %p150 = pneg %p77
      %p151 = pneg %p74
      %p152 = pneg %p103
      %p153 = pneg %p100
      %p154 = scmp.lt.s32.totalorder %s14, 1
      %s155 = scalar_select %p154, %s14, 1
      %s156 = smul.addr %s155, 2
      %s157 = smul.addr %s156, 8
      %s158 = scalar_lea.vmem %s3, %s157
      %p159 = scmp.lt.s32.totalorder %s14, 1
      %s160 = scalar_select %p159, %s14, 1
      %s161 = smul.addr %s160, 8
      %s162 = scalar_lea.vmem %s0, %s161
      %p163 = scmp.lt.s32.totalorder %s14, 1
      %s164 = scalar_select %p163, %s14, 1
      %s165 = smul.addr %s164, 2
      %s166 = smul.addr %s165, 8
      %s167 = scalar_lea.vmem %s3, %s166
      %v168 = vld [vmem:[%s162] sm:$0xff]
      %v169 = vld [vmem:[%s1] sm:$0xff]
      %v170 = vld [vmem:[%s1 + $0x8] sm:$0xff]
      %173 = vrot.lane.b32.xlu0 %v169, 120
      %v174 = vpop.permute.xlu0 %173
      %175 = vrot.lane.b32.xlu0 %v170, 120
      %v176 = vpop.permute.xlu0 %175
      %178 = vrot.lane.b32.xlu0 %v168, 127
      %v179 = vpop.permute.xlu0 %178
      %vm181 = vcmask 64512
      %v182 = vsel %vm181, %v174, 0
      %v184 = vsel %vm181, %v176, 0
      %186 = vmatprep.subr.mxu0 0.0
      %187 = vmatpush1.msra.mxu0 %v179
      %188 = vmatprep.subr.mxu0 0.0
      %189 = vmatpush1.msra.mxu0 0.0
      %190 = vmatprep.subr.mxu0 0.0
      %191 = vmatpush1.msra.mxu0 0.0
      %192 = vmatprep.subr.mxu0 0.0
      %193 = vmatpush1.msra.mxu0 0.0
      %194 = vmatprep.subr.mxu0 0.0
      %195 = vmatpush1.msra.mxu0 0.0
      %196 = vmatprep.subr.mxu0 0.0
      %197 = vmatpush1.msra.mxu0 0.0
      %198 = vmatprep.subr.mxu0 0.0
      %199 = vmatpush1.msra.mxu0 0.0
      %200 = vmatprep.subr.mxu0 0.0
      %201 = vmatpush1.msra.mxu0 0.0
      %202 = vmatprep.subr.mxu0 0.0
      %203 = vmatpush1.msra.mxu0 0.0
      %204 = vmatprep.subr.mxu0 0.0
      %205 = vmatpush1.msra.mxu0 0.0
      %206 = vmatprep.subr.mxu0 0.0
      %207 = vmatpush1.msra.mxu0 0.0
      %208 = vmatprep.subr.mxu0 0.0
      %209 = vmatpush1.msra.mxu0 0.0
      %210 = vmatprep.subr.mxu0 0.0
      %211 = vmatpush1.msra.mxu0 0.0
      %212 = vmatprep.subr.mxu0 0.0
      %213 = vmatpush1.msra.mxu0 0.0
      %214 = vmatprep.subr.mxu0 0.0
      %215 = vmatpush1.msra.mxu0 0.0
      %216 = vmatprep.subr.mxu0 0.0
      %217 = vmatpush1.msra.mxu0 0.0
      %218 = vmatprep.subr.mxu0 0.0
      %219 = vmatpush1.msra.mxu0 0.0
      %220 = vmatprep.subr.mxu0 0.0
      %221 = vmatpush1.msra.mxu0 0.0
      %222 = vmatprep.subr.mxu0 0.0
      %223 = vmatpush1.msra.mxu0 0.0
      %224 = vmatprep.subr.mxu0 0.0
      %225 = vmatpush1.msra.mxu0 0.0
      %226 = vmatprep.subr.mxu0 0.0
      %227 = vmatpush1.msra.mxu0 0.0
      %228 = vmatprep.subr.mxu0 0.0
      %229 = vmatpush1.msra.mxu0 0.0
      %230 = vmatprep.subr.mxu0 0.0
      %231 = vmatpush1.msra.mxu0 0.0
      %232 = vmatprep.subr.mxu0 0.0
      %233 = vmatpush1.msra.mxu0 0.0
      %234 = vmatprep.subr.mxu0 0.0
      %235 = vmatpush1.msra.mxu0 0.0
      %236 = vmatprep.subr.mxu0 0.0
      %237 = vmatpush1.msra.mxu0 0.0
      %238 = vmatprep.subr.mxu0 0.0
      %239 = vmatpush1.msra.mxu0 0.0
      %240 = vmatprep.subr.mxu0 0.0
      %241 = vmatpush1.msra.mxu0 0.0
      %242 = vmatprep.subr.mxu0 0.0
      %243 = vmatpush1.msra.mxu0 0.0
      %244 = vmatprep.subr.mxu0 0.0
      %245 = vmatpush1.msra.mxu0 0.0
      %246 = vmatprep.subr.mxu0 0.0
      %247 = vmatpush1.msra.mxu0 0.0
      %248 = vmatprep.subr.mxu0 0.0
      %249 = vmatpush1.msra.mxu0 0.0
      %250 = vmatprep.mubr.f32.mxu0 0.0
      %251 = vmatmul.mubr.f32.gmra.mrb[0].mxu0 %v182
      %v252 = vpop.f32.mrb[0].mxu0
      %v253 = vadd.f32 0.0, %v252
      %v254 = vpop.f32.mrb[0].mxu0
      %255 = vmatprep.mubr.f32.mxu0 0.0
      %256 = vmatmul.mubr.f32.gmra.mrb[0].mxu0 %v184
      %v257 = vpop.f32.mrb[0].mxu0
      %v258 = vadd.f32 0.0, %v257
      %v259 = vpop.f32.mrb[0].mxu0
      %260 = vdwg.mxu0
      %v261 = vsel %vm181, %v169, 0
      %v263 = vsel %vm181, %v170, 0
      %265 = vmatprep.subr.mxu0 0.0
      %266 = vmatpush1.msra.mxu0 %v168
      %267 = vmatprep.subr.mxu0 0.0
      %268 = vmatpush1.msra.mxu0 0.0
      %269 = vmatprep.subr.mxu0 0.0
      %270 = vmatpush1.msra.mxu0 0.0
      %271 = vmatprep.subr.mxu0 0.0
      %272 = vmatpush1.msra.mxu0 0.0
      %273 = vmatprep.subr.mxu0 0.0
      %274 = vmatpush1.msra.mxu0 0.0
      %275 = vmatprep.subr.mxu0 0.0
      %276 = vmatpush1.msra.mxu0 0.0
      %277 = vmatprep.subr.mxu0 0.0
      %278 = vmatpush1.msra.mxu0 0.0
      %279 = vmatprep.subr.mxu0 0.0
      %280 = vmatpush1.msra.mxu0 0.0
      %281 = vmatprep.subr.mxu0 0.0
      %282 = vmatpush1.msra.mxu0 0.0
      %283 = vmatprep.subr.mxu0 0.0
      %284 = vmatpush1.msra.mxu0 0.0
      %285 = vmatprep.subr.mxu0 0.0
      %286 = vmatpush1.msra.mxu0 0.0
      %287 = vmatprep.subr.mxu0 0.0
      %288 = vmatpush1.msra.mxu0 0.0
      %289 = vmatprep.subr.mxu0 0.0
      %290 = vmatpush1.msra.mxu0 0.0
      %291 = vmatprep.subr.mxu0 0.0
      %292 = vmatpush1.msra.mxu0 0.0
      %293 = vmatprep.subr.mxu0 0.0
      %294 = vmatpush1.msra.mxu0 0.0
      %295 = vmatprep.subr.mxu0 0.0
      %296 = vmatpush1.msra.mxu0 0.0
      %297 = vmatprep.subr.mxu0 0.0
      %298 = vmatpush1.msra.mxu0 0.0
      %299 = vmatprep.subr.mxu0 0.0
      %300 = vmatpush1.msra.mxu0 0.0
      %301 = vmatprep.subr.mxu0 0.0
      %302 = vmatpush1.msra.mxu0 0.0
      %303 = vmatprep.subr.mxu0 0.0
      %304 = vmatpush1.msra.mxu0 0.0
      %305 = vmatprep.subr.mxu0 0.0
      %306 = vmatpush1.msra.mxu0 0.0
      %307 = vmatprep.subr.mxu0 0.0
      %308 = vmatpush1.msra.mxu0 0.0
      %309 = vmatprep.subr.mxu0 0.0
      %310 = vmatpush1.msra.mxu0 0.0
      %311 = vmatprep.subr.mxu0 0.0
      %312 = vmatpush1.msra.mxu0 0.0
      %313 = vmatprep.subr.mxu0 0.0
      %314 = vmatpush1.msra.mxu0 0.0
      %315 = vmatprep.subr.mxu0 0.0
      %316 = vmatpush1.msra.mxu0 0.0
      %317 = vmatprep.subr.mxu0 0.0
      %318 = vmatpush1.msra.mxu0 0.0
      %319 = vmatprep.subr.mxu0 0.0
      %320 = vmatpush1.msra.mxu0 0.0
      %321 = vmatprep.subr.mxu0 0.0
      %322 = vmatpush1.msra.mxu0 0.0
      %323 = vmatprep.subr.mxu0 0.0
      %324 = vmatpush1.msra.mxu0 0.0
      %325 = vmatprep.subr.mxu0 0.0
      %326 = vmatpush1.msra.mxu0 0.0
      %327 = vmatprep.subr.mxu0 0.0
      %328 = vmatpush1.msra.mxu0 0.0
      %329 = vmatprep.mubr.f32.mxu0 0.0
      %330 = vmatmul.mubr.f32.gmra.mrb[0].mxu0 %v261
      %v331 = vpop.f32.mrb[0].mxu0
      %v332 = vadd.f32 %v253, %v331
      %v333 = vpop.f32.mrb[0].mxu0
      %334 = vmatprep.mubr.f32.mxu0 0.0
      %335 = vmatmul.mubr.f32.gmra.mrb[0].mxu0 %v263
      %v336 = vpop.f32.mrb[0].mxu0
      %v337 = vadd.f32 %v258, %v336
      %v338 = vpop.f32.mrb[0].mxu0
      %339 = vdwg.mxu0
      %340 = vrot.lane.b32.xlu0 %v169, 112
      %v341 = vpop.permute.xlu0 %340
      %342 = vrot.lane.b32.xlu0 %v170, 112
      %v343 = vpop.permute.xlu0 %342
      %344 = vrot.lane.b32.xlu0 %v168, 119
      %v345 = vpop.permute.xlu0 %344
      %v347 = vsel %vm181, %v341, 0
      %v349 = vsel %vm181, %v343, 0
      %351 = vmatprep.subr.mxu0 0.0
      %352 = vmatpush1.msra.mxu0 %v345
      %353 = vmatprep.subr.mxu0 0.0
      %354 = vmatpush1.msra.mxu0 0.0
      %355 = vmatprep.subr.mxu0 0.0
      %356 = vmatpush1.msra.mxu0 0.0
      %357 = vmatprep.subr.mxu0 0.0
      %358 = vmatpush1.msra.mxu0 0.0
      %359 = vmatprep.subr.mxu0 0.0
      %360 = vmatpush1.msra.mxu0 0.0
      %361 = vmatprep.subr.mxu0 0.0
      %362 = vmatpush1.msra.mxu0 0.0
      %363 = vmatprep.subr.mxu0 0.0
      %364 = vmatpush1.msra.mxu0 0.0
      %365 = vmatprep.subr.mxu0 0.0
      %366 = vmatpush1.msra.mxu0 0.0
      %367 = vmatprep.subr.mxu0 0.0
      %368 = vmatpush1.msra.mxu0 0.0
      %369 = vmatprep.subr.mxu0 0.0
      %370 = vmatpush1.msra.mxu0 0.0
      %371 = vmatprep.subr.mxu0 0.0
      %372 = vmatpush1.msra.mxu0 0.0
      %373 = vmatprep.subr.mxu0 0.0
      %374 = vmatpush1.msra.mxu0 0.0
      %375 = vmatprep.subr.mxu0 0.0
      %376 = vmatpush1.msra.mxu0 0.0
      %377 = vmatprep.subr.mxu0 0.0
      %378 = vmatpush1.msra.mxu0 0.0
      %379 = vmatprep.subr.mxu0 0.0
      %380 = vmatpush1.msra.mxu0 0.0
      %381 = vmatprep.subr.mxu0 0.0
      %382 = vmatpush1.msra.mxu0 0.0
      %383 = vmatprep.subr.mxu0 0.0
      %384 = vmatpush1.msra.mxu0 0.0
      %385 = vmatprep.subr.mxu0 0.0
      %386 = vmatpush1.msra.mxu0 0.0
      %387 = vmatprep.subr.mxu0 0.0
      %388 = vmatpush1.msra.mxu0 0.0
      %389 = vmatprep.subr.mxu0 0.0
      %390 = vmatpush1.msra.mxu0 0.0
      %391 = vmatprep.subr.mxu0 0.0
      %392 = vmatpush1.msra.mxu0 0.0
      %393 = vmatprep.subr.mxu0 0.0
      %394 = vmatpush1.msra.mxu0 0.0
      %395 = vmatprep.subr.mxu0 0.0
      %396 = vmatpush1.msra.mxu0 0.0
      %397 = vmatprep.subr.mxu0 0.0
      %398 = vmatpush1.msra.mxu0 0.0
      %399 = vmatprep.subr.mxu0 0.0
      %400 = vmatpush1.msra.mxu0 0.0
      %401 = vmatprep.subr.mxu0 0.0
      %402 = vmatpush1.msra.mxu0 0.0
      %403 = vmatprep.subr.mxu0 0.0
      %404 = vmatpush1.msra.mxu0 0.0
      %405 = vmatprep.subr.mxu0 0.0
      %406 = vmatpush1.msra.mxu0 0.0
      %407 = vmatprep.subr.mxu0 0.0
      %408 = vmatpush1.msra.mxu0 0.0
      %409 = vmatprep.subr.mxu0 0.0
      %410 = vmatpush1.msra.mxu0 0.0
      %411 = vmatprep.subr.mxu0 0.0
      %412 = vmatpush1.msra.mxu0 0.0
      %413 = vmatprep.subr.mxu0 0.0
      %414 = vmatpush1.msra.mxu0 0.0
      %415 = vmatprep.mubr.f32.mxu0 0.0
      %416 = vmatmul.mubr.f32.gmra.mrb[0].mxu0 %v347
      %v417 = vpop.f32.mrb[0].mxu0
      %v418 = vadd.f32 0.0, %v417
      %v419 = vpop.f32.mrb[0].mxu0
      %420 = vmatprep.mubr.f32.mxu0 0.0
      %421 = vmatmul.mubr.f32.gmra.mrb[0].mxu0 %v349
      %v422 = vpop.f32.mrb[0].mxu0
      %v423 = vadd.f32 0.0, %v422
      %v424 = vpop.f32.mrb[0].mxu0
      %425 = vdwg.mxu0
      %v426 = vadd.f32 %v332, %v418
      %v427 = vadd.f32 %v337, %v423
      %428 = vrot.lane.b32.xlu0 %v169, 104
      %v429 = vpop.permute.xlu0 %428
      %430 = vrot.lane.b32.xlu0 %v170, 104
      %v431 = vpop.permute.xlu0 %430
      %432 = vrot.lane.b32.xlu0 %v168, 118
      %v433 = vpop.permute.xlu0 %432
      %v435 = vsel %vm181, %v429, 0
      %v437 = vsel %vm181, %v431, 0
      %439 = vmatprep.subr.mxu0 0.0
      %440 = vmatpush1.msra.mxu0 %v433
      %441 = vmatprep.subr.mxu0 0.0
      %442 = vmatpush1.msra.mxu0 0.0
      %443 = vmatprep.subr.mxu0 0.0
      %444 = vmatpush1.msra.mxu0 0.0
      %445 = vmatprep.subr.mxu0 0.0
      %446 = vmatpush1.msra.mxu0 0.0
      %447 = vmatprep.subr.mxu0 0.0
      %448 = vmatpush1.msra.mxu0 0.0
      %449 = vmatprep.subr.mxu0 0.0
      %450 = vmatpush1.msra.mxu0 0.0
      %451 = vmatprep.subr.mxu0 0.0
      %452 = vmatpush1.msra.mxu0 0.0
      %453 = vmatprep.subr.mxu0 0.0
      %454 = vmatpush1.msra.mxu0 0.0
      %455 = vmatprep.subr.mxu0 0.0
      %456 = vmatpush1.msra.mxu0 0.0
      %457 = vmatprep.subr.mxu0 0.0
      %458 = vmatpush1.msra.mxu0 0.0
      %459 = vmatprep.subr.mxu0 0.0
      %460 = vmatpush1.msra.mxu0 0.0
      %461 = vmatprep.subr.mxu0 0.0
      %462 = vmatpush1.msra.mxu0 0.0
      %463 = vmatprep.subr.mxu0 0.0
      %464 = vmatpush1.msra.mxu0 0.0
      %465 = vmatprep.subr.mxu0 0.0
      %466 = vmatpush1.msra.mxu0 0.0
      %467 = vmatprep.subr.mxu0 0.0
      %468 = vmatpush1.msra.mxu0 0.0
      %469 = vmatprep.subr.mxu0 0.0
      %470 = vmatpush1.msra.mxu0 0.0
      %471 = vmatprep.subr.mxu0 0.0
      %472 = vmatpush1.msra.mxu0 0.0
      %473 = vmatprep.subr.mxu0 0.0
      %474 = vmatpush1.msra.mxu0 0.0
      %475 = vmatprep.subr.mxu0 0.0
      %476 = vmatpush1.msra.mxu0 0.0
      %477 = vmatprep.subr.mxu0 0.0
      %478 = vmatpush1.msra.mxu0 0.0
      %479 = vmatprep.subr.mxu0 0.0
      %480 = vmatpush1.msra.mxu0 0.0
      %481 = vmatprep.subr.mxu0 0.0
      %482 = vmatpush1.msra.mxu0 0.0
      %483 = vmatprep.subr.mxu0 0.0
      %484 = vmatpush1.msra.mxu0 0.0
      %485 = vmatprep.subr.mxu0 0.0
      %486 = vmatpush1.msra.mxu0 0.0
      %487 = vmatprep.subr.mxu0 0.0
      %488 = vmatpush1.msra.mxu0 0.0
      %489 = vmatprep.subr.mxu0 0.0
      %490 = vmatpush1.msra.mxu0 0.0
      %491 = vmatprep.subr.mxu0 0.0
      %492 = vmatpush1.msra.mxu0 0.0
      %493 = vmatprep.subr.mxu0 0.0
      %494 = vmatpush1.msra.mxu0 0.0
      %495 = vmatprep.subr.mxu0 0.0
      %496 = vmatpush1.msra.mxu0 0.0
      %497 = vmatprep.subr.mxu0 0.0
      %498 = vmatpush1.msra.mxu0 0.0
      %499 = vmatprep.subr.mxu0 0.0
      %500 = vmatpush1.msra.mxu0 0.0
      %501 = vmatprep.subr.mxu0 0.0
      %502 = vmatpush1.msra.mxu0 0.0
      %503 = vmatprep.mubr.f32.mxu0 0.0
      %504 = vmatmul.mubr.f32.gmra.mrb[0].mxu0 %v435
      %v505 = vpop.f32.mrb[0].mxu0
      %v506 = vadd.f32 0.0, %v505
      %v507 = vpop.f32.mrb[0].mxu0
      %508 = vmatprep.mubr.f32.mxu0 0.0
      %509 = vmatmul.mubr.f32.gmra.mrb[0].mxu0 %v437
      %v510 = vpop.f32.mrb[0].mxu0
      %v511 = vadd.f32 0.0, %v510
      %v512 = vpop.f32.mrb[0].mxu0
      %513 = vdwg.mxu0
      %v514 = vadd.f32 %v426, %v506
      %v515 = vadd.f32 %v427, %v511
      %v516 = vld [vmem:[%s2] sm:$0xff]
      %v517 = vld [vmem:[%s2 + $0x8] sm:$0xff]
      %519 = vset.pattern.permute.xlu0 0
      %520 = vperm.xlu0 %519, %v516
      %v521 = vpop.permute.xlu0 %520
      %524 = vset.pattern.permute.xlu0 0
      %525 = vperm.xlu0 %524, %v517
      %v526 = vpop.permute.xlu0 %525
      %v528 = vadd.f32 %v514, %v521
      %v529 = vadd.f32 %v515, %v526
      %vm530 = vcmask 588800
      %531 = vst.msk [vmem:[%s167] sm:$0xff] %vm530, %v528
      %532 = vst.msk [vmem:[%s167 + $0x8] sm:$0xff] %vm530, %v529
      %p533 = scmp.lt.s32.totalorder %s14, 1
      %s534 = scalar_select %p533, %s14, 1
      %s535 = smul.addr %s534, 2
      %s536 = smul.addr %s535, 8
      %s537 = scalar_lea.vmem %s3, %s536
      // Predicated region
      $region33: #{a_call__.4} parent=31 // pred_check
        %p538 = pneg %p100
      $region34: #{a_call__.4} parent=31 // pred_check_branch
        %540 = sbr.rel (%p538) target = $region36
      $region35: #{a_call__.4} parent=31 // pred_region
        _
      $region36: #{a_call__.4} parent=31 // pred_fallthru
        _
    $region32: #{a_call__.4} parent=5 // pred_fallthru
      _
    %p541 = scmp.le.s32.totalorder 2, %s9
    // Predicated region
    $region37: #{a_call__.4} parent=5 // pred_check
      %p542 = pneg %p541
    $region38: #{a_call__.4} parent=5 // pred_check_branch
      %544 = sbr.rel (%p542) target = $region40
    $region39: #{a_call__.4} parent=5 // pred_region
      %s545 = ssub.s32 %s9, 2
      // Predicated region
      $region41: #{a_call__.4} parent=39 // pred_check
        %p546 = pneg %p106
      $region42: #{a_call__.4} parent=39 // pred_check_branch
        %548 = sbr.rel (%p546) target = $region44
      $region43: #{a_call__.4} parent=39 // pred_region
        %p549 = scmp.lt.s32.totalorder %s15, 1
        %s550 = scalar_select %p549, %s15, 1
        %s551 = smul.addr %s550, 2
        %s552 = smul.addr %s551, 8
        %s553 = scalar_lea.vmem %s3, %s552
      $region44: #{a_call__.4} parent=39 // pred_fallthru
        _
    $region40: #{a_call__.4} parent=5 // pred_fallthru
      _
  $region6: #{a_call__.4} parent=0 // loop_footer
    %s13 = sadd.s32 1, %s9
  $region7: #{a_call__.4} parent=0 // loop_footer_branch
    %8 = sbr.rel target = $region3
  $region8: #{a_call__.4} parent=0 // loop_exit
    _

// kernel: a_call__.7
$region0: #{a_call__.7}
  #allocation0 [shape = 'u32[]', space=smem, size = 0x4, offset = 0x4, fixed_abs, tag = 'smem constant byte address 0x4 - core index']
  #allocation1 [shape = 'u32[144,128]{1,0:T(1,128)}', space=vmem, size = 0x12000, scoped, tag = 'internal scratch']
  %s0 = inlined_call_operand.vmem [shape: f32[2,8,16,18], index: 0, kind: input, shape index: {}]
  %s1 = inlined_call_operand.vmem [shape: f32[4,1,1], index: 1, kind: input, shape index: {}]
  %s2 = inlined_call_operand.vmem [shape: f32[4,1,1], index: 2, kind: input, shape index: {}]
  %s3 = inlined_call_operand.hbm [shape: f32[2,4,16,16], index: 3, kind: output, shape index: {}]
  %s4 = sld [smem:[#allocation0]]
  $region45: #{a_call__.7} parent=0
    _
  %s6 = ssub.s32 1, %s4
  %s7 = scalar_select 0, %s6, %s4
  $region1: #{a_call__.7} parent=0
    #allocation2 [shape = 'u8[65536]{0}', space=vmem, size = 0x10000, scoped, tag = 'output window, operand 0']
    #allocation3 [shape = 's32[2]{0}', space=sflag, size = 0x8, scoped, tag = 'scoped memory for a_call__.7']
    %8 = vsyncpa [#allocation3], 0
    %s9 = scalar_lea.sflag [#allocation3], 1
    %10 = vsyncpa %s9, 0
    loop: start=0, step=1, limit=4
    $region2: #{a_call__.7} parent=1 // loop_pre_header
      _
    $region3: #{a_call__.7} parent=1 // loop_header
      %s12 = sphi 0, %s16
      %p13 = scmp.ge.s32.totalorder %s12, 4
      %s22 = sphi 0, %s24
      %s25 = sphi 0, %s22
      %s26 = sphi 0, %s25
      %s42 = sphi 0, %s26
      %s46 = sphi 0, %s46
      %s48 = sphi 0, %s46
      %s49 = sphi 0, %s48
      %s63 = sphi 0, %s49
      %s67 = sphi 0, %s67
      %s69 = sphi 0, %s67
      %s70 = sphi 0, %s69
      %s84 = sphi 0, %s70
      %s90 = sphi 0, %s92
      %s93 = sphi 0, %s90
      %s94 = sphi 0, %s93
      %s110 = sphi 0, %s94
    $region4: #{a_call__.7} parent=1 // loop_header_branch
      %15 = sbr.rel (%p13) target = $region8
    $region5: #{a_call__.7} parent=1 // loop_body
      %s17 = ssub.s32 %s12, 1
      %s18 = ssub.s32 %s12, 2
      %s19 = sadd.s32 %s12, 1
      %s20 = ssub.s32 %s12, %s19
      %p21 = scmp.eq.s32.totalorder %s20, 0
      %s23 = sadd.s32 %s22, 1
      %s24 = scalar_select %p21, %s22, %s23
      %p27 = pneg %p21
      %p28 = scmp.eq.s32.totalorder %s12, 1
      %p29 = por %p27, %p28
      %p30 = scmp.ne.s32.totalorder %s22, %s25
      %p31 = scmp.eq.s32.totalorder %s12, 0
      %p32 = por %p30, %p31
      %p33 = scmp.ne.s32.totalorder %s22, %s25
      %p34 = scmp.eq.s32.totalorder %s17, 1
      %p35 = por %p33, %p34
      %p36 = scmp.ne.s32.totalorder %s25, %s26
      %p37 = scmp.eq.s32.totalorder %s17, 0
      %p38 = por %p36, %p37
      %p39 = scmp.ne.s32.totalorder %s25, %s26
      %p40 = scmp.eq.s32.totalorder %s18, 1
      %p41 = por %p39, %p40
      %p43 = scmp.ne.s32.totalorder %s26, %s42
      %p44 = scmp.eq.s32.totalorder %s18, 0
      %p45 = por %p43, %p44
      %s47 = sadd.s32 %s46, 1
      %p50 = scmp.eq.s32.totalorder %s12, 1
      %p51 = scmp.ne.s32.totalorder %s46, %s48
      %p52 = scmp.eq.s32.totalorder %s12, 0
      %p53 = por %p51, %p52
      %p54 = scmp.ne.s32.totalorder %s46, %s48
      %p55 = scmp.eq.s32.totalorder %s17, 1
      %p56 = por %p54, %p55
      %p57 = scmp.ne.s32.totalorder %s48, %s49
      %p58 = scmp.eq.s32.totalorder %s17, 0
      %p59 = por %p57, %p58
      %p60 = scmp.ne.s32.totalorder %s48, %s49
      %p61 = scmp.eq.s32.totalorder %s18, 1
      %p62 = por %p60, %p61
      %p64 = scmp.ne.s32.totalorder %s49, %s63
      %p65 = scmp.eq.s32.totalorder %s18, 0
      %p66 = por %p64, %p65
      %s68 = sadd.s32 %s67, 1
      %p71 = scmp.eq.s32.totalorder %s12, 1
      %p72 = scmp.ne.s32.totalorder %s67, %s69
      %p73 = scmp.eq.s32.totalorder %s12, 0
      %p74 = por %p72, %p73
      %p75 = scmp.ne.s32.totalorder %s67, %s69
      %p76 = scmp.eq.s32.totalorder %s17, 1
      %p77 = por %p75, %p76
      %p78 = scmp.ne.s32.totalorder %s69, %s70
      %p79 = scmp.eq.s32.totalorder %s17, 0
      %p80 = por %p78, %p79
      %p81 = scmp.ne.s32.totalorder %s69, %s70
      %p82 = scmp.eq.s32.totalorder %s18, 1
      %p83 = por %p81, %p82
      %p85 = scmp.ne.s32.totalorder %s70, %s84
      %p86 = scmp.eq.s32.totalorder %s18, 0
      %p87 = por %p85, %p86
      %s88 = ssub.s32 %s12, %s19
      %p89 = scmp.eq.s32.totalorder %s88, 0
      %s91 = sadd.s32 %s90, 1
      %s92 = scalar_select %p89, %s90, %s91
      %p95 = pneg %p89
      %p96 = scmp.eq.s32.totalorder %s12, 1
      %p97 = por %p95, %p96
      %p98 = scmp.ne.s32.totalorder %s90, %s93
      %p99 = scmp.eq.s32.totalorder %s12, 0
      %p100 = por %p98, %p99
      %p101 = scmp.ne.s32.totalorder %s90, %s93
      %p102 = scmp.eq.s32.totalorder %s17, 1
      %p103 = por %p101, %p102
      %p104 = scmp.ne.s32.totalorder %s93, %s94
      %p105 = scmp.eq.s32.totalorder %s17, 0
      %p106 = por %p104, %p105
      %p107 = scmp.ne.s32.totalorder %s93, %s94
      %p108 = scmp.eq.s32.totalorder %s18, 1
      %p109 = por %p107, %p108
      %p111 = scmp.ne.s32.totalorder %s94, %s110
      %p112 = scmp.eq.s32.totalorder %s18, 0
      %p113 = por %p111, %p112
      %p114 = scmp.le.s32.totalorder 1, %s12
      %p115 = scmp.lt.s32.totalorder %s12, 3
      %p116 = pnand %p114, %p115
      %p117 = pneg %p116
      // Predicated region
      $region9: #{a_call__.7} parent=5 // pred_check
        _
      $region10: #{a_call__.7} parent=5 // pred_check_branch
        %119 = sbr.rel (%p116) target = $region12
      $region11: #{a_call__.7} parent=5 // pred_region
        %s120 = ssub.s32 %s12, 1
        // Predicated region
        $region13: #{a_call__.7} parent=11 // pred_check
          %p121 = pneg %p59
        $region14: #{a_call__.7} parent=11 // pred_check_branch
          %123 = sbr.rel (%p121) target = $region16
        $region15: #{a_call__.7} parent=11 // pred_region
          _
        $region16: #{a_call__.7} parent=11 // pred_fallthru
          _
        // Predicated region
        $region17: #{a_call__.7} parent=11 // pred_check
          %p124 = pneg %p80
        $region18: #{a_call__.7} parent=11 // pred_check_branch
          %126 = sbr.rel (%p124) target = $region20
        $region19: #{a_call__.7} parent=11 // pred_region
          _
        $region20: #{a_call__.7} parent=11 // pred_fallthru
          _
      $region12: #{a_call__.7} parent=5 // pred_fallthru
        _
      %p127 = scmp.lt.s32.totalorder %s12, 2
      // Predicated region
      $region21: #{a_call__.7} parent=5 // pred_check
        %p128 = pneg %p127
      $region22: #{a_call__.7} parent=5 // pred_check_branch
        %130 = sbr.rel (%p128) target = $region24
      $region23: #{a_call__.7} parent=5 // pred_region
        // Predicated region
        $region25: #{a_call__.7} parent=23 // pred_check
          %p131 = pneg %p32
        $region26: #{a_call__.7} parent=23 // pred_check_branch
          %133 = sbr.rel (%p131) target = $region28
        $region27: #{a_call__.7} parent=23 // pred_region
          %p134 = scmp.lt.s32.totalorder %s12, 1
          %s135 = scalar_select %p134, %s12, 1
          %s136 = smul.addr %s135, 16
          %s137 = smul.addr %s136, 8
          %s138 = scalar_lea.vmem %s0, %s137
        $region28: #{a_call__.7} parent=23 // pred_fallthru
          _
      $region24: #{a_call__.7} parent=5 // pred_fallthru
        _
      %p139 = scmp.le.s32.totalorder 1, %s12
      %p140 = scmp.lt.s32.totalorder %s12, 3
      %p141 = pnand %p139, %p140
      %p142 = pneg %p141
      // Predicated region
      $region29: #{a_call__.7} parent=5 // pred_check
        _
      $region30: #{a_call__.7} parent=5 // pred_check_branch
        %144 = sbr.rel (%p141) target = $region32
      $region31: #{a_call__.7} parent=5 // pred_region
        %s145 = ssub.s32 %s12, 1
        %p146 = scmp.lt.s32.totalorder %s17, 1
        %s147 = scalar_select %p146, %s17, 1
        %s148 = smul.addr %s147, 16
        %s149 = smul.addr %s148, 8
        %s150 = scalar_lea.vmem %s0, %s149
        %p151 = pneg %p38
        %p152 = pneg %p35
        %p153 = pneg %p59
        %p154 = pneg %p56
        %p155 = pneg %p80
        %p156 = pneg %p77
        %p157 = pneg %p106
        %p158 = pneg %p103
        %s159 = sand.u32 %s93, 1
        %s160 = scalar_lea.sflag [#allocation3], %s159
        %s161 = sand.u32 %s93, 1
        %s162 = smul.addr %s161, 64
        %s163 = scalar_lea.vmem [#allocation2], %s162
        %p164 = scmp.lt.s32.totalorder %s17, 1
        %s165 = scalar_select %p164, %s17, 1
        %s166 = smul.addr %s165, 16
        %s167 = smul.addr %s166, 8
        %s168 = scalar_lea.vmem %s0, %s167
        %v169 = vld [vmem:[%s168] sm:$0xff]
        %v170 = vld [vmem:[%s168 + $0x8] sm:$0xff]
        %v171 = vld [vmem:[%s168 + $0x10] sm:$0xff]
        %v172 = vld [vmem:[%s168 + $0x18] sm:$0xff]
        %v173 = vld [vmem:[%s168 + $0x20] sm:$0xff]
        %v174 = vld [vmem:[%s168 + $0x28] sm:$0xff]
        %v175 = vld [vmem:[%s168 + $0x30] sm:$0xff]
        %v176 = vld [vmem:[%s168 + $0x38] sm:$0xff]
        %v177 = vld [vmem:[%s1] sm:$0x1]
        %v178 = vld [vmem:[%s1 + $0x1] sm:$0x1]
        %v179 = vld [vmem:[%s1 + $0x2] sm:$0x1]
        %v180 = vld [vmem:[%s1 + $0x3] sm:$0x1]
        %v185 = vlaneseq
        %v186 = vshrl.u32 %v185, 7
        %v187 = vsub.s32 0, %v186
        %v188 = vrot.slane %v177, %v187
        %v189 = vlaneseq
        %v190 = vshrl.u32 %v189, 7
        %v191 = vsub.s32 0, %v190
        %v192 = vrot.slane %v178, %v191
        %v193 = vlaneseq
        %v194 = vshrl.u32 %v193, 7
        %v195 = vsub.s32 0, %v194
        %v196 = vrot.slane %v179, %v195
        %v197 = vlaneseq
        %v198 = vshrl.u32 %v197, 7
        %v199 = vsub.s32 0, %v198
        %v200 = vrot.slane %v180, %v199
        %201 = vset.pattern.permute.xlu0 0
        %202 = vperm.xlu0 %201, %v188
        %v203 = vpop.permute.xlu0 %202
        %205 = vset.pattern.permute.xlu0 0
        %206 = vperm.xlu0 %205, %v192
        %v207 = vpop.permute.xlu0 %206
        %209 = vset.pattern.permute.xlu0 0
        %210 = vperm.xlu0 %209, %v196
        %v211 = vpop.permute.xlu0 %210
        %213 = vset.pattern.permute.xlu0 0
        %214 = vperm.xlu0 %213, %v200
        %v215 = vpop.permute.xlu0 %214
        %v217 = vmul.f32 %v169, %v203
        %v218 = vmul.f32 %v170, %v203
        %v219 = vmul.f32 %v171, %v207
        %v220 = vmul.f32 %v172, %v207
        %v221 = vmul.f32 %v173, %v211
        %v222 = vmul.f32 %v174, %v211
        %v223 = vmul.f32 %v175, %v215
        %v224 = vmul.f32 %v176, %v215
        %v225 = vld [vmem:[%s2] sm:$0x1]
        %v226 = vld [vmem:[%s2 + $0x1] sm:$0x1]
        %v227 = vld [vmem:[%s2 + $0x2] sm:$0x1]
        %v228 = vld [vmem:[%s2 + $0x3] sm:$0x1]
        %v233 = vlaneseq
        %v234 = vshrl.u32 %v233, 7
        %v235 = vsub.s32 0, %v234
        %v236 = vrot.slane %v225, %v235
        %v237 = vlaneseq
        %v238 = vshrl.u32 %v237, 7
        %v239 = vsub.s32 0, %v238
        %v240 = vrot.slane %v226, %v239
        %v241 = vlaneseq
        %v242 = vshrl.u32 %v241, 7
        %v243 = vsub.s32 0, %v242
        %v244 = vrot.slane %v227, %v243
        %v245 = vlaneseq
        %v246 = vshrl.u32 %v245, 7
        %v247 = vsub.s32 0, %v246
        %v248 = vrot.slane %v228, %v247
        %249 = vset.pattern.permute.xlu0 0
        %250 = vperm.xlu0 %249, %v236
        %v251 = vpop.permute.xlu0 %250
        %253 = vset.pattern.permute.xlu0 0
        %254 = vperm.xlu0 %253, %v240
        %v255 = vpop.permute.xlu0 %254
        %257 = vset.pattern.permute.xlu0 0
        %258 = vperm.xlu0 %257, %v244
        %v259 = vpop.permute.xlu0 %258
        %261 = vset.pattern.permute.xlu0 0
        %262 = vperm.xlu0 %261, %v248
        %v263 = vpop.permute.xlu0 %262
        %v265 = vadd.f32 %v217, %v251
        %v266 = vadd.f32 %v218, %v251
        %v267 = vadd.f32 %v219, %v255
        %v268 = vadd.f32 %v220, %v255
        %v269 = vadd.f32 %v221, %v259
        %v270 = vadd.f32 %v222, %v259
        %v271 = vadd.f32 %v223, %v263
        %v272 = vadd.f32 %v224, %v263
        %v273 = vmax.f32 %v265, 0.0
        %v274 = vmax.f32 %v266, 0.0
        %v275 = vmax.f32 %v267, 0.0
        %v276 = vmax.f32 %v268, 0.0
        %v277 = vmax.f32 %v269, 0.0
        %v278 = vmax.f32 %v270, 0.0
        %v279 = vmax.f32 %v271, 0.0
        %v280 = vmax.f32 %v272, 0.0
        %vm281 = vcmask 130048
        %282 = vst.msk [vmem:[%s163] sm:$0xff] %vm281, %v273
        %283 = vst.msk [vmem:[%s163 + $0x8] sm:$0xff] %vm281, %v274
        %284 = vst.msk [vmem:[%s163 + $0x10] sm:$0xff] %vm281, %v275
        %285 = vst.msk [vmem:[%s163 + $0x18] sm:$0xff] %vm281, %v276
        %286 = vst.msk [vmem:[%s163 + $0x20] sm:$0xff] %vm281, %v277
        %287 = vst.msk [vmem:[%s163 + $0x28] sm:$0xff] %vm281, %v278
        %288 = vst.msk [vmem:[%s163 + $0x30] sm:$0xff] %vm281, %v279
        %289 = vst.msk [vmem:[%s163 + $0x38] sm:$0xff] %vm281, %v280
        %s290 = sand.u32 %s93, 1
        %s291 = scalar_lea.sflag [#allocation3], %s290
        %s292 = sand.u32 %s93, 1
        %s293 = smul.addr %s292, 64
        %s294 = scalar_lea.vmem [#allocation2], %s293
        // Predicated region
        $region33: #{a_call__.7} parent=31 // pred_check
          %p295 = pneg %p103
        $region34: #{a_call__.7} parent=31 // pred_check_branch
          %297 = sbr.rel (%p295) target = $region36
        $region35: #{a_call__.7} parent=31 // pred_region
          %s299 = ssub.s32 1024, 1024
          %300 = vsyncadd %s291, %s299
          %s301 = smul.addr %s17, 8
          %s302 = smul.addr %s301, 128
          %s303 = scalar_lea.hbm %s3, %s302
          %s304 = sshll.u32 %s294, 4
          %s305 = int_to_ptr.vmem [resolvable:$true] %s304
          %310 = dma.vmem_to_hbm [thread:$0]  %s305, 1024, %s303, %s291, 128, 128, 8
        $region36: #{a_call__.7} parent=31 // pred_fallthru
          _
      $region32: #{a_call__.7} parent=5 // pred_fallthru
        _
      %p311 = scmp.le.s32.totalorder 2, %s12
      // Predicated region
      $region37: #{a_call__.7} parent=5 // pred_check
        %p312 = pneg %p311
      $region38: #{a_call__.7} parent=5 // pred_check_branch
        %314 = sbr.rel (%p312) target = $region40
      $region39: #{a_call__.7} parent=5 // pred_region
        %s315 = ssub.s32 %s12, 2
        // Predicated region
        $region41: #{a_call__.7} parent=39 // pred_check
          %p316 = pneg %p109
        $region42: #{a_call__.7} parent=39 // pred_check_branch
          %318 = sbr.rel (%p316) target = $region44
        $region43: #{a_call__.7} parent=39 // pred_region
          %s319 = sand.u32 %s94, 1
          %s320 = scalar_lea.sflag [#allocation3], %s319
          %s321 = sand.u32 %s94, 1
          %s322 = smul.addr %s321, 64
          %s323 = scalar_lea.vmem [#allocation2], %s322
          %324 = dma.done %s320, 1024
        $region44: #{a_call__.7} parent=39 // pred_fallthru
          _
      $region40: #{a_call__.7} parent=5 // pred_fallthru
        _
    $region6: #{a_call__.7} parent=1 // loop_footer
      %s16 = sadd.s32 1, %s12
    $region7: #{a_call__.7} parent=1 // loop_footer_branch
      %11 = sbr.rel target = $region3
    $region8: #{a_call__.7} parent=1 // loop_exit
      _
    %325 = vsyncpa [#allocation3], 1
    %s326 = scalar_lea.sflag [#allocation3], 1
    %327 = vsyncpa %s326, 1

// kernel: a_call__.5
$region0: #{a_call__.5}
  #allocation0 [shape = 'u32[]', space=smem, size = 0x4, offset = 0x4, fixed_abs, tag = 'smem constant byte address 0x4 - core index']
  #allocation1 [shape = 'u32[144,128]{1,0:T(1,128)}', space=vmem, size = 0x12000, scoped, tag = 'internal scratch']
  %s0 = inlined_call_operand.vmem [shape: f32[2,4,384], index: 0, kind: input, shape index: {}]
  %s1 = inlined_call_operand.vmem [shape: f32[2,4,384], index: 1, kind: input, shape index: {}]
  %s2 = inlined_call_operand.vmem [shape: f32[8,36], index: 2, kind: input, shape index: {}]
  %s3 = inlined_call_operand.vmem [shape: f32[8,36], index: 3, kind: input, shape index: {}]
  %s4 = inlined_call_operand.vmem [shape: f32[8,1], index: 4, kind: input, shape index: {}]
  %s5 = inlined_call_operand.vmem [shape: f32[1,288], index: 5, kind: input, shape index: {}]
  %s6 = inlined_call_operand.vmem [shape: f32[2,8,384], index: 6, kind: output, shape index: {0}]
  %s7 = inlined_call_operand.vmem [shape: f32[2,8,1], index: 7, kind: output, shape index: {1}]
  %s8 = inlined_call_operand.vmem [shape: f32[2,8,1], index: 8, kind: output, shape index: {2}]
  %9 = xla_tuple %s6, %s7, %s8
  %s10 = sld [smem:[#allocation0]]
  $region73: #{a_call__.5} parent=0
    _
  %s12 = ssub.s32 1, %s10
  %s13 = scalar_select 0, %s12, %s10
  loop: start=0, step=1, limit=4
  $region2: #{a_call__.5} parent=0 // loop_pre_header
    _
  $region3: #{a_call__.5} parent=0 // loop_header
    %s15 = sphi 0, %s19
    %p16 = scmp.ge.s32.totalorder %s15, 4
    %s25 = sphi 0, %s27
    %s28 = sphi 0, %s25
    %s29 = sphi 0, %s28
    %s45 = sphi 0, %s29
    %s51 = sphi 0, %s53
    %s54 = sphi 0, %s51
    %s55 = sphi 0, %s54
    %s71 = sphi 0, %s55
    %s75 = sphi 0, %s75
    %s77 = sphi 0, %s75
    %s78 = sphi 0, %s77
    %s92 = sphi 0, %s78
    %s96 = sphi 0, %s96
    %s98 = sphi 0, %s96
    %s99 = sphi 0, %s98
    %s113 = sphi 0, %s99
    %s117 = sphi 0, %s117
    %s119 = sphi 0, %s117
    %s120 = sphi 0, %s119
    %s134 = sphi 0, %s120
    %s138 = sphi 0, %s138
    %s140 = sphi 0, %s138
    %s141 = sphi 0, %s140
    %s155 = sphi 0, %s141
    %s161 = sphi 0, %s163
    %s164 = sphi 0, %s161
    %s165 = sphi 0, %s164
    %s181 = sphi 0, %s165
    %s187 = sphi 0, %s189
    %s190 = sphi 0, %s187
    %s191 = sphi 0, %s190
    %s207 = sphi 0, %s191
    %s213 = sphi 0, %s215
    %s216 = sphi 0, %s213
    %s217 = sphi 0, %s216
    %s233 = sphi 0, %s217
  $region4: #{a_call__.5} parent=0 // loop_header_branch
    %18 = sbr.rel (%p16) target = $region8
  $region5: #{a_call__.5} parent=0 // loop_body
    %s20 = ssub.s32 %s15, 1
    %s21 = ssub.s32 %s15, 2
    %s22 = sadd.s32 %s15, 1
    %s23 = ssub.s32 %s15, %s22
    %p24 = scmp.eq.s32.totalorder %s23, 0
    %s26 = sadd.s32 %s25, 1
    %s27 = scalar_select %p24, %s25, %s26
    %p30 = pneg %p24
    %p31 = scmp.eq.s32.totalorder %s15, 1
    %p32 = por %p30, %p31
    %p33 = scmp.ne.s32.totalorder %s25, %s28
    %p34 = scmp.eq.s32.totalorder %s15, 0
    %p35 = por %p33, %p34
    %p36 = scmp.ne.s32.totalorder %s25, %s28
    %p37 = scmp.eq.s32.totalorder %s20, 1
    %p38 = por %p36, %p37
    %p39 = scmp.ne.s32.totalorder %s28, %s29
    %p40 = scmp.eq.s32.totalorder %s20, 0
    %p41 = por %p39, %p40
    %p42 = scmp.ne.s32.totalorder %s28, %s29
    %p43 = scmp.eq.s32.totalorder %s21, 1
    %p44 = por %p42, %p43
    %p46 = scmp.ne.s32.totalorder %s29, %s45
    %p47 = scmp.eq.s32.totalorder %s21, 0
    %p48 = por %p46, %p47
    %s49 = ssub.s32 %s15, %s22
    %p50 = scmp.eq.s32.totalorder %s49, 0
    %s52 = sadd.s32 %s51, 1
    %s53 = scalar_select %p50, %s51, %s52
    %p56 = pneg %p50
    %p57 = scmp.eq.s32.totalorder %s15, 1
    %p58 = por %p56, %p57
    %p59 = scmp.ne.s32.totalorder %s51, %s54
    %p60 = scmp.eq.s32.totalorder %s15, 0
    %p61 = por %p59, %p60
    %p62 = scmp.ne.s32.totalorder %s51, %s54
    %p63 = scmp.eq.s32.totalorder %s20, 1
    %p64 = por %p62, %p63
    %p65 = scmp.ne.s32.totalorder %s54, %s55
    %p66 = scmp.eq.s32.totalorder %s20, 0
    %p67 = por %p65, %p66
    %p68 = scmp.ne.s32.totalorder %s54, %s55
    %p69 = scmp.eq.s32.totalorder %s21, 1
    %p70 = por %p68, %p69
    %p72 = scmp.ne.s32.totalorder %s55, %s71
    %p73 = scmp.eq.s32.totalorder %s21, 0
    %p74 = por %p72, %p73
    %s76 = sadd.s32 %s75, 1
    %p79 = scmp.eq.s32.totalorder %s15, 1
    %p80 = scmp.ne.s32.totalorder %s75, %s77
    %p81 = scmp.eq.s32.totalorder %s15, 0
    %p82 = por %p80, %p81
    %p83 = scmp.ne.s32.totalorder %s75, %s77
    %p84 = scmp.eq.s32.totalorder %s20, 1
    %p85 = por %p83, %p84
    %p86 = scmp.ne.s32.totalorder %s77, %s78
    %p87 = scmp.eq.s32.totalorder %s20, 0
    %p88 = por %p86, %p87
    %p89 = scmp.ne.s32.totalorder %s77, %s78
    %p90 = scmp.eq.s32.totalorder %s21, 1
    %p91 = por %p89, %p90
    %p93 = scmp.ne.s32.totalorder %s78, %s92
    %p94 = scmp.eq.s32.totalorder %s21, 0
    %p95 = por %p93, %p94
    %s97 = sadd.s32 %s96, 1
    %p100 = scmp.eq.s32.totalorder %s15, 1
    %p101 = scmp.ne.s32.totalorder %s96, %s98
    %p102 = scmp.eq.s32.totalorder %s15, 0
    %p103 = por %p101, %p102
    %p104 = scmp.ne.s32.totalorder %s96, %s98
    %p105 = scmp.eq.s32.totalorder %s20, 1
    %p106 = por %p104, %p105
    %p107 = scmp.ne.s32.totalorder %s98, %s99
    %p108 = scmp.eq.s32.totalorder %s20, 0
    %p109 = por %p107, %p108
    %p110 = scmp.ne.s32.totalorder %s98, %s99
    %p111 = scmp.eq.s32.totalorder %s21, 1
    %p112 = por %p110, %p111
    %p114 = scmp.ne.s32.totalorder %s99, %s113
    %p115 = scmp.eq.s32.totalorder %s21, 0
    %p116 = por %p114, %p115
    %s118 = sadd.s32 %s117, 1
    %p121 = scmp.eq.s32.totalorder %s15, 1
    %p122 = scmp.ne.s32.totalorder %s117, %s119
    %p123 = scmp.eq.s32.totalorder %s15, 0
    %p124 = por %p122, %p123
    %p125 = scmp.ne.s32.totalorder %s117, %s119
    %p126 = scmp.eq.s32.totalorder %s20, 1
    %p127 = por %p125, %p126
    %p128 = scmp.ne.s32.totalorder %s119, %s120
    %p129 = scmp.eq.s32.totalorder %s20, 0
    %p130 = por %p128, %p129
    %p131 = scmp.ne.s32.totalorder %s119, %s120
    %p132 = scmp.eq.s32.totalorder %s21, 1
    %p133 = por %p131, %p132
    %p135 = scmp.ne.s32.totalorder %s120, %s134
    %p136 = scmp.eq.s32.totalorder %s21, 0
    %p137 = por %p135, %p136
    %s139 = sadd.s32 %s138, 1
    %p142 = scmp.eq.s32.totalorder %s15, 1
    %p143 = scmp.ne.s32.totalorder %s138, %s140
    %p144 = scmp.eq.s32.totalorder %s15, 0
    %p145 = por %p143, %p144
    %p146 = scmp.ne.s32.totalorder %s138, %s140
    %p147 = scmp.eq.s32.totalorder %s20, 1
    %p148 = por %p146, %p147
    %p149 = scmp.ne.s32.totalorder %s140, %s141
    %p150 = scmp.eq.s32.totalorder %s20, 0
    %p151 = por %p149, %p150
    %p152 = scmp.ne.s32.totalorder %s140, %s141
    %p153 = scmp.eq.s32.totalorder %s21, 1
    %p154 = por %p152, %p153
    %p156 = scmp.ne.s32.totalorder %s141, %s155
    %p157 = scmp.eq.s32.totalorder %s21, 0
    %p158 = por %p156, %p157
    %s159 = ssub.s32 %s15, %s22
    %p160 = scmp.eq.s32.totalorder %s159, 0
    %s162 = sadd.s32 %s161, 1
    %s163 = scalar_select %p160, %s161, %s162
    %p166 = pneg %p160
    %p167 = scmp.eq.s32.totalorder %s15, 1
    %p168 = por %p166, %p167
    %p169 = scmp.ne.s32.totalorder %s161, %s164
    %p170 = scmp.eq.s32.totalorder %s15, 0
    %p171 = por %p169, %p170
    %p172 = scmp.ne.s32.totalorder %s161, %s164
    %p173 = scmp.eq.s32.totalorder %s20, 1
    %p174 = por %p172, %p173
    %p175 = scmp.ne.s32.totalorder %s164, %s165
    %p176 = scmp.eq.s32.totalorder %s20, 0
    %p177 = por %p175, %p176
    %p178 = scmp.ne.s32.totalorder %s164, %s165
    %p179 = scmp.eq.s32.totalorder %s21, 1
    %p180 = por %p178, %p179
    %p182 = scmp.ne.s32.totalorder %s165, %s181
    %p183 = scmp.eq.s32.totalorder %s21, 0
    %p184 = por %p182, %p183
    %s185 = ssub.s32 %s15, %s22
    %p186 = scmp.eq.s32.totalorder %s185, 0
    %s188 = sadd.s32 %s187, 1
    %s189 = scalar_select %p186, %s187, %s188
    %p192 = pneg %p186
    %p193 = scmp.eq.s32.totalorder %s15, 1
    %p194 = por %p192, %p193
    %p195 = scmp.ne.s32.totalorder %s187, %s190
    %p196 = scmp.eq.s32.totalorder %s15, 0
    %p197 = por %p195, %p196
    %p198 = scmp.ne.s32.totalorder %s187, %s190
    %p199 = scmp.eq.s32.totalorder %s20, 1
    %p200 = por %p198, %p199
    %p201 = scmp.ne.s32.totalorder %s190, %s191
    %p202 = scmp.eq.s32.totalorder %s20, 0
    %p203 = por %p201, %p202
    %p204 = scmp.ne.s32.totalorder %s190, %s191
    %p205 = scmp.eq.s32.totalorder %s21, 1
    %p206 = por %p204, %p205
    %p208 = scmp.ne.s32.totalorder %s191, %s207
    %p209 = scmp.eq.s32.totalorder %s21, 0
    %p210 = por %p208, %p209
    %s211 = ssub.s32 %s15, %s22
    %p212 = scmp.eq.s32.totalorder %s211, 0
    %s214 = sadd.s32 %s213, 1
    %s215 = scalar_select %p212, %s213, %s214
    %p218 = pneg %p212
    %p219 = scmp.eq.s32.totalorder %s15, 1
    %p220 = por %p218, %p219
    %p221 = scmp.ne.s32.totalorder %s213, %s216
    %p222 = scmp.eq.s32.totalorder %s15, 0
    %p223 = por %p221, %p222
    %p224 = scmp.ne.s32.totalorder %s213, %s216
    %p225 = scmp.eq.s32.totalorder %s20, 1
    %p226 = por %p224, %p225
    %p227 = scmp.ne.s32.totalorder %s216, %s217
    %p228 = scmp.eq.s32.totalorder %s20, 0
    %p229 = por %p227, %p228
    %p230 = scmp.ne.s32.totalorder %s216, %s217
    %p231 = scmp.eq.s32.totalorder %s21, 1
    %p232 = por %p230, %p231
    %p234 = scmp.ne.s32.totalorder %s217, %s233
    %p235 = scmp.eq.s32.totalorder %s21, 0
    %p236 = por %p234, %p235
    %p237 = scmp.le.s32.totalorder 1, %s15
    %p238 = scmp.lt.s32.totalorder %s15, 3
    %p239 = pnand %p237, %p238
    %p240 = pneg %p239
    // Predicated region
    $region9: #{a_call__.5} parent=5 // pred_check
      _
    $region10: #{a_call__.5} parent=5 // pred_check_branch
      %242 = sbr.rel (%p239) target = $region12
    $region11: #{a_call__.5} parent=5 // pred_region
      %s243 = ssub.s32 %s15, 1
      // Predicated region
      $region13: #{a_call__.5} parent=11 // pred_check
        %p244 = pneg %p88
      $region14: #{a_call__.5} parent=11 // pred_check_branch
        %246 = sbr.rel (%p244) target = $region16
      $region15: #{a_call__.5} parent=11 // pred_region
        _
      $region16: #{a_call__.5} parent=11 // pred_fallthru
        _
      // Predicated region
      $region17: #{a_call__.5} parent=11 // pred_check
        %p247 = pneg %p109
      $region18: #{a_call__.5} parent=11 // pred_check_branch
        %249 = sbr.rel (%p247) target = $region20
      $region19: #{a_call__.5} parent=11 // pred_region
        _
      $region20: #{a_call__.5} parent=11 // pred_fallthru
        _
      // Predicated region
      $region21: #{a_call__.5} parent=11 // pred_check
        %p250 = pneg %p130
      $region22: #{a_call__.5} parent=11 // pred_check_branch
        %252 = sbr.rel (%p250) target = $region24
      $region23: #{a_call__.5} parent=11 // pred_region
        _
      $region24: #{a_call__.5} parent=11 // pred_fallthru
        _
      // Predicated region
      $region25: #{a_call__.5} parent=11 // pred_check
        %p253 = pneg %p151
      $region26: #{a_call__.5} parent=11 // pred_check_branch
        %255 = sbr.rel (%p253) target = $region28
      $region27: #{a_call__.5} parent=11 // pred_region
        _
      $region28: #{a_call__.5} parent=11 // pred_fallthru
        _
    $region12: #{a_call__.5} parent=5 // pred_fallthru
      _
    %p256 = scmp.lt.s32.totalorder %s15, 2
    // Predicated region
    $region29: #{a_call__.5} parent=5 // pred_check
      %p257 = pneg %p256
    $region30: #{a_call__.5} parent=5 // pred_check_branch
      %259 = sbr.rel (%p257) target = $region32
    $region31: #{a_call__.5} parent=5 // pred_region
      // Predicated region
      $region33: #{a_call__.5} parent=31 // pred_check
        %p260 = pneg %p35
      $region34: #{a_call__.5} parent=31 // pred_check_branch
        %262 = sbr.rel (%p260) target = $region36
      $region35: #{a_call__.5} parent=31 // pred_region
        %p263 = scmp.lt.s32.totalorder %s15, 1
        %s264 = scalar_select %p263, %s15, 1
        %s265 = smul.addr %s264, 3
        %s266 = smul.addr %s265, 4
        %s267 = scalar_lea.vmem %s0, %s266
      $region36: #{a_call__.5} parent=31 // pred_fallthru
        _
      // Predicated region
      $region37: #{a_call__.5} parent=31 // pred_check
        %p268 = pneg %p61
      $region38: #{a_call__.5} parent=31 // pred_check_branch
        %270 = sbr.rel (%p268) target = $region40
      $region39: #{a_call__.5} parent=31 // pred_region
        %p271 = scmp.lt.s32.totalorder %s15, 1
        %s272 = scalar_select %p271, %s15, 1
        %s273 = smul.addr %s272, 3
        %s274 = smul.addr %s273, 4
        %s275 = scalar_lea.vmem %s1, %s274
      $region40: #{a_call__.5} parent=31 // pred_fallthru
        _
    $region32: #{a_call__.5} parent=5 // pred_fallthru
      _
    %p276 = scmp.le.s32.totalorder 1, %s15
    %p277 = scmp.lt.s32.totalorder %s15, 3
    %p278 = pnand %p276, %p277
    %p279 = pneg %p278
    // Predicated region
    $region41: #{a_call__.5} parent=5 // pred_check
      _
    $region42: #{a_call__.5} parent=5 // pred_check_branch
      %281 = sbr.rel (%p278) target = $region44
    $region43: #{a_call__.5} parent=5 // pred_region
      %s282 = ssub.s32 %s15, 1
      %p283 = scmp.lt.s32.totalorder %s20, 1
      %s284 = scalar_select %p283, %s20, 1
      %s285 = smul.addr %s284, 3
      %s286 = smul.addr %s285, 4
      %s287 = scalar_lea.vmem %s0, %s286
      %p288 = pneg %p41
      %p289 = pneg %p38
      %p290 = scmp.lt.s32.totalorder %s20, 1
      %s291 = scalar_select %p290, %s20, 1
      %s292 = smul.addr %s291, 3
      %s293 = smul.addr %s292, 4
      %s294 = scalar_lea.vmem %s1, %s293
      %p295 = pneg %p67
      %p296 = pneg %p64
      %p297 = pneg %p88
      %p298 = pneg %p85
      %p299 = pneg %p109
      %p300 = pneg %p106
      %p301 = pneg %p130
      %p302 = pneg %p127
      %p303 = pneg %p151
      %p304 = pneg %p148
      %p305 = pneg %p177
      %p306 = pneg %p174
      %p307 = scmp.lt.s32.totalorder %s20, 1
      %s308 = scalar_select %p307, %s20, 1
      %s309 = smul.addr %s308, 3
      %s310 = smul.addr %s309, 8
      %s311 = scalar_lea.vmem %s6, %s310
      %p312 = pneg %p203
      %p313 = pneg %p200
      %p314 = scmp.lt.s32.totalorder %s20, 1
      %s315 = scalar_select %p314, %s20, 1
      %s316 = smul.addr %s315, 8
      %s317 = scalar_lea.vmem %s7, %s316
      %p318 = pneg %p229
      %p319 = pneg %p226
      %p320 = scmp.lt.s32.totalorder %s20, 1
      %s321 = scalar_select %p320, %s20, 1
      %s322 = smul.addr %s321, 8
      %s323 = scalar_lea.vmem %s8, %s322
      %p324 = scmp.lt.s32.totalorder %s20, 1
      %s325 = scalar_select %p324, %s20, 1
      %s326 = smul.addr %s325, 3
      %s327 = smul.addr %s326, 4
      %s328 = scalar_lea.vmem %s0, %s327
      %p329 = scmp.lt.s32.totalorder %s20, 1
      %s330 = scalar_select %p329, %s20, 1
      %s331 = smul.addr %s330, 3
      %s332 = smul.addr %s331, 4
      %s333 = scalar_lea.vmem %s1, %s332
      %p334 = scmp.lt.s32.totalorder %s20, 1
      %s335 = scalar_select %p334, %s20, 1
      %s336 = smul.addr %s335, 3
      %s337 = smul.addr %s336, 8
      %s338 = scalar_lea.vmem %s6, %s337
      %p339 = scmp.lt.s32.totalorder %s20, 1
      %s340 = scalar_select %p339, %s20, 1
      %s341 = smul.addr %s340, 8
      %s342 = scalar_lea.vmem %s7, %s341
      %p343 = scmp.lt.s32.totalorder %s20, 1
      %s344 = scalar_select %p343, %s20, 1
      %s345 = smul.addr %s344, 8
      %s346 = scalar_lea.vmem %s8, %s345
      %v347 = vld [vmem:[%s328] sm:$0xff]
      %v348 = vld [vmem:[%s328 + $0x8] sm:$0xf]
      %v349 = vld [vmem:[%s333] sm:$0xff]
      %v350 = vld [vmem:[%s333 + $0x8] sm:$0xf]
      %v351 = vld [vmem:[%s2] sm:$0xff]
      %v352 = vld [vmem:[%s3] sm:$0xff]
      %v355 = vcombine.high %v349, %v349
      %vm356 = vcmask 31744
      %v358 = vsel %vm356, %v352, 0
      %vm360 = vcmask 1043456
      %v361 = vsel %vm360, %v349, 0
      %v363 = vsel %vm360, %v355, 0
      %v365 = vsel %vm360, %v350, 0
      %367 = vmatprep.subr.mxu0 %v363
      %368 = vmatpush1.msra.mxu0 %v361
      %369 = vmatprep.subr.mxu0 0.0
      %370 = vmatpush1.msra.mxu0 0.0
      %371 = vmatprep.subr.mxu0 0.0
      %372 = vmatpush1.msra.mxu0 0.0
      %373 = vmatprep.subr.mxu0 0.0
      %374 = vmatpush1.msra.mxu0 0.0
      %375 = vmatprep.subr.mxu0 0.0
      %376 = vmatpush1.msra.mxu0 0.0
      %377 = vmatprep.subr.mxu0 0.0
      %378 = vmatpush1.msra.mxu0 0.0
      %379 = vmatprep.subr.mxu0 0.0
      %380 = vmatpush1.msra.mxu0 0.0
      %381 = vmatprep.subr.mxu0 0.0
      %382 = vmatpush1.msra.mxu0 0.0
      %383 = vmatprep.subr.mxu0 0.0
      %384 = vmatpush1.msra.mxu0 0.0
      %385 = vmatprep.subr.mxu0 0.0
      %386 = vmatpush1.msra.mxu0 0.0
      %387 = vmatprep.subr.mxu0 0.0
      %388 = vmatpush1.msra.mxu0 0.0
      %389 = vmatprep.subr.mxu0 0.0
      %390 = vmatpush1.msra.mxu0 0.0
      %391 = vmatprep.subr.mxu0 0.0
      %392 = vmatpush1.msra.mxu0 0.0
      %393 = vmatprep.subr.mxu0 0.0
      %394 = vmatpush1.msra.mxu0 0.0
      %395 = vmatprep.subr.mxu0 0.0
      %396 = vmatpush1.msra.mxu0 0.0
      %397 = vmatprep.subr.mxu0 0.0
      %398 = vmatpush1.msra.mxu0 0.0
      %399 = vmatprep.subr.mxu0 0.0
      %400 = vmatpush1.msra.mxu0 0.0
      %401 = vmatprep.subr.mxu0 0.0
      %402 = vmatpush1.msra.mxu0 0.0
      %403 = vmatprep.subr.mxu0 0.0
      %404 = vmatpush1.msra.mxu0 0.0
      %405 = vmatprep.subr.mxu0 0.0
      %406 = vmatpush1.msra.mxu0 0.0
      %407 = vmatprep.subr.mxu0 0.0
      %408 = vmatpush1.msra.mxu0 0.0
      %409 = vmatprep.subr.mxu0 0.0
      %410 = vmatpush1.msra.mxu0 0.0
      %411 = vmatprep.subr.mxu0 0.0
      %412 = vmatpush1.msra.mxu0 0.0
      %413 = vmatprep.subr.mxu0 0.0
      %414 = vmatpush1.msra.mxu0 0.0
      %415 = vmatprep.subr.mxu0 0.0
      %416 = vmatpush1.msra.mxu0 0.0
      %417 = vmatprep.subr.mxu0 0.0
      %418 = vmatpush1.msra.mxu0 0.0
      %419 = vmatprep.subr.mxu0 0.0
      %420 = vmatpush1.msra.mxu0 0.0
      %421 = vmatprep.subr.mxu0 0.0
      %422 = vmatpush1.msra.mxu0 0.0
      %423 = vmatprep.subr.mxu0 0.0
      %424 = vmatpush1.msra.mxu0 0.0
      %425 = vmatprep.subr.mxu0 0.0
      %426 = vmatpush1.msra.mxu0 0.0
      %427 = vmatprep.subr.mxu0 0.0
      %428 = vmatpush1.msra.mxu0 0.0
      %429 = vmatprep.subr.mxu0 0.0
      %430 = vmatpush1.msra.mxu0 0.0
      %431 = vmatprep.mubr.f32.mxu0 0.0
      %432 = vmatmul.mubr.f32.gmra.mrb[0].mxu0 %v358
      %v433 = vpop.f32.mrb[0].mxu0
      %v434 = vadd.f32 0.0, %v433
      %v435 = vpop.f32.mrb[0].mxu0
      %v436 = vadd.f32 0.0, %v435
      %437 = vdwg.mxu0
      %438 = vmatprep.subr.mxu0 0.0
      %439 = vmatpush1.msra.mxu0 %v365
      %440 = vmatprep.subr.mxu0 0.0
      %441 = vmatpush1.msra.mxu0 0.0
      %442 = vmatprep.subr.mxu0 0.0
      %443 = vmatpush1.msra.mxu0 0.0
      %444 = vmatprep.subr.mxu0 0.0
      %445 = vmatpush1.msra.mxu0 0.0
      %446 = vmatprep.subr.mxu0 0.0
      %447 = vmatpush1.msra.mxu0 0.0
      %448 = vmatprep.subr.mxu0 0.0
      %449 = vmatpush1.msra.mxu0 0.0
      %450 = vmatprep.subr.mxu0 0.0
      %451 = vmatpush1.msra.mxu0 0.0
      %452 = vmatprep.subr.mxu0 0.0
      %453 = vmatpush1.msra.mxu0 0.0
      %454 = vmatprep.subr.mxu0 0.0
      %455 = vmatpush1.msra.mxu0 0.0
      %456 = vmatprep.subr.mxu0 0.0
      %457 = vmatpush1.msra.mxu0 0.0
      %458 = vmatprep.subr.mxu0 0.0
      %459 = vmatpush1.msra.mxu0 0.0
      %460 = vmatprep.subr.mxu0 0.0
      %461 = vmatpush1.msra.mxu0 0.0
      %462 = vmatprep.subr.mxu0 0.0
      %463 = vmatpush1.msra.mxu0 0.0
      %464 = vmatprep.subr.mxu0 0.0
      %465 = vmatpush1.msra.mxu0 0.0
      %466 = vmatprep.subr.mxu0 0.0
      %467 = vmatpush1.msra.mxu0 0.0
      %468 = vmatprep.subr.mxu0 0.0
      %469 = vmatpush1.msra.mxu0 0.0
      %470 = vmatprep.subr.mxu0 0.0
      %471 = vmatpush1.msra.mxu0 0.0
      %472 = vmatprep.subr.mxu0 0.0
      %473 = vmatpush1.msra.mxu0 0.0
      %474 = vmatprep.subr.mxu0 0.0
      %475 = vmatpush1.msra.mxu0 0.0
      %476 = vmatprep.subr.mxu0 0.0
      %477 = vmatpush1.msra.mxu0 0.0
      %478 = vmatprep.subr.mxu0 0.0
      %479 = vmatpush1.msra.mxu0 0.0
      %480 = vmatprep.subr.mxu0 0.0
      %481 = vmatpush1.msra.mxu0 0.0
      %482 = vmatprep.subr.mxu0 0.0
      %483 = vmatpush1.msra.mxu0 0.0
      %484 = vmatprep.subr.mxu0 0.0
      %485 = vmatpush1.msra.mxu0 0.0
      %486 = vmatprep.subr.mxu0 0.0
      %487 = vmatpush1.msra.mxu0 0.0
      %488 = vmatprep.subr.mxu0 0.0
      %489 = vmatpush1.msra.mxu0 0.0
      %490 = vmatprep.subr.mxu0 0.0
      %491 = vmatpush1.msra.mxu0 0.0
      %492 = vmatprep.subr.mxu0 0.0
      %493 = vmatpush1.msra.mxu0 0.0
      %494 = vmatprep.subr.mxu0 0.0
      %495 = vmatpush1.msra.mxu0 0.0
      %496 = vmatprep.subr.mxu0 0.0
      %497 = vmatpush1.msra.mxu0 0.0
      %498 = vmatprep.subr.mxu0 0.0
      %499 = vmatpush1.msra.mxu0 0.0
      %500 = vmatprep.subr.mxu0 0.0
      %501 = vmatpush1.msra.mxu0 0.0
      %502 = vmatprep.mubr.f32.mxu0 0.0
      %503 = vmatmul.mubr.f32.gmra.mrb[0].mxu0 %v358
      %v504 = vpop.f32.mrb[0].mxu0
      %v505 = vadd.f32 0.0, %v504
      %v506 = vpop.f32.mrb[0].mxu0
      %507 = vdwg.mxu0
      %v510 = vcombine.high %v347, %v347
      %v512 = vsel %vm356, %v351, 0
      %v514 = vsel %vm360, %v347, 0
      %v516 = vsel %vm360, %v510, 0
      %v518 = vsel %vm360, %v348, 0
      %520 = vmatprep.subr.mxu0 %v516
      %521 = vmatpush1.msra.mxu0 %v514
      %522 = vmatprep.subr.mxu0 0.0
      %523 = vmatpush1.msra.mxu0 0.0
      %524 = vmatprep.subr.mxu0 0.0
      %525 = vmatpush1.msra.mxu0 0.0
      %526 = vmatprep.subr.mxu0 0.0
      %527 = vmatpush1.msra.mxu0 0.0
      %528 = vmatprep.subr.mxu0 0.0
      %529 = vmatpush1.msra.mxu0 0.0
      %530 = vmatprep.subr.mxu0 0.0
      %531 = vmatpush1.msra.mxu0 0.0
      %532 = vmatprep.subr.mxu0 0.0
      %533 = vmatpush1.msra.mxu0 0.0
      %534 = vmatprep.subr.mxu0 0.0
      %535 = vmatpush1.msra.mxu0 0.0
      %536 = vmatprep.subr.mxu0 0.0
      %537 = vmatpush1.msra.mxu0 0.0
      %538 = vmatprep.subr.mxu0 0.0
      %539 = vmatpush1.msra.mxu0 0.0
      %540 = vmatprep.subr.mxu0 0.0
      %541 = vmatpush1.msra.mxu0 0.0
      %542 = vmatprep.subr.mxu0 0.0
      %543 = vmatpush1.msra.mxu0 0.0
      %544 = vmatprep.subr.mxu0 0.0
      %545 = vmatpush1.msra.mxu0 0.0
      %546 = vmatprep.subr.mxu0 0.0
      %547 = vmatpush1.msra.mxu0 0.0
      %548 = vmatprep.subr.mxu0 0.0
      %549 = vmatpush1.msra.mxu0 0.0
      %550 = vmatprep.subr.mxu0 0.0
      %551 = vmatpush1.msra.mxu0 0.0
      %552 = vmatprep.subr.mxu0 0.0
      %553 = vmatpush1.msra.mxu0 0.0
      %554 = vmatprep.subr.mxu0 0.0
      %555 = vmatpush1.msra.mxu0 0.0
      %556 = vmatprep.subr.mxu0 0.0
      %557 = vmatpush1.msra.mxu0 0.0
      %558 = vmatprep.subr.mxu0 0.0
      %559 = vmatpush1.msra.mxu0 0.0
      %560 = vmatprep.subr.mxu0 0.0
      %561 = vmatpush1.msra.mxu0 0.0
      %562 = vmatprep.subr.mxu0 0.0
      %563 = vmatpush1.msra.mxu0 0.0
      %564 = vmatprep.subr.mxu0 0.0
      %565 = vmatpush1.msra.mxu0 0.0
      %566 = vmatprep.subr.mxu0 0.0
      %567 = vmatpush1.msra.mxu0 0.0
      %568 = vmatprep.subr.mxu0 0.0
      %569 = vmatpush1.msra.mxu0 0.0
      %570 = vmatprep.subr.mxu0 0.0
      %571 = vmatpush1.msra.mxu0 0.0
      %572 = vmatprep.subr.mxu0 0.0
      %573 = vmatpush1.msra.mxu0 0.0
      %574 = vmatprep.subr.mxu0 0.0
      %575 = vmatpush1.msra.mxu0 0.0
      %576 = vmatprep.subr.mxu0 0.0
      %577 = vmatpush1.msra.mxu0 0.0
      %578 = vmatprep.subr.mxu0 0.0
      %579 = vmatpush1.msra.mxu0 0.0
      %580 = vmatprep.subr.mxu0 0.0
      %581 = vmatpush1.msra.mxu0 0.0
      %582 = vmatprep.subr.mxu0 0.0
      %583 = vmatpush1.msra.mxu0 0.0
      %584 = vmatprep.mubr.f32.mxu0 0.0
      %585 = vmatmul.mubr.f32.gmra.mrb[0].mxu0 %v512
      %v586 = vpop.f32.mrb[0].mxu0
      %v587 = vadd.f32 %v434, %v586
      %v588 = vpop.f32.mrb[0].mxu0
      %v589 = vadd.f32 %v436, %v588
      %590 = vdwg.mxu0
      %591 = vmatprep.subr.mxu0 0.0
      %592 = vmatpush1.msra.mxu0 %v518
      %593 = vmatprep.subr.mxu0 0.0
      %594 = vmatpush1.msra.mxu0 0.0
      %595 = vmatprep.subr.mxu0 0.0
      %596 = vmatpush1.msra.mxu0 0.0
      %597 = vmatprep.subr.mxu0 0.0
      %598 = vmatpush1.msra.mxu0 0.0
      %599 = vmatprep.subr.mxu0 0.0
      %600 = vmatpush1.msra.mxu0 0.0
      %601 = vmatprep.subr.mxu0 0.0
      %602 = vmatpush1.msra.mxu0 0.0
      %603 = vmatprep.subr.mxu0 0.0
      %604 = vmatpush1.msra.mxu0 0.0
      %605 = vmatprep.subr.mxu0 0.0
      %606 = vmatpush1.msra.mxu0 0.0
      %607 = vmatprep.subr.mxu0 0.0
      %608 = vmatpush1.msra.mxu0 0.0
      %609 = vmatprep.subr.mxu0 0.0
      %610 = vmatpush1.msra.mxu0 0.0
      %611 = vmatprep.subr.mxu0 0.0
      %612 = vmatpush1.msra.mxu0 0.0
      %613 = vmatprep.subr.mxu0 0.0
      %614 = vmatpush1.msra.mxu0 0.0
      %615 = vmatprep.subr.mxu0 0.0
      %616 = vmatpush1.msra.mxu0 0.0
      %617 = vmatprep.subr.mxu0 0.0
      %618 = vmatpush1.msra.mxu0 0.0
      %619 = vmatprep.subr.mxu0 0.0
      %620 = vmatpush1.msra.mxu0 0.0
      %621 = vmatprep.subr.mxu0 0.0
      %622 = vmatpush1.msra.mxu0 0.0
      %623 = vmatprep.subr.mxu0 0.0
      %624 = vmatpush1.msra.mxu0 0.0
      %625 = vmatprep.subr.mxu0 0.0
      %626 = vmatpush1.msra.mxu0 0.0
      %627 = vmatprep.subr.mxu0 0.0
      %628 = vmatpush1.msra.mxu0 0.0
      %629 = vmatprep.subr.mxu0 0.0
      %630 = vmatpush1.msra.mxu0 0.0
      %631 = vmatprep.subr.mxu0 0.0
      %632 = vmatpush1.msra.mxu0 0.0
      %633 = vmatprep.subr.mxu0 0.0
      %634 = vmatpush1.msra.mxu0 0.0
      %635 = vmatprep.subr.mxu0 0.0
      %636 = vmatpush1.msra.mxu0 0.0
      %637 = vmatprep.subr.mxu0 0.0
      %638 = vmatpush1.msra.mxu0 0.0
      %639 = vmatprep.subr.mxu0 0.0
      %640 = vmatpush1.msra.mxu0 0.0
      %641 = vmatprep.subr.mxu0 0.0
      %642 = vmatpush1.msra.mxu0 0.0
      %643 = vmatprep.subr.mxu0 0.0
      %644 = vmatpush1.msra.mxu0 0.0
      %645 = vmatprep.subr.mxu0 0.0
      %646 = vmatpush1.msra.mxu0 0.0
      %647 = vmatprep.subr.mxu0 0.0
      %648 = vmatpush1.msra.mxu0 0.0
      %649 = vmatprep.subr.mxu0 0.0
      %650 = vmatpush1.msra.mxu0 0.0
      %651 = vmatprep.subr.mxu0 0.0
      %652 = vmatpush1.msra.mxu0 0.0
      %653 = vmatprep.subr.mxu0 0.0
      %654 = vmatpush1.msra.mxu0 0.0
      %655 = vmatprep.mubr.f32.mxu0 0.0
      %656 = vmatmul.mubr.f32.gmra.mrb[0].mxu0 %v512
      %v657 = vpop.f32.mrb[0].mxu0
      %v658 = vadd.f32 %v505, %v657
      %v659 = vpop.f32.mrb[0].mxu0
      %660 = vdwg.mxu0
      %v661 = vld [vmem:[%s2] sm:$0xff]
      %v662 = vld [vmem:[%s3] sm:$0xff]
      %664 = vrot.lane.b32.xlu0 %v662, 124
      %v665 = vpop.permute.xlu0 %664
      %666 = vrot.lane.b32.xlu0 %v349, 127
      %v667 = vpop.permute.xlu0 %666
      %668 = vrot.lane.b32.xlu0 %v355, 127
      %v669 = vpop.permute.xlu0 %668
      %670 = vrot.lane.b32.xlu0 %v350, 127
      %v671 = vpop.permute.xlu0 %670
      %vm672 = vcmask 1039360
      %v673 = vsel %vm672, %v667, %v669
      %v674 = vsel %vm672, %v669, %v671
      %v675 = vsel %vm356, %v665, 0
      %v677 = vsel %vm360, %v673, 0
      %v679 = vsel %vm360, %v674, 0
      %v681 = vsel %vm360, %v671, 0
      %683 = vmatprep.subr.mxu0 %v679
      %684 = vmatpush1.msra.mxu0 %v677
      %685 = vmatprep.subr.mxu0 0.0
      %686 = vmatpush1.msra.mxu0 0.0
      %687 = vmatprep.subr.mxu0 0.0
      %688 = vmatpush1.msra.mxu0 0.0
      %689 = vmatprep.subr.mxu0 0.0
      %690 = vmatpush1.msra.mxu0 0.0
      %691 = vmatprep.subr.mxu0 0.0
      %692 = vmatpush1.msra.mxu0 0.0
      %693 = vmatprep.subr.mxu0 0.0
      %694 = vmatpush1.msra.mxu0 0.0
      %695 = vmatprep.subr.mxu0 0.0
      %696 = vmatpush1.msra.mxu0 0.0
      %697 = vmatprep.subr.mxu0 0.0
      %698 = vmatpush1.msra.mxu0 0.0
      %699 = vmatprep.subr.mxu0 0.0
      %700 = vmatpush1.msra.mxu0 0.0
      %701 = vmatprep.subr.mxu0 0.0
      %702 = vmatpush1.msra.mxu0 0.0
      %703 = vmatprep.subr.mxu0 0.0
      %704 = vmatpush1.msra.mxu0 0.0
      %705 = vmatprep.subr.mxu0 0.0
      %706 = vmatpush1.msra.mxu0 0.0
      %707 = vmatprep.subr.mxu0 0.0
      %708 = vmatpush1.msra.mxu0 0.0
      %709 = vmatprep.subr.mxu0 0.0
      %710 = vmatpush1.msra.mxu0 0.0
      %711 = vmatprep.subr.mxu0 0.0
      %712 = vmatpush1.msra.mxu0 0.0
      %713 = vmatprep.subr.mxu0 0.0
      %714 = vmatpush1.msra.mxu0 0.0
      %715 = vmatprep.subr.mxu0 0.0
      %716 = vmatpush1.msra.mxu0 0.0
      %717 = vmatprep.subr.mxu0 0.0
      %718 = vmatpush1.msra.mxu0 0.0
      %719 = vmatprep.subr.mxu0 0.0
      %720 = vmatpush1.msra.mxu0 0.0
      %721 = vmatprep.subr.mxu0 0.0
      %722 = vmatpush1.msra.mxu0 0.0
      %723 = vmatprep.subr.mxu0 0.0
      %724 = vmatpush1.msra.mxu0 0.0
      %725 = vmatprep.subr.mxu0 0.0
      %726 = vmatpush1.msra.mxu0 0.0
      %727 = vmatprep.subr.mxu0 0.0
      %728 = vmatpush1.msra.mxu0 0.0
      %729 = vmatprep.subr.mxu0 0.0
      %730 = vmatpush1.msra.mxu0 0.0
      %731 = vmatprep.subr.mxu0 0.0
      %732 = vmatpush1.msra.mxu0 0.0
      %733 = vmatprep.subr.mxu0 0.0
      %734 = vmatpush1.msra.mxu0 0.0
      %735 = vmatprep.subr.mxu0 0.0
      %736 = vmatpush1.msra.mxu0 0.0
      %737 = vmatprep.subr.mxu0 0.0
      %738 = vmatpush1.msra.mxu0 0.0
      %739 = vmatprep.subr.mxu0 0.0
      %740 = vmatpush1.msra.mxu0 0.0
      %741 = vmatprep.subr.mxu0 0.0
      %742 = vmatpush1.msra.mxu0 0.0
      %743 = vmatprep.subr.mxu0 0.0
      %744 = vmatpush1.msra.mxu0 0.0
      %745 = vmatprep.subr.mxu0 0.0
      %746 = vmatpush1.msra.mxu0 0.0
      %747 = vmatprep.mubr.f32.mxu0 0.0
      %748 = vmatmul.mubr.f32.gmra.mrb[0].mxu0 %v675
      %v749 = vpop.f32.mrb[0].mxu0
      %v750 = vadd.f32 0.0, %v749
      %v751 = vpop.f32.mrb[0].mxu0
      %v752 = vadd.f32 0.0, %v751
      %753 = vdwg.mxu0
      %754 = vmatprep.subr.mxu0 0.0
      %755 = vmatpush1.msra.mxu0 %v681
      %756 = vmatprep.subr.mxu0 0.0
      %757 = vmatpush1.msra.mxu0 0.0
      %758 = vmatprep.subr.mxu0 0.0
      %759 = vmatpush1.msra.mxu0 0.0
      %760 = vmatprep.subr.mxu0 0.0
      %761 = vmatpush1.msra.mxu0 0.0
      %762 = vmatprep.subr.mxu0 0.0
      %763 = vmatpush1.msra.mxu0 0.0
      %764 = vmatprep.subr.mxu0 0.0
      %765 = vmatpush1.msra.mxu0 0.0
      %766 = vmatprep.subr.mxu0 0.0
      %767 = vmatpush1.msra.mxu0 0.0
      %768 = vmatprep.subr.mxu0 0.0
      %769 = vmatpush1.msra.mxu0 0.0
      %770 = vmatprep.subr.mxu0 0.0
      %771 = vmatpush1.msra.mxu0 0.0
      %772 = vmatprep.subr.mxu0 0.0
      %773 = vmatpush1.msra.mxu0 0.0
      %774 = vmatprep.subr.mxu0 0.0
      %775 = vmatpush1.msra.mxu0 0.0
      %776 = vmatprep.subr.mxu0 0.0
      %777 = vmatpush1.msra.mxu0 0.0
      %778 = vmatprep.subr.mxu0 0.0
      %779 = vmatpush1.msra.mxu0 0.0
      %780 = vmatprep.subr.mxu0 0.0
      %781 = vmatpush1.msra.mxu0 0.0
      %782 = vmatprep.subr.mxu0 0.0
      %783 = vmatpush1.msra.mxu0 0.0
      %784 = vmatprep.subr.mxu0 0.0
      %785 = vmatpush1.msra.mxu0 0.0
      %786 = vmatprep.subr.mxu0 0.0
      %787 = vmatpush1.msra.mxu0 0.0
      %788 = vmatprep.subr.mxu0 0.0
      %789 = vmatpush1.msra.mxu0 0.0
      %790 = vmatprep.subr.mxu0 0.0
      %791 = vmatpush1.msra.mxu0 0.0
      %792 = vmatprep.subr.mxu0 0.0
      %793 = vmatpush1.msra.mxu0 0.0
      %794 = vmatprep.subr.mxu0 0.0
      %795 = vmatpush1.msra.mxu0 0.0
      %796 = vmatprep.subr.mxu0 0.0
      %797 = vmatpush1.msra.mxu0 0.0
      %798 = vmatprep.subr.mxu0 0.0
      %799 = vmatpush1.msra.mxu0 0.0
      %800 = vmatprep.subr.mxu0 0.0
      %801 = vmatpush1.msra.mxu0 0.0
      %802 = vmatprep.subr.mxu0 0.0
      %803 = vmatpush1.msra.mxu0 0.0
      %804 = vmatprep.subr.mxu0 0.0
      %805 = vmatpush1.msra.mxu0 0.0
      %806 = vmatprep.subr.mxu0 0.0
      %807 = vmatpush1.msra.mxu0 0.0
      %808 = vmatprep.subr.mxu0 0.0
      %809 = vmatpush1.msra.mxu0 0.0
      %810 = vmatprep.subr.mxu0 0.0
      %811 = vmatpush1.msra.mxu0 0.0
      %812 = vmatprep.subr.mxu0 0.0
      %813 = vmatpush1.msra.mxu0 0.0
      %814 = vmatprep.subr.mxu0 0.0
      %815 = vmatpush1.msra.mxu0 0.0
      %816 = vmatprep.subr.mxu0 0.0
      %817 = vmatpush1.msra.mxu0 0.0
      %818 = vmatprep.mubr.f32.mxu0 0.0
      %819 = vmatmul.mubr.f32.gmra.mrb[0].mxu0 %v675
      %v820 = vpop.f32.mrb[0].mxu0
      %v821 = vadd.f32 0.0, %v820
      %v822 = vpop.f32.mrb[0].mxu0
      %823 = vdwg.mxu0
      %825 = vrot.lane.b32.xlu0 %v661, 124
      %v826 = vpop.permute.xlu0 %825
      %827 = vrot.lane.b32.xlu0 %v347, 127
      %v828 = vpop.permute.xlu0 %827
      %829 = vrot.lane.b32.xlu0 %v510, 127
      %v830 = vpop.permute.xlu0 %829
      %831 = vrot.lane.b32.xlu0 %v348, 127
      %v832 = vpop.permute.xlu0 %831
      %v833 = vsel %vm672, %v828, %v830
      %v834 = vsel %vm672, %v830, %v832
      %v835 = vsel %vm356, %v826, 0
      %v837 = vsel %vm360, %v833, 0
      %v839 = vsel %vm360, %v834, 0
      %v841 = vsel %vm360, %v832, 0
      %843 = vmatprep.subr.mxu0 %v839
      %844 = vmatpush1.msra.mxu0 %v837
      %845 = vmatprep.subr.mxu0 0.0
      %846 = vmatpush1.msra.mxu0 0.0
      %847 = vmatprep.subr.mxu0 0.0
      %848 = vmatpush1.msra.mxu0 0.0
      %849 = vmatprep.subr.mxu0 0.0
      %850 = vmatpush1.msra.mxu0 0.0
      %851 = vmatprep.subr.mxu0 0.0
      %852 = vmatpush1.msra.mxu0 0.0
      %853 = vmatprep.subr.mxu0 0.0
      %854 = vmatpush1.msra.mxu0 0.0
      %855 = vmatprep.subr.mxu0 0.0
      %856 = vmatpush1.msra.mxu0 0.0
      %857 = vmatprep.subr.mxu0 0.0
      %858 = vmatpush1.msra.mxu0 0.0
      %859 = vmatprep.subr.mxu0 0.0
      %860 = vmatpush1.msra.mxu0 0.0
      %861 = vmatprep.subr.mxu0 0.0
      %862 = vmatpush1.msra.mxu0 0.0
      %863 = vmatprep.subr.mxu0 0.0
      %864 = vmatpush1.msra.mxu0 0.0
      %865 = vmatprep.subr.mxu0 0.0
      %866 = vmatpush1.msra.mxu0 0.0
      %867 = vmatprep.subr.mxu0 0.0
      %868 = vmatpush1.msra.mxu0 0.0
      %869 = vmatprep.subr.mxu0 0.0
      %870 = vmatpush1.msra.mxu0 0.0
      %871 = vmatprep.subr.mxu0 0.0
      %872 = vmatpush1.msra.mxu0 0.0
      %873 = vmatprep.subr.mxu0 0.0
      %874 = vmatpush1.msra.mxu0 0.0
      %875 = vmatprep.subr.mxu0 0.0
      %876 = vmatpush1.msra.mxu0 0.0
      %877 = vmatprep.subr.mxu0 0.0
      %878 = vmatpush1.msra.mxu0 0.0
      %879 = vmatprep.subr.mxu0 0.0
      %880 = vmatpush1.msra.mxu0 0.0
      %881 = vmatprep.subr.mxu0 0.0
      %882 = vmatpush1.msra.mxu0 0.0
      %883 = vmatprep.subr.mxu0 0.0
      %884 = vmatpush1.msra.mxu0 0.0
      %885 = vmatprep.subr.mxu0 0.0
      %886 = vmatpush1.msra.mxu0 0.0
      %887 = vmatprep.subr.mxu0 0.0
      %888 = vmatpush1.msra.mxu0 0.0
      %889 = vmatprep.subr.mxu0 0.0
      %890 = vmatpush1.msra.mxu0 0.0
      %891 = vmatprep.subr.mxu0 0.0
      %892 = vmatpush1.msra.mxu0 0.0
      %893 = vmatprep.subr.mxu0 0.0
      %894 = vmatpush1.msra.mxu0 0.0
      %895 = vmatprep.subr.mxu0 0.0
      %896 = vmatpush1.msra.mxu0 0.0
      %897 = vmatprep.subr.mxu0 0.0
      %898 = vmatpush1.msra.mxu0 0.0
      %899 = vmatprep.subr.mxu0 0.0
      %900 = vmatpush1.msra.mxu0 0.0
      %901 = vmatprep.subr.mxu0 0.0
      %902 = vmatpush1.msra.mxu0 0.0
      %903 = vmatprep.subr.mxu0 0.0
      %904 = vmatpush1.msra.mxu0 0.0
      %905 = vmatprep.subr.mxu0 0.0
      %906 = vmatpush1.msra.mxu0 0.0
      %907 = vmatprep.mubr.f32.mxu0 0.0
      %908 = vmatmul.mubr.f32.gmra.mrb[0].mxu0 %v835
      %v909 = vpop.f32.mrb[0].mxu0
      %v910 = vadd.f32 %v750, %v909
      %v911 = vpop.f32.mrb[0].mxu0
      %v912 = vadd.f32 %v752, %v911
      %913 = vdwg.mxu0
      %914 = vmatprep.subr.mxu0 0.0
      %915 = vmatpush1.msra.mxu0 %v841
      %916 = vmatprep.subr.mxu0 0.0
      %917 = vmatpush1.msra.mxu0 0.0
      %918 = vmatprep.subr.mxu0 0.0
      %919 = vmatpush1.msra.mxu0 0.0
      %920 = vmatprep.subr.mxu0 0.0
      %921 = vmatpush1.msra.mxu0 0.0
      %922 = vmatprep.subr.mxu0 0.0
      %923 = vmatpush1.msra.mxu0 0.0
      %924 = vmatprep.subr.mxu0 0.0
      %925 = vmatpush1.msra.mxu0 0.0
      %926 = vmatprep.subr.mxu0 0.0
      %927 = vmatpush1.msra.mxu0 0.0
      %928 = vmatprep.subr.mxu0 0.0
      %929 = vmatpush1.msra.mxu0 0.0
      %930 = vmatprep.subr.mxu0 0.0
      %931 = vmatpush1.msra.mxu0 0.0
      %932 = vmatprep.subr.mxu0 0.0
      %933 = vmatpush1.msra.mxu0 0.0
      %934 = vmatprep.subr.mxu0 0.0
      %935 = vmatpush1.msra.mxu0 0.0
      %936 = vmatprep.subr.mxu0 0.0
      %937 = vmatpush1.msra.mxu0 0.0
      %938 = vmatprep.subr.mxu0 0.0
      %939 = vmatpush1.msra.mxu0 0.0
      %940 = vmatprep.subr.mxu0 0.0
      %941 = vmatpush1.msra.mxu0 0.0
      %942 = vmatprep.subr.mxu0 0.0
      %943 = vmatpush1.msra.mxu0 0.0
      %944 = vmatprep.subr.mxu0 0.0
      %945 = vmatpush1.msra.mxu0 0.0
      %946 = vmatprep.subr.mxu0 0.0
      %947 = vmatpush1.msra.mxu0 0.0
      %948 = vmatprep.subr.mxu0 0.0
      %949 = vmatpush1.msra.mxu0 0.0
      %950 = vmatprep.subr.mxu0 0.0
      %951 = vmatpush1.msra.mxu0 0.0
      %952 = vmatprep.subr.mxu0 0.0
      %953 = vmatpush1.msra.mxu0 0.0
      %954 = vmatprep.subr.mxu0 0.0
      %955 = vmatpush1.msra.mxu0 0.0
      %956 = vmatprep.subr.mxu0 0.0
      %957 = vmatpush1.msra.mxu0 0.0
      %958 = vmatprep.subr.mxu0 0.0
      %959 = vmatpush1.msra.mxu0 0.0
      %960 = vmatprep.subr.mxu0 0.0
      %961 = vmatpush1.msra.mxu0 0.0
      %962 = vmatprep.subr.mxu0 0.0
      %963 = vmatpush1.msra.mxu0 0.0
      %964 = vmatprep.subr.mxu0 0.0
      %965 = vmatpush1.msra.mxu0 0.0
      %966 = vmatprep.subr.mxu0 0.0
      %967 = vmatpush1.msra.mxu0 0.0
      %968 = vmatprep.subr.mxu0 0.0
      %969 = vmatpush1.msra.mxu0 0.0
      %970 = vmatprep.subr.mxu0 0.0
      %971 = vmatpush1.msra.mxu0 0.0
      %972 = vmatprep.subr.mxu0 0.0
      %973 = vmatpush1.msra.mxu0 0.0
      %974 = vmatprep.subr.mxu0 0.0
      %975 = vmatpush1.msra.mxu0 0.0
      %976 = vmatprep.subr.mxu0 0.0
      %977 = vmatpush1.msra.mxu0 0.0
      %978 = vmatprep.mubr.f32.mxu0 0.0
      %979 = vmatmul.mubr.f32.gmra.mrb[0].mxu0 %v835
      %v980 = vpop.f32.mrb[0].mxu0
      %v981 = vadd.f32 %v821, %v980
      %v982 = vpop.f32.mrb[0].mxu0
      %983 = vdwg.mxu0
      %v984 = vadd.f32 %v587, %v910
      %v985 = vadd.f32 %v589, %v912
      %v986 = vadd.f32 %v658, %v981
      %v987 = vld [vmem:[%s2] sm:$0xff]
      %v988 = vld [vmem:[%s3] sm:$0xff]
      %990 = vrot.lane.b32.xlu0 %v988, 120
      %v991 = vpop.permute.xlu0 %990
      %992 = vrot.lane.b32.xlu0 %v349, 126
      %v993 = vpop.permute.xlu0 %992
      %994 = vrot.lane.b32.xlu0 %v355, 126
      %v995 = vpop.permute.xlu0 %994
      %996 = vrot.lane.b32.xlu0 %v350, 126
      %v997 = vpop.permute.xlu0 %996
      %vm998 = vcmask 1031168
      %v999 = vsel %vm998, %v993, %v995
      %v1000 = vsel %vm998, %v995, %v997
      %v1001 = vsel %vm356, %v991, 0
      %v1003 = vsel %vm360, %v999, 0
      %v1005 = vsel %vm360, %v1000, 0
      %v1007 = vsel %vm360, %v997, 0
      %1009 = vmatprep.subr.mxu0 %v1005
      %1010 = vmatpush1.msra.mxu0 %v1003
      %1011 = vmatprep.subr.mxu0 0.0
      %1012 = vmatpush1.msra.mxu0 0.0
      %1013 = vmatprep.subr.mxu0 0.0
      %1014 = vmatpush1.msra.mxu0 0.0
      %1015 = vmatprep.subr.mxu0 0.0
      %1016 = vmatpush1.msra.mxu0 0.0
      %1017 = vmatprep.subr.mxu0 0.0
      %1018 = vmatpush1.msra.mxu0 0.0
      %1019 = vmatprep.subr.mxu0 0.0
      %1020 = vmatpush1.msra.mxu0 0.0
      %1021 = vmatprep.subr.mxu0 0.0
      %1022 = vmatpush1.msra.mxu0 0.0
      %1023 = vmatprep.subr.mxu0 0.0
      %1024 = vmatpush1.msra.mxu0 0.0
      %1025 = vmatprep.subr.mxu0 0.0
      %1026 = vmatpush1.msra.mxu0 0.0
      %1027 = vmatprep.subr.mxu0 0.0
      %1028 = vmatpush1.msra.mxu0 0.0
      %1029 = vmatprep.subr.mxu0 0.0
      %1030 = vmatpush1.msra.mxu0 0.0
      %1031 = vmatprep.subr.mxu0 0.0
      %1032 = vmatpush1.msra.mxu0 0.0
      %1033 = vmatprep.subr.mxu0 0.0
      %1034 = vmatpush1.msra.mxu0 0.0
      %1035 = vmatprep.subr.mxu0 0.0
      %1036 = vmatpush1.msra.mxu0 0.0
      %1037 = vmatprep.subr.mxu0 0.0
      %1038 = vmatpush1.msra.mxu0 0.0
      %1039 = vmatprep.subr.mxu0 0.0
      %1040 = vmatpush1.msra.mxu0 0.0
      %1041 = vmatprep.subr.mxu0 0.0
      %1042 = vmatpush1.msra.mxu0 0.0
      %1043 = vmatprep.subr.mxu0 0.0
      %1044 = vmatpush1.msra.mxu0 0.0
      %1045 = vmatprep.subr.mxu0 0.0
      %1046 = vmatpush1.msra.mxu0 0.0
      %1047 = vmatprep.subr.mxu0 0.0
      %1048 = vmatpush1.msra.mxu0 0.0
      %1049 = vmatprep.subr.mxu0 0.0
      %1050 = vmatpush1.msra.mxu0 0.0
      %1051 = vmatprep.subr.mxu0 0.0
      %1052 = vmatpush1.msra.mxu0 0.0
      %1053 = vmatprep.subr.mxu0 0.0
      %1054 = vmatpush1.msra.mxu0 0.0
      %1055 = vmatprep.subr.mxu0 0.0
      %1056 = vmatpush1.msra.mxu0 0.0
      %1057 = vmatprep.subr.mxu0 0.0
      %1058 = vmatpush1.msra.mxu0 0.0
      %1059 = vmatprep.subr.mxu0 0.0
      %1060 = vmatpush1.msra.mxu0 0.0
      %1061 = vmatprep.subr.mxu0 0.0
      %1062 = vmatpush1.msra.mxu0 0.0
      %1063 = vmatprep.subr.mxu0 0.0
      %1064 = vmatpush1.msra.mxu0 0.0
      %1065 = vmatprep.subr.mxu0 0.0
      %1066 = vmatpush1.msra.mxu0 0.0
      %1067 = vmatprep.subr.mxu0 0.0
      %1068 = vmatpush1.msra.mxu0 0.0
      %1069 = vmatprep.subr.mxu0 0.0
      %1070 = vmatpush1.msra.mxu0 0.0
      %1071 = vmatprep.subr.mxu0 0.0
      %1072 = vmatpush1.msra.mxu0 0.0
      %1073 = vmatprep.mubr.f32.mxu0 0.0
      %1074 = vmatmul.mubr.f32.gmra.mrb[0].mxu0 %v1001
      %v1075 = vpop.f32.mrb[0].mxu0
      %v1076 = vadd.f32 0.0, %v1075
      %v1077 = vpop.f32.mrb[0].mxu0
      %v1078 = vadd.f32 0.0, %v1077
      %1079 = vdwg.mxu0
      %1080 = vmatprep.subr.mxu0 0.0
      %1081 = vmatpush1.msra.mxu0 %v1007
      %1082 = vmatprep.subr.mxu0 0.0
      %1083 = vmatpush1.msra.mxu0 0.0
      %1084 = vmatprep.subr.mxu0 0.0
      %1085 = vmatpush1.msra.mxu0 0.0
      %1086 = vmatprep.subr.mxu0 0.0
      %1087 = vmatpush1.msra.mxu0 0.0
      %1088 = vmatprep.subr.mxu0 0.0
      %1089 = vmatpush1.msra.mxu0 0.0
      %1090 = vmatprep.subr.mxu0 0.0
      %1091 = vmatpush1.msra.mxu0 0.0
      %1092 = vmatprep.subr.mxu0 0.0
      %1093 = vmatpush1.msra.mxu0 0.0
      %1094 = vmatprep.subr.mxu0 0.0
      %1095 = vmatpush1.msra.mxu0 0.0
      %1096 = vmatprep.subr.mxu0 0.0
      %1097 = vmatpush1.msra.mxu0 0.0
      %1098 = vmatprep.subr.mxu0 0.0
      %1099 = vmatpush1.msra.mxu0 0.0
      %1100 = vmatprep.subr.mxu0 0.0
      %1101 = vmatpush1.msra.mxu0 0.0
      %1102 = vmatprep.subr.mxu0 0.0
      %1103 = vmatpush1.msra.mxu0 0.0
      %1104 = vmatprep.subr.mxu0 0.0
      %1105 = vmatpush1.msra.mxu0 0.0
      %1106 = vmatprep.subr.mxu0 0.0
      %1107 = vmatpush1.msra.mxu0 0.0
      %1108 = vmatprep.subr.mxu0 0.0
      %1109 = vmatpush1.msra.mxu0 0.0
      %1110 = vmatprep.subr.mxu0 0.0
      %1111 = vmatpush1.msra.mxu0 0.0
      %1112 = vmatprep.subr.mxu0 0.0
      %1113 = vmatpush1.msra.mxu0 0.0
      %1114 = vmatprep.subr.mxu0 0.0
      %1115 = vmatpush1.msra.mxu0 0.0
      %1116 = vmatprep.subr.mxu0 0.0
      %1117 = vmatpush1.msra.mxu0 0.0
      %1118 = vmatprep.subr.mxu0 0.0
      %1119 = vmatpush1.msra.mxu0 0.0
      %1120 = vmatprep.subr.mxu0 0.0
      %1121 = vmatpush1.msra.mxu0 0.0
      %1122 = vmatprep.subr.mxu0 0.0
      %1123 = vmatpush1.msra.mxu0 0.0
      %1124 = vmatprep.subr.mxu0 0.0
      %1125 = vmatpush1.msra.mxu0 0.0
      %1126 = vmatprep.subr.mxu0 0.0
      %1127 = vmatpush1.msra.mxu0 0.0
      %1128 = vmatprep.subr.mxu0 0.0
      %1129 = vmatpush1.msra.mxu0 0.0
      %1130 = vmatprep.subr.mxu0 0.0
      %1131 = vmatpush1.msra.mxu0 0.0
      %1132 = vmatprep.subr.mxu0 0.0
      %1133 = vmatpush1.msra.mxu0 0.0
      %1134 = vmatprep.subr.mxu0 0.0
      %1135 = vmatpush1.msra.mxu0 0.0
      %1136 = vmatprep.subr.mxu0 0.0
      %1137 = vmatpush1.msra.mxu0 0.0
      %1138 = vmatprep.subr.mxu0 0.0
      %1139 = vmatpush1.msra.mxu0 0.0
      %1140 = vmatprep.subr.mxu0 0.0
      %1141 = vmatpush1.msra.mxu0 0.0
      %1142 = vmatprep.subr.mxu0 0.0
      %1143 = vmatpush1.msra.mxu0 0.0
      %1144 = vmatprep.mubr.f32.mxu0 0.0
      %1145 = vmatmul.mubr.f32.gmra.mrb[0].mxu0 %v1001
      %v1146 = vpop.f32.mrb[0].mxu0
      %v1147 = vadd.f32 0.0, %v1146
      %v1148 = vpop.f32.mrb[0].mxu0
      %1149 = vdwg.mxu0
      %1151 = vrot.lane.b32.xlu0 %v987, 120
      %v1152 = vpop.permute.xlu0 %1151
      %1153 = vrot.lane.b32.xlu0 %v347, 126
      %v1154 = vpop.permute.xlu0 %1153
      %1155 = vrot.lane.b32.xlu0 %v510, 126
      %v1156 = vpop.permute.xlu0 %1155
      %1157 = vrot.lane.b32.xlu0 %v348, 126
      %v1158 = vpop.permute.xlu0 %1157
      %v1159 = vsel %vm998, %v1154, %v1156
      %v1160 = vsel %vm998, %v1156, %v1158
      %v1161 = vsel %vm356, %v1152, 0
      %v1163 = vsel %vm360, %v1159, 0
      %v1165 = vsel %vm360, %v1160, 0
      %v1167 = vsel %vm360, %v1158, 0
      %1169 = vmatprep.subr.mxu0 %v1165
      %1170 = vmatpush1.msra.mxu0 %v1163
      %1171 = vmatprep.subr.mxu0 0.0
      %1172 = vmatpush1.msra.mxu0 0.0
      %1173 = vmatprep.subr.mxu0 0.0
      %1174 = vmatpush1.msra.mxu0 0.0
      %1175 = vmatprep.subr.mxu0 0.0
      %1176 = vmatpush1.msra.mxu0 0.0
      %1177 = vmatprep.subr.mxu0 0.0
      %1178 = vmatpush1.msra.mxu0 0.0
      %1179 = vmatprep.subr.mxu0 0.0
      %1180 = vmatpush1.msra.mxu0 0.0
      %1181 = vmatprep.subr.mxu0 0.0
      %1182 = vmatpush1.msra.mxu0 0.0
      %1183 = vmatprep.subr.mxu0 0.0
      %1184 = vmatpush1.msra.mxu0 0.0
      %1185 = vmatprep.subr.mxu0 0.0
      %1186 = vmatpush1.msra.mxu0 0.0
      %1187 = vmatprep.subr.mxu0 0.0
      %1188 = vmatpush1.msra.mxu0 0.0
      %1189 = vmatprep.subr.mxu0 0.0
      %1190 = vmatpush1.msra.mxu0 0.0
      %1191 = vmatprep.subr.mxu0 0.0
      %1192 = vmatpush1.msra.mxu0 0.0
      %1193 = vmatprep.subr.mxu0 0.0
      %1194 = vmatpush1.msra.mxu0 0.0
      %1195 = vmatprep.subr.mxu0 0.0
      %1196 = vmatpush1.msra.mxu0 0.0
      %1197 = vmatprep.subr.mxu0 0.0
      %1198 = vmatpush1.msra.mxu0 0.0
      %1199 = vmatprep.subr.mxu0 0.0
      %1200 = vmatpush1.msra.mxu0 0.0
      %1201 = vmatprep.subr.mxu0 0.0
      %1202 = vmatpush1.msra.mxu0 0.0
      %1203 = vmatprep.subr.mxu0 0.0
      %1204 = vmatpush1.msra.mxu0 0.0
      %1205 = vmatprep.subr.mxu0 0.0
      %1206 = vmatpush1.msra.mxu0 0.0
      %1207 = vmatprep.subr.mxu0 0.0
      %1208 = vmatpush1.msra.mxu0 0.0
      %1209 = vmatprep.subr.mxu0 0.0
      %1210 = vmatpush1.msra.mxu0 0.0
      %1211 = vmatprep.subr.mxu0 0.0
      %1212 = vmatpush1.msra.mxu0 0.0
      %1213 = vmatprep.subr.mxu0 0.0
      %1214 = vmatpush1.msra.mxu0 0.0
      %1215 = vmatprep.subr.mxu0 0.0
      %1216 = vmatpush1.msra.mxu0 0.0
      %1217 = vmatprep.subr.mxu0 0.0
      %1218 = vmatpush1.msra.mxu0 0.0
      %1219 = vmatprep.subr.mxu0 0.0
      %1220 = vmatpush1.msra.mxu0 0.0
      %1221 = vmatprep.subr.mxu0 0.0
      %1222 = vmatpush1.msra.mxu0 0.0
      %1223 = vmatprep.subr.mxu0 0.0
      %1224 = vmatpush1.msra.mxu0 0.0
      %1225 = vmatprep.subr.mxu0 0.0
      %1226 = vmatpush1.msra.mxu0 0.0
      %1227 = vmatprep.subr.mxu0 0.0
      %1228 = vmatpush1.msra.mxu0 0.0
      %1229 = vmatprep.subr.mxu0 0.0
      %1230 = vmatpush1.msra.mxu0 0.0
      %1231 = vmatprep.subr.mxu0 0.0
      %1232 = vmatpush1.msra.mxu0 0.0
      %1233 = vmatprep.mubr.f32.mxu0 0.0
      %1234 = vmatmul.mubr.f32.gmra.mrb[0].mxu0 %v1161
      %v1235 = vpop.f32.mrb[0].mxu0
      %v1236 = vadd.f32 %v1076, %v1235
      %v1237 = vpop.f32.mrb[0].mxu0
      %v1238 = vadd.f32 %v1078, %v1237
      %1239 = vdwg.mxu0
      %1240 = vmatprep.subr.mxu0 0.0
      %1241 = vmatpush1.msra.mxu0 %v1167
      %1242 = vmatprep.subr.mxu0 0.0
      %1243 = vmatpush1.msra.mxu0 0.0
      %1244 = vmatprep.subr.mxu0 0.0
      %1245 = vmatpush1.msra.mxu0 0.0
      %1246 = vmatprep.subr.mxu0 0.0
      %1247 = vmatpush1.msra.mxu0 0.0
      %1248 = vmatprep.subr.mxu0 0.0
      %1249 = vmatpush1.msra.mxu0 0.0
      %1250 = vmatprep.subr.mxu0 0.0
      %1251 = vmatpush1.msra.mxu0 0.0
      %1252 = vmatprep.subr.mxu0 0.0
      %1253 = vmatpush1.msra.mxu0 0.0
      %1254 = vmatprep.subr.mxu0 0.0
      %1255 = vmatpush1.msra.mxu0 0.0
      %1256 = vmatprep.subr.mxu0 0.0
      %1257 = vmatpush1.msra.mxu0 0.0
      %1258 = vmatprep.subr.mxu0 0.0
      %1259 = vmatpush1.msra.mxu0 0.0
      %1260 = vmatprep.subr.mxu0 0.0
      %1261 = vmatpush1.msra.mxu0 0.0
      %1262 = vmatprep.subr.mxu0 0.0
      %1263 = vmatpush1.msra.mxu0 0.0
      %1264 = vmatprep.subr.mxu0 0.0
      %1265 = vmatpush1.msra.mxu0 0.0
      %1266 = vmatprep.subr.mxu0 0.0
      %1267 = vmatpush1.msra.mxu0 0.0
      %1268 = vmatprep.subr.mxu0 0.0
      %1269 = vmatpush1.msra.mxu0 0.0
      %1270 = vmatprep.subr.mxu0 0.0
      %1271 = vmatpush1.msra.mxu0 0.0
      %1272 = vmatprep.subr.mxu0 0.0
      %1273 = vmatpush1.msra.mxu0 0.0
      %1274 = vmatprep.subr.mxu0 0.0
      %1275 = vmatpush1.msra.mxu0 0.0
      %1276 = vmatprep.subr.mxu0 0.0
      %1277 = vmatpush1.msra.mxu0 0.0
      %1278 = vmatprep.subr.mxu0 0.0
      %1279 = vmatpush1.msra.mxu0 0.0
      %1280 = vmatprep.subr.mxu0 0.0
      %1281 = vmatpush1.msra.mxu0 0.0
      %1282 = vmatprep.subr.mxu0 0.0
      %1283 = vmatpush1.msra.mxu0 0.0
      %1284 = vmatprep.subr.mxu0 0.0
      %1285 = vmatpush1.msra.mxu0 0.0
      %1286 = vmatprep.subr.mxu0 0.0
      %1287 = vmatpush1.msra.mxu0 0.0
      %1288 = vmatprep.subr.mxu0 0.0
      %1289 = vmatpush1.msra.mxu0 0.0
      %1290 = vmatprep.subr.mxu0 0.0
      %1291 = vmatpush1.msra.mxu0 0.0
      %1292 = vmatprep.subr.mxu0 0.0
      %1293 = vmatpush1.msra.mxu0 0.0
      %1294 = vmatprep.subr.mxu0 0.0
      %1295 = vmatpush1.msra.mxu0 0.0
      %1296 = vmatprep.subr.mxu0 0.0
      %1297 = vmatpush1.msra.mxu0 0.0
      %1298 = vmatprep.subr.mxu0 0.0
      %1299 = vmatpush1.msra.mxu0 0.0
      %1300 = vmatprep.subr.mxu0 0.0
      %1301 = vmatpush1.msra.mxu0 0.0
      %1302 = vmatprep.subr.mxu0 0.0
      %1303 = vmatpush1.msra.mxu0 0.0
      %1304 = vmatprep.mubr.f32.mxu0 0.0
      %1305 = vmatmul.mubr.f32.gmra.mrb[0].mxu0 %v1161
      %v1306 = vpop.f32.mrb[0].mxu0
      %v1307 = vadd.f32 %v1147, %v1306
      %v1308 = vpop.f32.mrb[0].mxu0
      %1309 = vdwg.mxu0
      %v1310 = vadd.f32 %v984, %v1236
      %v1311 = vadd.f32 %v985, %v1238
      %v1312 = vadd.f32 %v986, %v1307
      %v1313 = vld [vmem:[%s2] sm:$0xff]
      %v1314 = vld [vmem:[%s3] sm:$0xff]
      %1316 = vrot.lane.b32.xlu0 %v1314, 116
      %v1317 = vpop.permute.xlu0 %1316
      %1318 = vrot.lane.b32.xlu0 %v349, 110
      %v1319 = vpop.permute.xlu0 %1318
      %1320 = vrot.lane.b32.xlu0 %v355, 110
      %v1321 = vpop.permute.xlu0 %1320
      %1322 = vrot.lane.b32.xlu0 %v350, 110
      %v1323 = vpop.permute.xlu0 %1322
      %vm1324 = vcmask 900096
      %v1325 = vsel %vm1324, %v1319, %v1321
      %v1326 = vsel %vm1324, %v1321, %v1323
      %v1327 = vsel %vm356, %v1317, 0
      %v1329 = vsel %vm360, %v1325, 0
      %v1331 = vsel %vm360, %v1326, 0
      %v1333 = vsel %vm360, %v1323, 0
      %1335 = vmatprep.subr.mxu0 %v1331
      %1336 = vmatpush1.msra.mxu0 %v1329
      %1337 = vmatprep.subr.mxu0 0.0
      %1338 = vmatpush1.msra.mxu0 0.0
      %1339 = vmatprep.subr.mxu0 0.0
      %1340 = vmatpush1.msra.mxu0 0.0
      %1341 = vmatprep.subr.mxu0 0.0
      %1342 = vmatpush1.msra.mxu0 0.0
      %1343 = vmatprep.subr.mxu0 0.0
      %1344 = vmatpush1.msra.mxu0 0.0
      %1345 = vmatprep.subr.mxu0 0.0
      %1346 = vmatpush1.msra.mxu0 0.0
      %1347 = vmatprep.subr.mxu0 0.0
      %1348 = vmatpush1.msra.mxu0 0.0
      %1349 = vmatprep.subr.mxu0 0.0
      %1350 = vmatpush1.msra.mxu0 0.0
      %1351 = vmatprep.subr.mxu0 0.0
      %1352 = vmatpush1.msra.mxu0 0.0
      %1353 = vmatprep.subr.mxu0 0.0
      %1354 = vmatpush1.msra.mxu0 0.0
      %1355 = vmatprep.subr.mxu0 0.0
      %1356 = vmatpush1.msra.mxu0 0.0
      %1357 = vmatprep.subr.mxu0 0.0
      %1358 = vmatpush1.msra.mxu0 0.0
      %1359 = vmatprep.subr.mxu0 0.0
      %1360 = vmatpush1.msra.mxu0 0.0
      %1361 = vmatprep.subr.mxu0 0.0
      %1362 = vmatpush1.msra.mxu0 0.0
      %1363 = vmatprep.subr.mxu0 0.0
      %1364 = vmatpush1.msra.mxu0 0.0
      %1365 = vmatprep.subr.mxu0 0.0
      %1366 = vmatpush1.msra.mxu0 0.0
      %1367 = vmatprep.subr.mxu0 0.0
      %1368 = vmatpush1.msra.mxu0 0.0
      %1369 = vmatprep.subr.mxu0 0.0
      %1370 = vmatpush1.msra.mxu0 0.0
      %1371 = vmatprep.subr.mxu0 0.0
      %1372 = vmatpush1.msra.mxu0 0.0
      %1373 = vmatprep.subr.mxu0 0.0
      %1374 = vmatpush1.msra.mxu0 0.0
      %1375 = vmatprep.subr.mxu0 0.0
      %1376 = vmatpush1.msra.mxu0 0.0
      %1377 = vmatprep.subr.mxu0 0.0
      %1378 = vmatpush1.msra.mxu0 0.0
      %1379 = vmatprep.subr.mxu0 0.0
      %1380 = vmatpush1.msra.mxu0 0.0
      %1381 = vmatprep.subr.mxu0 0.0
      %1382 = vmatpush1.msra.mxu0 0.0
      %1383 = vmatprep.subr.mxu0 0.0
      %1384 = vmatpush1.msra.mxu0 0.0
      %1385 = vmatprep.subr.mxu0 0.0
      %1386 = vmatpush1.msra.mxu0 0.0
      %1387 = vmatprep.subr.mxu0 0.0
      %1388 = vmatpush1.msra.mxu0 0.0
      %1389 = vmatprep.subr.mxu0 0.0
      %1390 = vmatpush1.msra.mxu0 0.0
      %1391 = vmatprep.subr.mxu0 0.0
      %1392 = vmatpush1.msra.mxu0 0.0
      %1393 = vmatprep.subr.mxu0 0.0
      %1394 = vmatpush1.msra.mxu0 0.0
      %1395 = vmatprep.subr.mxu0 0.0
      %1396 = vmatpush1.msra.mxu0 0.0
      %1397 = vmatprep.subr.mxu0 0.0
      %1398 = vmatpush1.msra.mxu0 0.0
      %1399 = vmatprep.mubr.f32.mxu0 0.0
      %1400 = vmatmul.mubr.f32.gmra.mrb[0].mxu0 %v1327
      %v1401 = vpop.f32.mrb[0].mxu0
      %v1402 = vadd.f32 0.0, %v1401
      %v1403 = vpop.f32.mrb[0].mxu0
      %v1404 = vadd.f32 0.0, %v1403
      %1405 = vdwg.mxu0
      %1406 = vmatprep.subr.mxu0 0.0
      %1407 = vmatpush1.msra.mxu0 %v1333
      %1408 = vmatprep.subr.mxu0 0.0
      %1409 = vmatpush1.msra.mxu0 0.0
      %1410 = vmatprep.subr.mxu0 0.0
      %1411 = vmatpush1.msra.mxu0 0.0
      %1412 = vmatprep.subr.mxu0 0.0
      %1413 = vmatpush1.msra.mxu0 0.0
      %1414 = vmatprep.subr.mxu0 0.0
      %1415 = vmatpush1.msra.mxu0 0.0
      %1416 = vmatprep.subr.mxu0 0.0
      %1417 = vmatpush1.msra.mxu0 0.0
      %1418 = vmatprep.subr.mxu0 0.0
      %1419 = vmatpush1.msra.mxu0 0.0
      %1420 = vmatprep.subr.mxu0 0.0
      %1421 = vmatpush1.msra.mxu0 0.0
      %1422 = vmatprep.subr.mxu0 0.0
      %1423 = vmatpush1.msra.mxu0 0.0
      %1424 = vmatprep.subr.mxu0 0.0
      %1425 = vmatpush1.msra.mxu0 0.0
      %1426 = vmatprep.subr.mxu0 0.0
      %1427 = vmatpush1.msra.mxu0 0.0
      %1428 = vmatprep.subr.mxu0 0.0
      %1429 = vmatpush1.msra.mxu0 0.0
      %1430 = vmatprep.subr.mxu0 0.0
      %1431 = vmatpush1.msra.mxu0 0.0
      %1432 = vmatprep.subr.mxu0 0.0
      %1433 = vmatpush1.msra.mxu0 0.0
      %1434 = vmatprep.subr.mxu0 0.0
      %1435 = vmatpush1.msra.mxu0 0.0
      %1436 = vmatprep.subr.mxu0 0.0
      %1437 = vmatpush1.msra.mxu0 0.0
      %1438 = vmatprep.subr.mxu0 0.0
      %1439 = vmatpush1.msra.mxu0 0.0
      %1440 = vmatprep.subr.mxu0 0.0
      %1441 = vmatpush1.msra.mxu0 0.0
      %1442 = vmatprep.subr.mxu0 0.0
      %1443 = vmatpush1.msra.mxu0 0.0
      %1444 = vmatprep.subr.mxu0 0.0
      %1445 = vmatpush1.msra.mxu0 0.0
      %1446 = vmatprep.subr.mxu0 0.0
      %1447 = vmatpush1.msra.mxu0 0.0
      %1448 = vmatprep.subr.mxu0 0.0
      %1449 = vmatpush1.msra.mxu0 0.0
      %1450 = vmatprep.subr.mxu0 0.0
      %1451 = vmatpush1.msra.mxu0 0.0
      %1452 = vmatprep.subr.mxu0 0.0
      %1453 = vmatpush1.msra.mxu0 0.0
      %1454 = vmatprep.subr.mxu0 0.0
      %1455 = vmatpush1.msra.mxu0 0.0
      %1456 = vmatprep.subr.mxu0 0.0
      %1457 = vmatpush1.msra.mxu0 0.0
      %1458 = vmatprep.subr.mxu0 0.0
      %1459 = vmatpush1.msra.mxu0 0.0
      %1460 = vmatprep.subr.mxu0 0.0
      %1461 = vmatpush1.msra.mxu0 0.0
      %1462 = vmatprep.subr.mxu0 0.0
      %1463 = vmatpush1.msra.mxu0 0.0
      %1464 = vmatprep.subr.mxu0 0.0
      %1465 = vmatpush1.msra.mxu0 0.0
      %1466 = vmatprep.subr.mxu0 0.0
      %1467 = vmatpush1.msra.mxu0 0.0
      %1468 = vmatprep.subr.mxu0 0.0
      %1469 = vmatpush1.msra.mxu0 0.0
      %1470 = vmatprep.mubr.f32.mxu0 0.0
      %1471 = vmatmul.mubr.f32.gmra.mrb[0].mxu0 %v1327
      %v1472 = vpop.f32.mrb[0].mxu0
      %v1473 = vadd.f32 0.0, %v1472
      %v1474 = vpop.f32.mrb[0].mxu0
      %1475 = vdwg.mxu0
      %1477 = vrot.lane.b32.xlu0 %v1313, 116
      %v1478 = vpop.permute.xlu0 %1477
      %1479 = vrot.lane.b32.xlu0 %v347, 110
      %v1480 = vpop.permute.xlu0 %1479
      %1481 = vrot.lane.b32.xlu0 %v510, 110
      %v1482 = vpop.permute.xlu0 %1481
      %1483 = vrot.lane.b32.xlu0 %v348, 110
      %v1484 = vpop.permute.xlu0 %1483
      %v1485 = vsel %vm1324, %v1480, %v1482
      %v1486 = vsel %vm1324, %v1482, %v1484
      %v1487 = vsel %vm356, %v1478, 0
      %v1489 = vsel %vm360, %v1485, 0
      %v1491 = vsel %vm360, %v1486, 0
      %v1493 = vsel %vm360, %v1484, 0
      %1495 = vmatprep.subr.mxu0 %v1491
      %1496 = vmatpush1.msra.mxu0 %v1489
      %1497 = vmatprep.subr.mxu0 0.0
      %1498 = vmatpush1.msra.mxu0 0.0
      %1499 = vmatprep.subr.mxu0 0.0
      %1500 = vmatpush1.msra.mxu0 0.0
      %1501 = vmatprep.subr.mxu0 0.0
      %1502 = vmatpush1.msra.mxu0 0.0
      %1503 = vmatprep.subr.mxu0 0.0
      %1504 = vmatpush1.msra.mxu0 0.0
      %1505 = vmatprep.subr.mxu0 0.0
      %1506 = vmatpush1.msra.mxu0 0.0
      %1507 = vmatprep.subr.mxu0 0.0
      %1508 = vmatpush1.msra.mxu0 0.0
      %1509 = vmatprep.subr.mxu0 0.0
      %1510 = vmatpush1.msra.mxu0 0.0
      %1511 = vmatprep.subr.mxu0 0.0
      %1512 = vmatpush1.msra.mxu0 0.0
      %1513 = vmatprep.subr.mxu0 0.0
      %1514 = vmatpush1.msra.mxu0 0.0
      %1515 = vmatprep.subr.mxu0 0.0
      %1516 = vmatpush1.msra.mxu0 0.0
      %1517 = vmatprep.subr.mxu0 0.0
      %1518 = vmatpush1.msra.mxu0 0.0
      %1519 = vmatprep.subr.mxu0 0.0
      %1520 = vmatpush1.msra.mxu0 0.0
      %1521 = vmatprep.subr.mxu0 0.0
      %1522 = vmatpush1.msra.mxu0 0.0
      %1523 = vmatprep.subr.mxu0 0.0
      %1524 = vmatpush1.msra.mxu0 0.0
      %1525 = vmatprep.subr.mxu0 0.0
      %1526 = vmatpush1.msra.mxu0 0.0
      %1527 = vmatprep.subr.mxu0 0.0
      %1528 = vmatpush1.msra.mxu0 0.0
      %1529 = vmatprep.subr.mxu0 0.0
      %1530 = vmatpush1.msra.mxu0 0.0
      %1531 = vmatprep.subr.mxu0 0.0
      %1532 = vmatpush1.msra.mxu0 0.0
      %1533 = vmatprep.subr.mxu0 0.0
      %1534 = vmatpush1.msra.mxu0 0.0
      %1535 = vmatprep.subr.mxu0 0.0
      %1536 = vmatpush1.msra.mxu0 0.0
      %1537 = vmatprep.subr.mxu0 0.0
      %1538 = vmatpush1.msra.mxu0 0.0
      %1539 = vmatprep.subr.mxu0 0.0
      %1540 = vmatpush1.msra.mxu0 0.0
      %1541 = vmatprep.subr.mxu0 0.0
      %1542 = vmatpush1.msra.mxu0 0.0
      %1543 = vmatprep.subr.mxu0 0.0
      %1544 = vmatpush1.msra.mxu0 0.0
      %1545 = vmatprep.subr.mxu0 0.0
      %1546 = vmatpush1.msra.mxu0 0.0
      %1547 = vmatprep.subr.mxu0 0.0
      %1548 = vmatpush1.msra.mxu0 0.0
      %1549 = vmatprep.subr.mxu0 0.0
      %1550 = vmatpush1.msra.mxu0 0.0
      %1551 = vmatprep.subr.mxu0 0.0
      %1552 = vmatpush1.msra.mxu0 0.0
      %1553 = vmatprep.subr.mxu0 0.0
      %1554 = vmatpush1.msra.mxu0 0.0
      %1555 = vmatprep.subr.mxu0 0.0
      %1556 = vmatpush1.msra.mxu0 0.0
      %1557 = vmatprep.subr.mxu0 0.0
      %1558 = vmatpush1.msra.mxu0 0.0
      %1559 = vmatprep.mubr.f32.mxu0 0.0
      %1560 = vmatmul.mubr.f32.gmra.mrb[0].mxu0 %v1487
      %v1561 = vpop.f32.mrb[0].mxu0
      %v1562 = vadd.f32 %v1402, %v1561
      %v1563 = vpop.f32.mrb[0].mxu0
      %v1564 = vadd.f32 %v1404, %v1563
      %1565 = vdwg.mxu0
      %1566 = vmatprep.subr.mxu0 0.0
      %1567 = vmatpush1.msra.mxu0 %v1493
      %1568 = vmatprep.subr.mxu0 0.0
      %1569 = vmatpush1.msra.mxu0 0.0
      %1570 = vmatprep.subr.mxu0 0.0
      %1571 = vmatpush1.msra.mxu0 0.0
      %1572 = vmatprep.subr.mxu0 0.0
      %1573 = vmatpush1.msra.mxu0 0.0
      %1574 = vmatprep.subr.mxu0 0.0
      %1575 = vmatpush1.msra.mxu0 0.0
      %1576 = vmatprep.subr.mxu0 0.0
      %1577 = vmatpush1.msra.mxu0 0.0
      %1578 = vmatprep.subr.mxu0 0.0
      %1579 = vmatpush1.msra.mxu0 0.0
      %1580 = vmatprep.subr.mxu0 0.0
      %1581 = vmatpush1.msra.mxu0 0.0
      %1582 = vmatprep.subr.mxu0 0.0
      %1583 = vmatpush1.msra.mxu0 0.0
      %1584 = vmatprep.subr.mxu0 0.0
      %1585 = vmatpush1.msra.mxu0 0.0
      %1586 = vmatprep.subr.mxu0 0.0
      %1587 = vmatpush1.msra.mxu0 0.0
      %1588 = vmatprep.subr.mxu0 0.0
      %1589 = vmatpush1.msra.mxu0 0.0
      %1590 = vmatprep.subr.mxu0 0.0
      %1591 = vmatpush1.msra.mxu0 0.0
      %1592 = vmatprep.subr.mxu0 0.0
      %1593 = vmatpush1.msra.mxu0 0.0
      %1594 = vmatprep.subr.mxu0 0.0
      %1595 = vmatpush1.msra.mxu0 0.0
      %1596 = vmatprep.subr.mxu0 0.0
      %1597 = vmatpush1.msra.mxu0 0.0
      %1598 = vmatprep.subr.mxu0 0.0
      %1599 = vmatpush1.msra.mxu0 0.0
      %1600 = vmatprep.subr.mxu0 0.0
      %1601 = vmatpush1.msra.mxu0 0.0
      %1602 = vmatprep.subr.mxu0 0.0
      %1603 = vmatpush1.msra.mxu0 0.0
      %1604 = vmatprep.subr.mxu0 0.0
      %1605 = vmatpush1.msra.mxu0 0.0
      %1606 = vmatprep.subr.mxu0 0.0
      %1607 = vmatpush1.msra.mxu0 0.0
      %1608 = vmatprep.subr.mxu0 0.0
      %1609 = vmatpush1.msra.mxu0 0.0
      %1610 = vmatprep.subr.mxu0 0.0
      %1611 = vmatpush1.msra.mxu0 0.0
      %1612 = vmatprep.subr.mxu0 0.0
      %1613 = vmatpush1.msra.mxu0 0.0
      %1614 = vmatprep.subr.mxu0 0.0
      %1615 = vmatpush1.msra.mxu0 0.0
      %1616 = vmatprep.subr.mxu0 0.0
      %1617 = vmatpush1.msra.mxu0 0.0
      %1618 = vmatprep.subr.mxu0 0.0
      %1619 = vmatpush1.msra.mxu0 0.0
      %1620 = vmatprep.subr.mxu0 0.0
      %1621 = vmatpush1.msra.mxu0 0.0
      %1622 = vmatprep.subr.mxu0 0.0
      %1623 = vmatpush1.msra.mxu0 0.0
      %1624 = vmatprep.subr.mxu0 0.0
      %1625 = vmatpush1.msra.mxu0 0.0
      %1626 = vmatprep.subr.mxu0 0.0
      %1627 = vmatpush1.msra.mxu0 0.0
      %1628 = vmatprep.subr.mxu0 0.0
      %1629 = vmatpush1.msra.mxu0 0.0
      %1630 = vmatprep.mubr.f32.mxu0 0.0
      %1631 = vmatmul.mubr.f32.gmra.mrb[0].mxu0 %v1487
      %v1632 = vpop.f32.mrb[0].mxu0
      %v1633 = vadd.f32 %v1473, %v1632
      %v1634 = vpop.f32.mrb[0].mxu0
      %1635 = vdwg.mxu0
      %v1636 = vadd.f32 %v1310, %v1562
      %v1637 = vadd.f32 %v1311, %v1564
      %v1638 = vadd.f32 %v1312, %v1633
      %v1639 = vld [vmem:[%s2] sm:$0xff]
      %v1640 = vld [vmem:[%s3] sm:$0xff]
      %1642 = vrot.lane.b32.xlu0 %v1640, 112
      %v1643 = vpop.permute.xlu0 %1642
      %1644 = vrot.lane.b32.xlu0 %v349, 109
      %v1645 = vpop.permute.xlu0 %1644
      %1646 = vrot.lane.b32.xlu0 %v355, 109
      %v1647 = vpop.permute.xlu0 %1646
      %1648 = vrot.lane.b32.xlu0 %v350, 109
      %v1649 = vpop.permute.xlu0 %1648
      %vm1650 = vcmask 891904
      %v1651 = vsel %vm1650, %v1645, %v1647
      %v1652 = vsel %vm1650, %v1647, %v1649
      %v1653 = vsel %vm356, %v1643, 0
      %v1655 = vsel %vm360, %v1651, 0
      %v1657 = vsel %vm360, %v1652, 0
      %v1659 = vsel %vm360, %v1649, 0
      %1661 = vmatprep.subr.mxu0 %v1657
      %1662 = vmatpush1.msra.mxu0 %v1655
      %1663 = vmatprep.subr.mxu0 0.0
      %1664 = vmatpush1.msra.mxu0 0.0
      %1665 = vmatprep.subr.mxu0 0.0
      %1666 = vmatpush1.msra.mxu0 0.0
      %1667 = vmatprep.subr.mxu0 0.0
      %1668 = vmatpush1.msra.mxu0 0.0
      %1669 = vmatprep.subr.mxu0 0.0
      %1670 = vmatpush1.msra.mxu0 0.0
      %1671 = vmatprep.subr.mxu0 0.0
      %1672 = vmatpush1.msra.mxu0 0.0
      %1673 = vmatprep.subr.mxu0 0.0
      %1674 = vmatpush1.msra.mxu0 0.0
      %1675 = vmatprep.subr.mxu0 0.0
      %1676 = vmatpush1.msra.mxu0 0.0
      %1677 = vmatprep.subr.mxu0 0.0
      %1678 = vmatpush1.msra.mxu0 0.0
      %1679 = vmatprep.subr.mxu0 0.0
      %1680 = vmatpush1.msra.mxu0 0.0
      %1681 = vmatprep.subr.mxu0 0.0
      %1682 = vmatpush1.msra.mxu0 0.0
      %1683 = vmatprep.subr.mxu0 0.0
      %1684 = vmatpush1.msra.mxu0 0.0
      %1685 = vmatprep.subr.mxu0 0.0
      %1686 = vmatpush1.msra.mxu0 0.0
      %1687 = vmatprep.subr.mxu0 0.0
      %1688 = vmatpush1.msra.mxu0 0.0
      %1689 = vmatprep.subr.mxu0 0.0
      %1690 = vmatpush1.msra.mxu0 0.0
      %1691 = vmatprep.subr.mxu0 0.0
      %1692 = vmatpush1.msra.mxu0 0.0
      %1693 = vmatprep.subr.mxu0 0.0
      %1694 = vmatpush1.msra.mxu0 0.0
      %1695 = vmatprep.subr.mxu0 0.0
      %1696 = vmatpush1.msra.mxu0 0.0
      %1697 = vmatprep.subr.mxu0 0.0
      %1698 = vmatpush1.msra.mxu0 0.0
      %1699 = vmatprep.subr.mxu0 0.0
      %1700 = vmatpush1.msra.mxu0 0.0
      %1701 = vmatprep.subr.mxu0 0.0
      %1702 = vmatpush1.msra.mxu0 0.0
      %1703 = vmatprep.subr.mxu0 0.0
      %1704 = vmatpush1.msra.mxu0 0.0
      %1705 = vmatprep.subr.mxu0 0.0
      %1706 = vmatpush1.msra.mxu0 0.0
      %1707 = vmatprep.subr.mxu0 0.0
      %1708 = vmatpush1.msra.mxu0 0.0
      %1709 = vmatprep.subr.mxu0 0.0
      %1710 = vmatpush1.msra.mxu0 0.0
      %1711 = vmatprep.subr.mxu0 0.0
      %1712 = vmatpush1.msra.mxu0 0.0
      %1713 = vmatprep.subr.mxu0 0.0
      %1714 = vmatpush1.msra.mxu0 0.0
      %1715 = vmatprep.subr.mxu0 0.0
      %1716 = vmatpush1.msra.mxu0 0.0
      %1717 = vmatprep.subr.mxu0 0.0
      %1718 = vmatpush1.msra.mxu0 0.0
      %1719 = vmatprep.subr.mxu0 0.0
      %1720 = vmatpush1.msra.mxu0 0.0
      %1721 = vmatprep.subr.mxu0 0.0
      %1722 = vmatpush1.msra.mxu0 0.0
      %1723 = vmatprep.subr.mxu0 0.0
      %1724 = vmatpush1.msra.mxu0 0.0
      %1725 = vmatprep.mubr.f32.mxu0 0.0
      %1726 = vmatmul.mubr.f32.gmra.mrb[0].mxu0 %v1653
      %v1727 = vpop.f32.mrb[0].mxu0
      %v1728 = vadd.f32 0.0, %v1727
      %v1729 = vpop.f32.mrb[0].mxu0
      %v1730 = vadd.f32 0.0, %v1729
      %1731 = vdwg.mxu0
      %1732 = vmatprep.subr.mxu0 0.0
      %1733 = vmatpush1.msra.mxu0 %v1659
      %1734 = vmatprep.subr.mxu0 0.0
      %1735 = vmatpush1.msra.mxu0 0.0
      %1736 = vmatprep.subr.mxu0 0.0
      %1737 = vmatpush1.msra.mxu0 0.0
      %1738 = vmatprep.subr.mxu0 0.0
      %1739 = vmatpush1.msra.mxu0 0.0
      %1740 = vmatprep.subr.mxu0 0.0
      %1741 = vmatpush1.msra.mxu0 0.0
      %1742 = vmatprep.subr.mxu0 0.0
      %1743 = vmatpush1.msra.mxu0 0.0
      %1744 = vmatprep.subr.mxu0 0.0
      %1745 = vmatpush1.msra.mxu0 0.0
      %1746 = vmatprep.subr.mxu0 0.0
      %1747 = vmatpush1.msra.mxu0 0.0
      %1748 = vmatprep.subr.mxu0 0.0
      %1749 = vmatpush1.msra.mxu0 0.0
      %1750 = vmatprep.subr.mxu0 0.0
      %1751 = vmatpush1.msra.mxu0 0.0
      %1752 = vmatprep.subr.mxu0 0.0
      %1753 = vmatpush1.msra.mxu0 0.0
      %1754 = vmatprep.subr.mxu0 0.0
      %1755 = vmatpush1.msra.mxu0 0.0
      %1756 = vmatprep.subr.mxu0 0.0
      %1757 = vmatpush1.msra.mxu0 0.0
      %1758 = vmatprep.subr.mxu0 0.0
      %1759 = vmatpush1.msra.mxu0 0.0
      %1760 = vmatprep.subr.mxu0 0.0
      %1761 = vmatpush1.msra.mxu0 0.0
      %1762 = vmatprep.subr.mxu0 0.0
      %1763 = vmatpush1.msra.mxu0 0.0
      %1764 = vmatprep.subr.mxu0 0.0
      %1765 = vmatpush1.msra.mxu0 0.0
      %1766 = vmatprep.subr.mxu0 0.0
      %1767 = vmatpush1.msra.mxu0 0.0
      %1768 = vmatprep.subr.mxu0 0.0
      %1769 = vmatpush1.msra.mxu0 0.0
      %1770 = vmatprep.subr.mxu0 0.0
      %1771 = vmatpush1.msra.mxu0 0.0
      %1772 = vmatprep.subr.mxu0 0.0
      %1773 = vmatpush1.msra.mxu0 0.0
      %1774 = vmatprep.subr.mxu0 0.0
      %1775 = vmatpush1.msra.mxu0 0.0
      %1776 = vmatprep.subr.mxu0 0.0
      %1777 = vmatpush1.msra.mxu0 0.0
      %1778 = vmatprep.subr.mxu0 0.0
      %1779 = vmatpush1.msra.mxu0 0.0
      %1780 = vmatprep.subr.mxu0 0.0
      %1781 = vmatpush1.msra.mxu0 0.0
      %1782 = vmatprep.subr.mxu0 0.0
      %1783 = vmatpush1.msra.mxu0 0.0
      %1784 = vmatprep.subr.mxu0 0.0
      %1785 = vmatpush1.msra.mxu0 0.0
      %1786 = vmatprep.subr.mxu0 0.0
      %1787 = vmatpush1.msra.mxu0 0.0
      %1788 = vmatprep.subr.mxu0 0.0
      %1789 = vmatpush1.msra.mxu0 0.0
      %1790 = vmatprep.subr.mxu0 0.0
      %1791 = vmatpush1.msra.mxu0 0.0
      %1792 = vmatprep.subr.mxu0 0.0
      %1793 = vmatpush1.msra.mxu0 0.0
      %1794 = vmatprep.subr.mxu0 0.0
      %1795 = vmatpush1.msra.mxu0 0.0
      %1796 = vmatprep.mubr.f32.mxu0 0.0
      %1797 = vmatmul.mubr.f32.gmra.mrb[0].mxu0 %v1653
      %v1798 = vpop.f32.mrb[0].mxu0
      %v1799 = vadd.f32 0.0, %v1798
      %v1800 = vpop.f32.mrb[0].mxu0
      %1801 = vdwg.mxu0
      %1803 = vrot.lane.b32.xlu0 %v1639, 112
      %v1804 = vpop.permute.xlu0 %1803
      %1805 = vrot.lane.b32.xlu0 %v347, 109
      %v1806 = vpop.permute.xlu0 %1805
      %1807 = vrot.lane.b32.xlu0 %v510, 109
      %v1808 = vpop.permute.xlu0 %1807
      %1809 = vrot.lane.b32.xlu0 %v348, 109
      %v1810 = vpop.permute.xlu0 %1809
      %v1811 = vsel %vm1650, %v1806, %v1808
      %v1812 = vsel %vm1650, %v1808, %v1810
      %v1813 = vsel %vm356, %v1804, 0
      %v1815 = vsel %vm360, %v1811, 0
      %v1817 = vsel %vm360, %v1812, 0
      %v1819 = vsel %vm360, %v1810, 0
      %1821 = vmatprep.subr.mxu0 %v1817
      %1822 = vmatpush1.msra.mxu0 %v1815
      %1823 = vmatprep.subr.mxu0 0.0
      %1824 = vmatpush1.msra.mxu0 0.0
      %1825 = vmatprep.subr.mxu0 0.0
      %1826 = vmatpush1.msra.mxu0 0.0
      %1827 = vmatprep.subr.mxu0 0.0
      %1828 = vmatpush1.msra.mxu0 0.0
      %1829 = vmatprep.subr.mxu0 0.0
      %1830 = vmatpush1.msra.mxu0 0.0
      %1831 = vmatprep.subr.mxu0 0.0
      %1832 = vmatpush1.msra.mxu0 0.0
      %1833 = vmatprep.subr.mxu0 0.0
      %1834 = vmatpush1.msra.mxu0 0.0
      %1835 = vmatprep.subr.mxu0 0.0
      %1836 = vmatpush1.msra.mxu0 0.0
      %1837 = vmatprep.subr.mxu0 0.0
      %1838 = vmatpush1.msra.mxu0 0.0
      %1839 = vmatprep.subr.mxu0 0.0
      %1840 = vmatpush1.msra.mxu0 0.0
      %1841 = vmatprep.subr.mxu0 0.0
      %1842 = vmatpush1.msra.mxu0 0.0
      %1843 = vmatprep.subr.mxu0 0.0
      %1844 = vmatpush1.msra.mxu0 0.0
      %1845 = vmatprep.subr.mxu0 0.0
      %1846 = vmatpush1.msra.mxu0 0.0
      %1847 = vmatprep.subr.mxu0 0.0
      %1848 = vmatpush1.msra.mxu0 0.0
      %1849 = vmatprep.subr.mxu0 0.0
      %1850 = vmatpush1.msra.mxu0 0.0
      %1851 = vmatprep.subr.mxu0 0.0
      %1852 = vmatpush1.msra.mxu0 0.0
      %1853 = vmatprep.subr.mxu0 0.0
      %1854 = vmatpush1.msra.mxu0 0.0
      %1855 = vmatprep.subr.mxu0 0.0
      %1856 = vmatpush1.msra.mxu0 0.0
      %1857 = vmatprep.subr.mxu0 0.0
      %1858 = vmatpush1.msra.mxu0 0.0
      %1859 = vmatprep.subr.mxu0 0.0
      %1860 = vmatpush1.msra.mxu0 0.0
      %1861 = vmatprep.subr.mxu0 0.0
      %1862 = vmatpush1.msra.mxu0 0.0
      %1863 = vmatprep.subr.mxu0 0.0
      %1864 = vmatpush1.msra.mxu0 0.0
      %1865 = vmatprep.subr.mxu0 0.0
      %1866 = vmatpush1.msra.mxu0 0.0
      %1867 = vmatprep.subr.mxu0 0.0
      %1868 = vmatpush1.msra.mxu0 0.0
      %1869 = vmatprep.subr.mxu0 0.0
      %1870 = vmatpush1.msra.mxu0 0.0
      %1871 = vmatprep.subr.mxu0 0.0
      %1872 = vmatpush1.msra.mxu0 0.0
      %1873 = vmatprep.subr.mxu0 0.0
      %1874 = vmatpush1.msra.mxu0 0.0
      %1875 = vmatprep.subr.mxu0 0.0
      %1876 = vmatpush1.msra.mxu0 0.0
      %1877 = vmatprep.subr.mxu0 0.0
      %1878 = vmatpush1.msra.mxu0 0.0
      %1879 = vmatprep.subr.mxu0 0.0
      %1880 = vmatpush1.msra.mxu0 0.0
      %1881 = vmatprep.subr.mxu0 0.0
      %1882 = vmatpush1.msra.mxu0 0.0
      %1883 = vmatprep.subr.mxu0 0.0
      %1884 = vmatpush1.msra.mxu0 0.0
      %1885 = vmatprep.mubr.f32.mxu0 0.0
      %1886 = vmatmul.mubr.f32.gmra.mrb[0].mxu0 %v1813
      %v1887 = vpop.f32.mrb[0].mxu0
      %v1888 = vadd.f32 %v1728, %v1887
      %v1889 = vpop.f32.mrb[0].mxu0
      %v1890 = vadd.f32 %v1730, %v1889
      %1891 = vdwg.mxu0
      %1892 = vmatprep.subr.mxu0 0.0
      %1893 = vmatpush1.msra.mxu0 %v1819
      %1894 = vmatprep.subr.mxu0 0.0
      %1895 = vmatpush1.msra.mxu0 0.0
      %1896 = vmatprep.subr.mxu0 0.0
      %1897 = vmatpush1.msra.mxu0 0.0
      %1898 = vmatprep.subr.mxu0 0.0
      %1899 = vmatpush1.msra.mxu0 0.0
      %1900 = vmatprep.subr.mxu0 0.0
      %1901 = vmatpush1.msra.mxu0 0.0
      %1902 = vmatprep.subr.mxu0 0.0
      %1903 = vmatpush1.msra.mxu0 0.0
      %1904 = vmatprep.subr.mxu0 0.0
      %1905 = vmatpush1.msra.mxu0 0.0
      %1906 = vmatprep.subr.mxu0 0.0
      %1907 = vmatpush1.msra.mxu0 0.0
      %1908 = vmatprep.subr.mxu0 0.0
      %1909 = vmatpush1.msra.mxu0 0.0
      %1910 = vmatprep.subr.mxu0 0.0
      %1911 = vmatpush1.msra.mxu0 0.0
      %1912 = vmatprep.subr.mxu0 0.0
      %1913 = vmatpush1.msra.mxu0 0.0
      %1914 = vmatprep.subr.mxu0 0.0
      %1915 = vmatpush1.msra.mxu0 0.0
      %1916 = vmatprep.subr.mxu0 0.0
      %1917 = vmatpush1.msra.mxu0 0.0
      %1918 = vmatprep.subr.mxu0 0.0
      %1919 = vmatpush1.msra.mxu0 0.0
      %1920 = vmatprep.subr.mxu0 0.0
      %1921 = vmatpush1.msra.mxu0 0.0
      %1922 = vmatprep.subr.mxu0 0.0
      %1923 = vmatpush1.msra.mxu0 0.0
      %1924 = vmatprep.subr.mxu0 0.0
      %1925 = vmatpush1.msra.mxu0 0.0
      %1926 = vmatprep.subr.mxu0 0.0
      %1927 = vmatpush1.msra.mxu0 0.0
      %1928 = vmatprep.subr.mxu0 0.0
      %1929 = vmatpush1.msra.mxu0 0.0
      %1930 = vmatprep.subr.mxu0 0.0
      %1931 = vmatpush1.msra.mxu0 0.0
      %1932 = vmatprep.subr.mxu0 0.0
      %1933 = vmatpush1.msra.mxu0 0.0
      %1934 = vmatprep.subr.mxu0 0.0
      %1935 = vmatpush1.msra.mxu0 0.0
      %1936 = vmatprep.subr.mxu0 0.0
      %1937 = vmatpush1.msra.mxu0 0.0
      %1938 = vmatprep.subr.mxu0 0.0
      %1939 = vmatpush1.msra.mxu0 0.0
      %1940 = vmatprep.subr.mxu0 0.0
      %1941 = vmatpush1.msra.mxu0 0.0
      %1942 = vmatprep.subr.mxu0 0.0
      %1943 = vmatpush1.msra.mxu0 0.0
      %1944 = vmatprep.subr.mxu0 0.0
      %1945 = vmatpush1.msra.mxu0 0.0
      %1946 = vmatprep.subr.mxu0 0.0
      %1947 = vmatpush1.msra.mxu0 0.0
      %1948 = vmatprep.subr.mxu0 0.0
      %1949 = vmatpush1.msra.mxu0 0.0
      %1950 = vmatprep.subr.mxu0 0.0
      %1951 = vmatpush1.msra.mxu0 0.0
      %1952 = vmatprep.subr.mxu0 0.0
      %1953 = vmatpush1.msra.mxu0 0.0
      %1954 = vmatprep.subr.mxu0 0.0
      %1955 = vmatpush1.msra.mxu0 0.0
      %1956 = vmatprep.mubr.f32.mxu0 0.0
      %1957 = vmatmul.mubr.f32.gmra.mrb[0].mxu0 %v1813
      %v1958 = vpop.f32.mrb[0].mxu0
      %v1959 = vadd.f32 %v1799, %v1958
      %v1960 = vpop.f32.mrb[0].mxu0
      %1961 = vdwg.mxu0
      %v1962 = vadd.f32 %v1636, %v1888
      %v1963 = vadd.f32 %v1637, %v1890
      %v1964 = vadd.f32 %v1638, %v1959
      %v1965 = vld [vmem:[%s2] sm:$0xff]
      %v1966 = vld [vmem:[%s3] sm:$0xff]
      %1968 = vrot.lane.b32.xlu0 %v1966, 108
      %v1969 = vpop.permute.xlu0 %1968
      %1970 = vrot.lane.b32.xlu0 %v349, 108
      %v1971 = vpop.permute.xlu0 %1970
      %1972 = vrot.lane.b32.xlu0 %v355, 108
      %v1973 = vpop.permute.xlu0 %1972
      %1974 = vrot.lane.b32.xlu0 %v350, 108
      %v1975 = vpop.permute.xlu0 %1974
      %vm1976 = vcmask 883712
      %v1977 = vsel %vm1976, %v1971, %v1973
      %v1978 = vsel %vm1976, %v1973, %v1975
      %v1979 = vsel %vm356, %v1969, 0
      %v1981 = vsel %vm360, %v1977, 0
      %v1983 = vsel %vm360, %v1978, 0
      %v1985 = vsel %vm360, %v1975, 0
      %1987 = vmatprep.subr.mxu0 %v1983
      %1988 = vmatpush1.msra.mxu0 %v1981
      %1989 = vmatprep.subr.mxu0 0.0
      %1990 = vmatpush1.msra.mxu0 0.0
      %1991 = vmatprep.subr.mxu0 0.0
      %1992 = vmatpush1.msra.mxu0 0.0
      %1993 = vmatprep.subr.mxu0 0.0
      %1994 = vmatpush1.msra.mxu0 0.0
      %1995 = vmatprep.subr.mxu0 0.0
      %1996 = vmatpush1.msra.mxu0 0.0
      %1997 = vmatprep.subr.mxu0 0.0
      %1998 = vmatpush1.msra.mxu0 0.0
      %1999 = vmatprep.subr.mxu0 0.0
      %2000 = vmatpush1.msra.mxu0 0.0
      %2001 = vmatprep.subr.mxu0 0.0
      %2002 = vmatpush1.msra.mxu0 0.0
      %2003 = vmatprep.subr.mxu0 0.0
      %2004 = vmatpush1.msra.mxu0 0.0
      %2005 = vmatprep.subr.mxu0 0.0
      %2006 = vmatpush1.msra.mxu0 0.0
      %2007 = vmatprep.subr.mxu0 0.0
      %2008 = vmatpush1.msra.mxu0 0.0
      %2009 = vmatprep.subr.mxu0 0.0
      %2010 = vmatpush1.msra.mxu0 0.0
      %2011 = vmatprep.subr.mxu0 0.0
      %2012 = vmatpush1.msra.mxu0 0.0
      %2013 = vmatprep.subr.mxu0 0.0
      %2014 = vmatpush1.msra.mxu0 0.0
      %2015 = vmatprep.subr.mxu0 0.0
      %2016 = vmatpush1.msra.mxu0 0.0
      %2017 = vmatprep.subr.mxu0 0.0
      %2018 = vmatpush1.msra.mxu0 0.0
      %2019 = vmatprep.subr.mxu0 0.0
      %2020 = vmatpush1.msra.mxu0 0.0
      %2021 = vmatprep.subr.mxu0 0.0
      %2022 = vmatpush1.msra.mxu0 0.0
      %2023 = vmatprep.subr.mxu0 0.0
      %2024 = vmatpush1.msra.mxu0 0.0
      %2025 = vmatprep.subr.mxu0 0.0
      %2026 = vmatpush1.msra.mxu0 0.0
      %2027 = vmatprep.subr.mxu0 0.0
      %2028 = vmatpush1.msra.mxu0 0.0
      %2029 = vmatprep.subr.mxu0 0.0
      %2030 = vmatpush1.msra.mxu0 0.0
      %2031 = vmatprep.subr.mxu0 0.0
      %2032 = vmatpush1.msra.mxu0 0.0
      %2033 = vmatprep.subr.mxu0 0.0
      %2034 = vmatpush1.msra.mxu0 0.0
      %2035 = vmatprep.subr.mxu0 0.0
      %2036 = vmatpush1.msra.mxu0 0.0
      %2037 = vmatprep.subr.mxu0 0.0
      %2038 = vmatpush1.msra.mxu0 0.0
      %2039 = vmatprep.subr.mxu0 0.0
      %2040 = vmatpush1.msra.mxu0 0.0
      %2041 = vmatprep.subr.mxu0 0.0
      %2042 = vmatpush1.msra.mxu0 0.0
      %2043 = vmatprep.subr.mxu0 0.0
      %2044 = vmatpush1.msra.mxu0 0.0
      %2045 = vmatprep.subr.mxu0 0.0
      %2046 = vmatpush1.msra.mxu0 0.0
      %2047 = vmatprep.subr.mxu0 0.0
      %2048 = vmatpush1.msra.mxu0 0.0
      %2049 = vmatprep.subr.mxu0 0.0
      %2050 = vmatpush1.msra.mxu0 0.0
      %2051 = vmatprep.mubr.f32.mxu0 0.0
      %2052 = vmatmul.mubr.f32.gmra.mrb[0].mxu0 %v1979
      %v2053 = vpop.f32.mrb[0].mxu0
      %v2054 = vadd.f32 0.0, %v2053
      %v2055 = vpop.f32.mrb[0].mxu0
      %v2056 = vadd.f32 0.0, %v2055
      %2057 = vdwg.mxu0
      %2058 = vmatprep.subr.mxu0 0.0
      %2059 = vmatpush1.msra.mxu0 %v1985
      %2060 = vmatprep.subr.mxu0 0.0
      %2061 = vmatpush1.msra.mxu0 0.0
      %2062 = vmatprep.subr.mxu0 0.0
      %2063 = vmatpush1.msra.mxu0 0.0
      %2064 = vmatprep.subr.mxu0 0.0
      %2065 = vmatpush1.msra.mxu0 0.0
      %2066 = vmatprep.subr.mxu0 0.0
      %2067 = vmatpush1.msra.mxu0 0.0
      %2068 = vmatprep.subr.mxu0 0.0
      %2069 = vmatpush1.msra.mxu0 0.0
      %2070 = vmatprep.subr.mxu0 0.0
      %2071 = vmatpush1.msra.mxu0 0.0
      %2072 = vmatprep.subr.mxu0 0.0
      %2073 = vmatpush1.msra.mxu0 0.0
      %2074 = vmatprep.subr.mxu0 0.0
      %2075 = vmatpush1.msra.mxu0 0.0
      %2076 = vmatprep.subr.mxu0 0.0
      %2077 = vmatpush1.msra.mxu0 0.0
      %2078 = vmatprep.subr.mxu0 0.0
      %2079 = vmatpush1.msra.mxu0 0.0
      %2080 = vmatprep.subr.mxu0 0.0
      %2081 = vmatpush1.msra.mxu0 0.0
      %2082 = vmatprep.subr.mxu0 0.0
      %2083 = vmatpush1.msra.mxu0 0.0
      %2084 = vmatprep.subr.mxu0 0.0
      %2085 = vmatpush1.msra.mxu0 0.0
      %2086 = vmatprep.subr.mxu0 0.0
      %2087 = vmatpush1.msra.mxu0 0.0
      %2088 = vmatprep.subr.mxu0 0.0
      %2089 = vmatpush1.msra.mxu0 0.0
      %2090 = vmatprep.subr.mxu0 0.0
      %2091 = vmatpush1.msra.mxu0 0.0
      %2092 = vmatprep.subr.mxu0 0.0
      %2093 = vmatpush1.msra.mxu0 0.0
      %2094 = vmatprep.subr.mxu0 0.0
      %2095 = vmatpush1.msra.mxu0 0.0
      %2096 = vmatprep.subr.mxu0 0.0
      %2097 = vmatpush1.msra.mxu0 0.0
      %2098 = vmatprep.subr.mxu0 0.0
      %2099 = vmatpush1.msra.mxu0 0.0
      %2100 = vmatprep.subr.mxu0 0.0
      %2101 = vmatpush1.msra.mxu0 0.0
      %2102 = vmatprep.subr.mxu0 0.0
      %2103 = vmatpush1.msra.mxu0 0.0
      %2104 = vmatprep.subr.mxu0 0.0
      %2105 = vmatpush1.msra.mxu0 0.0
      %2106 = vmatprep.subr.mxu0 0.0
      %2107 = vmatpush1.msra.mxu0 0.0
      %2108 = vmatprep.subr.mxu0 0.0
      %2109 = vmatpush1.msra.mxu0 0.0
      %2110 = vmatprep.subr.mxu0 0.0
      %2111 = vmatpush1.msra.mxu0 0.0
      %2112 = vmatprep.subr.mxu0 0.0
      %2113 = vmatpush1.msra.mxu0 0.0
      %2114 = vmatprep.subr.mxu0 0.0
      %2115 = vmatpush1.msra.mxu0 0.0
      %2116 = vmatprep.subr.mxu0 0.0
      %2117 = vmatpush1.msra.mxu0 0.0
      %2118 = vmatprep.subr.mxu0 0.0
      %2119 = vmatpush1.msra.mxu0 0.0
      %2120 = vmatprep.subr.mxu0 0.0
      %2121 = vmatpush1.msra.mxu0 0.0
      %2122 = vmatprep.mubr.f32.mxu0 0.0
      %2123 = vmatmul.mubr.f32.gmra.mrb[0].mxu0 %v1979
      %v2124 = vpop.f32.mrb[0].mxu0
      %v2125 = vadd.f32 0.0, %v2124
      %v2126 = vpop.f32.mrb[0].mxu0
      %2127 = vdwg.mxu0
      %2129 = vrot.lane.b32.xlu0 %v1965, 108
      %v2130 = vpop.permute.xlu0 %2129
      %2131 = vrot.lane.b32.xlu0 %v347, 108
      %v2132 = vpop.permute.xlu0 %2131
      %2133 = vrot.lane.b32.xlu0 %v510, 108
      %v2134 = vpop.permute.xlu0 %2133
      %2135 = vrot.lane.b32.xlu0 %v348, 108
      %v2136 = vpop.permute.xlu0 %2135
      %v2137 = vsel %vm1976, %v2132, %v2134
      %v2138 = vsel %vm1976, %v2134, %v2136
      %v2139 = vsel %vm356, %v2130, 0
      %v2141 = vsel %vm360, %v2137, 0
      %v2143 = vsel %vm360, %v2138, 0
      %v2145 = vsel %vm360, %v2136, 0
      %2147 = vmatprep.subr.mxu0 %v2143
      %2148 = vmatpush1.msra.mxu0 %v2141
      %2149 = vmatprep.subr.mxu0 0.0
      %2150 = vmatpush1.msra.mxu0 0.0
      %2151 = vmatprep.subr.mxu0 0.0
      %2152 = vmatpush1.msra.mxu0 0.0
      %2153 = vmatprep.subr.mxu0 0.0
      %2154 = vmatpush1.msra.mxu0 0.0
      %2155 = vmatprep.subr.mxu0 0.0
      %2156 = vmatpush1.msra.mxu0 0.0
      %2157 = vmatprep.subr.mxu0 0.0
      %2158 = vmatpush1.msra.mxu0 0.0
      %2159 = vmatprep.subr.mxu0 0.0
      %2160 = vmatpush1.msra.mxu0 0.0
      %2161 = vmatprep.subr.mxu0 0.0
      %2162 = vmatpush1.msra.mxu0 0.0
      %2163 = vmatprep.subr.mxu0 0.0
      %2164 = vmatpush1.msra.mxu0 0.0
      %2165 = vmatprep.subr.mxu0 0.0
      %2166 = vmatpush1.msra.mxu0 0.0
      %2167 = vmatprep.subr.mxu0 0.0
      %2168 = vmatpush1.msra.mxu0 0.0
      %2169 = vmatprep.subr.mxu0 0.0
      %2170 = vmatpush1.msra.mxu0 0.0
      %2171 = vmatprep.subr.mxu0 0.0
      %2172 = vmatpush1.msra.mxu0 0.0
      %2173 = vmatprep.subr.mxu0 0.0
      %2174 = vmatpush1.msra.mxu0 0.0
      %2175 = vmatprep.subr.mxu0 0.0
      %2176 = vmatpush1.msra.mxu0 0.0
      %2177 = vmatprep.subr.mxu0 0.0
      %2178 = vmatpush1.msra.mxu0 0.0
      %2179 = vmatprep.subr.mxu0 0.0
      %2180 = vmatpush1.msra.mxu0 0.0
      %2181 = vmatprep.subr.mxu0 0.0
      %2182 = vmatpush1.msra.mxu0 0.0
      %2183 = vmatprep.subr.mxu0 0.0
      %2184 = vmatpush1.msra.mxu0 0.0
      %2185 = vmatprep.subr.mxu0 0.0
      %2186 = vmatpush1.msra.mxu0 0.0
      %2187 = vmatprep.subr.mxu0 0.0
      %2188 = vmatpush1.msra.mxu0 0.0
      %2189 = vmatprep.subr.mxu0 0.0
      %2190 = vmatpush1.msra.mxu0 0.0
      %2191 = vmatprep.subr.mxu0 0.0
      %2192 = vmatpush1.msra.mxu0 0.0
      %2193 = vmatprep.subr.mxu0 0.0
      %2194 = vmatpush1.msra.mxu0 0.0
      %2195 = vmatprep.subr.mxu0 0.0
      %2196 = vmatpush1.msra.mxu0 0.0
      %2197 = vmatprep.subr.mxu0 0.0
      %2198 = vmatpush1.msra.mxu0 0.0
      %2199 = vmatprep.subr.mxu0 0.0
      %2200 = vmatpush1.msra.mxu0 0.0
      %2201 = vmatprep.subr.mxu0 0.0
      %2202 = vmatpush1.msra.mxu0 0.0
      %2203 = vmatprep.subr.mxu0 0.0
      %2204 = vmatpush1.msra.mxu0 0.0
      %2205 = vmatprep.subr.mxu0 0.0
      %2206 = vmatpush1.msra.mxu0 0.0
      %2207 = vmatprep.subr.mxu0 0.0
      %2208 = vmatpush1.msra.mxu0 0.0
      %2209 = vmatprep.subr.mxu0 0.0
      %2210 = vmatpush1.msra.mxu0 0.0
      %2211 = vmatprep.mubr.f32.mxu0 0.0
      %2212 = vmatmul.mubr.f32.gmra.mrb[0].mxu0 %v2139
      %v2213 = vpop.f32.mrb[0].mxu0
      %v2214 = vadd.f32 %v2054, %v2213
      %v2215 = vpop.f32.mrb[0].mxu0
      %v2216 = vadd.f32 %v2056, %v2215
      %2217 = vdwg.mxu0
      %2218 = vmatprep.subr.mxu0 0.0
      %2219 = vmatpush1.msra.mxu0 %v2145
      %2220 = vmatprep.subr.mxu0 0.0
      %2221 = vmatpush1.msra.mxu0 0.0
      %2222 = vmatprep.subr.mxu0 0.0
      %2223 = vmatpush1.msra.mxu0 0.0
      %2224 = vmatprep.subr.mxu0 0.0
      %2225 = vmatpush1.msra.mxu0 0.0
      %2226 = vmatprep.subr.mxu0 0.0
      %2227 = vmatpush1.msra.mxu0 0.0
      %2228 = vmatprep.subr.mxu0 0.0
      %2229 = vmatpush1.msra.mxu0 0.0
      %2230 = vmatprep.subr.mxu0 0.0
      %2231 = vmatpush1.msra.mxu0 0.0
      %2232 = vmatprep.subr.mxu0 0.0
      %2233 = vmatpush1.msra.mxu0 0.0
      %2234 = vmatprep.subr.mxu0 0.0
      %2235 = vmatpush1.msra.mxu0 0.0
      %2236 = vmatprep.subr.mxu0 0.0
      %2237 = vmatpush1.msra.mxu0 0.0
      %2238 = vmatprep.subr.mxu0 0.0
      %2239 = vmatpush1.msra.mxu0 0.0
      %2240 = vmatprep.subr.mxu0 0.0
      %2241 = vmatpush1.msra.mxu0 0.0
      %2242 = vmatprep.subr.mxu0 0.0
      %2243 = vmatpush1.msra.mxu0 0.0
      %2244 = vmatprep.subr.mxu0 0.0
      %2245 = vmatpush1.msra.mxu0 0.0
      %2246 = vmatprep.subr.mxu0 0.0
      %2247 = vmatpush1.msra.mxu0 0.0
      %2248 = vmatprep.subr.mxu0 0.0
      %2249 = vmatpush1.msra.mxu0 0.0
      %2250 = vmatprep.subr.mxu0 0.0
      %2251 = vmatpush1.msra.mxu0 0.0
      %2252 = vmatprep.subr.mxu0 0.0
      %2253 = vmatpush1.msra.mxu0 0.0
      %2254 = vmatprep.subr.mxu0 0.0
      %2255 = vmatpush1.msra.mxu0 0.0
      %2256 = vmatprep.subr.mxu0 0.0
      %2257 = vmatpush1.msra.mxu0 0.0
      %2258 = vmatprep.subr.mxu0 0.0
      %2259 = vmatpush1.msra.mxu0 0.0
      %2260 = vmatprep.subr.mxu0 0.0
      %2261 = vmatpush1.msra.mxu0 0.0
      %2262 = vmatprep.subr.mxu0 0.0
      %2263 = vmatpush1.msra.mxu0 0.0
      %2264 = vmatprep.subr.mxu0 0.0
      %2265 = vmatpush1.msra.mxu0 0.0
      %2266 = vmatprep.subr.mxu0 0.0
      %2267 = vmatpush1.msra.mxu0 0.0
      %2268 = vmatprep.subr.mxu0 0.0
      %2269 = vmatpush1.msra.mxu0 0.0
      %2270 = vmatprep.subr.mxu0 0.0
      %2271 = vmatpush1.msra.mxu0 0.0
      %2272 = vmatprep.subr.mxu0 0.0
      %2273 = vmatpush1.msra.mxu0 0.0
      %2274 = vmatprep.subr.mxu0 0.0
      %2275 = vmatpush1.msra.mxu0 0.0
      %2276 = vmatprep.subr.mxu0 0.0
      %2277 = vmatpush1.msra.mxu0 0.0
      %2278 = vmatprep.subr.mxu0 0.0
      %2279 = vmatpush1.msra.mxu0 0.0
      %2280 = vmatprep.subr.mxu0 0.0
      %2281 = vmatpush1.msra.mxu0 0.0
      %2282 = vmatprep.mubr.f32.mxu0 0.0
      %2283 = vmatmul.mubr.f32.gmra.mrb[0].mxu0 %v2139
      %v2284 = vpop.f32.mrb[0].mxu0
      %v2285 = vadd.f32 %v2125, %v2284
      %v2286 = vpop.f32.mrb[0].mxu0
      %2287 = vdwg.mxu0
      %v2288 = vadd.f32 %v1962, %v2214
      %v2289 = vadd.f32 %v1963, %v2216
      %v2290 = vadd.f32 %v1964, %v2285
      %v2291 = vld [vmem:[%s2] sm:$0xff]
      %v2292 = vld [vmem:[%s3] sm:$0xff]
      %2294 = vrot.lane.b32.xlu0 %v2292, 104
      %v2295 = vpop.permute.xlu0 %2294
      %2296 = vrot.lane.b32.xlu0 %v349, 92
      %v2297 = vpop.permute.xlu0 %2296
      %2298 = vrot.lane.b32.xlu0 %v355, 92
      %v2299 = vpop.permute.xlu0 %2298
      %2300 = vrot.lane.b32.xlu0 %v350, 92
      %v2301 = vpop.permute.xlu0 %2300
      %vm2302 = vcmask 752640
      %v2303 = vsel %vm2302, %v2297, %v2299
      %v2304 = vsel %vm2302, %v2299, %v2301
      %v2305 = vsel %vm356, %v2295, 0
      %v2307 = vsel %vm360, %v2303, 0
      %v2309 = vsel %vm360, %v2304, 0
      %v2311 = vsel %vm360, %v2301, 0
      %2313 = vmatprep.subr.mxu0 %v2309
      %2314 = vmatpush1.msra.mxu0 %v2307
      %2315 = vmatprep.subr.mxu0 0.0
      %2316 = vmatpush1.msra.mxu0 0.0
      %2317 = vmatprep.subr.mxu0 0.0
      %2318 = vmatpush1.msra.mxu0 0.0
      %2319 = vmatprep.subr.mxu0 0.0
      %2320 = vmatpush1.msra.mxu0 0.0
      %2321 = vmatprep.subr.mxu0 0.0
      %2322 = vmatpush1.msra.mxu0 0.0
      %2323 = vmatprep.subr.mxu0 0.0
      %2324 = vmatpush1.msra.mxu0 0.0
      %2325 = vmatprep.subr.mxu0 0.0
      %2326 = vmatpush1.msra.mxu0 0.0
      %2327 = vmatprep.subr.mxu0 0.0
      %2328 = vmatpush1.msra.mxu0 0.0
      %2329 = vmatprep.subr.mxu0 0.0
      %2330 = vmatpush1.msra.mxu0 0.0
      %2331 = vmatprep.subr.mxu0 0.0
      %2332 = vmatpush1.msra.mxu0 0.0
      %2333 = vmatprep.subr.mxu0 0.0
      %2334 = vmatpush1.msra.mxu0 0.0
      %2335 = vmatprep.subr.mxu0 0.0
      %2336 = vmatpush1.msra.mxu0 0.0
      %2337 = vmatprep.subr.mxu0 0.0
      %2338 = vmatpush1.msra.mxu0 0.0
      %2339 = vmatprep.subr.mxu0 0.0
      %2340 = vmatpush1.msra.mxu0 0.0
      %2341 = vmatprep.subr.mxu0 0.0
      %2342 = vmatpush1.msra.mxu0 0.0
      %2343 = vmatprep.subr.mxu0 0.0
      %2344 = vmatpush1.msra.mxu0 0.0
      %2345 = vmatprep.subr.mxu0 0.0
      %2346 = vmatpush1.msra.mxu0 0.0
      %2347 = vmatprep.subr.mxu0 0.0
      %2348 = vmatpush1.msra.mxu0 0.0
      %2349 = vmatprep.subr.mxu0 0.0
      %2350 = vmatpush1.msra.mxu0 0.0
      %2351 = vmatprep.subr.mxu0 0.0
      %2352 = vmatpush1.msra.mxu0 0.0
      %2353 = vmatprep.subr.mxu0 0.0
      %2354 = vmatpush1.msra.mxu0 0.0
      %2355 = vmatprep.subr.mxu0 0.0
      %2356 = vmatpush1.msra.mxu0 0.0
      %2357 = vmatprep.subr.mxu0 0.0
      %2358 = vmatpush1.msra.mxu0 0.0
      %2359 = vmatprep.subr.mxu0 0.0
      %2360 = vmatpush1.msra.mxu0 0.0
      %2361 = vmatprep.subr.mxu0 0.0
      %2362 = vmatpush1.msra.mxu0 0.0
      %2363 = vmatprep.subr.mxu0 0.0
      %2364 = vmatpush1.msra.mxu0 0.0
      %2365 = vmatprep.subr.mxu0 0.0
      %2366 = vmatpush1.msra.mxu0 0.0
      %2367 = vmatprep.subr.mxu0 0.0
      %2368 = vmatpush1.msra.mxu0 0.0
      %2369 = vmatprep.subr.mxu0 0.0
      %2370 = vmatpush1.msra.mxu0 0.0
      %2371 = vmatprep.subr.mxu0 0.0
      %2372 = vmatpush1.msra.mxu0 0.0
      %2373 = vmatprep.subr.mxu0 0.0
      %2374 = vmatpush1.msra.mxu0 0.0
      %2375 = vmatprep.subr.mxu0 0.0
      %2376 = vmatpush1.msra.mxu0 0.0
      %2377 = vmatprep.mubr.f32.mxu0 0.0
      %2378 = vmatmul.mubr.f32.gmra.mrb[0].mxu0 %v2305
      %v2379 = vpop.f32.mrb[0].mxu0
      %v2380 = vadd.f32 0.0, %v2379
      %v2381 = vpop.f32.mrb[0].mxu0
      %v2382 = vadd.f32 0.0, %v2381
      %2383 = vdwg.mxu0
      %2384 = vmatprep.subr.mxu0 0.0
      %2385 = vmatpush1.msra.mxu0 %v2311
      %2386 = vmatprep.subr.mxu0 0.0
      %2387 = vmatpush1.msra.mxu0 0.0
      %2388 = vmatprep.subr.mxu0 0.0
      %2389 = vmatpush1.msra.mxu0 0.0
      %2390 = vmatprep.subr.mxu0 0.0
      %2391 = vmatpush1.msra.mxu0 0.0
      %2392 = vmatprep.subr.mxu0 0.0
      %2393 = vmatpush1.msra.mxu0 0.0
      %2394 = vmatprep.subr.mxu0 0.0
      %2395 = vmatpush1.msra.mxu0 0.0
      %2396 = vmatprep.subr.mxu0 0.0
      %2397 = vmatpush1.msra.mxu0 0.0
      %2398 = vmatprep.subr.mxu0 0.0
      %2399 = vmatpush1.msra.mxu0 0.0
      %2400 = vmatprep.subr.mxu0 0.0
      %2401 = vmatpush1.msra.mxu0 0.0
      %2402 = vmatprep.subr.mxu0 0.0
      %2403 = vmatpush1.msra.mxu0 0.0
      %2404 = vmatprep.subr.mxu0 0.0
      %2405 = vmatpush1.msra.mxu0 0.0
      %2406 = vmatprep.subr.mxu0 0.0
      %2407 = vmatpush1.msra.mxu0 0.0
      %2408 = vmatprep.subr.mxu0 0.0
      %2409 = vmatpush1.msra.mxu0 0.0
      %2410 = vmatprep.subr.mxu0 0.0
      %2411 = vmatpush1.msra.mxu0 0.0
      %2412 = vmatprep.subr.mxu0 0.0
      %2413 = vmatpush1.msra.mxu0 0.0
      %2414 = vmatprep.subr.mxu0 0.0
      %2415 = vmatpush1.msra.mxu0 0.0
      %2416 = vmatprep.subr.mxu0 0.0
      %2417 = vmatpush1.msra.mxu0 0.0
      %2418 = vmatprep.subr.mxu0 0.0
      %2419 = vmatpush1.msra.mxu0 0.0
      %2420 = vmatprep.subr.mxu0 0.0
      %2421 = vmatpush1.msra.mxu0 0.0
      %2422 = vmatprep.subr.mxu0 0.0
      %2423 = vmatpush1.msra.mxu0 0.0
      %2424 = vmatprep.subr.mxu0 0.0
      %2425 = vmatpush1.msra.mxu0 0.0
      %2426 = vmatprep.subr.mxu0 0.0
      %2427 = vmatpush1.msra.mxu0 0.0
      %2428 = vmatprep.subr.mxu0 0.0
      %2429 = vmatpush1.msra.mxu0 0.0
      %2430 = vmatprep.subr.mxu0 0.0
      %2431 = vmatpush1.msra.mxu0 0.0
      %2432 = vmatprep.subr.mxu0 0.0
      %2433 = vmatpush1.msra.mxu0 0.0
      %2434 = vmatprep.subr.mxu0 0.0
      %2435 = vmatpush1.msra.mxu0 0.0
      %2436 = vmatprep.subr.mxu0 0.0
      %2437 = vmatpush1.msra.mxu0 0.0
      %2438 = vmatprep.subr.mxu0 0.0
      %2439 = vmatpush1.msra.mxu0 0.0
      %2440 = vmatprep.subr.mxu0 0.0
      %2441 = vmatpush1.msra.mxu0 0.0
      %2442 = vmatprep.subr.mxu0 0.0
      %2443 = vmatpush1.msra.mxu0 0.0
      %2444 = vmatprep.subr.mxu0 0.0
      %2445 = vmatpush1.msra.mxu0 0.0
      %2446 = vmatprep.subr.mxu0 0.0
      %2447 = vmatpush1.msra.mxu0 0.0
      %2448 = vmatprep.mubr.f32.mxu0 0.0
      %2449 = vmatmul.mubr.f32.gmra.mrb[0].mxu0 %v2305
      %v2450 = vpop.f32.mrb[0].mxu0
      %v2451 = vadd.f32 0.0, %v2450
      %v2452 = vpop.f32.mrb[0].mxu0
      %2453 = vdwg.mxu0
      %2455 = vrot.lane.b32.xlu0 %v2291, 104
      %v2456 = vpop.permute.xlu0 %2455
      %2457 = vrot.lane.b32.xlu0 %v347, 92
      %v2458 = vpop.permute.xlu0 %2457
      %2459 = vrot.lane.b32.xlu0 %v510, 92
      %v2460 = vpop.permute.xlu0 %2459
      %2461 = vrot.lane.b32.xlu0 %v348, 92
      %v2462 = vpop.permute.xlu0 %2461
      %v2463 = vsel %vm2302, %v2458, %v2460
      %v2464 = vsel %vm2302, %v2460, %v2462
      %v2465 = vsel %vm356, %v2456, 0
      %v2467 = vsel %vm360, %v2463, 0
      %v2469 = vsel %vm360, %v2464, 0
      %v2471 = vsel %vm360, %v2462, 0
      %2473 = vmatprep.subr.mxu0 %v2469
      %2474 = vmatpush1.msra.mxu0 %v2467
      %2475 = vmatprep.subr.mxu0 0.0
      %2476 = vmatpush1.msra.mxu0 0.0
      %2477 = vmatprep.subr.mxu0 0.0
      %2478 = vmatpush1.msra.mxu0 0.0
      %2479 = vmatprep.subr.mxu0 0.0
      %2480 = vmatpush1.msra.mxu0 0.0
      %2481 = vmatprep.subr.mxu0 0.0
      %2482 = vmatpush1.msra.mxu0 0.0
      %2483 = vmatprep.subr.mxu0 0.0
      %2484 = vmatpush1.msra.mxu0 0.0
      %2485 = vmatprep.subr.mxu0 0.0
      %2486 = vmatpush1.msra.mxu0 0.0
      %2487 = vmatprep.subr.mxu0 0.0
      %2488 = vmatpush1.msra.mxu0 0.0
      %2489 = vmatprep.subr.mxu0 0.0
      %2490 = vmatpush1.msra.mxu0 0.0
      %2491 = vmatprep.subr.mxu0 0.0
      %2492 = vmatpush1.msra.mxu0 0.0
      %2493 = vmatprep.subr.mxu0 0.0
      %2494 = vmatpush1.msra.mxu0 0.0
      %2495 = vmatprep.subr.mxu0 0.0
      %2496 = vmatpush1.msra.mxu0 0.0
      %2497 = vmatprep.subr.mxu0 0.0
      %2498 = vmatpush1.msra.mxu0 0.0
      %2499 = vmatprep.subr.mxu0 0.0
      %2500 = vmatpush1.msra.mxu0 0.0
      %2501 = vmatprep.subr.mxu0 0.0
      %2502 = vmatpush1.msra.mxu0 0.0
      %2503 = vmatprep.subr.mxu0 0.0
      %2504 = vmatpush1.msra.mxu0 0.0
      %2505 = vmatprep.subr.mxu0 0.0
      %2506 = vmatpush1.msra.mxu0 0.0
      %2507 = vmatprep.subr.mxu0 0.0
      %2508 = vmatpush1.msra.mxu0 0.0
      %2509 = vmatprep.subr.mxu0 0.0
      %2510 = vmatpush1.msra.mxu0 0.0
      %2511 = vmatprep.subr.mxu0 0.0
      %2512 = vmatpush1.msra.mxu0 0.0
      %2513 = vmatprep.subr.mxu0 0.0
      %2514 = vmatpush1.msra.mxu0 0.0
      %2515 = vmatprep.subr.mxu0 0.0
      %2516 = vmatpush1.msra.mxu0 0.0
      %2517 = vmatprep.subr.mxu0 0.0
      %2518 = vmatpush1.msra.mxu0 0.0
      %2519 = vmatprep.subr.mxu0 0.0
      %2520 = vmatpush1.msra.mxu0 0.0
      %2521 = vmatprep.subr.mxu0 0.0
      %2522 = vmatpush1.msra.mxu0 0.0
      %2523 = vmatprep.subr.mxu0 0.0
      %2524 = vmatpush1.msra.mxu0 0.0
      %2525 = vmatprep.subr.mxu0 0.0
      %2526 = vmatpush1.msra.mxu0 0.0
      %2527 = vmatprep.subr.mxu0 0.0
      %2528 = vmatpush1.msra.mxu0 0.0
      %2529 = vmatprep.subr.mxu0 0.0
      %2530 = vmatpush1.msra.mxu0 0.0
      %2531 = vmatprep.subr.mxu0 0.0
      %2532 = vmatpush1.msra.mxu0 0.0
      %2533 = vmatprep.subr.mxu0 0.0
      %2534 = vmatpush1.msra.mxu0 0.0
      %2535 = vmatprep.subr.mxu0 0.0
      %2536 = vmatpush1.msra.mxu0 0.0
      %2537 = vmatprep.mubr.f32.mxu0 0.0
      %2538 = vmatmul.mubr.f32.gmra.mrb[0].mxu0 %v2465
      %v2539 = vpop.f32.mrb[0].mxu0
      %v2540 = vadd.f32 %v2380, %v2539
      %v2541 = vpop.f32.mrb[0].mxu0
      %v2542 = vadd.f32 %v2382, %v2541
      %2543 = vdwg.mxu0
      %2544 = vmatprep.subr.mxu0 0.0
      %2545 = vmatpush1.msra.mxu0 %v2471
      %2546 = vmatprep.subr.mxu0 0.0
      %2547 = vmatpush1.msra.mxu0 0.0
      %2548 = vmatprep.subr.mxu0 0.0
      %2549 = vmatpush1.msra.mxu0 0.0
      %2550 = vmatprep.subr.mxu0 0.0
      %2551 = vmatpush1.msra.mxu0 0.0
      %2552 = vmatprep.subr.mxu0 0.0
      %2553 = vmatpush1.msra.mxu0 0.0
      %2554 = vmatprep.subr.mxu0 0.0
      %2555 = vmatpush1.msra.mxu0 0.0
      %2556 = vmatprep.subr.mxu0 0.0
      %2557 = vmatpush1.msra.mxu0 0.0
      %2558 = vmatprep.subr.mxu0 0.0
      %2559 = vmatpush1.msra.mxu0 0.0
      %2560 = vmatprep.subr.mxu0 0.0
      %2561 = vmatpush1.msra.mxu0 0.0
      %2562 = vmatprep.subr.mxu0 0.0
      %2563 = vmatpush1.msra.mxu0 0.0
      %2564 = vmatprep.subr.mxu0 0.0
      %2565 = vmatpush1.msra.mxu0 0.0
      %2566 = vmatprep.subr.mxu0 0.0
      %2567 = vmatpush1.msra.mxu0 0.0
      %2568 = vmatprep.subr.mxu0 0.0
      %2569 = vmatpush1.msra.mxu0 0.0
      %2570 = vmatprep.subr.mxu0 0.0
      %2571 = vmatpush1.msra.mxu0 0.0
      %2572 = vmatprep.subr.mxu0 0.0
      %2573 = vmatpush1.msra.mxu0 0.0
      %2574 = vmatprep.subr.mxu0 0.0
      %2575 = vmatpush1.msra.mxu0 0.0
      %2576 = vmatprep.subr.mxu0 0.0
      %2577 = vmatpush1.msra.mxu0 0.0
      %2578 = vmatprep.subr.mxu0 0.0
      %2579 = vmatpush1.msra.mxu0 0.0
      %2580 = vmatprep.subr.mxu0 0.0
      %2581 = vmatpush1.msra.mxu0 0.0
      %2582 = vmatprep.subr.mxu0 0.0
      %2583 = vmatpush1.msra.mxu0 0.0
      %2584 = vmatprep.subr.mxu0 0.0
      %2585 = vmatpush1.msra.mxu0 0.0
      %2586 = vmatprep.subr.mxu0 0.0
      %2587 = vmatpush1.msra.mxu0 0.0
      %2588 = vmatprep.subr.mxu0 0.0
      %2589 = vmatpush1.msra.mxu0 0.0
      %2590 = vmatprep.subr.mxu0 0.0
      %2591 = vmatpush1.msra.mxu0 0.0
      %2592 = vmatprep.subr.mxu0 0.0
      %2593 = vmatpush1.msra.mxu0 0.0
      %2594 = vmatprep.subr.mxu0 0.0
      %2595 = vmatpush1.msra.mxu0 0.0
      %2596 = vmatprep.subr.mxu0 0.0
      %2597 = vmatpush1.msra.mxu0 0.0
      %2598 = vmatprep.subr.mxu0 0.0
      %2599 = vmatpush1.msra.mxu0 0.0
      %2600 = vmatprep.subr.mxu0 0.0
      %2601 = vmatpush1.msra.mxu0 0.0
      %2602 = vmatprep.subr.mxu0 0.0
      %2603 = vmatpush1.msra.mxu0 0.0
      %2604 = vmatprep.subr.mxu0 0.0
      %2605 = vmatpush1.msra.mxu0 0.0
      %2606 = vmatprep.subr.mxu0 0.0
      %2607 = vmatpush1.msra.mxu0 0.0
      %2608 = vmatprep.mubr.f32.mxu0 0.0
      %2609 = vmatmul.mubr.f32.gmra.mrb[0].mxu0 %v2465
      %v2610 = vpop.f32.mrb[0].mxu0
      %v2611 = vadd.f32 %v2451, %v2610
      %v2612 = vpop.f32.mrb[0].mxu0
      %2613 = vdwg.mxu0
      %v2614 = vadd.f32 %v2288, %v2540
      %v2615 = vadd.f32 %v2289, %v2542
      %v2616 = vadd.f32 %v2290, %v2611
      %v2617 = vld [vmem:[%s2] sm:$0xff]
      %v2618 = vld [vmem:[%s3] sm:$0xff]
      %2620 = vrot.lane.b32.xlu0 %v2618, 100
      %v2621 = vpop.permute.xlu0 %2620
      %2622 = vrot.lane.b32.xlu0 %v349, 91
      %v2623 = vpop.permute.xlu0 %2622
      %2624 = vrot.lane.b32.xlu0 %v355, 91
      %v2625 = vpop.permute.xlu0 %2624
      %2626 = vrot.lane.b32.xlu0 %v350, 91
      %v2627 = vpop.permute.xlu0 %2626
      %vm2628 = vcmask 744448
      %v2629 = vsel %vm2628, %v2623, %v2625
      %v2630 = vsel %vm2628, %v2625, %v2627
      %v2631 = vsel %vm356, %v2621, 0
      %v2633 = vsel %vm360, %v2629, 0
      %v2635 = vsel %vm360, %v2630, 0
      %v2637 = vsel %vm360, %v2627, 0
      %2639 = vmatprep.subr.mxu0 %v2635
      %2640 = vmatpush1.msra.mxu0 %v2633
      %2641 = vmatprep.subr.mxu0 0.0
      %2642 = vmatpush1.msra.mxu0 0.0
      %2643 = vmatprep.subr.mxu0 0.0
      %2644 = vmatpush1.msra.mxu0 0.0
      %2645 = vmatprep.subr.mxu0 0.0
      %2646 = vmatpush1.msra.mxu0 0.0
      %2647 = vmatprep.subr.mxu0 0.0
      %2648 = vmatpush1.msra.mxu0 0.0
      %2649 = vmatprep.subr.mxu0 0.0
      %2650 = vmatpush1.msra.mxu0 0.0
      %2651 = vmatprep.subr.mxu0 0.0
      %2652 = vmatpush1.msra.mxu0 0.0
      %2653 = vmatprep.subr.mxu0 0.0
      %2654 = vmatpush1.msra.mxu0 0.0
      %2655 = vmatprep.subr.mxu0 0.0
      %2656 = vmatpush1.msra.mxu0 0.0
      %2657 = vmatprep.subr.mxu0 0.0
      %2658 = vmatpush1.msra.mxu0 0.0
      %2659 = vmatprep.subr.mxu0 0.0
      %2660 = vmatpush1.msra.mxu0 0.0
      %2661 = vmatprep.subr.mxu0 0.0
      %2662 = vmatpush1.msra.mxu0 0.0
      %2663 = vmatprep.subr.mxu0 0.0
      %2664 = vmatpush1.msra.mxu0 0.0
      %2665 = vmatprep.subr.mxu0 0.0
      %2666 = vmatpush1.msra.mxu0 0.0
      %2667 = vmatprep.subr.mxu0 0.0
      %2668 = vmatpush1.msra.mxu0 0.0
      %2669 = vmatprep.subr.mxu0 0.0
      %2670 = vmatpush1.msra.mxu0 0.0
      %2671 = vmatprep.subr.mxu0 0.0
      %2672 = vmatpush1.msra.mxu0 0.0
      %2673 = vmatprep.subr.mxu0 0.0
      %2674 = vmatpush1.msra.mxu0 0.0
      %2675 = vmatprep.subr.mxu0 0.0
      %2676 = vmatpush1.msra.mxu0 0.0
      %2677 = vmatprep.subr.mxu0 0.0
      %2678 = vmatpush1.msra.mxu0 0.0
      %2679 = vmatprep.subr.mxu0 0.0
      %2680 = vmatpush1.msra.mxu0 0.0
      %2681 = vmatprep.subr.mxu0 0.0
      %2682 = vmatpush1.msra.mxu0 0.0
      %2683 = vmatprep.subr.mxu0 0.0
      %2684 = vmatpush1.msra.mxu0 0.0
      %2685 = vmatprep.subr.mxu0 0.0
      %2686 = vmatpush1.msra.mxu0 0.0
      %2687 = vmatprep.subr.mxu0 0.0
      %2688 = vmatpush1.msra.mxu0 0.0
      %2689 = vmatprep.subr.mxu0 0.0
      %2690 = vmatpush1.msra.mxu0 0.0
      %2691 = vmatprep.subr.mxu0 0.0
      %2692 = vmatpush1.msra.mxu0 0.0
      %2693 = vmatprep.subr.mxu0 0.0
      %2694 = vmatpush1.msra.mxu0 0.0
      %2695 = vmatprep.subr.mxu0 0.0
      %2696 = vmatpush1.msra.mxu0 0.0
      %2697 = vmatprep.subr.mxu0 0.0
      %2698 = vmatpush1.msra.mxu0 0.0
      %2699 = vmatprep.subr.mxu0 0.0
      %2700 = vmatpush1.msra.mxu0 0.0
      %2701 = vmatprep.subr.mxu0 0.0
      %2702 = vmatpush1.msra.mxu0 0.0
      %2703 = vmatprep.mubr.f32.mxu0 0.0
      %2704 = vmatmul.mubr.f32.gmra.mrb[0].mxu0 %v2631
      %v2705 = vpop.f32.mrb[0].mxu0
      %v2706 = vadd.f32 0.0, %v2705
      %v2707 = vpop.f32.mrb[0].mxu0
      %v2708 = vadd.f32 0.0, %v2707
      %2709 = vdwg.mxu0
      %2710 = vmatprep.subr.mxu0 0.0
      %2711 = vmatpush1.msra.mxu0 %v2637
      %2712 = vmatprep.subr.mxu0 0.0
      %2713 = vmatpush1.msra.mxu0 0.0
      %2714 = vmatprep.subr.mxu0 0.0
      %2715 = vmatpush1.msra.mxu0 0.0
      %2716 = vmatprep.subr.mxu0 0.0
      %2717 = vmatpush1.msra.mxu0 0.0
      %2718 = vmatprep.subr.mxu0 0.0
      %2719 = vmatpush1.msra.mxu0 0.0
      %2720 = vmatprep.subr.mxu0 0.0
      %2721 = vmatpush1.msra.mxu0 0.0
      %2722 = vmatprep.subr.mxu0 0.0
      %2723 = vmatpush1.msra.mxu0 0.0
      %2724 = vmatprep.subr.mxu0 0.0
      %2725 = vmatpush1.msra.mxu0 0.0
      %2726 = vmatprep.subr.mxu0 0.0
      %2727 = vmatpush1.msra.mxu0 0.0
      %2728 = vmatprep.subr.mxu0 0.0
      %2729 = vmatpush1.msra.mxu0 0.0
      %2730 = vmatprep.subr.mxu0 0.0
      %2731 = vmatpush1.msra.mxu0 0.0
      %2732 = vmatprep.subr.mxu0 0.0
      %2733 = vmatpush1.msra.mxu0 0.0
      %2734 = vmatprep.subr.mxu0 0.0
      %2735 = vmatpush1.msra.mxu0 0.0
      %2736 = vmatprep.subr.mxu0 0.0
      %2737 = vmatpush1.msra.mxu0 0.0
      %2738 = vmatprep.subr.mxu0 0.0
      %2739 = vmatpush1.msra.mxu0 0.0
      %2740 = vmatprep.subr.mxu0 0.0
      %2741 = vmatpush1.msra.mxu0 0.0
      %2742 = vmatprep.subr.mxu0 0.0
      %2743 = vmatpush1.msra.mxu0 0.0
      %2744 = vmatprep.subr.mxu0 0.0
      %2745 = vmatpush1.msra.mxu0 0.0
      %2746 = vmatprep.subr.mxu0 0.0
      %2747 = vmatpush1.msra.mxu0 0.0
      %2748 = vmatprep.subr.mxu0 0.0
      %2749 = vmatpush1.msra.mxu0 0.0
      %2750 = vmatprep.subr.mxu0 0.0
      %2751 = vmatpush1.msra.mxu0 0.0
      %2752 = vmatprep.subr.mxu0 0.0
      %2753 = vmatpush1.msra.mxu0 0.0
      %2754 = vmatprep.subr.mxu0 0.0
      %2755 = vmatpush1.msra.mxu0 0.0
      %2756 = vmatprep.subr.mxu0 0.0
      %2757 = vmatpush1.msra.mxu0 0.0
      %2758 = vmatprep.subr.mxu0 0.0
      %2759 = vmatpush1.msra.mxu0 0.0
      %2760 = vmatprep.subr.mxu0 0.0
      %2761 = vmatpush1.msra.mxu0 0.0
      %2762 = vmatprep.subr.mxu0 0.0
      %2763 = vmatpush1.msra.mxu0 0.0
      %2764 = vmatprep.subr.mxu0 0.0
      %2765 = vmatpush1.msra.mxu0 0.0
      %2766 = vmatprep.subr.mxu0 0.0
      %2767 = vmatpush1.msra.mxu0 0.0
      %2768 = vmatprep.subr.mxu0 0.0
      %2769 = vmatpush1.msra.mxu0 0.0
      %2770 = vmatprep.subr.mxu0 0.0
      %2771 = vmatpush1.msra.mxu0 0.0
      %2772 = vmatprep.subr.mxu0 0.0
      %2773 = vmatpush1.msra.mxu0 0.0
      %2774 = vmatprep.mubr.f32.mxu0 0.0
      %2775 = vmatmul.mubr.f32.gmra.mrb[0].mxu0 %v2631
      %v2776 = vpop.f32.mrb[0].mxu0
      %v2777 = vadd.f32 0.0, %v2776
      %v2778 = vpop.f32.mrb[0].mxu0
      %2779 = vdwg.mxu0
      %2781 = vrot.lane.b32.xlu0 %v2617, 100
      %v2782 = vpop.permute.xlu0 %2781
      %2783 = vrot.lane.b32.xlu0 %v347, 91
      %v2784 = vpop.permute.xlu0 %2783
      %2785 = vrot.lane.b32.xlu0 %v510, 91
      %v2786 = vpop.permute.xlu0 %2785
      %2787 = vrot.lane.b32.xlu0 %v348, 91
      %v2788 = vpop.permute.xlu0 %2787
      %v2789 = vsel %vm2628, %v2784, %v2786
      %v2790 = vsel %vm2628, %v2786, %v2788
      %v2791 = vsel %vm356, %v2782, 0
      %v2793 = vsel %vm360, %v2789, 0
      %v2795 = vsel %vm360, %v2790, 0
      %v2797 = vsel %vm360, %v2788, 0
      %2799 = vmatprep.subr.mxu0 %v2795
      %2800 = vmatpush1.msra.mxu0 %v2793
      %2801 = vmatprep.subr.mxu0 0.0
      %2802 = vmatpush1.msra.mxu0 0.0
      %2803 = vmatprep.subr.mxu0 0.0
      %2804 = vmatpush1.msra.mxu0 0.0
      %2805 = vmatprep.subr.mxu0 0.0
      %2806 = vmatpush1.msra.mxu0 0.0
      %2807 = vmatprep.subr.mxu0 0.0
      %2808 = vmatpush1.msra.mxu0 0.0
      %2809 = vmatprep.subr.mxu0 0.0
      %2810 = vmatpush1.msra.mxu0 0.0
      %2811 = vmatprep.subr.mxu0 0.0
      %2812 = vmatpush1.msra.mxu0 0.0
      %2813 = vmatprep.subr.mxu0 0.0
      %2814 = vmatpush1.msra.mxu0 0.0
      %2815 = vmatprep.subr.mxu0 0.0
      %2816 = vmatpush1.msra.mxu0 0.0
      %2817 = vmatprep.subr.mxu0 0.0
      %2818 = vmatpush1.msra.mxu0 0.0
      %2819 = vmatprep.subr.mxu0 0.0
      %2820 = vmatpush1.msra.mxu0 0.0
      %2821 = vmatprep.subr.mxu0 0.0
      %2822 = vmatpush1.msra.mxu0 0.0
      %2823 = vmatprep.subr.mxu0 0.0
      %2824 = vmatpush1.msra.mxu0 0.0
      %2825 = vmatprep.subr.mxu0 0.0
      %2826 = vmatpush1.msra.mxu0 0.0
      %2827 = vmatprep.subr.mxu0 0.0
      %2828 = vmatpush1.msra.mxu0 0.0
      %2829 = vmatprep.subr.mxu0 0.0
      %2830 = vmatpush1.msra.mxu0 0.0
      %2831 = vmatprep.subr.mxu0 0.0
      %2832 = vmatpush1.msra.mxu0 0.0
      %2833 = vmatprep.subr.mxu0 0.0
      %2834 = vmatpush1.msra.mxu0 0.0
      %2835 = vmatprep.subr.mxu0 0.0
      %2836 = vmatpush1.msra.mxu0 0.0
      %2837 = vmatprep.subr.mxu0 0.0
      %2838 = vmatpush1.msra.mxu0 0.0
      %2839 = vmatprep.subr.mxu0 0.0
      %2840 = vmatpush1.msra.mxu0 0.0
      %2841 = vmatprep.subr.mxu0 0.0
      %2842 = vmatpush1.msra.mxu0 0.0
      %2843 = vmatprep.subr.mxu0 0.0
      %2844 = vmatpush1.msra.mxu0 0.0
      %2845 = vmatprep.subr.mxu0 0.0
      %2846 = vmatpush1.msra.mxu0 0.0
      %2847 = vmatprep.subr.mxu0 0.0
      %2848 = vmatpush1.msra.mxu0 0.0
      %2849 = vmatprep.subr.mxu0 0.0
      %2850 = vmatpush1.msra.mxu0 0.0
      %2851 = vmatprep.subr.mxu0 0.0
      %2852 = vmatpush1.msra.mxu0 0.0
      %2853 = vmatprep.subr.mxu0 0.0
      %2854 = vmatpush1.msra.mxu0 0.0
      %2855 = vmatprep.subr.mxu0 0.0
      %2856 = vmatpush1.msra.mxu0 0.0
      %2857 = vmatprep.subr.mxu0 0.0
      %2858 = vmatpush1.msra.mxu0 0.0
      %2859 = vmatprep.subr.mxu0 0.0
      %2860 = vmatpush1.msra.mxu0 0.0
      %2861 = vmatprep.subr.mxu0 0.0
      %2862 = vmatpush1.msra.mxu0 0.0
      %2863 = vmatprep.mubr.f32.mxu0 0.0
      %2864 = vmatmul.mubr.f32.gmra.mrb[0].mxu0 %v2791
      %v2865 = vpop.f32.mrb[0].mxu0
      %v2866 = vadd.f32 %v2706, %v2865
      %v2867 = vpop.f32.mrb[0].mxu0
      %v2868 = vadd.f32 %v2708, %v2867
      %2869 = vdwg.mxu0
      %2870 = vmatprep.subr.mxu0 0.0
      %2871 = vmatpush1.msra.mxu0 %v2797
      %2872 = vmatprep.subr.mxu0 0.0
      %2873 = vmatpush1.msra.mxu0 0.0
      %2874 = vmatprep.subr.mxu0 0.0
      %2875 = vmatpush1.msra.mxu0 0.0
      %2876 = vmatprep.subr.mxu0 0.0
      %2877 = vmatpush1.msra.mxu0 0.0
      %2878 = vmatprep.subr.mxu0 0.0
      %2879 = vmatpush1.msra.mxu0 0.0
      %2880 = vmatprep.subr.mxu0 0.0
      %2881 = vmatpush1.msra.mxu0 0.0
      %2882 = vmatprep.subr.mxu0 0.0
      %2883 = vmatpush1.msra.mxu0 0.0
      %2884 = vmatprep.subr.mxu0 0.0
      %2885 = vmatpush1.msra.mxu0 0.0
      %2886 = vmatprep.subr.mxu0 0.0
      %2887 = vmatpush1.msra.mxu0 0.0
      %2888 = vmatprep.subr.mxu0 0.0
      %2889 = vmatpush1.msra.mxu0 0.0
      %2890 = vmatprep.subr.mxu0 0.0
      %2891 = vmatpush1.msra.mxu0 0.0
      %2892 = vmatprep.subr.mxu0 0.0
      %2893 = vmatpush1.msra.mxu0 0.0
      %2894 = vmatprep.subr.mxu0 0.0
      %2895 = vmatpush1.msra.mxu0 0.0
      %2896 = vmatprep.subr.mxu0 0.0
      %2897 = vmatpush1.msra.mxu0 0.0
      %2898 = vmatprep.subr.mxu0 0.0
      %2899 = vmatpush1.msra.mxu0 0.0
      %2900 = vmatprep.subr.mxu0 0.0
      %2901 = vmatpush1.msra.mxu0 0.0
      %2902 = vmatprep.subr.mxu0 0.0
      %2903 = vmatpush1.msra.mxu0 0.0
      %2904 = vmatprep.subr.mxu0 0.0
      %2905 = vmatpush1.msra.mxu0 0.0
      %2906 = vmatprep.subr.mxu0 0.0
      %2907 = vmatpush1.msra.mxu0 0.0
      %2908 = vmatprep.subr.mxu0 0.0
      %2909 = vmatpush1.msra.mxu0 0.0
      %2910 = vmatprep.subr.mxu0 0.0
      %2911 = vmatpush1.msra.mxu0 0.0
      %2912 = vmatprep.subr.mxu0 0.0
      %2913 = vmatpush1.msra.mxu0 0.0
      %2914 = vmatprep.subr.mxu0 0.0
      %2915 = vmatpush1.msra.mxu0 0.0
      %2916 = vmatprep.subr.mxu0 0.0
      %2917 = vmatpush1.msra.mxu0 0.0
      %2918 = vmatprep.subr.mxu0 0.0
      %2919 = vmatpush1.msra.mxu0 0.0
      %2920 = vmatprep.subr.mxu0 0.0
      %2921 = vmatpush1.msra.mxu0 0.0
      %2922 = vmatprep.subr.mxu0 0.0
      %2923 = vmatpush1.msra.mxu0 0.0
      %2924 = vmatprep.subr.mxu0 0.0
      %2925 = vmatpush1.msra.mxu0 0.0
      %2926 = vmatprep.subr.mxu0 0.0
      %2927 = vmatpush1.msra.mxu0 0.0
      %2928 = vmatprep.subr.mxu0 0.0
      %2929 = vmatpush1.msra.mxu0 0.0
      %2930 = vmatprep.subr.mxu0 0.0
      %2931 = vmatpush1.msra.mxu0 0.0
      %2932 = vmatprep.subr.mxu0 0.0
      %2933 = vmatpush1.msra.mxu0 0.0
      %2934 = vmatprep.mubr.f32.mxu0 0.0
      %2935 = vmatmul.mubr.f32.gmra.mrb[0].mxu0 %v2791
      %v2936 = vpop.f32.mrb[0].mxu0
      %v2937 = vadd.f32 %v2777, %v2936
      %v2938 = vpop.f32.mrb[0].mxu0
      %2939 = vdwg.mxu0
      %v2940 = vadd.f32 %v2614, %v2866
      %v2941 = vadd.f32 %v2615, %v2868
      %v2942 = vadd.f32 %v2616, %v2937
      %v2943 = vld [vmem:[%s2] sm:$0xff]
      %v2944 = vld [vmem:[%s3] sm:$0xff]
      %2946 = vrot.lane.b32.xlu0 %v2944, 96
      %v2947 = vpop.permute.xlu0 %2946
      %2948 = vrot.lane.b32.xlu0 %v349, 90
      %v2949 = vpop.permute.xlu0 %2948
      %2950 = vrot.lane.b32.xlu0 %v355, 90
      %v2951 = vpop.permute.xlu0 %2950
      %2952 = vrot.lane.b32.xlu0 %v350, 90
      %v2953 = vpop.permute.xlu0 %2952
      %vm2954 = vcmask 736256
      %v2955 = vsel %vm2954, %v2949, %v2951
      %v2956 = vsel %vm2954, %v2951, %v2953
      %v2957 = vsel %vm356, %v2947, 0
      %v2959 = vsel %vm360, %v2955, 0
      %v2961 = vsel %vm360, %v2956, 0
      %v2963 = vsel %vm360, %v2953, 0
      %2965 = vmatprep.subr.mxu0 %v2961
      %2966 = vmatpush1.msra.mxu0 %v2959
      %2967 = vmatprep.subr.mxu0 0.0
      %2968 = vmatpush1.msra.mxu0 0.0
      %2969 = vmatprep.subr.mxu0 0.0
      %2970 = vmatpush1.msra.mxu0 0.0
      %2971 = vmatprep.subr.mxu0 0.0
      %2972 = vmatpush1.msra.mxu0 0.0
      %2973 = vmatprep.subr.mxu0 0.0
      %2974 = vmatpush1.msra.mxu0 0.0
      %2975 = vmatprep.subr.mxu0 0.0
      %2976 = vmatpush1.msra.mxu0 0.0
      %2977 = vmatprep.subr.mxu0 0.0
      %2978 = vmatpush1.msra.mxu0 0.0
      %2979 = vmatprep.subr.mxu0 0.0
      %2980 = vmatpush1.msra.mxu0 0.0
      %2981 = vmatprep.subr.mxu0 0.0
      %2982 = vmatpush1.msra.mxu0 0.0
      %2983 = vmatprep.subr.mxu0 0.0
      %2984 = vmatpush1.msra.mxu0 0.0
      %2985 = vmatprep.subr.mxu0 0.0
      %2986 = vmatpush1.msra.mxu0 0.0
      %2987 = vmatprep.subr.mxu0 0.0
      %2988 = vmatpush1.msra.mxu0 0.0
      %2989 = vmatprep.subr.mxu0 0.0
      %2990 = vmatpush1.msra.mxu0 0.0
      %2991 = vmatprep.subr.mxu0 0.0
      %2992 = vmatpush1.msra.mxu0 0.0
      %2993 = vmatprep.subr.mxu0 0.0
      %2994 = vmatpush1.msra.mxu0 0.0
      %2995 = vmatprep.subr.mxu0 0.0
      %2996 = vmatpush1.msra.mxu0 0.0
      %2997 = vmatprep.subr.mxu0 0.0
      %2998 = vmatpush1.msra.mxu0 0.0
      %2999 = vmatprep.subr.mxu0 0.0
      %3000 = vmatpush1.msra.mxu0 0.0
      %3001 = vmatprep.subr.mxu0 0.0
      %3002 = vmatpush1.msra.mxu0 0.0
      %3003 = vmatprep.subr.mxu0 0.0
      %3004 = vmatpush1.msra.mxu0 0.0
      %3005 = vmatprep.subr.mxu0 0.0
      %3006 = vmatpush1.msra.mxu0 0.0
      %3007 = vmatprep.subr.mxu0 0.0
      %3008 = vmatpush1.msra.mxu0 0.0
      %3009 = vmatprep.subr.mxu0 0.0
      %3010 = vmatpush1.msra.mxu0 0.0
      %3011 = vmatprep.subr.mxu0 0.0
      %3012 = vmatpush1.msra.mxu0 0.0
      %3013 = vmatprep.subr.mxu0 0.0
      %3014 = vmatpush1.msra.mxu0 0.0
      %3015 = vmatprep.subr.mxu0 0.0
      %3016 = vmatpush1.msra.mxu0 0.0
      %3017 = vmatprep.subr.mxu0 0.0
      %3018 = vmatpush1.msra.mxu0 0.0
      %3019 = vmatprep.subr.mxu0 0.0
      %3020 = vmatpush1.msra.mxu0 0.0
      %3021 = vmatprep.subr.mxu0 0.0
      %3022 = vmatpush1.msra.mxu0 0.0
      %3023 = vmatprep.subr.mxu0 0.0
      %3024 = vmatpush1.msra.mxu0 0.0
      %3025 = vmatprep.subr.mxu0 0.0
      %3026 = vmatpush1.msra.mxu0 0.0
      %3027 = vmatprep.subr.mxu0 0.0
      %3028 = vmatpush1.msra.mxu0 0.0
      %3029 = vmatprep.mubr.f32.mxu0 0.0
      %3030 = vmatmul.mubr.f32.gmra.mrb[0].mxu0 %v2957
      %v3031 = vpop.f32.mrb[0].mxu0
      %v3032 = vadd.f32 0.0, %v3031
      %v3033 = vpop.f32.mrb[0].mxu0
      %v3034 = vadd.f32 0.0, %v3033
      %3035 = vdwg.mxu0
      %3036 = vmatprep.subr.mxu0 0.0
      %3037 = vmatpush1.msra.mxu0 %v2963
      %3038 = vmatprep.subr.mxu0 0.0
      %3039 = vmatpush1.msra.mxu0 0.0
      %3040 = vmatprep.subr.mxu0 0.0
      %3041 = vmatpush1.msra.mxu0 0.0
      %3042 = vmatprep.subr.mxu0 0.0
      %3043 = vmatpush1.msra.mxu0 0.0
      %3044 = vmatprep.subr.mxu0 0.0
      %3045 = vmatpush1.msra.mxu0 0.0
      %3046 = vmatprep.subr.mxu0 0.0
      %3047 = vmatpush1.msra.mxu0 0.0
      %3048 = vmatprep.subr.mxu0 0.0
      %3049 = vmatpush1.msra.mxu0 0.0
      %3050 = vmatprep.subr.mxu0 0.0
      %3051 = vmatpush1.msra.mxu0 0.0
      %3052 = vmatprep.subr.mxu0 0.0
      %3053 = vmatpush1.msra.mxu0 0.0
      %3054 = vmatprep.subr.mxu0 0.0
      %3055 = vmatpush1.msra.mxu0 0.0
      %3056 = vmatprep.subr.mxu0 0.0
      %3057 = vmatpush1.msra.mxu0 0.0
      %3058 = vmatprep.subr.mxu0 0.0
      %3059 = vmatpush1.msra.mxu0 0.0
      %3060 = vmatprep.subr.mxu0 0.0
      %3061 = vmatpush1.msra.mxu0 0.0
      %3062 = vmatprep.subr.mxu0 0.0
      %3063 = vmatpush1.msra.mxu0 0.0
      %3064 = vmatprep.subr.mxu0 0.0
      %3065 = vmatpush1.msra.mxu0 0.0
      %3066 = vmatprep.subr.mxu0 0.0
      %3067 = vmatpush1.msra.mxu0 0.0
      %3068 = vmatprep.subr.mxu0 0.0
      %3069 = vmatpush1.msra.mxu0 0.0
      %3070 = vmatprep.subr.mxu0 0.0
      %3071 = vmatpush1.msra.mxu0 0.0
      %3072 = vmatprep.subr.mxu0 0.0
      %3073 = vmatpush1.msra.mxu0 0.0
      %3074 = vmatprep.subr.mxu0 0.0
      %3075 = vmatpush1.msra.mxu0 0.0
      %3076 = vmatprep.subr.mxu0 0.0
      %3077 = vmatpush1.msra.mxu0 0.0
      %3078 = vmatprep.subr.mxu0 0.0
      %3079 = vmatpush1.msra.mxu0 0.0
      %3080 = vmatprep.subr.mxu0 0.0
      %3081 = vmatpush1.msra.mxu0 0.0
      %3082 = vmatprep.subr.mxu0 0.0
      %3083 = vmatpush1.msra.mxu0 0.0
      %3084 = vmatprep.subr.mxu0 0.0
      %3085 = vmatpush1.msra.mxu0 0.0
      %3086 = vmatprep.subr.mxu0 0.0
      %3087 = vmatpush1.msra.mxu0 0.0
      %3088 = vmatprep.subr.mxu0 0.0
      %3089 = vmatpush1.msra.mxu0 0.0
      %3090 = vmatprep.subr.mxu0 0.0
      %3091 = vmatpush1.msra.mxu0 0.0
      %3092 = vmatprep.subr.mxu0 0.0
      %3093 = vmatpush1.msra.mxu0 0.0
      %3094 = vmatprep.subr.mxu0 0.0
      %3095 = vmatpush1.msra.mxu0 0.0
      %3096 = vmatprep.subr.mxu0 0.0
      %3097 = vmatpush1.msra.mxu0 0.0
      %3098 = vmatprep.subr.mxu0 0.0
      %3099 = vmatpush1.msra.mxu0 0.0
      %3100 = vmatprep.mubr.f32.mxu0 0.0
      %3101 = vmatmul.mubr.f32.gmra.mrb[0].mxu0 %v2957
      %v3102 = vpop.f32.mrb[0].mxu0
      %v3103 = vadd.f32 0.0, %v3102
      %v3104 = vpop.f32.mrb[0].mxu0
      %3105 = vdwg.mxu0
      %3107 = vrot.lane.b32.xlu0 %v2943, 96
      %v3108 = vpop.permute.xlu0 %3107
      %3109 = vrot.lane.b32.xlu0 %v347, 90
      %v3110 = vpop.permute.xlu0 %3109
      %3111 = vrot.lane.b32.xlu0 %v510, 90
      %v3112 = vpop.permute.xlu0 %3111
      %3113 = vrot.lane.b32.xlu0 %v348, 90
      %v3114 = vpop.permute.xlu0 %3113
      %v3115 = vsel %vm2954, %v3110, %v3112
      %v3116 = vsel %vm2954, %v3112, %v3114
      %v3117 = vsel %vm356, %v3108, 0
      %v3119 = vsel %vm360, %v3115, 0
      %v3121 = vsel %vm360, %v3116, 0
      %v3123 = vsel %vm360, %v3114, 0
      %3125 = vmatprep.subr.mxu0 %v3121
      %3126 = vmatpush1.msra.mxu0 %v3119
      %3127 = vmatprep.subr.mxu0 0.0
      %3128 = vmatpush1.msra.mxu0 0.0
      %3129 = vmatprep.subr.mxu0 0.0
      %3130 = vmatpush1.msra.mxu0 0.0
      %3131 = vmatprep.subr.mxu0 0.0
      %3132 = vmatpush1.msra.mxu0 0.0
      %3133 = vmatprep.subr.mxu0 0.0
      %3134 = vmatpush1.msra.mxu0 0.0
      %3135 = vmatprep.subr.mxu0 0.0
      %3136 = vmatpush1.msra.mxu0 0.0
      %3137 = vmatprep.subr.mxu0 0.0
      %3138 = vmatpush1.msra.mxu0 0.0
      %3139 = vmatprep.subr.mxu0 0.0
      %3140 = vmatpush1.msra.mxu0 0.0
      %3141 = vmatprep.subr.mxu0 0.0
      %3142 = vmatpush1.msra.mxu0 0.0
      %3143 = vmatprep.subr.mxu0 0.0
      %3144 = vmatpush1.msra.mxu0 0.0
      %3145 = vmatprep.subr.mxu0 0.0
      %3146 = vmatpush1.msra.mxu0 0.0
      %3147 = vmatprep.subr.mxu0 0.0
      %3148 = vmatpush1.msra.mxu0 0.0
      %3149 = vmatprep.subr.mxu0 0.0
      %3150 = vmatpush1.msra.mxu0 0.0
      %3151 = vmatprep.subr.mxu0 0.0
      %3152 = vmatpush1.msra.mxu0 0.0
      %3153 = vmatprep.subr.mxu0 0.0
      %3154 = vmatpush1.msra.mxu0 0.0
      %3155 = vmatprep.subr.mxu0 0.0
      %3156 = vmatpush1.msra.mxu0 0.0
      %3157 = vmatprep.subr.mxu0 0.0
      %3158 = vmatpush1.msra.mxu0 0.0
      %3159 = vmatprep.subr.mxu0 0.0
      %3160 = vmatpush1.msra.mxu0 0.0
      %3161 = vmatprep.subr.mxu0 0.0
      %3162 = vmatpush1.msra.mxu0 0.0
      %3163 = vmatprep.subr.mxu0 0.0
      %3164 = vmatpush1.msra.mxu0 0.0
      %3165 = vmatprep.subr.mxu0 0.0
      %3166 = vmatpush1.msra.mxu0 0.0
      %3167 = vmatprep.subr.mxu0 0.0
      %3168 = vmatpush1.msra.mxu0 0.0
      %3169 = vmatprep.subr.mxu0 0.0
      %3170 = vmatpush1.msra.mxu0 0.0
      %3171 = vmatprep.subr.mxu0 0.0
      %3172 = vmatpush1.msra.mxu0 0.0
      %3173 = vmatprep.subr.mxu0 0.0
      %3174 = vmatpush1.msra.mxu0 0.0
      %3175 = vmatprep.subr.mxu0 0.0
      %3176 = vmatpush1.msra.mxu0 0.0
      %3177 = vmatprep.subr.mxu0 0.0
      %3178 = vmatpush1.msra.mxu0 0.0
      %3179 = vmatprep.subr.mxu0 0.0
      %3180 = vmatpush1.msra.mxu0 0.0
      %3181 = vmatprep.subr.mxu0 0.0
      %3182 = vmatpush1.msra.mxu0 0.0
      %3183 = vmatprep.subr.mxu0 0.0
      %3184 = vmatpush1.msra.mxu0 0.0
      %3185 = vmatprep.subr.mxu0 0.0
      %3186 = vmatpush1.msra.mxu0 0.0
      %3187 = vmatprep.subr.mxu0 0.0
      %3188 = vmatpush1.msra.mxu0 0.0
      %3189 = vmatprep.mubr.f32.mxu0 0.0
      %3190 = vmatmul.mubr.f32.gmra.mrb[0].mxu0 %v3117
      %v3191 = vpop.f32.mrb[0].mxu0
      %v3192 = vadd.f32 %v3032, %v3191
      %v3193 = vpop.f32.mrb[0].mxu0
      %v3194 = vadd.f32 %v3034, %v3193
      %3195 = vdwg.mxu0
      %3196 = vmatprep.subr.mxu0 0.0
      %3197 = vmatpush1.msra.mxu0 %v3123
      %3198 = vmatprep.subr.mxu0 0.0
      %3199 = vmatpush1.msra.mxu0 0.0
      %3200 = vmatprep.subr.mxu0 0.0
      %3201 = vmatpush1.msra.mxu0 0.0
      %3202 = vmatprep.subr.mxu0 0.0
      %3203 = vmatpush1.msra.mxu0 0.0
      %3204 = vmatprep.subr.mxu0 0.0
      %3205 = vmatpush1.msra.mxu0 0.0
      %3206 = vmatprep.subr.mxu0 0.0
      %3207 = vmatpush1.msra.mxu0 0.0
      %3208 = vmatprep.subr.mxu0 0.0
      %3209 = vmatpush1.msra.mxu0 0.0
      %3210 = vmatprep.subr.mxu0 0.0
      %3211 = vmatpush1.msra.mxu0 0.0
      %3212 = vmatprep.subr.mxu0 0.0
      %3213 = vmatpush1.msra.mxu0 0.0
      %3214 = vmatprep.subr.mxu0 0.0
      %3215 = vmatpush1.msra.mxu0 0.0
      %3216 = vmatprep.subr.mxu0 0.0
      %3217 = vmatpush1.msra.mxu0 0.0
      %3218 = vmatprep.subr.mxu0 0.0
      %3219 = vmatpush1.msra.mxu0 0.0
      %3220 = vmatprep.subr.mxu0 0.0
      %3221 = vmatpush1.msra.mxu0 0.0
      %3222 = vmatprep.subr.mxu0 0.0
      %3223 = vmatpush1.msra.mxu0 0.0
      %3224 = vmatprep.subr.mxu0 0.0
      %3225 = vmatpush1.msra.mxu0 0.0
      %3226 = vmatprep.subr.mxu0 0.0
      %3227 = vmatpush1.msra.mxu0 0.0
      %3228 = vmatprep.subr.mxu0 0.0
      %3229 = vmatpush1.msra.mxu0 0.0
      %3230 = vmatprep.subr.mxu0 0.0
      %3231 = vmatpush1.msra.mxu0 0.0
      %3232 = vmatprep.subr.mxu0 0.0
      %3233 = vmatpush1.msra.mxu0 0.0
      %3234 = vmatprep.subr.mxu0 0.0
      %3235 = vmatpush1.msra.mxu0 0.0
      %3236 = vmatprep.subr.mxu0 0.0
      %3237 = vmatpush1.msra.mxu0 0.0
      %3238 = vmatprep.subr.mxu0 0.0
      %3239 = vmatpush1.msra.mxu0 0.0
      %3240 = vmatprep.subr.mxu0 0.0
      %3241 = vmatpush1.msra.mxu0 0.0
      %3242 = vmatprep.subr.mxu0 0.0
      %3243 = vmatpush1.msra.mxu0 0.0
      %3244 = vmatprep.subr.mxu0 0.0
      %3245 = vmatpush1.msra.mxu0 0.0
      %3246 = vmatprep.subr.mxu0 0.0
      %3247 = vmatpush1.msra.mxu0 0.0
      %3248 = vmatprep.subr.mxu0 0.0
      %3249 = vmatpush1.msra.mxu0 0.0
      %3250 = vmatprep.subr.mxu0 0.0
      %3251 = vmatpush1.msra.mxu0 0.0
      %3252 = vmatprep.subr.mxu0 0.0
      %3253 = vmatpush1.msra.mxu0 0.0
      %3254 = vmatprep.subr.mxu0 0.0
      %3255 = vmatpush1.msra.mxu0 0.0
      %3256 = vmatprep.subr.mxu0 0.0
      %3257 = vmatpush1.msra.mxu0 0.0
      %3258 = vmatprep.subr.mxu0 0.0
      %3259 = vmatpush1.msra.mxu0 0.0
      %3260 = vmatprep.mubr.f32.mxu0 0.0
      %3261 = vmatmul.mubr.f32.gmra.mrb[0].mxu0 %v3117
      %v3262 = vpop.f32.mrb[0].mxu0
      %v3263 = vadd.f32 %v3103, %v3262
      %v3264 = vpop.f32.mrb[0].mxu0
      %3265 = vdwg.mxu0
      %v3266 = vadd.f32 %v2940, %v3192
      %v3267 = vadd.f32 %v2941, %v3194
      %v3268 = vadd.f32 %v2942, %v3263
      %v3269 = vld [vmem:[%s4] sm:$0xff]
      %3271 = vset.pattern.permute.xlu0 0
      %3272 = vperm.xlu0 %3271, %v3269
      %v3273 = vpop.permute.xlu0 %3272
      %v3275 = vadd.f32 %v3266, %v3273
      %v3276 = vadd.f32 %v3267, %v3273
      %v3277 = vadd.f32 %v3268, %v3273
      %v3278 = vld [vmem:[%s5] sm:$0x7]
      %v3280 = vlaneseq
      %v3281 = vshrl.u32 %v3280, 7
      %v3282 = vsub.s32 0, %v3281
      %v3283 = vrot.slane %v3278, %v3282
      %v3284 = vlaneseq
      %v3285 = vshrl.u32 %v3284, 7
      %v3286 = vsub.s32 1, %v3285
      %v3287 = vrot.slane %v3278, %v3286
      %v3288 = vlaneseq
      %v3289 = vshrl.u32 %v3288, 7
      %v3290 = vsub.s32 2, %v3289
      %v3291 = vrot.slane %v3278, %v3290
      %v3295 = vmul.f32 %v3275, %v3283
      %v3296 = vmul.f32 %v3276, %v3287
      %v3297 = vmul.f32 %v3277, %v3291
      %3298 = vst [vmem:[%s338] sm:$0xff] 0.0
      %3299 = vst [vmem:[%s338 + $0x8] sm:$0xff] 0.0
      %3300 = vst [vmem:[%s338 + $0x10] sm:$0xff] 0.0
      %3304 = vrot.lane.b32.xlu0 %v3295, 19
      %v3305 = vpop.permute.xlu0 %3304
      %3306 = vrot.lane.b32.xlu0 %v3296, 19
      %v3307 = vpop.permute.xlu0 %3306
      %3308 = vrot.lane.b32.xlu0 %v3297, 19
      %v3309 = vpop.permute.xlu0 %3308
      %vm3310 = vcmask 154624
      %v3311 = vsel %vm3310, %v3305, %v3307
      %v3312 = vsel %vm3310, %v3307, %v3309
      %vm3316 = vcmask 1047704
      %3317 = vst.msk [vmem:[%s338] sm:$0xff] %vm3316, %v3305
      %3318 = vst [vmem:[%s338 + $0x8] sm:$0xff] %v3311
      %vm3319 = vcmask 416768
      %3320 = vst.msk [vmem:[%s338 + $0x10] sm:$0xff] %vm3319, %v3312
      %v3321 = vadd.f32 %v3295, %v3296
      %vm3322 = vcmask 261120
      %v3323 = vsel %vm3322, %v3297, 0.0
      %v3324 = vadd.f32 %v3321, %v3323
      %3325 = vadd.xlane.f32.xlu0 %v3324
      %v3326 = vpop.xlane.xlu0 %3325
      %v3327 = vmul.f32 %v3326, 0.00390625
      %v3328 = vsub.f32 %v3275, %v3327
      %v3329 = vsub.f32 %v3276, %v3327
      %v3330 = vsub.f32 %v3277, %v3327
      %v3331 = vmul.f32 %v3328, %v3283
      %v3332 = vmul.f32 %v3329, %v3287
      %v3333 = vmul.f32 %v3330, %v3291
      %vm3334 = vcmask 7168
      %3335 = vst.msk [vmem:[%s342] sm:$0xff] %vm3334, %v3327
      %v3336 = vmul.f32 %v3331, %v3331
      %v3337 = vmul.f32 %v3332, %v3332
      %v3338 = vmul.f32 %v3333, %v3333
      %v3339 = vadd.f32 %v3336, %v3337
      %v3340 = vsel %vm3322, %v3338, 0.0
      %v3341 = vadd.f32 %v3339, %v3340
      %3342 = vadd.xlane.f32.xlu0 %v3341
      %v3343 = vpop.xlane.xlu0 %3342
      %3344 = vst.msk [vmem:[%s346] sm:$0xff] %vm3334, %v3343
      %p3345 = scmp.lt.s32.totalorder %s20, 1
      %s3346 = scalar_select %p3345, %s20, 1
      %s3347 = smul.addr %s3346, 3
      %s3348 = smul.addr %s3347, 8
      %s3349 = scalar_lea.vmem %s6, %s3348
      %p3350 = scmp.lt.s32.totalorder %s20, 1
      %s3351 = scalar_select %p3350, %s20, 1
      %s3352 = smul.addr %s3351, 8
      %s3353 = scalar_lea.vmem %s7, %s3352
      %p3354 = scmp.lt.s32.totalorder %s20, 1
      %s3355 = scalar_select %p3354, %s20, 1
      %s3356 = smul.addr %s3355, 8
      %s3357 = scalar_lea.vmem %s8, %s3356
      // Predicated region
      $region45: #{a_call__.5} parent=43 // pred_check
        %p3358 = pneg %p174
      $region46: #{a_call__.5} parent=43 // pred_check_branch
        %3360 = sbr.rel (%p3358) target = $region48
      $region47: #{a_call__.5} parent=43 // pred_region
        _
      $region48: #{a_call__.5} parent=43 // pred_fallthru
        _
      // Predicated region
      $region49: #{a_call__.5} parent=43 // pred_check
        %p3361 = pneg %p200
      $region50: #{a_call__.5} parent=43 // pred_check_branch
        %3363 = sbr.rel (%p3361) target = $region52
      $region51: #{a_call__.5} parent=43 // pred_region
        _
      $region52: #{a_call__.5} parent=43 // pred_fallthru
        _
      // Predicated region
      $region53: #{a_call__.5} parent=43 // pred_check
        %p3364 = pneg %p226
      $region54: #{a_call__.5} parent=43 // pred_check_branch
        %3366 = sbr.rel (%p3364) target = $region56
      $region55: #{a_call__.5} parent=43 // pred_region
        _
      $region56: #{a_call__.5} parent=43 // pred_fallthru
        _
    $region44: #{a_call__.5} parent=5 // pred_fallthru
      _
    %p3367 = scmp.le.s32.totalorder 2, %s15
    // Predicated region
    $region57: #{a_call__.5} parent=5 // pred_check
      %p3368 = pneg %p3367
    $region58: #{a_call__.5} parent=5 // pred_check_branch
      %3370 = sbr.rel (%p3368) target = $region60
    $region59: #{a_call__.5} parent=5 // pred_region
      %s3371 = ssub.s32 %s15, 2
      // Predicated region
      $region61: #{a_call__.5} parent=59 // pred_check
        %p3372 = pneg %p180
      $region62: #{a_call__.5} parent=59 // pred_check_branch
        %3374 = sbr.rel (%p3372) target = $region64
      $region63: #{a_call__.5} parent=59 // pred_region
        %p3375 = scmp.lt.s32.totalorder %s21, 1
        %s3376 = scalar_select %p3375, %s21, 1
        %s3377 = smul.addr %s3376, 3
        %s3378 = smul.addr %s3377, 8
        %s3379 = scalar_lea.vmem %s6, %s3378
      $region64: #{a_call__.5} parent=59 // pred_fallthru
        _
      // Predicated region
      $region65: #{a_call__.5} parent=59 // pred_check
        %p3380 = pneg %p206
      $region66: #{a_call__.5} parent=59 // pred_check_branch
        %3382 = sbr.rel (%p3380) target = $region68
      $region67: #{a_call__.5} parent=59 // pred_region
        %p3383 = scmp.lt.s32.totalorder %s21, 1
        %s3384 = scalar_select %p3383, %s21, 1
        %s3385 = smul.addr %s3384, 8
        %s3386 = scalar_lea.vmem %s7, %s3385
      $region68: #{a_call__.5} parent=59 // pred_fallthru
        _
      // Predicated region
      $region69: #{a_call__.5} parent=59 // pred_check
        %p3387 = pneg %p232
      $region70: #{a_call__.5} parent=59 // pred_check_branch
        %3389 = sbr.rel (%p3387) target = $region72
      $region71: #{a_call__.5} parent=59 // pred_region
        %p3390 = scmp.lt.s32.totalorder %s21, 1
        %s3391 = scalar_select %p3390, %s21, 1
        %s3392 = smul.addr %s3391, 8
        %s3393 = scalar_lea.vmem %s8, %s3392
      $region72: #{a_call__.5} parent=59 // pred_fallthru
        _
    $region60: #{a_call__.5} parent=5 // pred_fallthru
      _
  $region6: #{a_call__.5} parent=0 // loop_footer
    %s19 = sadd.s32 1, %s15
  $region7: #{a_call__.5} parent=0 // loop_footer_branch
    %14 = sbr.rel target = $region3
  $region8: #{a_call__.5} parent=0 // loop_exit
    _

// kernel: a_call__.6
$region0: #{a_call__.6}
  #allocation0 [shape = 'u32[]', space=smem, size = 0x4, offset = 0x4, fixed_abs, tag = 'smem constant byte address 0x4 - core index']
  #allocation1 [shape = 'u32[144,128]{1,0:T(1,128)}', space=vmem, size = 0x12000, scoped, tag = 'internal scratch']
  %s0 = inlined_call_operand.vmem [shape: f32[2,8,384], index: 0, kind: input, shape index: {}]
  %s1 = inlined_call_operand.vmem [shape: f32[8,1], index: 1, kind: input, shape index: {}]
  %s2 = inlined_call_operand.vmem [shape: f32[8,1], index: 2, kind: input, shape index: {}]
  %s3 = inlined_call_operand.vmem [shape: f32[1,384], index: 3, kind: input, shape index: {}]
  %s4 = inlined_call_operand.vmem [shape: f32[1,288], index: 4, kind: input, shape index: {}]
  %s5 = inlined_call_operand.vmem [shape: f32[8,72], index: 5, kind: input, shape index: {}]
  %s6 = inlined_call_operand.vmem [shape: f32[8,1], index: 6, kind: input, shape index: {}]
  %s7 = inlined_call_operand.vmem [shape: f32[2,8,288], index: 7, kind: output, shape index: {0}]
  %s8 = inlined_call_operand.vmem [shape: f32[2,8,1], index: 8, kind: output, shape index: {1}]
  %s9 = inlined_call_operand.vmem [shape: f32[2,8,1], index: 9, kind: output, shape index: {2}]
  %10 = xla_tuple %s7, %s8, %s9
  %s11 = sld [smem:[#allocation0]]
  $region77: #{a_call__.6} parent=0
    _
  %s13 = ssub.s32 1, %s11
  %s14 = scalar_select 0, %s13, %s11
  loop: start=0, step=1, limit=4
  $region2: #{a_call__.6} parent=0 // loop_pre_header
    _
  $region3: #{a_call__.6} parent=0 // loop_header
    %s16 = sphi 0, %s20
    %p17 = scmp.ge.s32.totalorder %s16, 4
    %s26 = sphi 0, %s28
    %s29 = sphi 0, %s26
    %s30 = sphi 0, %s29
    %s46 = sphi 0, %s30
    %s50 = sphi 0, %s50
    %s52 = sphi 0, %s50
    %s53 = sphi 0, %s52
    %s67 = sphi 0, %s53
    %s71 = sphi 0, %s71
    %s73 = sphi 0, %s71
    %s74 = sphi 0, %s73
    %s88 = sphi 0, %s74
    %s92 = sphi 0, %s92
    %s94 = sphi 0, %s92
    %s95 = sphi 0, %s94
    %s109 = sphi 0, %s95
    %s113 = sphi 0, %s113
    %s115 = sphi 0, %s113
    %s116 = sphi 0, %s115
    %s130 = sphi 0, %s116
    %s134 = sphi 0, %s134
    %s136 = sphi 0, %s134
    %s137 = sphi 0, %s136
    %s151 = sphi 0, %s137
    %s155 = sphi 0, %s155
    %s157 = sphi 0, %s155
    %s158 = sphi 0, %s157
    %s172 = sphi 0, %s158
    %s178 = sphi 0, %s180
    %s181 = sphi 0, %s178
    %s182 = sphi 0, %s181
    %s198 = sphi 0, %s182
    %s204 = sphi 0, %s206
    %s207 = sphi 0, %s204
    %s208 = sphi 0, %s207
    %s224 = sphi 0, %s208
    %s230 = sphi 0, %s232
    %s233 = sphi 0, %s230
    %s234 = sphi 0, %s233
    %s250 = sphi 0, %s234
  $region4: #{a_call__.6} parent=0 // loop_header_branch
    %19 = sbr.rel (%p17) target = $region8
  $region5: #{a_call__.6} parent=0 // loop_body
    %s21 = ssub.s32 %s16, 1
    %s22 = ssub.s32 %s16, 2
    %s23 = sadd.s32 %s16, 1
    %s24 = ssub.s32 %s16, %s23
    %p25 = scmp.eq.s32.totalorder %s24, 0
    %s27 = sadd.s32 %s26, 1
    %s28 = scalar_select %p25, %s26, %s27
    %p31 = pneg %p25
    %p32 = scmp.eq.s32.totalorder %s16, 1
    %p33 = por %p31, %p32
    %p34 = scmp.ne.s32.totalorder %s26, %s29
    %p35 = scmp.eq.s32.totalorder %s16, 0
    %p36 = por %p34, %p35
    %p37 = scmp.ne.s32.totalorder %s26, %s29
    %p38 = scmp.eq.s32.totalorder %s21, 1
    %p39 = por %p37, %p38
    %p40 = scmp.ne.s32.totalorder %s29, %s30
    %p41 = scmp.eq.s32.totalorder %s21, 0
    %p42 = por %p40, %p41
    %p43 = scmp.ne.s32.totalorder %s29, %s30
    %p44 = scmp.eq.s32.totalorder %s22, 1
    %p45 = por %p43, %p44
    %p47 = scmp.ne.s32.totalorder %s30, %s46
    %p48 = scmp.eq.s32.totalorder %s22, 0
    %p49 = por %p47, %p48
    %s51 = sadd.s32 %s50, 1
    %p54 = scmp.eq.s32.totalorder %s16, 1
    %p55 = scmp.ne.s32.totalorder %s50, %s52
    %p56 = scmp.eq.s32.totalorder %s16, 0
    %p57 = por %p55, %p56
    %p58 = scmp.ne.s32.totalorder %s50, %s52
    %p59 = scmp.eq.s32.totalorder %s21, 1
    %p60 = por %p58, %p59
    %p61 = scmp.ne.s32.totalorder %s52, %s53
    %p62 = scmp.eq.s32.totalorder %s21, 0
    %p63 = por %p61, %p62
    %p64 = scmp.ne.s32.totalorder %s52, %s53
    %p65 = scmp.eq.s32.totalorder %s22, 1
    %p66 = por %p64, %p65
    %p68 = scmp.ne.s32.totalorder %s53, %s67
    %p69 = scmp.eq.s32.totalorder %s22, 0
    %p70 = por %p68, %p69
    %s72 = sadd.s32 %s71, 1
    %p75 = scmp.eq.s32.totalorder %s16, 1
    %p76 = scmp.ne.s32.totalorder %s71, %s73
    %p77 = scmp.eq.s32.totalorder %s16, 0
    %p78 = por %p76, %p77
    %p79 = scmp.ne.s32.totalorder %s71, %s73
    %p80 = scmp.eq.s32.totalorder %s21, 1
    %p81 = por %p79, %p80
    %p82 = scmp.ne.s32.totalorder %s73, %s74
    %p83 = scmp.eq.s32.totalorder %s21, 0
    %p84 = por %p82, %p83
    %p85 = scmp.ne.s32.totalorder %s73, %s74
    %p86 = scmp.eq.s32.totalorder %s22, 1
    %p87 = por %p85, %p86
    %p89 = scmp.ne.s32.totalorder %s74, %s88
    %p90 = scmp.eq.s32.totalorder %s22, 0
    %p91 = por %p89, %p90
    %s93 = sadd.s32 %s92, 1
    %p96 = scmp.eq.s32.totalorder %s16, 1
    %p97 = scmp.ne.s32.totalorder %s92, %s94
    %p98 = scmp.eq.s32.totalorder %s16, 0
    %p99 = por %p97, %p98
    %p100 = scmp.ne.s32.totalorder %s92, %s94
    %p101 = scmp.eq.s32.totalorder %s21, 1
    %p102 = por %p100, %p101
    %p103 = scmp.ne.s32.totalorder %s94, %s95
    %p104 = scmp.eq.s32.totalorder %s21, 0
    %p105 = por %p103, %p104
    %p106 = scmp.ne.s32.totalorder %s94, %s95
    %p107 = scmp.eq.s32.totalorder %s22, 1
    %p108 = por %p106, %p107
    %p110 = scmp.ne.s32.totalorder %s95, %s109
    %p111 = scmp.eq.s32.totalorder %s22, 0
    %p112 = por %p110, %p111
    %s114 = sadd.s32 %s113, 1
    %p117 = scmp.eq.s32.totalorder %s16, 1
    %p118 = scmp.ne.s32.totalorder %s113, %s115
    %p119 = scmp.eq.s32.totalorder %s16, 0
    %p120 = por %p118, %p119
    %p121 = scmp.ne.s32.totalorder %s113, %s115
    %p122 = scmp.eq.s32.totalorder %s21, 1
    %p123 = por %p121, %p122
    %p124 = scmp.ne.s32.totalorder %s115, %s116
    %p125 = scmp.eq.s32.totalorder %s21, 0
    %p126 = por %p124, %p125
    %p127 = scmp.ne.s32.totalorder %s115, %s116
    %p128 = scmp.eq.s32.totalorder %s22, 1
    %p129 = por %p127, %p128
    %p131 = scmp.ne.s32.totalorder %s116, %s130
    %p132 = scmp.eq.s32.totalorder %s22, 0
    %p133 = por %p131, %p132
    %s135 = sadd.s32 %s134, 1
    %p138 = scmp.eq.s32.totalorder %s16, 1
    %p139 = scmp.ne.s32.totalorder %s134, %s136
    %p140 = scmp.eq.s32.totalorder %s16, 0
    %p141 = por %p139, %p140
    %p142 = scmp.ne.s32.totalorder %s134, %s136
    %p143 = scmp.eq.s32.totalorder %s21, 1
    %p144 = por %p142, %p143
    %p145 = scmp.ne.s32.totalorder %s136, %s137
    %p146 = scmp.eq.s32.totalorder %s21, 0
    %p147 = por %p145, %p146
    %p148 = scmp.ne.s32.totalorder %s136, %s137
    %p149 = scmp.eq.s32.totalorder %s22, 1
    %p150 = por %p148, %p149
    %p152 = scmp.ne.s32.totalorder %s137, %s151
    %p153 = scmp.eq.s32.totalorder %s22, 0
    %p154 = por %p152, %p153
    %s156 = sadd.s32 %s155, 1
    %p159 = scmp.eq.s32.totalorder %s16, 1
    %p160 = scmp.ne.s32.totalorder %s155, %s157
    %p161 = scmp.eq.s32.totalorder %s16, 0
    %p162 = por %p160, %p161
    %p163 = scmp.ne.s32.totalorder %s155, %s157
    %p164 = scmp.eq.s32.totalorder %s21, 1
    %p165 = por %p163, %p164
    %p166 = scmp.ne.s32.totalorder %s157, %s158
    %p167 = scmp.eq.s32.totalorder %s21, 0
    %p168 = por %p166, %p167
    %p169 = scmp.ne.s32.totalorder %s157, %s158
    %p170 = scmp.eq.s32.totalorder %s22, 1
    %p171 = por %p169, %p170
    %p173 = scmp.ne.s32.totalorder %s158, %s172
    %p174 = scmp.eq.s32.totalorder %s22, 0
    %p175 = por %p173, %p174
    %s176 = ssub.s32 %s16, %s23
    %p177 = scmp.eq.s32.totalorder %s176, 0
    %s179 = sadd.s32 %s178, 1
    %s180 = scalar_select %p177, %s178, %s179
    %p183 = pneg %p177
    %p184 = scmp.eq.s32.totalorder %s16, 1
    %p185 = por %p183, %p184
    %p186 = scmp.ne.s32.totalorder %s178, %s181
    %p187 = scmp.eq.s32.totalorder %s16, 0
    %p188 = por %p186, %p187
    %p189 = scmp.ne.s32.totalorder %s178, %s181
    %p190 = scmp.eq.s32.totalorder %s21, 1
    %p191 = por %p189, %p190
    %p192 = scmp.ne.s32.totalorder %s181, %s182
    %p193 = scmp.eq.s32.totalorder %s21, 0
    %p194 = por %p192, %p193
    %p195 = scmp.ne.s32.totalorder %s181, %s182
    %p196 = scmp.eq.s32.totalorder %s22, 1
    %p197 = por %p195, %p196
    %p199 = scmp.ne.s32.totalorder %s182, %s198
    %p200 = scmp.eq.s32.totalorder %s22, 0
    %p201 = por %p199, %p200
    %s202 = ssub.s32 %s16, %s23
    %p203 = scmp.eq.s32.totalorder %s202, 0
    %s205 = sadd.s32 %s204, 1
    %s206 = scalar_select %p203, %s204, %s205
    %p209 = pneg %p203
    %p210 = scmp.eq.s32.totalorder %s16, 1
    %p211 = por %p209, %p210
    %p212 = scmp.ne.s32.totalorder %s204, %s207
    %p213 = scmp.eq.s32.totalorder %s16, 0
    %p214 = por %p212, %p213
    %p215 = scmp.ne.s32.totalorder %s204, %s207
    %p216 = scmp.eq.s32.totalorder %s21, 1
    %p217 = por %p215, %p216
    %p218 = scmp.ne.s32.totalorder %s207, %s208
    %p219 = scmp.eq.s32.totalorder %s21, 0
    %p220 = por %p218, %p219
    %p221 = scmp.ne.s32.totalorder %s207, %s208
    %p222 = scmp.eq.s32.totalorder %s22, 1
    %p223 = por %p221, %p222
    %p225 = scmp.ne.s32.totalorder %s208, %s224
    %p226 = scmp.eq.s32.totalorder %s22, 0
    %p227 = por %p225, %p226
    %s228 = ssub.s32 %s16, %s23
    %p229 = scmp.eq.s32.totalorder %s228, 0
    %s231 = sadd.s32 %s230, 1
    %s232 = scalar_select %p229, %s230, %s231
    %p235 = pneg %p229
    %p236 = scmp.eq.s32.totalorder %s16, 1
    %p237 = por %p235, %p236
    %p238 = scmp.ne.s32.totalorder %s230, %s233
    %p239 = scmp.eq.s32.totalorder %s16, 0
    %p240 = por %p238, %p239
    %p241 = scmp.ne.s32.totalorder %s230, %s233
    %p242 = scmp.eq.s32.totalorder %s21, 1
    %p243 = por %p241, %p242
    %p244 = scmp.ne.s32.totalorder %s233, %s234
    %p245 = scmp.eq.s32.totalorder %s21, 0
    %p246 = por %p244, %p245
    %p247 = scmp.ne.s32.totalorder %s233, %s234
    %p248 = scmp.eq.s32.totalorder %s22, 1
    %p249 = por %p247, %p248
    %p251 = scmp.ne.s32.totalorder %s234, %s250
    %p252 = scmp.eq.s32.totalorder %s22, 0
    %p253 = por %p251, %p252
    %p254 = scmp.le.s32.totalorder 1, %s16
    %p255 = scmp.lt.s32.totalorder %s16, 3
    %p256 = pnand %p254, %p255
    %p257 = pneg %p256
    // Predicated region
    $region9: #{a_call__.6} parent=5 // pred_check
      _
    $region10: #{a_call__.6} parent=5 // pred_check_branch
      %259 = sbr.rel (%p256) target = $region12
    $region11: #{a_call__.6} parent=5 // pred_region
      %s260 = ssub.s32 %s16, 1
      // Predicated region
      $region13: #{a_call__.6} parent=11 // pred_check
        %p261 = pneg %p63
      $region14: #{a_call__.6} parent=11 // pred_check_branch
        %263 = sbr.rel (%p261) target = $region16
      $region15: #{a_call__.6} parent=11 // pred_region
        _
      $region16: #{a_call__.6} parent=11 // pred_fallthru
        _
      // Predicated region
      $region17: #{a_call__.6} parent=11 // pred_check
        %p264 = pneg %p84
      $region18: #{a_call__.6} parent=11 // pred_check_branch
        %266 = sbr.rel (%p264) target = $region20
      $region19: #{a_call__.6} parent=11 // pred_region
        _
      $region20: #{a_call__.6} parent=11 // pred_fallthru
        _
      // Predicated region
      $region21: #{a_call__.6} parent=11 // pred_check
        %p267 = pneg %p105
      $region22: #{a_call__.6} parent=11 // pred_check_branch
        %269 = sbr.rel (%p267) target = $region24
      $region23: #{a_call__.6} parent=11 // pred_region
        _
      $region24: #{a_call__.6} parent=11 // pred_fallthru
        _
      // Predicated region
      $region25: #{a_call__.6} parent=11 // pred_check
        %p270 = pneg %p126
      $region26: #{a_call__.6} parent=11 // pred_check_branch
        %272 = sbr.rel (%p270) target = $region28
      $region27: #{a_call__.6} parent=11 // pred_region
        _
      $region28: #{a_call__.6} parent=11 // pred_fallthru
        _
      // Predicated region
      $region29: #{a_call__.6} parent=11 // pred_check
        %p273 = pneg %p147
      $region30: #{a_call__.6} parent=11 // pred_check_branch
        %275 = sbr.rel (%p273) target = $region32
      $region31: #{a_call__.6} parent=11 // pred_region
        _
      $region32: #{a_call__.6} parent=11 // pred_fallthru
        _
      // Predicated region
      $region33: #{a_call__.6} parent=11 // pred_check
        %p276 = pneg %p168
      $region34: #{a_call__.6} parent=11 // pred_check_branch
        %278 = sbr.rel (%p276) target = $region36
      $region35: #{a_call__.6} parent=11 // pred_region
        _
      $region36: #{a_call__.6} parent=11 // pred_fallthru
        _
    $region12: #{a_call__.6} parent=5 // pred_fallthru
      _
    %p279 = scmp.lt.s32.totalorder %s16, 2
    // Predicated region
    $region37: #{a_call__.6} parent=5 // pred_check
      %p280 = pneg %p279
    $region38: #{a_call__.6} parent=5 // pred_check_branch
      %282 = sbr.rel (%p280) target = $region40
    $region39: #{a_call__.6} parent=5 // pred_region
      // Predicated region
      $region41: #{a_call__.6} parent=39 // pred_check
        %p283 = pneg %p36
      $region42: #{a_call__.6} parent=39 // pred_check_branch
        %285 = sbr.rel (%p283) target = $region44
      $region43: #{a_call__.6} parent=39 // pred_region
        %p286 = scmp.lt.s32.totalorder %s16, 1
        %s287 = scalar_select %p286, %s16, 1
        %s288 = smul.addr %s287, 3
        %s289 = smul.addr %s288, 8
        %s290 = scalar_lea.vmem %s0, %s289
      $region44: #{a_call__.6} parent=39 // pred_fallthru
        _
    $region40: #{a_call__.6} parent=5 // pred_fallthru
      _
    %p291 = scmp.le.s32.totalorder 1, %s16
    %p292 = scmp.lt.s32.totalorder %s16, 3
    %p293 = pnand %p291, %p292
    %p294 = pneg %p293
    // Predicated region
    $region45: #{a_call__.6} parent=5 // pred_check
      _
    $region46: #{a_call__.6} parent=5 // pred_check_branch
      %296 = sbr.rel (%p293) target = $region48
    $region47: #{a_call__.6} parent=5 // pred_region
      %s297 = ssub.s32 %s16, 1
      %p298 = scmp.lt.s32.totalorder %s21, 1
      %s299 = scalar_select %p298, %s21, 1
      %s300 = smul.addr %s299, 3
      %s301 = smul.addr %s300, 8
      %s302 = scalar_lea.vmem %s0, %s301
      %p303 = pneg %p42
      %p304 = pneg %p39
      %p305 = pneg %p63
      %p306 = pneg %p60
      %p307 = pneg %p84
      %p308 = pneg %p81
      %p309 = pneg %p105
      %p310 = pneg %p102
      %p311 = pneg %p126
      %p312 = pneg %p123
      %p313 = pneg %p147
      %p314 = pneg %p144
      %p315 = pneg %p168
      %p316 = pneg %p165
      %p317 = pneg %p194
      %p318 = pneg %p191
      %p319 = scmp.lt.s32.totalorder %s21, 1
      %s320 = scalar_select %p319, %s21, 1
      %s321 = smul.addr %s320, 3
      %s322 = smul.addr %s321, 8
      %s323 = scalar_lea.vmem %s7, %s322
      %p324 = pneg %p220
      %p325 = pneg %p217
      %p326 = scmp.lt.s32.totalorder %s21, 1
      %s327 = scalar_select %p326, %s21, 1
      %s328 = smul.addr %s327, 8
      %s329 = scalar_lea.vmem %s8, %s328
      %p330 = pneg %p246
      %p331 = pneg %p243
      %p332 = scmp.lt.s32.totalorder %s21, 1
      %s333 = scalar_select %p332, %s21, 1
      %s334 = smul.addr %s333, 8
      %s335 = scalar_lea.vmem %s9, %s334
      %p336 = scmp.lt.s32.totalorder %s21, 1
      %s337 = scalar_select %p336, %s21, 1
      %s338 = smul.addr %s337, 3
      %s339 = smul.addr %s338, 8
      %s340 = scalar_lea.vmem %s0, %s339
      %p341 = scmp.lt.s32.totalorder %s21, 1
      %s342 = scalar_select %p341, %s21, 1
      %s343 = smul.addr %s342, 3
      %s344 = smul.addr %s343, 8
      %s345 = scalar_lea.vmem %s7, %s344
      %p346 = scmp.lt.s32.totalorder %s21, 1
      %s347 = scalar_select %p346, %s21, 1
      %s348 = smul.addr %s347, 8
      %s349 = scalar_lea.vmem %s8, %s348
      %p350 = scmp.lt.s32.totalorder %s21, 1
      %s351 = scalar_select %p350, %s21, 1
      %s352 = smul.addr %s351, 8
      %s353 = scalar_lea.vmem %s9, %s352
      %v354 = vld [vmem:[%s340] sm:$0xff]
      %v355 = vld [vmem:[%s340 + $0x8] sm:$0xff]
      %v356 = vld [vmem:[%s340 + $0x10] sm:$0xff]
      %v357 = vld [vmem:[%s1] sm:$0xff]
      %359 = vset.pattern.permute.xlu0 0
      %360 = vperm.xlu0 %359, %v357
      %v361 = vpop.permute.xlu0 %360
      %v363 = vmul.f32 %v354, %v361
      %v364 = vmul.f32 %v355, %v361
      %v365 = vmul.f32 %v356, %v361
      %v366 = vld [vmem:[%s2] sm:$0xff]
      %368 = vset.pattern.permute.xlu0 0
      %369 = vperm.xlu0 %368, %v366
      %v370 = vpop.permute.xlu0 %369
      %v372 = vadd.f32 %v363, %v370
      %v373 = vadd.f32 %v364, %v370
      %v374 = vadd.f32 %v365, %v370
      %v375 = vmax.f32 %v372, 0.0
      %v376 = vmax.f32 %v373, 0.0
      %v377 = vmax.f32 %v374, 0.0
      %v378 = vld [vmem:[%s3] sm:$0x7]
      %v380 = vlaneseq
      %v381 = vshrl.u32 %v380, 7
      %v382 = vsub.s32 0, %v381
      %v383 = vrot.slane %v378, %v382
      %v384 = vlaneseq
      %v385 = vshrl.u32 %v384, 7
      %v386 = vsub.s32 1, %v385
      %v387 = vrot.slane %v378, %v386
      %v388 = vlaneseq
      %v389 = vshrl.u32 %v388, 7
      %v390 = vsub.s32 2, %v389
      %v391 = vrot.slane %v378, %v390
      %v395 = vmul.f32 %v375, %v383
      %v396 = vmul.f32 %v376, %v387
      %v397 = vmul.f32 %v377, %v391
      %v398 = vld [vmem:[%s5] sm:$0xff]
      %400 = vrot.lane.b32.xlu0 %v398, 120
      %v401 = vpop.permute.xlu0 %400
      %405 = vrot.lane.b32.xlu0 %v395, 127
      %v406 = vpop.permute.xlu0 %405
      %407 = vrot.lane.b32.xlu0 %v396, 127
      %v408 = vpop.permute.xlu0 %407
      %409 = vrot.lane.b32.xlu0 %v397, 127
      %v410 = vpop.permute.xlu0 %409
      %vm411 = vcmask 1039360
      %v412 = vsel %vm411, %v406, %v408
      %v413 = vsel %vm411, %v408, %v410
      %vm417 = vcmask 64512
      %v418 = vsel %vm417, %v401, 0
      %420 = vmatprep.subr.mxu0 %v413
      %421 = vmatpush1.msra.mxu0 %v412
      %422 = vmatprep.subr.mxu0 0.0
      %423 = vmatpush1.msra.mxu0 0.0
      %424 = vmatprep.subr.mxu0 0.0
      %425 = vmatpush1.msra.mxu0 0.0
      %426 = vmatprep.subr.mxu0 0.0
      %427 = vmatpush1.msra.mxu0 0.0
      %428 = vmatprep.subr.mxu0 0.0
      %429 = vmatpush1.msra.mxu0 0.0
      %430 = vmatprep.subr.mxu0 0.0
      %431 = vmatpush1.msra.mxu0 0.0
      %432 = vmatprep.subr.mxu0 0.0
      %433 = vmatpush1.msra.mxu0 0.0
      %434 = vmatprep.subr.mxu0 0.0
      %435 = vmatpush1.msra.mxu0 0.0
      %436 = vmatprep.subr.mxu0 0.0
      %437 = vmatpush1.msra.mxu0 0.0
      %438 = vmatprep.subr.mxu0 0.0
      %439 = vmatpush1.msra.mxu0 0.0
      %440 = vmatprep.subr.mxu0 0.0
      %441 = vmatpush1.msra.mxu0 0.0
      %442 = vmatprep.subr.mxu0 0.0
      %443 = vmatpush1.msra.mxu0 0.0
      %444 = vmatprep.subr.mxu0 0.0
      %445 = vmatpush1.msra.mxu0 0.0
      %446 = vmatprep.subr.mxu0 0.0
      %447 = vmatpush1.msra.mxu0 0.0
      %448 = vmatprep.subr.mxu0 0.0
      %449 = vmatpush1.msra.mxu0 0.0
      %450 = vmatprep.subr.mxu0 0.0
      %451 = vmatpush1.msra.mxu0 0.0
      %452 = vmatprep.subr.mxu0 0.0
      %453 = vmatpush1.msra.mxu0 0.0
      %454 = vmatprep.subr.mxu0 0.0
      %455 = vmatpush1.msra.mxu0 0.0
      %456 = vmatprep.subr.mxu0 0.0
      %457 = vmatpush1.msra.mxu0 0.0
      %458 = vmatprep.subr.mxu0 0.0
      %459 = vmatpush1.msra.mxu0 0.0
      %460 = vmatprep.subr.mxu0 0.0
      %461 = vmatpush1.msra.mxu0 0.0
      %462 = vmatprep.subr.mxu0 0.0
      %463 = vmatpush1.msra.mxu0 0.0
      %464 = vmatprep.subr.mxu0 0.0
      %465 = vmatpush1.msra.mxu0 0.0
      %466 = vmatprep.subr.mxu0 0.0
      %467 = vmatpush1.msra.mxu0 0.0
      %468 = vmatprep.subr.mxu0 0.0
      %469 = vmatpush1.msra.mxu0 0.0
      %470 = vmatprep.subr.mxu0 0.0
      %471 = vmatpush1.msra.mxu0 0.0
      %472 = vmatprep.subr.mxu0 0.0
      %473 = vmatpush1.msra.mxu0 0.0
      %474 = vmatprep.subr.mxu0 0.0
      %475 = vmatpush1.msra.mxu0 0.0
      %476 = vmatprep.subr.mxu0 0.0
      %477 = vmatpush1.msra.mxu0 0.0
      %478 = vmatprep.subr.mxu0 0.0
      %479 = vmatpush1.msra.mxu0 0.0
      %480 = vmatprep.subr.mxu0 0.0
      %481 = vmatpush1.msra.mxu0 0.0
      %482 = vmatprep.subr.mxu0 0.0
      %483 = vmatpush1.msra.mxu0 0.0
      %484 = vmatprep.mubr.f32.mxu0 0.0
      %485 = vmatmul.mubr.f32.gmra.mrb[0].mxu0 %v418
      %v486 = vpop.f32.mrb[0].mxu0
      %v487 = vadd.f32 0.0, %v486
      %v488 = vpop.f32.mrb[0].mxu0
      %v489 = vadd.f32 0.0, %v488
      %490 = vdwg.mxu0
      %491 = vmatprep.subr.mxu0 0.0
      %492 = vmatpush1.msra.mxu0 %v410
      %493 = vmatprep.subr.mxu0 0.0
      %494 = vmatpush1.msra.mxu0 0.0
      %495 = vmatprep.subr.mxu0 0.0
      %496 = vmatpush1.msra.mxu0 0.0
      %497 = vmatprep.subr.mxu0 0.0
      %498 = vmatpush1.msra.mxu0 0.0
      %499 = vmatprep.subr.mxu0 0.0
      %500 = vmatpush1.msra.mxu0 0.0
      %501 = vmatprep.subr.mxu0 0.0
      %502 = vmatpush1.msra.mxu0 0.0
      %503 = vmatprep.subr.mxu0 0.0
      %504 = vmatpush1.msra.mxu0 0.0
      %505 = vmatprep.subr.mxu0 0.0
      %506 = vmatpush1.msra.mxu0 0.0
      %507 = vmatprep.subr.mxu0 0.0
      %508 = vmatpush1.msra.mxu0 0.0
      %509 = vmatprep.subr.mxu0 0.0
      %510 = vmatpush1.msra.mxu0 0.0
      %511 = vmatprep.subr.mxu0 0.0
      %512 = vmatpush1.msra.mxu0 0.0
      %513 = vmatprep.subr.mxu0 0.0
      %514 = vmatpush1.msra.mxu0 0.0
      %515 = vmatprep.subr.mxu0 0.0
      %516 = vmatpush1.msra.mxu0 0.0
      %517 = vmatprep.subr.mxu0 0.0
      %518 = vmatpush1.msra.mxu0 0.0
      %519 = vmatprep.subr.mxu0 0.0
      %520 = vmatpush1.msra.mxu0 0.0
      %521 = vmatprep.subr.mxu0 0.0
      %522 = vmatpush1.msra.mxu0 0.0
      %523 = vmatprep.subr.mxu0 0.0
      %524 = vmatpush1.msra.mxu0 0.0
      %525 = vmatprep.subr.mxu0 0.0
      %526 = vmatpush1.msra.mxu0 0.0
      %527 = vmatprep.subr.mxu0 0.0
      %528 = vmatpush1.msra.mxu0 0.0
      %529 = vmatprep.subr.mxu0 0.0
      %530 = vmatpush1.msra.mxu0 0.0
      %531 = vmatprep.subr.mxu0 0.0
      %532 = vmatpush1.msra.mxu0 0.0
      %533 = vmatprep.subr.mxu0 0.0
      %534 = vmatpush1.msra.mxu0 0.0
      %535 = vmatprep.subr.mxu0 0.0
      %536 = vmatpush1.msra.mxu0 0.0
      %537 = vmatprep.subr.mxu0 0.0
      %538 = vmatpush1.msra.mxu0 0.0
      %539 = vmatprep.subr.mxu0 0.0
      %540 = vmatpush1.msra.mxu0 0.0
      %541 = vmatprep.subr.mxu0 0.0
      %542 = vmatpush1.msra.mxu0 0.0
      %543 = vmatprep.subr.mxu0 0.0
      %544 = vmatpush1.msra.mxu0 0.0
      %545 = vmatprep.subr.mxu0 0.0
      %546 = vmatpush1.msra.mxu0 0.0
      %547 = vmatprep.subr.mxu0 0.0
      %548 = vmatpush1.msra.mxu0 0.0
      %549 = vmatprep.subr.mxu0 0.0
      %550 = vmatpush1.msra.mxu0 0.0
      %551 = vmatprep.subr.mxu0 0.0
      %552 = vmatpush1.msra.mxu0 0.0
      %553 = vmatprep.subr.mxu0 0.0
      %554 = vmatpush1.msra.mxu0 0.0
      %555 = vmatprep.mubr.f32.mxu0 0.0
      %556 = vmatmul.mubr.f32.gmra.mrb[0].mxu0 %v418
      %v557 = vpop.f32.mrb[0].mxu0
      %v558 = vadd.f32 0.0, %v557
      %v559 = vpop.f32.mrb[0].mxu0
      %560 = vdwg.mxu0
      %v561 = vsel %vm417, %v398, 0
      %563 = vmatprep.subr.mxu0 %v396
      %564 = vmatpush1.msra.mxu0 %v395
      %565 = vmatprep.subr.mxu0 0.0
      %566 = vmatpush1.msra.mxu0 0.0
      %567 = vmatprep.subr.mxu0 0.0
      %568 = vmatpush1.msra.mxu0 0.0
      %569 = vmatprep.subr.mxu0 0.0
      %570 = vmatpush1.msra.mxu0 0.0
      %571 = vmatprep.subr.mxu0 0.0
      %572 = vmatpush1.msra.mxu0 0.0
      %573 = vmatprep.subr.mxu0 0.0
      %574 = vmatpush1.msra.mxu0 0.0
      %575 = vmatprep.subr.mxu0 0.0
      %576 = vmatpush1.msra.mxu0 0.0
      %577 = vmatprep.subr.mxu0 0.0
      %578 = vmatpush1.msra.mxu0 0.0
      %579 = vmatprep.subr.mxu0 0.0
      %580 = vmatpush1.msra.mxu0 0.0
      %581 = vmatprep.subr.mxu0 0.0
      %582 = vmatpush1.msra.mxu0 0.0
      %583 = vmatprep.subr.mxu0 0.0
      %584 = vmatpush1.msra.mxu0 0.0
      %585 = vmatprep.subr.mxu0 0.0
      %586 = vmatpush1.msra.mxu0 0.0
      %587 = vmatprep.subr.mxu0 0.0
      %588 = vmatpush1.msra.mxu0 0.0
      %589 = vmatprep.subr.mxu0 0.0
      %590 = vmatpush1.msra.mxu0 0.0
      %591 = vmatprep.subr.mxu0 0.0
      %592 = vmatpush1.msra.mxu0 0.0
      %593 = vmatprep.subr.mxu0 0.0
      %594 = vmatpush1.msra.mxu0 0.0
      %595 = vmatprep.subr.mxu0 0.0
      %596 = vmatpush1.msra.mxu0 0.0
      %597 = vmatprep.subr.mxu0 0.0
      %598 = vmatpush1.msra.mxu0 0.0
      %599 = vmatprep.subr.mxu0 0.0
      %600 = vmatpush1.msra.mxu0 0.0
      %601 = vmatprep.subr.mxu0 0.0
      %602 = vmatpush1.msra.mxu0 0.0
      %603 = vmatprep.subr.mxu0 0.0
      %604 = vmatpush1.msra.mxu0 0.0
      %605 = vmatprep.subr.mxu0 0.0
      %606 = vmatpush1.msra.mxu0 0.0
      %607 = vmatprep.subr.mxu0 0.0
      %608 = vmatpush1.msra.mxu0 0.0
      %609 = vmatprep.subr.mxu0 0.0
      %610 = vmatpush1.msra.mxu0 0.0
      %611 = vmatprep.subr.mxu0 0.0
      %612 = vmatpush1.msra.mxu0 0.0
      %613 = vmatprep.subr.mxu0 0.0
      %614 = vmatpush1.msra.mxu0 0.0
      %615 = vmatprep.subr.mxu0 0.0
      %616 = vmatpush1.msra.mxu0 0.0
      %617 = vmatprep.subr.mxu0 0.0
      %618 = vmatpush1.msra.mxu0 0.0
      %619 = vmatprep.subr.mxu0 0.0
      %620 = vmatpush1.msra.mxu0 0.0
      %621 = vmatprep.subr.mxu0 0.0
      %622 = vmatpush1.msra.mxu0 0.0
      %623 = vmatprep.subr.mxu0 0.0
      %624 = vmatpush1.msra.mxu0 0.0
      %625 = vmatprep.subr.mxu0 0.0
      %626 = vmatpush1.msra.mxu0 0.0
      %627 = vmatprep.mubr.f32.mxu0 0.0
      %628 = vmatmul.mubr.f32.gmra.mrb[0].mxu0 %v561
      %v629 = vpop.f32.mrb[0].mxu0
      %v630 = vadd.f32 %v487, %v629
      %v631 = vpop.f32.mrb[0].mxu0
      %v632 = vadd.f32 %v489, %v631
      %633 = vdwg.mxu0
      %634 = vmatprep.subr.mxu0 0.0
      %635 = vmatpush1.msra.mxu0 %v397
      %636 = vmatprep.subr.mxu0 0.0
      %637 = vmatpush1.msra.mxu0 0.0
      %638 = vmatprep.subr.mxu0 0.0
      %639 = vmatpush1.msra.mxu0 0.0
      %640 = vmatprep.subr.mxu0 0.0
      %641 = vmatpush1.msra.mxu0 0.0
      %642 = vmatprep.subr.mxu0 0.0
      %643 = vmatpush1.msra.mxu0 0.0
      %644 = vmatprep.subr.mxu0 0.0
      %645 = vmatpush1.msra.mxu0 0.0
      %646 = vmatprep.subr.mxu0 0.0
      %647 = vmatpush1.msra.mxu0 0.0
      %648 = vmatprep.subr.mxu0 0.0
      %649 = vmatpush1.msra.mxu0 0.0
      %650 = vmatprep.subr.mxu0 0.0
      %651 = vmatpush1.msra.mxu0 0.0
      %652 = vmatprep.subr.mxu0 0.0
      %653 = vmatpush1.msra.mxu0 0.0
      %654 = vmatprep.subr.mxu0 0.0
      %655 = vmatpush1.msra.mxu0 0.0
      %656 = vmatprep.subr.mxu0 0.0
      %657 = vmatpush1.msra.mxu0 0.0
      %658 = vmatprep.subr.mxu0 0.0
      %659 = vmatpush1.msra.mxu0 0.0
      %660 = vmatprep.subr.mxu0 0.0
      %661 = vmatpush1.msra.mxu0 0.0
      %662 = vmatprep.subr.mxu0 0.0
      %663 = vmatpush1.msra.mxu0 0.0
      %664 = vmatprep.subr.mxu0 0.0
      %665 = vmatpush1.msra.mxu0 0.0
      %666 = vmatprep.subr.mxu0 0.0
      %667 = vmatpush1.msra.mxu0 0.0
      %668 = vmatprep.subr.mxu0 0.0
      %669 = vmatpush1.msra.mxu0 0.0
      %670 = vmatprep.subr.mxu0 0.0
      %671 = vmatpush1.msra.mxu0 0.0
      %672 = vmatprep.subr.mxu0 0.0
      %673 = vmatpush1.msra.mxu0 0.0
      %674 = vmatprep.subr.mxu0 0.0
      %675 = vmatpush1.msra.mxu0 0.0
      %676 = vmatprep.subr.mxu0 0.0
      %677 = vmatpush1.msra.mxu0 0.0
      %678 = vmatprep.subr.mxu0 0.0
      %679 = vmatpush1.msra.mxu0 0.0
      %680 = vmatprep.subr.mxu0 0.0
      %681 = vmatpush1.msra.mxu0 0.0
      %682 = vmatprep.subr.mxu0 0.0
      %683 = vmatpush1.msra.mxu0 0.0
      %684 = vmatprep.subr.mxu0 0.0
      %685 = vmatpush1.msra.mxu0 0.0
      %686 = vmatprep.subr.mxu0 0.0
      %687 = vmatpush1.msra.mxu0 0.0
      %688 = vmatprep.subr.mxu0 0.0
      %689 = vmatpush1.msra.mxu0 0.0
      %690 = vmatprep.subr.mxu0 0.0
      %691 = vmatpush1.msra.mxu0 0.0
      %692 = vmatprep.subr.mxu0 0.0
      %693 = vmatpush1.msra.mxu0 0.0
      %694 = vmatprep.subr.mxu0 0.0
      %695 = vmatpush1.msra.mxu0 0.0
      %696 = vmatprep.subr.mxu0 0.0
      %697 = vmatpush1.msra.mxu0 0.0
      %698 = vmatprep.mubr.f32.mxu0 0.0
      %699 = vmatmul.mubr.f32.gmra.mrb[0].mxu0 %v561
      %v700 = vpop.f32.mrb[0].mxu0
      %v701 = vadd.f32 %v558, %v700
      %v702 = vpop.f32.mrb[0].mxu0
      %703 = vdwg.mxu0
      %704 = vrot.lane.b32.xlu0 %v398, 112
      %v705 = vpop.permute.xlu0 %704
      %706 = vrot.lane.b32.xlu0 %v395, 126
      %v707 = vpop.permute.xlu0 %706
      %708 = vrot.lane.b32.xlu0 %v396, 126
      %v709 = vpop.permute.xlu0 %708
      %710 = vrot.lane.b32.xlu0 %v397, 126
      %v711 = vpop.permute.xlu0 %710
      %vm712 = vcmask 1031168
      %v713 = vsel %vm712, %v707, %v709
      %v714 = vsel %vm712, %v709, %v711
      %v718 = vsel %vm417, %v705, 0
      %720 = vmatprep.subr.mxu0 %v714
      %721 = vmatpush1.msra.mxu0 %v713
      %722 = vmatprep.subr.mxu0 0.0
      %723 = vmatpush1.msra.mxu0 0.0
      %724 = vmatprep.subr.mxu0 0.0
      %725 = vmatpush1.msra.mxu0 0.0
      %726 = vmatprep.subr.mxu0 0.0
      %727 = vmatpush1.msra.mxu0 0.0
      %728 = vmatprep.subr.mxu0 0.0
      %729 = vmatpush1.msra.mxu0 0.0
      %730 = vmatprep.subr.mxu0 0.0
      %731 = vmatpush1.msra.mxu0 0.0
      %732 = vmatprep.subr.mxu0 0.0
      %733 = vmatpush1.msra.mxu0 0.0
      %734 = vmatprep.subr.mxu0 0.0
      %735 = vmatpush1.msra.mxu0 0.0
      %736 = vmatprep.subr.mxu0 0.0
      %737 = vmatpush1.msra.mxu0 0.0
      %738 = vmatprep.subr.mxu0 0.0
      %739 = vmatpush1.msra.mxu0 0.0
      %740 = vmatprep.subr.mxu0 0.0
      %741 = vmatpush1.msra.mxu0 0.0
      %742 = vmatprep.subr.mxu0 0.0
      %743 = vmatpush1.msra.mxu0 0.0
      %744 = vmatprep.subr.mxu0 0.0
      %745 = vmatpush1.msra.mxu0 0.0
      %746 = vmatprep.subr.mxu0 0.0
      %747 = vmatpush1.msra.mxu0 0.0
      %748 = vmatprep.subr.mxu0 0.0
      %749 = vmatpush1.msra.mxu0 0.0
      %750 = vmatprep.subr.mxu0 0.0
      %751 = vmatpush1.msra.mxu0 0.0
      %752 = vmatprep.subr.mxu0 0.0
      %753 = vmatpush1.msra.mxu0 0.0
      %754 = vmatprep.subr.mxu0 0.0
      %755 = vmatpush1.msra.mxu0 0.0
      %756 = vmatprep.subr.mxu0 0.0
      %757 = vmatpush1.msra.mxu0 0.0
      %758 = vmatprep.subr.mxu0 0.0
      %759 = vmatpush1.msra.mxu0 0.0
      %760 = vmatprep.subr.mxu0 0.0
      %761 = vmatpush1.msra.mxu0 0.0
      %762 = vmatprep.subr.mxu0 0.0
      %763 = vmatpush1.msra.mxu0 0.0
      %764 = vmatprep.subr.mxu0 0.0
      %765 = vmatpush1.msra.mxu0 0.0
      %766 = vmatprep.subr.mxu0 0.0
      %767 = vmatpush1.msra.mxu0 0.0
      %768 = vmatprep.subr.mxu0 0.0
      %769 = vmatpush1.msra.mxu0 0.0
      %770 = vmatprep.subr.mxu0 0.0
      %771 = vmatpush1.msra.mxu0 0.0
      %772 = vmatprep.subr.mxu0 0.0
      %773 = vmatpush1.msra.mxu0 0.0
      %774 = vmatprep.subr.mxu0 0.0
      %775 = vmatpush1.msra.mxu0 0.0
      %776 = vmatprep.subr.mxu0 0.0
      %777 = vmatpush1.msra.mxu0 0.0
      %778 = vmatprep.subr.mxu0 0.0
      %779 = vmatpush1.msra.mxu0 0.0
      %780 = vmatprep.subr.mxu0 0.0
      %781 = vmatpush1.msra.mxu0 0.0
      %782 = vmatprep.subr.mxu0 0.0
      %783 = vmatpush1.msra.mxu0 0.0
      %784 = vmatprep.mubr.f32.mxu0 0.0
      %785 = vmatmul.mubr.f32.gmra.mrb[0].mxu0 %v718
      %v786 = vpop.f32.mrb[0].mxu0
      %v787 = vadd.f32 0.0, %v786
      %v788 = vpop.f32.mrb[0].mxu0
      %v789 = vadd.f32 0.0, %v788
      %790 = vdwg.mxu0
      %791 = vmatprep.subr.mxu0 0.0
      %792 = vmatpush1.msra.mxu0 %v711
      %793 = vmatprep.subr.mxu0 0.0
      %794 = vmatpush1.msra.mxu0 0.0
      %795 = vmatprep.subr.mxu0 0.0
      %796 = vmatpush1.msra.mxu0 0.0
      %797 = vmatprep.subr.mxu0 0.0
      %798 = vmatpush1.msra.mxu0 0.0
      %799 = vmatprep.subr.mxu0 0.0
      %800 = vmatpush1.msra.mxu0 0.0
      %801 = vmatprep.subr.mxu0 0.0
      %802 = vmatpush1.msra.mxu0 0.0
      %803 = vmatprep.subr.mxu0 0.0
      %804 = vmatpush1.msra.mxu0 0.0
      %805 = vmatprep.subr.mxu0 0.0
      %806 = vmatpush1.msra.mxu0 0.0
      %807 = vmatprep.subr.mxu0 0.0
      %808 = vmatpush1.msra.mxu0 0.0
      %809 = vmatprep.subr.mxu0 0.0
      %810 = vmatpush1.msra.mxu0 0.0
      %811 = vmatprep.subr.mxu0 0.0
      %812 = vmatpush1.msra.mxu0 0.0
      %813 = vmatprep.subr.mxu0 0.0
      %814 = vmatpush1.msra.mxu0 0.0
      %815 = vmatprep.subr.mxu0 0.0
      %816 = vmatpush1.msra.mxu0 0.0
      %817 = vmatprep.subr.mxu0 0.0
      %818 = vmatpush1.msra.mxu0 0.0
      %819 = vmatprep.subr.mxu0 0.0
      %820 = vmatpush1.msra.mxu0 0.0
      %821 = vmatprep.subr.mxu0 0.0
      %822 = vmatpush1.msra.mxu0 0.0
      %823 = vmatprep.subr.mxu0 0.0
      %824 = vmatpush1.msra.mxu0 0.0
      %825 = vmatprep.subr.mxu0 0.0
      %826 = vmatpush1.msra.mxu0 0.0
      %827 = vmatprep.subr.mxu0 0.0
      %828 = vmatpush1.msra.mxu0 0.0
      %829 = vmatprep.subr.mxu0 0.0
      %830 = vmatpush1.msra.mxu0 0.0
      %831 = vmatprep.subr.mxu0 0.0
      %832 = vmatpush1.msra.mxu0 0.0
      %833 = vmatprep.subr.mxu0 0.0
      %834 = vmatpush1.msra.mxu0 0.0
      %835 = vmatprep.subr.mxu0 0.0
      %836 = vmatpush1.msra.mxu0 0.0
      %837 = vmatprep.subr.mxu0 0.0
      %838 = vmatpush1.msra.mxu0 0.0
      %839 = vmatprep.subr.mxu0 0.0
      %840 = vmatpush1.msra.mxu0 0.0
      %841 = vmatprep.subr.mxu0 0.0
      %842 = vmatpush1.msra.mxu0 0.0
      %843 = vmatprep.subr.mxu0 0.0
      %844 = vmatpush1.msra.mxu0 0.0
      %845 = vmatprep.subr.mxu0 0.0
      %846 = vmatpush1.msra.mxu0 0.0
      %847 = vmatprep.subr.mxu0 0.0
      %848 = vmatpush1.msra.mxu0 0.0
      %849 = vmatprep.subr.mxu0 0.0
      %850 = vmatpush1.msra.mxu0 0.0
      %851 = vmatprep.subr.mxu0 0.0
      %852 = vmatpush1.msra.mxu0 0.0
      %853 = vmatprep.subr.mxu0 0.0
      %854 = vmatpush1.msra.mxu0 0.0
      %855 = vmatprep.mubr.f32.mxu0 0.0
      %856 = vmatmul.mubr.f32.gmra.mrb[0].mxu0 %v718
      %v857 = vpop.f32.mrb[0].mxu0
      %v858 = vadd.f32 0.0, %v857
      %v859 = vpop.f32.mrb[0].mxu0
      %860 = vdwg.mxu0
      %v861 = vadd.f32 %v630, %v787
      %v862 = vadd.f32 %v632, %v789
      %v863 = vadd.f32 %v701, %v858
      %864 = vrot.lane.b32.xlu0 %v398, 104
      %v865 = vpop.permute.xlu0 %864
      %866 = vrot.lane.b32.xlu0 %v395, 110
      %v867 = vpop.permute.xlu0 %866
      %868 = vrot.lane.b32.xlu0 %v396, 110
      %v869 = vpop.permute.xlu0 %868
      %870 = vrot.lane.b32.xlu0 %v397, 110
      %v871 = vpop.permute.xlu0 %870
      %vm872 = vcmask 900096
      %v873 = vsel %vm872, %v867, %v869
      %v874 = vsel %vm872, %v869, %v871
      %v878 = vsel %vm417, %v865, 0
      %880 = vmatprep.subr.mxu0 %v874
      %881 = vmatpush1.msra.mxu0 %v873
      %882 = vmatprep.subr.mxu0 0.0
      %883 = vmatpush1.msra.mxu0 0.0
      %884 = vmatprep.subr.mxu0 0.0
      %885 = vmatpush1.msra.mxu0 0.0
      %886 = vmatprep.subr.mxu0 0.0
      %887 = vmatpush1.msra.mxu0 0.0
      %888 = vmatprep.subr.mxu0 0.0
      %889 = vmatpush1.msra.mxu0 0.0
      %890 = vmatprep.subr.mxu0 0.0
      %891 = vmatpush1.msra.mxu0 0.0
      %892 = vmatprep.subr.mxu0 0.0
      %893 = vmatpush1.msra.mxu0 0.0
      %894 = vmatprep.subr.mxu0 0.0
      %895 = vmatpush1.msra.mxu0 0.0
      %896 = vmatprep.subr.mxu0 0.0
      %897 = vmatpush1.msra.mxu0 0.0
      %898 = vmatprep.subr.mxu0 0.0
      %899 = vmatpush1.msra.mxu0 0.0
      %900 = vmatprep.subr.mxu0 0.0
      %901 = vmatpush1.msra.mxu0 0.0
      %902 = vmatprep.subr.mxu0 0.0
      %903 = vmatpush1.msra.mxu0 0.0
      %904 = vmatprep.subr.mxu0 0.0
      %905 = vmatpush1.msra.mxu0 0.0
      %906 = vmatprep.subr.mxu0 0.0
      %907 = vmatpush1.msra.mxu0 0.0
      %908 = vmatprep.subr.mxu0 0.0
      %909 = vmatpush1.msra.mxu0 0.0
      %910 = vmatprep.subr.mxu0 0.0
      %911 = vmatpush1.msra.mxu0 0.0
      %912 = vmatprep.subr.mxu0 0.0
      %913 = vmatpush1.msra.mxu0 0.0
      %914 = vmatprep.subr.mxu0 0.0
      %915 = vmatpush1.msra.mxu0 0.0
      %916 = vmatprep.subr.mxu0 0.0
      %917 = vmatpush1.msra.mxu0 0.0
      %918 = vmatprep.subr.mxu0 0.0
      %919 = vmatpush1.msra.mxu0 0.0
      %920 = vmatprep.subr.mxu0 0.0
      %921 = vmatpush1.msra.mxu0 0.0
      %922 = vmatprep.subr.mxu0 0.0
      %923 = vmatpush1.msra.mxu0 0.0
      %924 = vmatprep.subr.mxu0 0.0
      %925 = vmatpush1.msra.mxu0 0.0
      %926 = vmatprep.subr.mxu0 0.0
      %927 = vmatpush1.msra.mxu0 0.0
      %928 = vmatprep.subr.mxu0 0.0
      %929 = vmatpush1.msra.mxu0 0.0
      %930 = vmatprep.subr.mxu0 0.0
      %931 = vmatpush1.msra.mxu0 0.0
      %932 = vmatprep.subr.mxu0 0.0
      %933 = vmatpush1.msra.mxu0 0.0
      %934 = vmatprep.subr.mxu0 0.0
      %935 = vmatpush1.msra.mxu0 0.0
      %936 = vmatprep.subr.mxu0 0.0
      %937 = vmatpush1.msra.mxu0 0.0
      %938 = vmatprep.subr.mxu0 0.0
      %939 = vmatpush1.msra.mxu0 0.0
      %940 = vmatprep.subr.mxu0 0.0
      %941 = vmatpush1.msra.mxu0 0.0
      %942 = vmatprep.subr.mxu0 0.0
      %943 = vmatpush1.msra.mxu0 0.0
      %944 = vmatprep.mubr.f32.mxu0 0.0
      %945 = vmatmul.mubr.f32.gmra.mrb[0].mxu0 %v878
      %v946 = vpop.f32.mrb[0].mxu0
      %v947 = vadd.f32 0.0, %v946
      %v948 = vpop.f32.mrb[0].mxu0
      %v949 = vadd.f32 0.0, %v948
      %950 = vdwg.mxu0
      %951 = vmatprep.subr.mxu0 0.0
      %952 = vmatpush1.msra.mxu0 %v871
      %953 = vmatprep.subr.mxu0 0.0
      %954 = vmatpush1.msra.mxu0 0.0
      %955 = vmatprep.subr.mxu0 0.0
      %956 = vmatpush1.msra.mxu0 0.0
      %957 = vmatprep.subr.mxu0 0.0
      %958 = vmatpush1.msra.mxu0 0.0
      %959 = vmatprep.subr.mxu0 0.0
      %960 = vmatpush1.msra.mxu0 0.0
      %961 = vmatprep.subr.mxu0 0.0
      %962 = vmatpush1.msra.mxu0 0.0
      %963 = vmatprep.subr.mxu0 0.0
      %964 = vmatpush1.msra.mxu0 0.0
      %965 = vmatprep.subr.mxu0 0.0
      %966 = vmatpush1.msra.mxu0 0.0
      %967 = vmatprep.subr.mxu0 0.0
      %968 = vmatpush1.msra.mxu0 0.0
      %969 = vmatprep.subr.mxu0 0.0
      %970 = vmatpush1.msra.mxu0 0.0
      %971 = vmatprep.subr.mxu0 0.0
      %972 = vmatpush1.msra.mxu0 0.0
      %973 = vmatprep.subr.mxu0 0.0
      %974 = vmatpush1.msra.mxu0 0.0
      %975 = vmatprep.subr.mxu0 0.0
      %976 = vmatpush1.msra.mxu0 0.0
      %977 = vmatprep.subr.mxu0 0.0
      %978 = vmatpush1.msra.mxu0 0.0
      %979 = vmatprep.subr.mxu0 0.0
      %980 = vmatpush1.msra.mxu0 0.0
      %981 = vmatprep.subr.mxu0 0.0
      %982 = vmatpush1.msra.mxu0 0.0
      %983 = vmatprep.subr.mxu0 0.0
      %984 = vmatpush1.msra.mxu0 0.0
      %985 = vmatprep.subr.mxu0 0.0
      %986 = vmatpush1.msra.mxu0 0.0
      %987 = vmatprep.subr.mxu0 0.0
      %988 = vmatpush1.msra.mxu0 0.0
      %989 = vmatprep.subr.mxu0 0.0
      %990 = vmatpush1.msra.mxu0 0.0
      %991 = vmatprep.subr.mxu0 0.0
      %992 = vmatpush1.msra.mxu0 0.0
      %993 = vmatprep.subr.mxu0 0.0
      %994 = vmatpush1.msra.mxu0 0.0
      %995 = vmatprep.subr.mxu0 0.0
      %996 = vmatpush1.msra.mxu0 0.0
      %997 = vmatprep.subr.mxu0 0.0
      %998 = vmatpush1.msra.mxu0 0.0
      %999 = vmatprep.subr.mxu0 0.0
      %1000 = vmatpush1.msra.mxu0 0.0
      %1001 = vmatprep.subr.mxu0 0.0
      %1002 = vmatpush1.msra.mxu0 0.0
      %1003 = vmatprep.subr.mxu0 0.0
      %1004 = vmatpush1.msra.mxu0 0.0
      %1005 = vmatprep.subr.mxu0 0.0
      %1006 = vmatpush1.msra.mxu0 0.0
      %1007 = vmatprep.subr.mxu0 0.0
      %1008 = vmatpush1.msra.mxu0 0.0
      %1009 = vmatprep.subr.mxu0 0.0
      %1010 = vmatpush1.msra.mxu0 0.0
      %1011 = vmatprep.subr.mxu0 0.0
      %1012 = vmatpush1.msra.mxu0 0.0
      %1013 = vmatprep.subr.mxu0 0.0
      %1014 = vmatpush1.msra.mxu0 0.0
      %1015 = vmatprep.mubr.f32.mxu0 0.0
      %1016 = vmatmul.mubr.f32.gmra.mrb[0].mxu0 %v878
      %v1017 = vpop.f32.mrb[0].mxu0
      %v1018 = vadd.f32 0.0, %v1017
      %v1019 = vpop.f32.mrb[0].mxu0
      %1020 = vdwg.mxu0
      %v1021 = vadd.f32 %v861, %v947
      %v1022 = vadd.f32 %v862, %v949
      %v1023 = vadd.f32 %v863, %v1018
      %1024 = vrot.lane.b32.xlu0 %v398, 96
      %v1025 = vpop.permute.xlu0 %1024
      %1026 = vrot.lane.b32.xlu0 %v395, 109
      %v1027 = vpop.permute.xlu0 %1026
      %1028 = vrot.lane.b32.xlu0 %v396, 109
      %v1029 = vpop.permute.xlu0 %1028
      %1030 = vrot.lane.b32.xlu0 %v397, 109
      %v1031 = vpop.permute.xlu0 %1030
      %vm1032 = vcmask 891904
      %v1033 = vsel %vm1032, %v1027, %v1029
      %v1034 = vsel %vm1032, %v1029, %v1031
      %v1038 = vsel %vm417, %v1025, 0
      %1040 = vmatprep.subr.mxu0 %v1034
      %1041 = vmatpush1.msra.mxu0 %v1033
      %1042 = vmatprep.subr.mxu0 0.0
      %1043 = vmatpush1.msra.mxu0 0.0
      %1044 = vmatprep.subr.mxu0 0.0
      %1045 = vmatpush1.msra.mxu0 0.0
      %1046 = vmatprep.subr.mxu0 0.0
      %1047 = vmatpush1.msra.mxu0 0.0
      %1048 = vmatprep.subr.mxu0 0.0
      %1049 = vmatpush1.msra.mxu0 0.0
      %1050 = vmatprep.subr.mxu0 0.0
      %1051 = vmatpush1.msra.mxu0 0.0
      %1052 = vmatprep.subr.mxu0 0.0
      %1053 = vmatpush1.msra.mxu0 0.0
      %1054 = vmatprep.subr.mxu0 0.0
      %1055 = vmatpush1.msra.mxu0 0.0
      %1056 = vmatprep.subr.mxu0 0.0
      %1057 = vmatpush1.msra.mxu0 0.0
      %1058 = vmatprep.subr.mxu0 0.0
      %1059 = vmatpush1.msra.mxu0 0.0
      %1060 = vmatprep.subr.mxu0 0.0
      %1061 = vmatpush1.msra.mxu0 0.0
      %1062 = vmatprep.subr.mxu0 0.0
      %1063 = vmatpush1.msra.mxu0 0.0
      %1064 = vmatprep.subr.mxu0 0.0
      %1065 = vmatpush1.msra.mxu0 0.0
      %1066 = vmatprep.subr.mxu0 0.0
      %1067 = vmatpush1.msra.mxu0 0.0
      %1068 = vmatprep.subr.mxu0 0.0
      %1069 = vmatpush1.msra.mxu0 0.0
      %1070 = vmatprep.subr.mxu0 0.0
      %1071 = vmatpush1.msra.mxu0 0.0
      %1072 = vmatprep.subr.mxu0 0.0
      %1073 = vmatpush1.msra.mxu0 0.0
      %1074 = vmatprep.subr.mxu0 0.0
      %1075 = vmatpush1.msra.mxu0 0.0
      %1076 = vmatprep.subr.mxu0 0.0
      %1077 = vmatpush1.msra.mxu0 0.0
      %1078 = vmatprep.subr.mxu0 0.0
      %1079 = vmatpush1.msra.mxu0 0.0
      %1080 = vmatprep.subr.mxu0 0.0
      %1081 = vmatpush1.msra.mxu0 0.0
      %1082 = vmatprep.subr.mxu0 0.0
      %1083 = vmatpush1.msra.mxu0 0.0
      %1084 = vmatprep.subr.mxu0 0.0
      %1085 = vmatpush1.msra.mxu0 0.0
      %1086 = vmatprep.subr.mxu0 0.0
      %1087 = vmatpush1.msra.mxu0 0.0
      %1088 = vmatprep.subr.mxu0 0.0
      %1089 = vmatpush1.msra.mxu0 0.0
      %1090 = vmatprep.subr.mxu0 0.0
      %1091 = vmatpush1.msra.mxu0 0.0
      %1092 = vmatprep.subr.mxu0 0.0
      %1093 = vmatpush1.msra.mxu0 0.0
      %1094 = vmatprep.subr.mxu0 0.0
      %1095 = vmatpush1.msra.mxu0 0.0
      %1096 = vmatprep.subr.mxu0 0.0
      %1097 = vmatpush1.msra.mxu0 0.0
      %1098 = vmatprep.subr.mxu0 0.0
      %1099 = vmatpush1.msra.mxu0 0.0
      %1100 = vmatprep.subr.mxu0 0.0
      %1101 = vmatpush1.msra.mxu0 0.0
      %1102 = vmatprep.subr.mxu0 0.0
      %1103 = vmatpush1.msra.mxu0 0.0
      %1104 = vmatprep.mubr.f32.mxu0 0.0
      %1105 = vmatmul.mubr.f32.gmra.mrb[0].mxu0 %v1038
      %v1106 = vpop.f32.mrb[0].mxu0
      %v1107 = vadd.f32 0.0, %v1106
      %v1108 = vpop.f32.mrb[0].mxu0
      %v1109 = vadd.f32 0.0, %v1108
      %1110 = vdwg.mxu0
      %1111 = vmatprep.subr.mxu0 0.0
      %1112 = vmatpush1.msra.mxu0 %v1031
      %1113 = vmatprep.subr.mxu0 0.0
      %1114 = vmatpush1.msra.mxu0 0.0
      %1115 = vmatprep.subr.mxu0 0.0
      %1116 = vmatpush1.msra.mxu0 0.0
      %1117 = vmatprep.subr.mxu0 0.0
      %1118 = vmatpush1.msra.mxu0 0.0
      %1119 = vmatprep.subr.mxu0 0.0
      %1120 = vmatpush1.msra.mxu0 0.0
      %1121 = vmatprep.subr.mxu0 0.0
      %1122 = vmatpush1.msra.mxu0 0.0
      %1123 = vmatprep.subr.mxu0 0.0
      %1124 = vmatpush1.msra.mxu0 0.0
      %1125 = vmatprep.subr.mxu0 0.0
      %1126 = vmatpush1.msra.mxu0 0.0
      %1127 = vmatprep.subr.mxu0 0.0
      %1128 = vmatpush1.msra.mxu0 0.0
      %1129 = vmatprep.subr.mxu0 0.0
      %1130 = vmatpush1.msra.mxu0 0.0
      %1131 = vmatprep.subr.mxu0 0.0
      %1132 = vmatpush1.msra.mxu0 0.0
      %1133 = vmatprep.subr.mxu0 0.0
      %1134 = vmatpush1.msra.mxu0 0.0
      %1135 = vmatprep.subr.mxu0 0.0
      %1136 = vmatpush1.msra.mxu0 0.0
      %1137 = vmatprep.subr.mxu0 0.0
      %1138 = vmatpush1.msra.mxu0 0.0
      %1139 = vmatprep.subr.mxu0 0.0
      %1140 = vmatpush1.msra.mxu0 0.0
      %1141 = vmatprep.subr.mxu0 0.0
      %1142 = vmatpush1.msra.mxu0 0.0
      %1143 = vmatprep.subr.mxu0 0.0
      %1144 = vmatpush1.msra.mxu0 0.0
      %1145 = vmatprep.subr.mxu0 0.0
      %1146 = vmatpush1.msra.mxu0 0.0
      %1147 = vmatprep.subr.mxu0 0.0
      %1148 = vmatpush1.msra.mxu0 0.0
      %1149 = vmatprep.subr.mxu0 0.0
      %1150 = vmatpush1.msra.mxu0 0.0
      %1151 = vmatprep.subr.mxu0 0.0
      %1152 = vmatpush1.msra.mxu0 0.0
      %1153 = vmatprep.subr.mxu0 0.0
      %1154 = vmatpush1.msra.mxu0 0.0
      %1155 = vmatprep.subr.mxu0 0.0
      %1156 = vmatpush1.msra.mxu0 0.0
      %1157 = vmatprep.subr.mxu0 0.0
      %1158 = vmatpush1.msra.mxu0 0.0
      %1159 = vmatprep.subr.mxu0 0.0
      %1160 = vmatpush1.msra.mxu0 0.0
      %1161 = vmatprep.subr.mxu0 0.0
      %1162 = vmatpush1.msra.mxu0 0.0
      %1163 = vmatprep.subr.mxu0 0.0
      %1164 = vmatpush1.msra.mxu0 0.0
      %1165 = vmatprep.subr.mxu0 0.0
      %1166 = vmatpush1.msra.mxu0 0.0
      %1167 = vmatprep.subr.mxu0 0.0
      %1168 = vmatpush1.msra.mxu0 0.0
      %1169 = vmatprep.subr.mxu0 0.0
      %1170 = vmatpush1.msra.mxu0 0.0
      %1171 = vmatprep.subr.mxu0 0.0
      %1172 = vmatpush1.msra.mxu0 0.0
      %1173 = vmatprep.subr.mxu0 0.0
      %1174 = vmatpush1.msra.mxu0 0.0
      %1175 = vmatprep.mubr.f32.mxu0 0.0
      %1176 = vmatmul.mubr.f32.gmra.mrb[0].mxu0 %v1038
      %v1177 = vpop.f32.mrb[0].mxu0
      %v1178 = vadd.f32 0.0, %v1177
      %v1179 = vpop.f32.mrb[0].mxu0
      %1180 = vdwg.mxu0
      %v1181 = vadd.f32 %v1021, %v1107
      %v1182 = vadd.f32 %v1022, %v1109
      %v1183 = vadd.f32 %v1023, %v1178
      %1184 = vrot.lane.b32.xlu0 %v398, 88
      %v1185 = vpop.permute.xlu0 %1184
      %1186 = vrot.lane.b32.xlu0 %v395, 108
      %v1187 = vpop.permute.xlu0 %1186
      %1188 = vrot.lane.b32.xlu0 %v396, 108
      %v1189 = vpop.permute.xlu0 %1188
      %1190 = vrot.lane.b32.xlu0 %v397, 108
      %v1191 = vpop.permute.xlu0 %1190
      %vm1192 = vcmask 883712
      %v1193 = vsel %vm1192, %v1187, %v1189
      %v1194 = vsel %vm1192, %v1189, %v1191
      %v1198 = vsel %vm417, %v1185, 0
      %1200 = vmatprep.subr.mxu0 %v1194
      %1201 = vmatpush1.msra.mxu0 %v1193
      %1202 = vmatprep.subr.mxu0 0.0
      %1203 = vmatpush1.msra.mxu0 0.0
      %1204 = vmatprep.subr.mxu0 0.0
      %1205 = vmatpush1.msra.mxu0 0.0
      %1206 = vmatprep.subr.mxu0 0.0
      %1207 = vmatpush1.msra.mxu0 0.0
      %1208 = vmatprep.subr.mxu0 0.0
      %1209 = vmatpush1.msra.mxu0 0.0
      %1210 = vmatprep.subr.mxu0 0.0
      %1211 = vmatpush1.msra.mxu0 0.0
      %1212 = vmatprep.subr.mxu0 0.0
      %1213 = vmatpush1.msra.mxu0 0.0
      %1214 = vmatprep.subr.mxu0 0.0
      %1215 = vmatpush1.msra.mxu0 0.0
      %1216 = vmatprep.subr.mxu0 0.0
      %1217 = vmatpush1.msra.mxu0 0.0
      %1218 = vmatprep.subr.mxu0 0.0
      %1219 = vmatpush1.msra.mxu0 0.0
      %1220 = vmatprep.subr.mxu0 0.0
      %1221 = vmatpush1.msra.mxu0 0.0
      %1222 = vmatprep.subr.mxu0 0.0
      %1223 = vmatpush1.msra.mxu0 0.0
      %1224 = vmatprep.subr.mxu0 0.0
      %1225 = vmatpush1.msra.mxu0 0.0
      %1226 = vmatprep.subr.mxu0 0.0
      %1227 = vmatpush1.msra.mxu0 0.0
      %1228 = vmatprep.subr.mxu0 0.0
      %1229 = vmatpush1.msra.mxu0 0.0
      %1230 = vmatprep.subr.mxu0 0.0
      %1231 = vmatpush1.msra.mxu0 0.0
      %1232 = vmatprep.subr.mxu0 0.0
      %1233 = vmatpush1.msra.mxu0 0.0
      %1234 = vmatprep.subr.mxu0 0.0
      %1235 = vmatpush1.msra.mxu0 0.0
      %1236 = vmatprep.subr.mxu0 0.0
      %1237 = vmatpush1.msra.mxu0 0.0
      %1238 = vmatprep.subr.mxu0 0.0
      %1239 = vmatpush1.msra.mxu0 0.0
      %1240 = vmatprep.subr.mxu0 0.0
      %1241 = vmatpush1.msra.mxu0 0.0
      %1242 = vmatprep.subr.mxu0 0.0
      %1243 = vmatpush1.msra.mxu0 0.0
      %1244 = vmatprep.subr.mxu0 0.0
      %1245 = vmatpush1.msra.mxu0 0.0
      %1246 = vmatprep.subr.mxu0 0.0
      %1247 = vmatpush1.msra.mxu0 0.0
      %1248 = vmatprep.subr.mxu0 0.0
      %1249 = vmatpush1.msra.mxu0 0.0
      %1250 = vmatprep.subr.mxu0 0.0
      %1251 = vmatpush1.msra.mxu0 0.0
      %1252 = vmatprep.subr.mxu0 0.0
      %1253 = vmatpush1.msra.mxu0 0.0
      %1254 = vmatprep.subr.mxu0 0.0
      %1255 = vmatpush1.msra.mxu0 0.0
      %1256 = vmatprep.subr.mxu0 0.0
      %1257 = vmatpush1.msra.mxu0 0.0
      %1258 = vmatprep.subr.mxu0 0.0
      %1259 = vmatpush1.msra.mxu0 0.0
      %1260 = vmatprep.subr.mxu0 0.0
      %1261 = vmatpush1.msra.mxu0 0.0
      %1262 = vmatprep.subr.mxu0 0.0
      %1263 = vmatpush1.msra.mxu0 0.0
      %1264 = vmatprep.mubr.f32.mxu0 0.0
      %1265 = vmatmul.mubr.f32.gmra.mrb[0].mxu0 %v1198
      %v1266 = vpop.f32.mrb[0].mxu0
      %v1267 = vadd.f32 0.0, %v1266
      %v1268 = vpop.f32.mrb[0].mxu0
      %v1269 = vadd.f32 0.0, %v1268
      %1270 = vdwg.mxu0
      %1271 = vmatprep.subr.mxu0 0.0
      %1272 = vmatpush1.msra.mxu0 %v1191
      %1273 = vmatprep.subr.mxu0 0.0
      %1274 = vmatpush1.msra.mxu0 0.0
      %1275 = vmatprep.subr.mxu0 0.0
      %1276 = vmatpush1.msra.mxu0 0.0
      %1277 = vmatprep.subr.mxu0 0.0
      %1278 = vmatpush1.msra.mxu0 0.0
      %1279 = vmatprep.subr.mxu0 0.0
      %1280 = vmatpush1.msra.mxu0 0.0
      %1281 = vmatprep.subr.mxu0 0.0
      %1282 = vmatpush1.msra.mxu0 0.0
      %1283 = vmatprep.subr.mxu0 0.0
      %1284 = vmatpush1.msra.mxu0 0.0
      %1285 = vmatprep.subr.mxu0 0.0
      %1286 = vmatpush1.msra.mxu0 0.0
      %1287 = vmatprep.subr.mxu0 0.0
      %1288 = vmatpush1.msra.mxu0 0.0
      %1289 = vmatprep.subr.mxu0 0.0
      %1290 = vmatpush1.msra.mxu0 0.0
      %1291 = vmatprep.subr.mxu0 0.0
      %1292 = vmatpush1.msra.mxu0 0.0
      %1293 = vmatprep.subr.mxu0 0.0
      %1294 = vmatpush1.msra.mxu0 0.0
      %1295 = vmatprep.subr.mxu0 0.0
      %1296 = vmatpush1.msra.mxu0 0.0
      %1297 = vmatprep.subr.mxu0 0.0
      %1298 = vmatpush1.msra.mxu0 0.0
      %1299 = vmatprep.subr.mxu0 0.0
      %1300 = vmatpush1.msra.mxu0 0.0
      %1301 = vmatprep.subr.mxu0 0.0
      %1302 = vmatpush1.msra.mxu0 0.0
      %1303 = vmatprep.subr.mxu0 0.0
      %1304 = vmatpush1.msra.mxu0 0.0
      %1305 = vmatprep.subr.mxu0 0.0
      %1306 = vmatpush1.msra.mxu0 0.0
      %1307 = vmatprep.subr.mxu0 0.0
      %1308 = vmatpush1.msra.mxu0 0.0
      %1309 = vmatprep.subr.mxu0 0.0
      %1310 = vmatpush1.msra.mxu0 0.0
      %1311 = vmatprep.subr.mxu0 0.0
      %1312 = vmatpush1.msra.mxu0 0.0
      %1313 = vmatprep.subr.mxu0 0.0
      %1314 = vmatpush1.msra.mxu0 0.0
      %1315 = vmatprep.subr.mxu0 0.0
      %1316 = vmatpush1.msra.mxu0 0.0
      %1317 = vmatprep.subr.mxu0 0.0
      %1318 = vmatpush1.msra.mxu0 0.0
      %1319 = vmatprep.subr.mxu0 0.0
      %1320 = vmatpush1.msra.mxu0 0.0
      %1321 = vmatprep.subr.mxu0 0.0
      %1322 = vmatpush1.msra.mxu0 0.0
      %1323 = vmatprep.subr.mxu0 0.0
      %1324 = vmatpush1.msra.mxu0 0.0
      %1325 = vmatprep.subr.mxu0 0.0
      %1326 = vmatpush1.msra.mxu0 0.0
      %1327 = vmatprep.subr.mxu0 0.0
      %1328 = vmatpush1.msra.mxu0 0.0
      %1329 = vmatprep.subr.mxu0 0.0
      %1330 = vmatpush1.msra.mxu0 0.0
      %1331 = vmatprep.subr.mxu0 0.0
      %1332 = vmatpush1.msra.mxu0 0.0
      %1333 = vmatprep.subr.mxu0 0.0
      %1334 = vmatpush1.msra.mxu0 0.0
      %1335 = vmatprep.mubr.f32.mxu0 0.0
      %1336 = vmatmul.mubr.f32.gmra.mrb[0].mxu0 %v1198
      %v1337 = vpop.f32.mrb[0].mxu0
      %v1338 = vadd.f32 0.0, %v1337
      %v1339 = vpop.f32.mrb[0].mxu0
      %1340 = vdwg.mxu0
      %v1341 = vadd.f32 %v1181, %v1267
      %v1342 = vadd.f32 %v1182, %v1269
      %v1343 = vadd.f32 %v1183, %v1338
      %1344 = vrot.lane.b32.xlu0 %v398, 80
      %v1345 = vpop.permute.xlu0 %1344
      %1346 = vrot.lane.b32.xlu0 %v395, 92
      %v1347 = vpop.permute.xlu0 %1346
      %1348 = vrot.lane.b32.xlu0 %v396, 92
      %v1349 = vpop.permute.xlu0 %1348
      %1350 = vrot.lane.b32.xlu0 %v397, 92
      %v1351 = vpop.permute.xlu0 %1350
      %vm1352 = vcmask 752640
      %v1353 = vsel %vm1352, %v1347, %v1349
      %v1354 = vsel %vm1352, %v1349, %v1351
      %v1358 = vsel %vm417, %v1345, 0
      %1360 = vmatprep.subr.mxu0 %v1354
      %1361 = vmatpush1.msra.mxu0 %v1353
      %1362 = vmatprep.subr.mxu0 0.0
      %1363 = vmatpush1.msra.mxu0 0.0
      %1364 = vmatprep.subr.mxu0 0.0
      %1365 = vmatpush1.msra.mxu0 0.0
      %1366 = vmatprep.subr.mxu0 0.0
      %1367 = vmatpush1.msra.mxu0 0.0
      %1368 = vmatprep.subr.mxu0 0.0
      %1369 = vmatpush1.msra.mxu0 0.0
      %1370 = vmatprep.subr.mxu0 0.0
      %1371 = vmatpush1.msra.mxu0 0.0
      %1372 = vmatprep.subr.mxu0 0.0
      %1373 = vmatpush1.msra.mxu0 0.0
      %1374 = vmatprep.subr.mxu0 0.0
      %1375 = vmatpush1.msra.mxu0 0.0
      %1376 = vmatprep.subr.mxu0 0.0
      %1377 = vmatpush1.msra.mxu0 0.0
      %1378 = vmatprep.subr.mxu0 0.0
      %1379 = vmatpush1.msra.mxu0 0.0
      %1380 = vmatprep.subr.mxu0 0.0
      %1381 = vmatpush1.msra.mxu0 0.0
      %1382 = vmatprep.subr.mxu0 0.0
      %1383 = vmatpush1.msra.mxu0 0.0
      %1384 = vmatprep.subr.mxu0 0.0
      %1385 = vmatpush1.msra.mxu0 0.0
      %1386 = vmatprep.subr.mxu0 0.0
      %1387 = vmatpush1.msra.mxu0 0.0
      %1388 = vmatprep.subr.mxu0 0.0
      %1389 = vmatpush1.msra.mxu0 0.0
      %1390 = vmatprep.subr.mxu0 0.0
      %1391 = vmatpush1.msra.mxu0 0.0
      %1392 = vmatprep.subr.mxu0 0.0
      %1393 = vmatpush1.msra.mxu0 0.0
      %1394 = vmatprep.subr.mxu0 0.0
      %1395 = vmatpush1.msra.mxu0 0.0
      %1396 = vmatprep.subr.mxu0 0.0
      %1397 = vmatpush1.msra.mxu0 0.0
      %1398 = vmatprep.subr.mxu0 0.0
      %1399 = vmatpush1.msra.mxu0 0.0
      %1400 = vmatprep.subr.mxu0 0.0
      %1401 = vmatpush1.msra.mxu0 0.0
      %1402 = vmatprep.subr.mxu0 0.0
      %1403 = vmatpush1.msra.mxu0 0.0
      %1404 = vmatprep.subr.mxu0 0.0
      %1405 = vmatpush1.msra.mxu0 0.0
      %1406 = vmatprep.subr.mxu0 0.0
      %1407 = vmatpush1.msra.mxu0 0.0
      %1408 = vmatprep.subr.mxu0 0.0
      %1409 = vmatpush1.msra.mxu0 0.0
      %1410 = vmatprep.subr.mxu0 0.0
      %1411 = vmatpush1.msra.mxu0 0.0
      %1412 = vmatprep.subr.mxu0 0.0
      %1413 = vmatpush1.msra.mxu0 0.0
      %1414 = vmatprep.subr.mxu0 0.0
      %1415 = vmatpush1.msra.mxu0 0.0
      %1416 = vmatprep.subr.mxu0 0.0
      %1417 = vmatpush1.msra.mxu0 0.0
      %1418 = vmatprep.subr.mxu0 0.0
      %1419 = vmatpush1.msra.mxu0 0.0
      %1420 = vmatprep.subr.mxu0 0.0
      %1421 = vmatpush1.msra.mxu0 0.0
      %1422 = vmatprep.subr.mxu0 0.0
      %1423 = vmatpush1.msra.mxu0 0.0
      %1424 = vmatprep.mubr.f32.mxu0 0.0
      %1425 = vmatmul.mubr.f32.gmra.mrb[0].mxu0 %v1358
      %v1426 = vpop.f32.mrb[0].mxu0
      %v1427 = vadd.f32 0.0, %v1426
      %v1428 = vpop.f32.mrb[0].mxu0
      %v1429 = vadd.f32 0.0, %v1428
      %1430 = vdwg.mxu0
      %1431 = vmatprep.subr.mxu0 0.0
      %1432 = vmatpush1.msra.mxu0 %v1351
      %1433 = vmatprep.subr.mxu0 0.0
      %1434 = vmatpush1.msra.mxu0 0.0
      %1435 = vmatprep.subr.mxu0 0.0
      %1436 = vmatpush1.msra.mxu0 0.0
      %1437 = vmatprep.subr.mxu0 0.0
      %1438 = vmatpush1.msra.mxu0 0.0
      %1439 = vmatprep.subr.mxu0 0.0
      %1440 = vmatpush1.msra.mxu0 0.0
      %1441 = vmatprep.subr.mxu0 0.0
      %1442 = vmatpush1.msra.mxu0 0.0
      %1443 = vmatprep.subr.mxu0 0.0
      %1444 = vmatpush1.msra.mxu0 0.0
      %1445 = vmatprep.subr.mxu0 0.0
      %1446 = vmatpush1.msra.mxu0 0.0
      %1447 = vmatprep.subr.mxu0 0.0
      %1448 = vmatpush1.msra.mxu0 0.0
      %1449 = vmatprep.subr.mxu0 0.0
      %1450 = vmatpush1.msra.mxu0 0.0
      %1451 = vmatprep.subr.mxu0 0.0
      %1452 = vmatpush1.msra.mxu0 0.0
      %1453 = vmatprep.subr.mxu0 0.0
      %1454 = vmatpush1.msra.mxu0 0.0
      %1455 = vmatprep.subr.mxu0 0.0
      %1456 = vmatpush1.msra.mxu0 0.0
      %1457 = vmatprep.subr.mxu0 0.0
      %1458 = vmatpush1.msra.mxu0 0.0
      %1459 = vmatprep.subr.mxu0 0.0
      %1460 = vmatpush1.msra.mxu0 0.0
      %1461 = vmatprep.subr.mxu0 0.0
      %1462 = vmatpush1.msra.mxu0 0.0
      %1463 = vmatprep.subr.mxu0 0.0
      %1464 = vmatpush1.msra.mxu0 0.0
      %1465 = vmatprep.subr.mxu0 0.0
      %1466 = vmatpush1.msra.mxu0 0.0
      %1467 = vmatprep.subr.mxu0 0.0
      %1468 = vmatpush1.msra.mxu0 0.0
      %1469 = vmatprep.subr.mxu0 0.0
      %1470 = vmatpush1.msra.mxu0 0.0
      %1471 = vmatprep.subr.mxu0 0.0
      %1472 = vmatpush1.msra.mxu0 0.0
      %1473 = vmatprep.subr.mxu0 0.0
      %1474 = vmatpush1.msra.mxu0 0.0
      %1475 = vmatprep.subr.mxu0 0.0
      %1476 = vmatpush1.msra.mxu0 0.0
      %1477 = vmatprep.subr.mxu0 0.0
      %1478 = vmatpush1.msra.mxu0 0.0
      %1479 = vmatprep.subr.mxu0 0.0
      %1480 = vmatpush1.msra.mxu0 0.0
      %1481 = vmatprep.subr.mxu0 0.0
      %1482 = vmatpush1.msra.mxu0 0.0
      %1483 = vmatprep.subr.mxu0 0.0
      %1484 = vmatpush1.msra.mxu0 0.0
      %1485 = vmatprep.subr.mxu0 0.0
      %1486 = vmatpush1.msra.mxu0 0.0
      %1487 = vmatprep.subr.mxu0 0.0
      %1488 = vmatpush1.msra.mxu0 0.0
      %1489 = vmatprep.subr.mxu0 0.0
      %1490 = vmatpush1.msra.mxu0 0.0
      %1491 = vmatprep.subr.mxu0 0.0
      %1492 = vmatpush1.msra.mxu0 0.0
      %1493 = vmatprep.subr.mxu0 0.0
      %1494 = vmatpush1.msra.mxu0 0.0
      %1495 = vmatprep.mubr.f32.mxu0 0.0
      %1496 = vmatmul.mubr.f32.gmra.mrb[0].mxu0 %v1358
      %v1497 = vpop.f32.mrb[0].mxu0
      %v1498 = vadd.f32 0.0, %v1497
      %v1499 = vpop.f32.mrb[0].mxu0
      %1500 = vdwg.mxu0
      %v1501 = vadd.f32 %v1341, %v1427
      %v1502 = vadd.f32 %v1342, %v1429
      %v1503 = vadd.f32 %v1343, %v1498
      %1504 = vrot.lane.b32.xlu0 %v398, 72
      %v1505 = vpop.permute.xlu0 %1504
      %1506 = vrot.lane.b32.xlu0 %v395, 91
      %v1507 = vpop.permute.xlu0 %1506
      %1508 = vrot.lane.b32.xlu0 %v396, 91
      %v1509 = vpop.permute.xlu0 %1508
      %1510 = vrot.lane.b32.xlu0 %v397, 91
      %v1511 = vpop.permute.xlu0 %1510
      %vm1512 = vcmask 744448
      %v1513 = vsel %vm1512, %v1507, %v1509
      %v1514 = vsel %vm1512, %v1509, %v1511
      %v1518 = vsel %vm417, %v1505, 0
      %1520 = vmatprep.subr.mxu0 %v1514
      %1521 = vmatpush1.msra.mxu0 %v1513
      %1522 = vmatprep.subr.mxu0 0.0
      %1523 = vmatpush1.msra.mxu0 0.0
      %1524 = vmatprep.subr.mxu0 0.0
      %1525 = vmatpush1.msra.mxu0 0.0
      %1526 = vmatprep.subr.mxu0 0.0
      %1527 = vmatpush1.msra.mxu0 0.0
      %1528 = vmatprep.subr.mxu0 0.0
      %1529 = vmatpush1.msra.mxu0 0.0
      %1530 = vmatprep.subr.mxu0 0.0
      %1531 = vmatpush1.msra.mxu0 0.0
      %1532 = vmatprep.subr.mxu0 0.0
      %1533 = vmatpush1.msra.mxu0 0.0
      %1534 = vmatprep.subr.mxu0 0.0
      %1535 = vmatpush1.msra.mxu0 0.0
      %1536 = vmatprep.subr.mxu0 0.0
      %1537 = vmatpush1.msra.mxu0 0.0
      %1538 = vmatprep.subr.mxu0 0.0
      %1539 = vmatpush1.msra.mxu0 0.0
      %1540 = vmatprep.subr.mxu0 0.0
      %1541 = vmatpush1.msra.mxu0 0.0
      %1542 = vmatprep.subr.mxu0 0.0
      %1543 = vmatpush1.msra.mxu0 0.0
      %1544 = vmatprep.subr.mxu0 0.0
      %1545 = vmatpush1.msra.mxu0 0.0
      %1546 = vmatprep.subr.mxu0 0.0
      %1547 = vmatpush1.msra.mxu0 0.0
      %1548 = vmatprep.subr.mxu0 0.0
      %1549 = vmatpush1.msra.mxu0 0.0
      %1550 = vmatprep.subr.mxu0 0.0
      %1551 = vmatpush1.msra.mxu0 0.0
      %1552 = vmatprep.subr.mxu0 0.0
      %1553 = vmatpush1.msra.mxu0 0.0
      %1554 = vmatprep.subr.mxu0 0.0
      %1555 = vmatpush1.msra.mxu0 0.0
      %1556 = vmatprep.subr.mxu0 0.0
      %1557 = vmatpush1.msra.mxu0 0.0
      %1558 = vmatprep.subr.mxu0 0.0
      %1559 = vmatpush1.msra.mxu0 0.0
      %1560 = vmatprep.subr.mxu0 0.0
      %1561 = vmatpush1.msra.mxu0 0.0
      %1562 = vmatprep.subr.mxu0 0.0
      %1563 = vmatpush1.msra.mxu0 0.0
      %1564 = vmatprep.subr.mxu0 0.0
      %1565 = vmatpush1.msra.mxu0 0.0
      %1566 = vmatprep.subr.mxu0 0.0
      %1567 = vmatpush1.msra.mxu0 0.0
      %1568 = vmatprep.subr.mxu0 0.0
      %1569 = vmatpush1.msra.mxu0 0.0
      %1570 = vmatprep.subr.mxu0 0.0
      %1571 = vmatpush1.msra.mxu0 0.0
      %1572 = vmatprep.subr.mxu0 0.0
      %1573 = vmatpush1.msra.mxu0 0.0
      %1574 = vmatprep.subr.mxu0 0.0
      %1575 = vmatpush1.msra.mxu0 0.0
      %1576 = vmatprep.subr.mxu0 0.0
      %1577 = vmatpush1.msra.mxu0 0.0
      %1578 = vmatprep.subr.mxu0 0.0
      %1579 = vmatpush1.msra.mxu0 0.0
      %1580 = vmatprep.subr.mxu0 0.0
      %1581 = vmatpush1.msra.mxu0 0.0
      %1582 = vmatprep.subr.mxu0 0.0
      %1583 = vmatpush1.msra.mxu0 0.0
      %1584 = vmatprep.mubr.f32.mxu0 0.0
      %1585 = vmatmul.mubr.f32.gmra.mrb[0].mxu0 %v1518
      %v1586 = vpop.f32.mrb[0].mxu0
      %v1587 = vadd.f32 0.0, %v1586
      %v1588 = vpop.f32.mrb[0].mxu0
      %v1589 = vadd.f32 0.0, %v1588
      %1590 = vdwg.mxu0
      %1591 = vmatprep.subr.mxu0 0.0
      %1592 = vmatpush1.msra.mxu0 %v1511
      %1593 = vmatprep.subr.mxu0 0.0
      %1594 = vmatpush1.msra.mxu0 0.0
      %1595 = vmatprep.subr.mxu0 0.0
      %1596 = vmatpush1.msra.mxu0 0.0
      %1597 = vmatprep.subr.mxu0 0.0
      %1598 = vmatpush1.msra.mxu0 0.0
      %1599 = vmatprep.subr.mxu0 0.0
      %1600 = vmatpush1.msra.mxu0 0.0
      %1601 = vmatprep.subr.mxu0 0.0
      %1602 = vmatpush1.msra.mxu0 0.0
      %1603 = vmatprep.subr.mxu0 0.0
      %1604 = vmatpush1.msra.mxu0 0.0
      %1605 = vmatprep.subr.mxu0 0.0
      %1606 = vmatpush1.msra.mxu0 0.0
      %1607 = vmatprep.subr.mxu0 0.0
      %1608 = vmatpush1.msra.mxu0 0.0
      %1609 = vmatprep.subr.mxu0 0.0
      %1610 = vmatpush1.msra.mxu0 0.0
      %1611 = vmatprep.subr.mxu0 0.0
      %1612 = vmatpush1.msra.mxu0 0.0
      %1613 = vmatprep.subr.mxu0 0.0
      %1614 = vmatpush1.msra.mxu0 0.0
      %1615 = vmatprep.subr.mxu0 0.0
      %1616 = vmatpush1.msra.mxu0 0.0
      %1617 = vmatprep.subr.mxu0 0.0
      %1618 = vmatpush1.msra.mxu0 0.0
      %1619 = vmatprep.subr.mxu0 0.0
      %1620 = vmatpush1.msra.mxu0 0.0
      %1621 = vmatprep.subr.mxu0 0.0
      %1622 = vmatpush1.msra.mxu0 0.0
      %1623 = vmatprep.subr.mxu0 0.0
      %1624 = vmatpush1.msra.mxu0 0.0
      %1625 = vmatprep.subr.mxu0 0.0
      %1626 = vmatpush1.msra.mxu0 0.0
      %1627 = vmatprep.subr.mxu0 0.0
      %1628 = vmatpush1.msra.mxu0 0.0
      %1629 = vmatprep.subr.mxu0 0.0
      %1630 = vmatpush1.msra.mxu0 0.0
      %1631 = vmatprep.subr.mxu0 0.0
      %1632 = vmatpush1.msra.mxu0 0.0
      %1633 = vmatprep.subr.mxu0 0.0
      %1634 = vmatpush1.msra.mxu0 0.0
      %1635 = vmatprep.subr.mxu0 0.0
      %1636 = vmatpush1.msra.mxu0 0.0
      %1637 = vmatprep.subr.mxu0 0.0
      %1638 = vmatpush1.msra.mxu0 0.0
      %1639 = vmatprep.subr.mxu0 0.0
      %1640 = vmatpush1.msra.mxu0 0.0
      %1641 = vmatprep.subr.mxu0 0.0
      %1642 = vmatpush1.msra.mxu0 0.0
      %1643 = vmatprep.subr.mxu0 0.0
      %1644 = vmatpush1.msra.mxu0 0.0
      %1645 = vmatprep.subr.mxu0 0.0
      %1646 = vmatpush1.msra.mxu0 0.0
      %1647 = vmatprep.subr.mxu0 0.0
      %1648 = vmatpush1.msra.mxu0 0.0
      %1649 = vmatprep.subr.mxu0 0.0
      %1650 = vmatpush1.msra.mxu0 0.0
      %1651 = vmatprep.subr.mxu0 0.0
      %1652 = vmatpush1.msra.mxu0 0.0
      %1653 = vmatprep.subr.mxu0 0.0
      %1654 = vmatpush1.msra.mxu0 0.0
      %1655 = vmatprep.mubr.f32.mxu0 0.0
      %1656 = vmatmul.mubr.f32.gmra.mrb[0].mxu0 %v1518
      %v1657 = vpop.f32.mrb[0].mxu0
      %v1658 = vadd.f32 0.0, %v1657
      %v1659 = vpop.f32.mrb[0].mxu0
      %1660 = vdwg.mxu0
      %v1661 = vadd.f32 %v1501, %v1587
      %v1662 = vadd.f32 %v1502, %v1589
      %v1663 = vadd.f32 %v1503, %v1658
      %1664 = vrot.lane.b32.xlu0 %v398, 64
      %v1665 = vpop.permute.xlu0 %1664
      %1666 = vrot.lane.b32.xlu0 %v395, 90
      %v1667 = vpop.permute.xlu0 %1666
      %1668 = vrot.lane.b32.xlu0 %v396, 90
      %v1669 = vpop.permute.xlu0 %1668
      %1670 = vrot.lane.b32.xlu0 %v397, 90
      %v1671 = vpop.permute.xlu0 %1670
      %vm1672 = vcmask 736256
      %v1673 = vsel %vm1672, %v1667, %v1669
      %v1674 = vsel %vm1672, %v1669, %v1671
      %v1678 = vsel %vm417, %v1665, 0
      %1680 = vmatprep.subr.mxu0 %v1674
      %1681 = vmatpush1.msra.mxu0 %v1673
      %1682 = vmatprep.subr.mxu0 0.0
      %1683 = vmatpush1.msra.mxu0 0.0
      %1684 = vmatprep.subr.mxu0 0.0
      %1685 = vmatpush1.msra.mxu0 0.0
      %1686 = vmatprep.subr.mxu0 0.0
      %1687 = vmatpush1.msra.mxu0 0.0
      %1688 = vmatprep.subr.mxu0 0.0
      %1689 = vmatpush1.msra.mxu0 0.0
      %1690 = vmatprep.subr.mxu0 0.0
      %1691 = vmatpush1.msra.mxu0 0.0
      %1692 = vmatprep.subr.mxu0 0.0
      %1693 = vmatpush1.msra.mxu0 0.0
      %1694 = vmatprep.subr.mxu0 0.0
      %1695 = vmatpush1.msra.mxu0 0.0
      %1696 = vmatprep.subr.mxu0 0.0
      %1697 = vmatpush1.msra.mxu0 0.0
      %1698 = vmatprep.subr.mxu0 0.0
      %1699 = vmatpush1.msra.mxu0 0.0
      %1700 = vmatprep.subr.mxu0 0.0
      %1701 = vmatpush1.msra.mxu0 0.0
      %1702 = vmatprep.subr.mxu0 0.0
      %1703 = vmatpush1.msra.mxu0 0.0
      %1704 = vmatprep.subr.mxu0 0.0
      %1705 = vmatpush1.msra.mxu0 0.0
      %1706 = vmatprep.subr.mxu0 0.0
      %1707 = vmatpush1.msra.mxu0 0.0
      %1708 = vmatprep.subr.mxu0 0.0
      %1709 = vmatpush1.msra.mxu0 0.0
      %1710 = vmatprep.subr.mxu0 0.0
      %1711 = vmatpush1.msra.mxu0 0.0
      %1712 = vmatprep.subr.mxu0 0.0
      %1713 = vmatpush1.msra.mxu0 0.0
      %1714 = vmatprep.subr.mxu0 0.0
      %1715 = vmatpush1.msra.mxu0 0.0
      %1716 = vmatprep.subr.mxu0 0.0
      %1717 = vmatpush1.msra.mxu0 0.0
      %1718 = vmatprep.subr.mxu0 0.0
      %1719 = vmatpush1.msra.mxu0 0.0
      %1720 = vmatprep.subr.mxu0 0.0
      %1721 = vmatpush1.msra.mxu0 0.0
      %1722 = vmatprep.subr.mxu0 0.0
      %1723 = vmatpush1.msra.mxu0 0.0
      %1724 = vmatprep.subr.mxu0 0.0
      %1725 = vmatpush1.msra.mxu0 0.0
      %1726 = vmatprep.subr.mxu0 0.0
      %1727 = vmatpush1.msra.mxu0 0.0
      %1728 = vmatprep.subr.mxu0 0.0
      %1729 = vmatpush1.msra.mxu0 0.0
      %1730 = vmatprep.subr.mxu0 0.0
      %1731 = vmatpush1.msra.mxu0 0.0
      %1732 = vmatprep.subr.mxu0 0.0
      %1733 = vmatpush1.msra.mxu0 0.0
      %1734 = vmatprep.subr.mxu0 0.0
      %1735 = vmatpush1.msra.mxu0 0.0
      %1736 = vmatprep.subr.mxu0 0.0
      %1737 = vmatpush1.msra.mxu0 0.0
      %1738 = vmatprep.subr.mxu0 0.0
      %1739 = vmatpush1.msra.mxu0 0.0
      %1740 = vmatprep.subr.mxu0 0.0
      %1741 = vmatpush1.msra.mxu0 0.0
      %1742 = vmatprep.subr.mxu0 0.0
      %1743 = vmatpush1.msra.mxu0 0.0
      %1744 = vmatprep.mubr.f32.mxu0 0.0
      %1745 = vmatmul.mubr.f32.gmra.mrb[0].mxu0 %v1678
      %v1746 = vpop.f32.mrb[0].mxu0
      %v1747 = vadd.f32 0.0, %v1746
      %v1748 = vpop.f32.mrb[0].mxu0
      %v1749 = vadd.f32 0.0, %v1748
      %1750 = vdwg.mxu0
      %1751 = vmatprep.subr.mxu0 0.0
      %1752 = vmatpush1.msra.mxu0 %v1671
      %1753 = vmatprep.subr.mxu0 0.0
      %1754 = vmatpush1.msra.mxu0 0.0
      %1755 = vmatprep.subr.mxu0 0.0
      %1756 = vmatpush1.msra.mxu0 0.0
      %1757 = vmatprep.subr.mxu0 0.0
      %1758 = vmatpush1.msra.mxu0 0.0
      %1759 = vmatprep.subr.mxu0 0.0
      %1760 = vmatpush1.msra.mxu0 0.0
      %1761 = vmatprep.subr.mxu0 0.0
      %1762 = vmatpush1.msra.mxu0 0.0
      %1763 = vmatprep.subr.mxu0 0.0
      %1764 = vmatpush1.msra.mxu0 0.0
      %1765 = vmatprep.subr.mxu0 0.0
      %1766 = vmatpush1.msra.mxu0 0.0
      %1767 = vmatprep.subr.mxu0 0.0
      %1768 = vmatpush1.msra.mxu0 0.0
      %1769 = vmatprep.subr.mxu0 0.0
      %1770 = vmatpush1.msra.mxu0 0.0
      %1771 = vmatprep.subr.mxu0 0.0
      %1772 = vmatpush1.msra.mxu0 0.0
      %1773 = vmatprep.subr.mxu0 0.0
      %1774 = vmatpush1.msra.mxu0 0.0
      %1775 = vmatprep.subr.mxu0 0.0
      %1776 = vmatpush1.msra.mxu0 0.0
      %1777 = vmatprep.subr.mxu0 0.0
      %1778 = vmatpush1.msra.mxu0 0.0
      %1779 = vmatprep.subr.mxu0 0.0
      %1780 = vmatpush1.msra.mxu0 0.0
      %1781 = vmatprep.subr.mxu0 0.0
      %1782 = vmatpush1.msra.mxu0 0.0
      %1783 = vmatprep.subr.mxu0 0.0
      %1784 = vmatpush1.msra.mxu0 0.0
      %1785 = vmatprep.subr.mxu0 0.0
      %1786 = vmatpush1.msra.mxu0 0.0
      %1787 = vmatprep.subr.mxu0 0.0
      %1788 = vmatpush1.msra.mxu0 0.0
      %1789 = vmatprep.subr.mxu0 0.0
      %1790 = vmatpush1.msra.mxu0 0.0
      %1791 = vmatprep.subr.mxu0 0.0
      %1792 = vmatpush1.msra.mxu0 0.0
      %1793 = vmatprep.subr.mxu0 0.0
      %1794 = vmatpush1.msra.mxu0 0.0
      %1795 = vmatprep.subr.mxu0 0.0
      %1796 = vmatpush1.msra.mxu0 0.0
      %1797 = vmatprep.subr.mxu0 0.0
      %1798 = vmatpush1.msra.mxu0 0.0
      %1799 = vmatprep.subr.mxu0 0.0
      %1800 = vmatpush1.msra.mxu0 0.0
      %1801 = vmatprep.subr.mxu0 0.0
      %1802 = vmatpush1.msra.mxu0 0.0
      %1803 = vmatprep.subr.mxu0 0.0
      %1804 = vmatpush1.msra.mxu0 0.0
      %1805 = vmatprep.subr.mxu0 0.0
      %1806 = vmatpush1.msra.mxu0 0.0
      %1807 = vmatprep.subr.mxu0 0.0
      %1808 = vmatpush1.msra.mxu0 0.0
      %1809 = vmatprep.subr.mxu0 0.0
      %1810 = vmatpush1.msra.mxu0 0.0
      %1811 = vmatprep.subr.mxu0 0.0
      %1812 = vmatpush1.msra.mxu0 0.0
      %1813 = vmatprep.subr.mxu0 0.0
      %1814 = vmatpush1.msra.mxu0 0.0
      %1815 = vmatprep.mubr.f32.mxu0 0.0
      %1816 = vmatmul.mubr.f32.gmra.mrb[0].mxu0 %v1678
      %v1817 = vpop.f32.mrb[0].mxu0
      %v1818 = vadd.f32 0.0, %v1817
      %v1819 = vpop.f32.mrb[0].mxu0
      %1820 = vdwg.mxu0
      %v1821 = vadd.f32 %v1661, %v1747
      %v1822 = vadd.f32 %v1662, %v1749
      %v1823 = vadd.f32 %v1663, %v1818
      %v1824 = vld [vmem:[%s6] sm:$0xff]
      %1826 = vset.pattern.permute.xlu0 0
      %1827 = vperm.xlu0 %1826, %v1824
      %v1828 = vpop.permute.xlu0 %1827
      %v1830 = vadd.f32 %v1821, %v1828
      %v1831 = vadd.f32 %v1822, %v1828
      %v1832 = vadd.f32 %v1823, %v1828
      %v1833 = vld [vmem:[%s4] sm:$0x7]
      %v1835 = vlaneseq
      %v1836 = vshrl.u32 %v1835, 7
      %v1837 = vsub.s32 0, %v1836
      %v1838 = vrot.slane %v1833, %v1837
      %v1839 = vlaneseq
      %v1840 = vshrl.u32 %v1839, 7
      %v1841 = vsub.s32 1, %v1840
      %v1842 = vrot.slane %v1833, %v1841
      %v1843 = vlaneseq
      %v1844 = vshrl.u32 %v1843, 7
      %v1845 = vsub.s32 2, %v1844
      %v1846 = vrot.slane %v1833, %v1845
      %v1850 = vmul.f32 %v1830, %v1838
      %v1851 = vmul.f32 %v1831, %v1842
      %v1852 = vmul.f32 %v1832, %v1846
      %1853 = vst [vmem:[%s345] sm:$0xff] %v1850
      %1854 = vst [vmem:[%s345 + $0x8] sm:$0xff] %v1851
      %vm1855 = vcmask 261120
      %1856 = vst.msk [vmem:[%s345 + $0x10] sm:$0xff] %vm1855, %v1852
      %v1857 = vadd.f32 %v1850, %v1851
      %v1858 = vsel %vm1855, %v1852, 0.0
      %v1859 = vadd.f32 %v1857, %v1858
      %1860 = vadd.xlane.f32.xlu0 %v1859
      %v1861 = vpop.xlane.xlu0 %1860
      %v1862 = vmul.f32 %v1861, 0.00390625
      %v1863 = vsub.f32 %v1830, %v1862
      %v1864 = vsub.f32 %v1831, %v1862
      %v1865 = vsub.f32 %v1832, %v1862
      %v1866 = vmul.f32 %v1863, %v1838
      %v1867 = vmul.f32 %v1864, %v1842
      %v1868 = vmul.f32 %v1865, %v1846
      %vm1869 = vcmask 7168
      %1870 = vst.msk [vmem:[%s349] sm:$0xff] %vm1869, %v1862
      %v1871 = vmul.f32 %v1866, %v1866
      %v1872 = vmul.f32 %v1867, %v1867
      %v1873 = vmul.f32 %v1868, %v1868
      %v1874 = vadd.f32 %v1871, %v1872
      %v1875 = vsel %vm1855, %v1873, 0.0
      %v1876 = vadd.f32 %v1874, %v1875
      %1877 = vadd.xlane.f32.xlu0 %v1876
      %v1878 = vpop.xlane.xlu0 %1877
      %1879 = vst.msk [vmem:[%s353] sm:$0xff] %vm1869, %v1878
      %p1880 = scmp.lt.s32.totalorder %s21, 1
      %s1881 = scalar_select %p1880, %s21, 1
      %s1882 = smul.addr %s1881, 3
      %s1883 = smul.addr %s1882, 8
      %s1884 = scalar_lea.vmem %s7, %s1883
      %p1885 = scmp.lt.s32.totalorder %s21, 1
      %s1886 = scalar_select %p1885, %s21, 1
      %s1887 = smul.addr %s1886, 8
      %s1888 = scalar_lea.vmem %s8, %s1887
      %p1889 = scmp.lt.s32.totalorder %s21, 1
      %s1890 = scalar_select %p1889, %s21, 1
      %s1891 = smul.addr %s1890, 8
      %s1892 = scalar_lea.vmem %s9, %s1891
      // Predicated region
      $region49: #{a_call__.6} parent=47 // pred_check
        %p1893 = pneg %p191
      $region50: #{a_call__.6} parent=47 // pred_check_branch
        %1895 = sbr.rel (%p1893) target = $region52
      $region51: #{a_call__.6} parent=47 // pred_region
        _
      $region52: #{a_call__.6} parent=47 // pred_fallthru
        _
      // Predicated region
      $region53: #{a_call__.6} parent=47 // pred_check
        %p1896 = pneg %p217
      $region54: #{a_call__.6} parent=47 // pred_check_branch
        %1898 = sbr.rel (%p1896) target = $region56
      $region55: #{a_call__.6} parent=47 // pred_region
        _
      $region56: #{a_call__.6} parent=47 // pred_fallthru
        _
      // Predicated region
      $region57: #{a_call__.6} parent=47 // pred_check
        %p1899 = pneg %p243
      $region58: #{a_call__.6} parent=47 // pred_check_branch
        %1901 = sbr.rel (%p1899) target = $region60
      $region59: #{a_call__.6} parent=47 // pred_region
        _
      $region60: #{a_call__.6} parent=47 // pred_fallthru
        _
    $region48: #{a_call__.6} parent=5 // pred_fallthru
      _
    %p1902 = scmp.le.s32.totalorder 2, %s16
    // Predicated region
    $region61: #{a_call__.6} parent=5 // pred_check
      %p1903 = pneg %p1902
    $region62: #{a_call__.6} parent=5 // pred_check_branch
      %1905 = sbr.rel (%p1903) target = $region64
    $region63: #{a_call__.6} parent=5 // pred_region
      %s1906 = ssub.s32 %s16, 2
      // Predicated region
      $region65: #{a_call__.6} parent=63 // pred_check
        %p1907 = pneg %p197
      $region66: #{a_call__.6} parent=63 // pred_check_branch
        %1909 = sbr.rel (%p1907) target = $region68
      $region67: #{a_call__.6} parent=63 // pred_region
        %p1910 = scmp.lt.s32.totalorder %s22, 1
        %s1911 = scalar_select %p1910, %s22, 1
        %s1912 = smul.addr %s1911, 3
        %s1913 = smul.addr %s1912, 8
        %s1914 = scalar_lea.vmem %s7, %s1913
      $region68: #{a_call__.6} parent=63 // pred_fallthru
        _
      // Predicated region
      $region69: #{a_call__.6} parent=63 // pred_check
        %p1915 = pneg %p223
      $region70: #{a_call__.6} parent=63 // pred_check_branch
        %1917 = sbr.rel (%p1915) target = $region72
      $region71: #{a_call__.6} parent=63 // pred_region
        %p1918 = scmp.lt.s32.totalorder %s22, 1
        %s1919 = scalar_select %p1918, %s22, 1
        %s1920 = smul.addr %s1919, 8
        %s1921 = scalar_lea.vmem %s8, %s1920
      $region72: #{a_call__.6} parent=63 // pred_fallthru
        _
      // Predicated region
      $region73: #{a_call__.6} parent=63 // pred_check
        %p1922 = pneg %p249
      $region74: #{a_call__.6} parent=63 // pred_check_branch
        %1924 = sbr.rel (%p1922) target = $region76
      $region75: #{a_call__.6} parent=63 // pred_region
        %p1925 = scmp.lt.s32.totalorder %s22, 1
        %s1926 = scalar_select %p1925, %s22, 1
        %s1927 = smul.addr %s1926, 8
        %s1928 = scalar_lea.vmem %s9, %s1927
      $region76: #{a_call__.6} parent=63 // pred_fallthru
        _
    $region64: #{a_call__.6} parent=5 // pred_fallthru
      _
  $region6: #{a_call__.6} parent=0 // loop_footer
    %s20 = sadd.s32 1, %s16
  $region7: #{a_call__.6} parent=0 // loop_footer_branch
    %15 = sbr.rel target = $region3
  $region8: #{a_call__.6} parent=0 // loop_exit
    _

</llo_original>
